<compile_context>
chip_gen: v6e
topology: v6e:2x2x1
jax: 0.10.0
libtpu: 0.0.40
codegen_flags: <defaults>
</compile_context>

<pallas_src>
import functools

import numpy as np
import jax
import jax.numpy as jnp
from jax.experimental import pallas as pl
from jax.experimental.pallas import tpu as pltpu

LN_EPS = 1e-5  # PyTorch nn.LayerNorm default


def _layernorm(v, w, b):
    """LayerNorm over the last dim; biased variance (matches PyTorch)."""
    mu = jnp.mean(v, axis=-1, keepdims=True)
    var = jnp.mean((v - mu) ** 2, axis=-1, keepdims=True)
    return (v - mu) * jax.lax.rsqrt(var + LN_EPS) * w + b


def _head_layernorm(v, seg, seg_t, gamma, beta, head_dim):
    """Per-head LayerNorm over a (rows, D = H*Dh) slab, fully lane-dense.

    Per-head mean / mean-of-squares via two MXU matmuls against the (D, H)
    head-indicator matrix, broadcast back with the (H, D) transpose, then a
    single elementwise normalize of the whole slab (no 16-lane slice reductions).
    gamma/beta are pre-tiled to (1, D) host-side (scale already folded for q).
    """
    inv_dh = jnp.float32(1.0 / head_dim)
    mu_h = jnp.dot(v, seg, preferred_element_type=jnp.float32) * inv_dh       # (R, H)
    ms_h = jnp.dot(v * v, seg, preferred_element_type=jnp.float32) * inv_dh   # (R, H)
    var_h = jnp.maximum(ms_h - mu_h * mu_h, 0.0)
    inv_h = jax.lax.rsqrt(var_h + LN_EPS)
    mu = jnp.dot(mu_h, seg_t, preferred_element_type=jnp.float32)             # (R, D)
    inv = jnp.dot(inv_h, seg_t, preferred_element_type=jnp.float32)           # (R, D)
    return (v - mu) * inv * gamma + beta


def encoder_block_kernel(x_ref, kv_ref,
                         n1w_ref, n1b_ref,
                         wq_ref, bq_ref,
                         wkv_ref, bkv_ref,
                         seg_ref, segt_ref,
                         qnw_ref, qnb_ref, knw_ref, knb_ref,
                         wp_ref, bp_ref,
                         n2w_ref, n2b_ref,
                         w1_ref, b1_ref, w2_ref, b2_ref,
                         out_ref,
                         attn_s, kv_s,
                         *, num_heads, bt, tq, nkv, matmul_dtype, exact_gelu):
    md = matmul_dtype
    x = x_ref[...].astype(jnp.float32)          # (bt*tq, D) query-token slab
    D = x.shape[-1]
    Dh = D // num_heads

    # ---- K/V projection + per-head k-LayerNorm: once per batch group -------------
    # The query-tile axis (j) is innermost/"arbitrary", so the cached scratch is
    # valid for every j step of the current batch group.
    @pl.when(pl.program_id(1) == 0)
    def _():
        kvs = kv_ref[...].astype(jnp.float32)   # (bt*Nkv, D)
        kvp = jnp.dot(kvs.astype(md), wkv_ref[...],
                      preferred_element_type=jnp.float32) + bkv_ref[...]
        kn = _head_layernorm(kvp[:, :D], seg_ref[...], segt_ref[...],
                             knw_ref[...], knb_ref[...], Dh)
        kv_s[0] = kn.astype(md)
        kv_s[1] = kvp[:, D:].astype(md)

    # ---- norm1 + Q projection + per-head q-LayerNorm (1/sqrt(Dh) pre-folded) ------
    n1 = _layernorm(x, n1w_ref[...], n1b_ref[...])
    q = jnp.dot(n1.astype(md), wq_ref[...],
                preferred_element_type=jnp.float32) + bq_ref[...]
    qn = _head_layernorm(q, seg_ref[...], segt_ref[...],
                         qnw_ref[...], qnb_ref[...], Dh).astype(md)

    kn_all = kv_s[0]                            # (bt*Nkv, D), matmul dtype
    v_all = kv_s[1]

    # ---- attention: batch outer, heads inner; head outputs written straight into
    # the matmul-dtype scratch slab (no concatenate; attn_s fully overwritten each
    # step, so no zero-init is needed).
    # TODO(synk): at production Nq/H, batch the H small K=Dh matmuls per batch into
    # one head-batched dot_general / fori_loop(unroll=True) — skipped here because
    # the (N, H*Dh)->(H, N, Dh) relayout is not worth the lowering risk at Dh=16.
    for b in range(bt):
        qb = qn[b * tq:(b + 1) * tq]
        kb = kn_all[b * nkv:(b + 1) * nkv]
        vb = v_all[b * nkv:(b + 1) * nkv]
        for h in range(num_heads):
            sl = slice(h * Dh, (h + 1) * Dh)
            s = jax.lax.dot_general(
                qb[:, sl], kb[:, sl],
                dimension_numbers=(((1,), (1,)), ((), ())),
                preferred_element_type=jnp.float32)              # (tq, Nkv)
            s = s - jnp.max(s, axis=-1, keepdims=True)
            p = jnp.exp(s)
            den = jnp.sum(p, axis=-1, keepdims=True)
            r = pl.reciprocal(den, approx=True)
            r = r * (2.0 - den * r)        # one Newton step -> near-exact softmax rows
            p = (p * r).astype(md)
            attn_s[b * tq:(b + 1) * tq, sl] = jnp.dot(
                p, vb[:, sl], preferred_element_type=jnp.float32).astype(md)

    # ---- output projection + residual ---------------------------------------------
    attn = jnp.dot(attn_s[...], wp_ref[...],
                   preferred_element_type=jnp.float32) + bp_ref[...]
    x1 = x + attn

    # ---- norm2 + MLP + residual -----------------------------------------------------
    n2 = _layernorm(x1, n2w_ref[...], n2b_ref[...])
    h1 = jnp.dot(n2.astype(md), w1_ref[...],
                 preferred_element_type=jnp.float32) + b1_ref[...]
    if exact_gelu:
        # exact GELU (PyTorch nn.GELU default, approximate='none'), f32
        h1 = 0.5 * h1 * (1.0 + jax.lax.erf(h1 * jnp.float32(0.7071067811865476)))
    else:
        # tanh-approximate GELU: transcendental goes to the EUP slot (v6e/v7x)
        c = jnp.float32(0.7978845608028654)       # sqrt(2/pi)
        h1 = 0.5 * h1 * (1.0 + jnp.tanh(c * (h1 + 0.044715 * h1 * h1 * h1)))
    mlp = jnp.dot(h1.astype(md), w2_ref[...],
                  preferred_element_type=jnp.float32) + b2_ref[...]

    out_ref[...] = (x1 + mlp).astype(out_ref.dtype)


def _estimate_vmem_bytes(bt, tq, nkv, d, hd, md_bytes, io_bytes, buffered_weights):
    """Rough per-step VMEM footprint: pipelined I/O slabs + weights + scratch + temps."""
    rq, rk = bt * tq, bt * nkv
    io = 2 * rq * d * io_bytes          # x slab (double-buffered)
    io += 2 * rk * d * io_bytes         # kv slab
    io += 2 * rq * d * io_bytes         # out slab
    wmul = 1 if buffered_weights else 2
    weights = (4 * d * d + 2 * d * hd) * md_bytes * wmul   # wq, wkv(2DD), wp, fc1, fc2
    weights += (14 * d + 2 * hd) * 4 * wmul                # biases / norms / seg
    scratch = (rq * d + 2 * rk * d) * md_bytes             # attn out + cached kn/v
    temps = rq * (4 * d + hd) * 4 + rk * 2 * d * 4         # f32 intermediates
    return io + weights + scratch + temps


def encoder_block(x, kv, params, num_heads, *,
                  matmul_dtype=jnp.bfloat16, batch_tile=8, token_tile=512,
                  gelu_approximate=False):
    B, Nq, D = x.shape
    _, Nkv, _ = kv.shape
    H = num_heads
    Dh = D // H
    Hd = params["w1"].shape[1]
    md = matmul_dtype
    md_bytes = np.dtype(md).itemsize
    io_bytes = np.dtype(x.dtype).itemsize

    # ---- tile selection -------------------------------------------------------------
    VMEM_BUDGET = 40 * 1024 * 1024   # conservative: leaves headroom on v7x (64 MiB)

    def divisors(n):
        return [d for d in range(1, n + 1) if n % d == 0]

    # token tile: largest sublane-aligned divisor of Nq under token_tile (or full Nq)
    tq_opts = [d for d in divisors(Nq) if d % 8 == 0 or d == Nq]
    in_budget = [d for d in tq_opts if d <= token_tile]
    tq = max(in_budget) if in_budget else min(tq_opts)

    if tq < Nq:
        bt = 1   # query tiles of different batches are not contiguous in the 2-D slab
    else:
        bt_opts = [d for d in divisors(B) if d <= batch_tile]
        if B >= 2:  # keep >=2 grid steps so both v7x TensorCores get work
            bt_opts = [d for d in bt_opts if B // d >= 2] or [1]
        bt = max(bt_opts)

    def fits(bt_, tq_):
        return _estimate_vmem_bytes(bt_, tq_, Nkv, D, Hd, md_bytes, io_bytes,
                                    True) <= VMEM_BUDGET

    while not fits(bt, tq):
        if bt > 1:
            bt = max(d for d in divisors(B) if d < bt)
        else:
            smaller = [d for d in tq_opts if d < tq]
            if not smaller:
                break
            tq = max(smaller)

    # (8,128) guard on the row dimension of the folded slabs; fall back to one full slab.
    def rows_ok(r, total):
        return (r % 8 == 0) or (r == total)
    if not (rows_ok(bt * tq, B * Nq) and rows_ok(bt * Nkv, B * Nkv)):
        bt, tq = B, Nq

    nb, ntq = B // bt, Nq // tq
    scale = 1.0 / float(Dh) ** 0.5

    # ---- host-side (free) weight prep -------------------------------------------------
    wq = params["wq"].astype(md)
    wkv = jnp.concatenate([params["wk"], params["wv"]], axis=1).astype(md)
    bkv = jnp.concatenate([params["bk"], params["bv"]], axis=1)
    wp = params["wp"].astype(md)
    w1 = params["w1"].astype(md)
    w2 = params["w2"].astype(md)
    # attention scale folded into q-norm affine; per-head gamma/beta tiled to (1, D)
    qnw = jnp.tile(params["qnw"] * scale, (1, H))
    qnb = jnp.tile(params["qnb"] * scale, (1, H))
    knw = jnp.tile(params["knw"], (1, H))
    knb = jnp.tile(params["knb"], (1, H))
    # head block-indicator matrices for the segmented (per-head) LayerNorm
    head_id = jnp.arange(D, dtype=jnp.int32) // Dh
    seg = (head_id[:, None] == jnp.arange(H, dtype=jnp.int32)[None, :]).astype(jnp.float32)
    seg_t = seg.T

    # fold batch into the token axis (free HBM reshape) -> lane/sublane-dense slabs
    x2 = x.reshape(B * Nq, D)
    kv2 = kv.reshape(B * Nkv, D)

    vmem_limit = int(min(64 * 1024 * 1024,
                         max(32 * 1024 * 1024,
                             1.5 * _estimate_vmem_bytes(bt, tq, Nkv, D, Hd,
                                                        md_bytes, io_bytes, True))))

    kernel = functools.partial(encoder_block_kernel, num_heads=H, bt=bt, tq=tq,
                               nkv=Nkv, matmul_dtype=md,
                               exact_gelu=not gelu_approximate)

    def build(buffered_weights):
        def rep(shape):
            # Replicated weight/bias block: constant index_map (fetched once).
            # Buffered(1) drops the never-used second pipeline buffer (VMEM economy).
            n = len(shape)
            if buffered_weights:
                return pl.BlockSpec(shape, lambda i, j, _n=n: (0,) * _n,
                                    pipeline_mode=pl.Buffered(1))
            return pl.BlockSpec(shape, lambda i, j, _n=n: (0,) * _n)

        in_specs = [
            pl.BlockSpec((bt * tq, D), lambda i, j: (i * ntq + j, 0)),   # x slab
            pl.BlockSpec((bt * Nkv, D), lambda i, j: (i, 0)),            # kv slab
            rep((1, D)), rep((1, D)),              # norm1 gamma/beta
            rep((D, D)), rep((1, D)),              # q proj W, b
            rep((D, 2 * D)), rep((1, 2 * D)),      # fused k|v proj W, b
            rep((D, H)), rep((H, D)),              # head indicator / transpose
            rep((1, D)), rep((1, D)),              # q_norm gamma/beta (scaled, tiled)
            rep((1, D)), rep((1, D)),              # k_norm gamma/beta (tiled)
            rep((D, D)), rep((1, D)),              # out proj W, b
            rep((1, D)), rep((1, D)),              # norm2 gamma/beta
            rep((D, Hd)), rep((1, Hd)),            # mlp fc1 W, b
            rep((Hd, D)), rep((1, D)),             # mlp fc2 W, b
        ]
        return pl.pallas_call(
            kernel,
            out_shape=jax.ShapeDtypeStruct((B * Nq, D), x.dtype),
            grid=(nb, ntq),
            in_specs=in_specs,
            out_specs=pl.BlockSpec((bt * tq, D), lambda i, j: (i * ntq + j, 0)),
            scratch_shapes=[pltpu.VMEM((bt * tq, D), md),        # attention output
                            pltpu.VMEM((2, bt * Nkv, D), md)],   # cached kn / v
            compiler_params=pltpu.CompilerParams(
                dimension_semantics=("parallel", "arbitrary"),
                vmem_limit_bytes=vmem_limit),
        )

    args = (x2, kv2,
            params["n1w"], params["n1b"],
            wq, params["bq"], wkv, bkv,
            seg, seg_t,
            qnw, qnb, knw, knb,
            wp, params["bp"],
            params["n2w"], params["n2b"],
            w1, params["b1"], w2, params["b2"])

    try:
        out2 = build(True)(*args)
    except Exception:   # pl.Buffered(1) unsupported on this jax build -> safe fallback
        out2 = build(False)(*args)

    return out2.reshape(B, Nq, D)


def reference(x, kv, p, num_heads):
    """Pure-JAX reference mirroring the PyTorch forward exactly (all f32)."""
    def ln(v, w, b):
        mu = v.mean(-1, keepdims=True)
        var = ((v - mu) ** 2).mean(-1, keepdims=True)
        return (v - mu) / jnp.sqrt(var + LN_EPS) * w + b

    B, Nq, D = x.shape
    Nkv = kv.shape[1]
    Dh = D // num_heads

    n1 = ln(x, p["n1w"][0], p["n1b"][0])
    q = n1 @ p["wq"] + p["bq"][0]
    k = kv @ p["wk"] + p["bk"][0]
    v = kv @ p["wv"] + p["bv"][0]
    q = q.reshape(B, Nq, num_heads, Dh).transpose(0, 2, 1, 3)
    k = k.reshape(B, Nkv, num_heads, Dh).transpose(0, 2, 1, 3)
    v = v.reshape(B, Nkv, num_heads, Dh).transpose(0, 2, 1, 3)
    q = ln(q, p["qnw"][0], p["qnb"][0])
    k = ln(k, p["knw"][0], p["knb"][0])
    s = jnp.einsum("bhqd,bhkd->bhqk", q, k) / jnp.sqrt(jnp.float32(Dh))
    a = jax.nn.softmax(s, axis=-1)
    o = jnp.einsum("bhqk,bhkd->bhqd", a, v).transpose(0, 2, 1, 3).reshape(B, Nq, D)
    o = o @ p["wp"] + p["bp"][0]
    x1 = x + o
    n2 = ln(x1, p["n2w"][0], p["n2b"][0])
    h = n2 @ p["w1"] + p["b1"][0]
    h = 0.5 * h * (1.0 + jax.lax.erf(h / jnp.sqrt(jnp.float32(2.0))))
    return x1 + h @ p["w2"] + p["b2"][0]


def make_params(key, dim, num_heads, mlp_ratio=4.0):
    Dh = dim // num_heads
    Hd = int(dim * mlp_ratio)
    keys = jax.random.split(key, 16)
    std = 0.05
    p = {
        "n1w": 1.0 + std * jax.random.normal(keys[0], (1, dim), jnp.float32),
        "n1b": std * jax.random.normal(keys[1], (1, dim), jnp.float32),
        "n2w": 1.0 + std * jax.random.normal(keys[2], (1, dim), jnp.float32),
        "n2b": std * jax.random.normal(keys[3], (1, dim), jnp.float32),
        "qnw": 1.0 + std * jax.random.normal(keys[4], (1, Dh), jnp.float32),
        "qnb": std * jax.random.normal(keys[5], (1, Dh), jnp.float32),
        "knw": 1.0 + std * jax.random.normal(keys[6], (1, Dh), jnp.float32),
        "knb": std * jax.random.normal(keys[7], (1, Dh), jnp.float32),
        "wq": std * jax.random.normal(keys[8], (dim, dim), jnp.float32),
        "bq": std * jax.random.normal(keys[9], (1, dim), jnp.float32),
        "wk": std * jax.random.normal(keys[10], (dim, dim), jnp.float32),
        "bk": std * jax.random.normal(keys[11], (1, dim), jnp.float32),
        "wv": std * jax.random.normal(keys[12], (dim, dim), jnp.float32),
        "bv": std * jax.random.normal(keys[13], (1, dim), jnp.float32),
        "wp": std * jax.random.normal(keys[14], (dim, dim), jnp.float32),
        "bp": std * jax.random.normal(keys[15], (1, dim), jnp.float32),
    }
    k2 = jax.random.split(keys[0], 4)
    p["w1"] = std * jax.random.normal(k2[0], (dim, Hd), jnp.float32)
    p["b1"] = std * jax.random.normal(k2[1], (1, Hd), jnp.float32)
    p["w2"] = std * jax.random.normal(k2[2], (Hd, dim), jnp.float32)
    p["b2"] = std * jax.random.normal(k2[3], (1, dim), jnp.float32)
    return p


if __name__ == "__main__":
    B, Nq, Nkv, dim, num_heads = 2, 16, 8, 64, 4

    key = jax.random.PRNGKey(0)
    kx, kkv, kp = jax.random.split(key, 3)
    x = jax.random.normal(kx, (B, Nq, dim), jnp.float32)
    kv = jax.random.normal(kkv, (B, Nkv, dim), jnp.float32)
    params = make_params(kp, dim, num_heads)

    ref = reference(x, kv, params, num_heads)

    # f32-matmul path, exact GELU: tight check against the PyTorch-equivalent
    # reference (Newton-refined softmax reciprocal keeps this well within 2e-3).
    out_f32 = jax.block_until_ready(
        encoder_block(x, kv, params, num_heads, matmul_dtype=jnp.float32))
    assert out_f32.shape == (B, Nq, dim)
    err_f32 = float(jnp.max(jnp.abs(out_f32 - ref)))
    assert jnp.allclose(out_f32, ref, atol=2e-3, rtol=2e-3), err_f32

    # bf16-matmul path (default; MXU-friendly), f32 accumulation, tanh GELU (EUP).
    out_bf16 = jax.block_until_ready(
        encoder_block(x, kv, params, num_heads, matmul_dtype=jnp.bfloat16,
                      gelu_approximate=True))
    assert out_bf16.shape == (B, Nq, dim)
    err_bf16 = float(jnp.max(jnp.abs(out_bf16 - ref)))
    assert jnp.allclose(out_bf16, ref, atol=6e-2, rtol=6e-2), err_bf16

    print("KERNEL_OK")
</pallas_src>

<mosaic_0001>
module attributes {stable_mosaic.version = 11 : i64} {
  func.func @encoder_block_kernel(%arg0: i32, %arg1: i32, %arg2: memref<16x64xf32, #tpu.memory_space<vmem>>, %arg3: memref<8x64xf32, #tpu.memory_space<vmem>>, %arg4: memref<1x64xf32, #tpu.memory_space<vmem>>, %arg5: memref<1x64xf32, #tpu.memory_space<vmem>>, %arg6: memref<64x64xf32, #tpu.memory_space<vmem>>, %arg7: memref<1x64xf32, #tpu.memory_space<vmem>>, %arg8: memref<64x128xf32, #tpu.memory_space<vmem>>, %arg9: memref<1x128xf32, #tpu.memory_space<vmem>>, %arg10: memref<64x4xf32, #tpu.memory_space<vmem>>, %arg11: memref<4x64xf32, #tpu.memory_space<vmem>>, %arg12: memref<1x64xf32, #tpu.memory_space<vmem>>, %arg13: memref<1x64xf32, #tpu.memory_space<vmem>>, %arg14: memref<1x64xf32, #tpu.memory_space<vmem>>, %arg15: memref<1x64xf32, #tpu.memory_space<vmem>>, %arg16: memref<64x64xf32, #tpu.memory_space<vmem>>, %arg17: memref<1x64xf32, #tpu.memory_space<vmem>>, %arg18: memref<1x64xf32, #tpu.memory_space<vmem>>, %arg19: memref<1x64xf32, #tpu.memory_space<vmem>>, %arg20: memref<64x256xf32, #tpu.memory_space<vmem>>, %arg21: memref<1x256xf32, #tpu.memory_space<vmem>>, %arg22: memref<256x64xf32, #tpu.memory_space<vmem>>, %arg23: memref<1x64xf32, #tpu.memory_space<vmem>>, %arg24: memref<16x64xf32, #tpu.memory_space<vmem>>, %arg25: memref<16x64xf32, #tpu.memory_space<vmem>>, %arg26: memref<2x8x64xf32, #tpu.memory_space<vmem>>) attributes {dimension_semantics = [#tpu.dimension_semantics<parallel>, #tpu.dimension_semantics<arbitrary>], iteration_bounds = array<i64: 2, 1>, scalar_prefetch = 0 : i64, scratch_operands = 2 : i64, tpu.core_type = #tpu.core_type<tc>, window_params = [{transform_indices = @transform_0, window_bounds = array<i64: 16, 64>}, {transform_indices = @transform_1, window_bounds = array<i64: 8, 64>}, {pipeline_mode = #tpu.pipeline_mode<synchronous>, transform_indices = @transform_2, window_bounds = array<i64: 1, 64>}, {pipeline_mode = #tpu.pipeline_mode<synchronous>, transform_indices = @transform_3, window_bounds = array<i64: 1, 64>}, {pipeline_mode = #tpu.pipeline_mode<synchronous>, transform_indices = @transform_4, window_bounds = array<i64: 64, 64>}, {pipeline_mode = #tpu.pipeline_mode<synchronous>, transform_indices = @transform_5, window_bounds = array<i64: 1, 64>}, {pipeline_mode = #tpu.pipeline_mode<synchronous>, transform_indices = @transform_6, window_bounds = array<i64: 64, 128>}, {pipeline_mode = #tpu.pipeline_mode<synchronous>, transform_indices = @transform_7, window_bounds = array<i64: 1, 128>}, {pipeline_mode = #tpu.pipeline_mode<synchronous>, transform_indices = @transform_8, window_bounds = array<i64: 64, 4>}, {pipeline_mode = #tpu.pipeline_mode<synchronous>, transform_indices = @transform_9, window_bounds = array<i64: 4, 64>}, {pipeline_mode = #tpu.pipeline_mode<synchronous>, transform_indices = @transform_10, window_bounds = array<i64: 1, 64>}, {pipeline_mode = #tpu.pipeline_mode<synchronous>, transform_indices = @transform_11, window_bounds = array<i64: 1, 64>}, {pipeline_mode = #tpu.pipeline_mode<synchronous>, transform_indices = @transform_12, window_bounds = array<i64: 1, 64>}, {pipeline_mode = #tpu.pipeline_mode<synchronous>, transform_indices = @transform_13, window_bounds = array<i64: 1, 64>}, {pipeline_mode = #tpu.pipeline_mode<synchronous>, transform_indices = @transform_14, window_bounds = array<i64: 64, 64>}, {pipeline_mode = #tpu.pipeline_mode<synchronous>, transform_indices = @transform_15, window_bounds = array<i64: 1, 64>}, {pipeline_mode = #tpu.pipeline_mode<synchronous>, transform_indices = @transform_16, window_bounds = array<i64: 1, 64>}, {pipeline_mode = #tpu.pipeline_mode<synchronous>, transform_indices = @transform_17, window_bounds = array<i64: 1, 64>}, {pipeline_mode = #tpu.pipeline_mode<synchronous>, transform_indices = @transform_18, window_bounds = array<i64: 64, 256>}, {pipeline_mode = #tpu.pipeline_mode<synchronous>, transform_indices = @transform_19, window_bounds = array<i64: 1, 256>}, {pipeline_mode = #tpu.pipeline_mode<synchronous>, transform_indices = @transform_20, window_bounds = array<i64: 256, 64>}, {pipeline_mode = #tpu.pipeline_mode<synchronous>, transform_indices = @transform_21, window_bounds = array<i64: 1, 64>}, {transform_indices = @transform_22, window_bounds = array<i64: 16, 64>}]} {
    %c0 = arith.constant 0 : index
    %c0_0 = arith.constant 0 : index
    %0 = vector.load %arg2[%c0, %c0_0] : memref<16x64xf32, #tpu.memory_space<vmem>>, vector<16x64xf32>
    %c0_i32 = arith.constant 0 : i32
    %1 = arith.cmpi eq, %arg1, %c0_i32 : i32
    %2 = arith.extui %1 : i1 to i32
    %c0_i32_1 = arith.constant 0 : i32
    %3 = arith.cmpi ne, %2, %c0_i32_1 : i32
    scf.if %3 {
      %c0_92 = arith.constant 0 : index
      %c0_93 = arith.constant 0 : index
      %194 = vector.load %arg3[%c0_92, %c0_93] : memref<8x64xf32, #tpu.memory_space<vmem>>, vector<8x64xf32>
      %c0_94 = arith.constant 0 : index
      %c0_95 = arith.constant 0 : index
      %195 = vector.load %arg8[%c0_94, %c0_95] : memref<64x128xf32, #tpu.memory_space<vmem>>, vector<64x128xf32>
      %cst_96 = arith.constant dense<0.000000e+00> : vector<8x128xf32>
      %196 = tpu.matmul %194, %195, %cst_96 {dimension_numbers = #tpu.dot_dimension_numbers<[1], [0], [0], [1], [0, 0, 1, 1], [], []>} : vector<8x64xf32>, vector<64x128xf32>, vector<8x128xf32> -> vector<8x128xf32>
      %c0_97 = arith.constant 0 : index
      %c0_98 = arith.constant 0 : index
      %197 = vector.load %arg9[%c0_97, %c0_98] : memref<1x128xf32, #tpu.memory_space<vmem>>, vector<1x128xf32>
      %198 = vector.broadcast %197 : vector<1x128xf32> to vector<8x128xf32>
      %199 = arith.addf %196, %198 : vector<8x128xf32>
      %200 = vector.extract_strided_slice %199 {offsets = [0, 0], sizes = [8, 64], strides = [1, 1]} : vector<8x128xf32> to vector<8x64xf32>
      %c0_99 = arith.constant 0 : index
      %c0_100 = arith.constant 0 : index
      %201 = vector.load %arg10[%c0_99, %c0_100] : memref<64x4xf32, #tpu.memory_space<vmem>>, vector<64x4xf32>
      %c0_101 = arith.constant 0 : index
      %c0_102 = arith.constant 0 : index
      %202 = vector.load %arg11[%c0_101, %c0_102] : memref<4x64xf32, #tpu.memory_space<vmem>>, vector<4x64xf32>
      %c0_103 = arith.constant 0 : index
      %c0_104 = arith.constant 0 : index
      %203 = vector.load %arg14[%c0_103, %c0_104] : memref<1x64xf32, #tpu.memory_space<vmem>>, vector<1x64xf32>
      %c0_105 = arith.constant 0 : index
      %c0_106 = arith.constant 0 : index
      %204 = vector.load %arg15[%c0_105, %c0_106] : memref<1x64xf32, #tpu.memory_space<vmem>>, vector<1x64xf32>
      %cst_107 = arith.constant dense<0.000000e+00> : vector<8x4xf32>
      %205 = tpu.matmul %200, %201, %cst_107 {dimension_numbers = #tpu.dot_dimension_numbers<[1], [0], [0], [1], [0, 0, 1, 1], [], []>} : vector<8x64xf32>, vector<64x4xf32>, vector<8x4xf32> -> vector<8x4xf32>
      %cst_108 = arith.constant 6.250000e-02 : f32
      %206 = vector.broadcast %cst_108 : f32 to vector<8x4xf32>
      %207 = arith.mulf %205, %206 : vector<8x4xf32>
      %208 = arith.mulf %200, %200 : vector<8x64xf32>
      %cst_109 = arith.constant dense<0.000000e+00> : vector<8x4xf32>
      %209 = tpu.matmul %208, %201, %cst_109 {dimension_numbers = #tpu.dot_dimension_numbers<[1], [0], [0], [1], [0, 0, 1, 1], [], []>} : vector<8x64xf32>, vector<64x4xf32>, vector<8x4xf32> -> vector<8x4xf32>
      %cst_110 = arith.constant 6.250000e-02 : f32
      %210 = vector.broadcast %cst_110 : f32 to vector<8x4xf32>
      %211 = arith.mulf %209, %210 : vector<8x4xf32>
      %212 = arith.mulf %207, %207 : vector<8x4xf32>
      %213 = arith.subf %211, %212 : vector<8x4xf32>
      %cst_111 = arith.constant 0.000000e+00 : f32
      %214 = vector.broadcast %cst_111 : f32 to vector<8x4xf32>
      %215 = arith.maximumf %213, %214 : vector<8x4xf32>
      %cst_112 = arith.constant 9.99999974E-6 : f32
      %216 = vector.broadcast %cst_112 : f32 to vector<8x4xf32>
      %217 = arith.addf %215, %216 : vector<8x4xf32>
      %218 = math.rsqrt %217 : vector<8x4xf32>
      %cst_113 = arith.constant dense<0.000000e+00> : vector<8x64xf32>
      %219 = tpu.matmul %207, %202, %cst_113 {dimension_numbers = #tpu.dot_dimension_numbers<[1], [0], [0], [1], [0, 0, 1, 1], [], []>} : vector<8x4xf32>, vector<4x64xf32>, vector<8x64xf32> -> vector<8x64xf32>
      %cst_114 = arith.constant dense<0.000000e+00> : vector<8x64xf32>
      %220 = tpu.matmul %218, %202, %cst_114 {dimension_numbers = #tpu.dot_dimension_numbers<[1], [0], [0], [1], [0, 0, 1, 1], [], []>} : vector<8x4xf32>, vector<4x64xf32>, vector<8x64xf32> -> vector<8x64xf32>
      %221 = arith.subf %200, %219 : vector<8x64xf32>
      %222 = arith.mulf %221, %220 : vector<8x64xf32>
      %223 = vector.broadcast %203 : vector<1x64xf32> to vector<8x64xf32>
      %224 = arith.mulf %222, %223 : vector<8x64xf32>
      %225 = vector.broadcast %204 : vector<1x64xf32> to vector<8x64xf32>
      %226 = arith.addf %224, %225 : vector<8x64xf32>
      %c0_115 = arith.constant 0 : index
      %c0_116 = arith.constant 0 : index
      %c0_117 = arith.constant 0 : index
      %227 = vector.load %arg26[%c0_115, %c0_116, %c0_117] : memref<2x8x64xf32, #tpu.memory_space<vmem>>, vector<1x8x64xf32>
      %228 = vector.shape_cast %227 : vector<1x8x64xf32> to vector<8x64xf32>
      %229 = vector.shape_cast %226 : vector<8x64xf32> to vector<1x8x64xf32>
      tpu.vector_store %arg26[%c0_115, %c0_116, %c0_117], %229 {strides = array<i32>} : memref<2x8x64xf32, #tpu.memory_space<vmem>>, vector<1x8x64xf32>,
      %230 = vector.extract_strided_slice %199 {offsets = [0, 64], sizes = [8, 64], strides = [1, 1]} : vector<8x128xf32> to vector<8x64xf32>
      %c1_118 = arith.constant 1 : index
      %c0_119 = arith.constant 0 : index
      %c0_120 = arith.constant 0 : index
      %231 = vector.load %arg26[%c1_118, %c0_119, %c0_120] : memref<2x8x64xf32, #tpu.memory_space<vmem>>, vector<1x8x64xf32>
      %232 = vector.shape_cast %231 : vector<1x8x64xf32> to vector<8x64xf32>
      %233 = vector.shape_cast %230 : vector<8x64xf32> to vector<1x8x64xf32>
      tpu.vector_store %arg26[%c1_118, %c0_119, %c0_120], %233 {strides = array<i32>} : memref<2x8x64xf32, #tpu.memory_space<vmem>>, vector<1x8x64xf32>,
    } else {
    }
    %c0_2 = arith.constant 0 : index
    %c0_3 = arith.constant 0 : index
    %4 = vector.load %arg4[%c0_2, %c0_3] : memref<1x64xf32, #tpu.memory_space<vmem>>, vector<1x64xf32>
    %c0_4 = arith.constant 0 : index
    %c0_5 = arith.constant 0 : index
    %5 = vector.load %arg5[%c0_4, %c0_5] : memref<1x64xf32, #tpu.memory_space<vmem>>, vector<1x64xf32>
    %cst = arith.constant dense<0.000000e+00> : vector<16xf32>
    %6 = vector.multi_reduction <add>, %0, %cst [1] : vector<16x64xf32> to vector<16xf32>
    %7 = vector.shape_cast %6 : vector<16xf32> to vector<16x1xf32>
    %cst_6 = arith.constant 6.400000e+01 : f32
    %8 = vector.broadcast %cst_6 : f32 to vector<16x1xf32>
    %9 = arith.divf %7, %8 : vector<16x1xf32>
    %10 = vector.broadcast %9 : vector<16x1xf32> to vector<16x64xf32>
    %11 = arith.subf %0, %10 : vector<16x64xf32>
    %12 = arith.mulf %11, %11 : vector<16x64xf32>
    %cst_7 = arith.constant dense<0.000000e+00> : vector<16xf32>
    %13 = vector.multi_reduction <add>, %12, %cst_7 [1] : vector<16x64xf32> to vector<16xf32>
    %14 = vector.shape_cast %13 : vector<16xf32> to vector<16x1xf32>
    %cst_8 = arith.constant 6.400000e+01 : f32
    %15 = vector.broadcast %cst_8 : f32 to vector<16x1xf32>
    %16 = arith.divf %14, %15 : vector<16x1xf32>
    %17 = vector.broadcast %9 : vector<16x1xf32> to vector<16x64xf32>
    %18 = arith.subf %0, %17 : vector<16x64xf32>
    %cst_9 = arith.constant 9.99999974E-6 : f32
    %19 = vector.broadcast %cst_9 : f32 to vector<16x1xf32>
    %20 = arith.addf %16, %19 : vector<16x1xf32>
    %21 = math.rsqrt %20 : vector<16x1xf32>
    %22 = vector.broadcast %21 : vector<16x1xf32> to vector<16x64xf32>
    %23 = arith.mulf %18, %22 : vector<16x64xf32>
    %24 = vector.broadcast %4 : vector<1x64xf32> to vector<16x64xf32>
    %25 = arith.mulf %23, %24 : vector<16x64xf32>
    %26 = vector.broadcast %5 : vector<1x64xf32> to vector<16x64xf32>
    %27 = arith.addf %25, %26 : vector<16x64xf32>
    %c0_10 = arith.constant 0 : index
    %c0_11 = arith.constant 0 : index
    %28 = vector.load %arg6[%c0_10, %c0_11] : memref<64x64xf32, #tpu.memory_space<vmem>>, vector<64x64xf32>
    %cst_12 = arith.constant dense<0.000000e+00> : vector<16x64xf32>
    %29 = tpu.matmul %27, %28, %cst_12 {dimension_numbers = #tpu.dot_dimension_numbers<[1], [0], [0], [1], [0, 0, 1, 1], [], []>} : vector<16x64xf32>, vector<64x64xf32>, vector<16x64xf32> -> vector<16x64xf32>
    %c0_13 = arith.constant 0 : index
    %c0_14 = arith.constant 0 : index
    %30 = vector.load %arg7[%c0_13, %c0_14] : memref<1x64xf32, #tpu.memory_space<vmem>>, vector<1x64xf32>
    %31 = vector.broadcast %30 : vector<1x64xf32> to vector<16x64xf32>
    %32 = arith.addf %29, %31 : vector<16x64xf32>
    %c0_15 = arith.constant 0 : index
    %c0_16 = arith.constant 0 : index
    %33 = vector.load %arg10[%c0_15, %c0_16] : memref<64x4xf32, #tpu.memory_space<vmem>>, vector<64x4xf32>
    %c0_17 = arith.constant 0 : index
    %c0_18 = arith.constant 0 : index
    %34 = vector.load %arg11[%c0_17, %c0_18] : memref<4x64xf32, #tpu.memory_space<vmem>>, vector<4x64xf32>
    %c0_19 = arith.constant 0 : index
    %c0_20 = arith.constant 0 : index
    %35 = vector.load %arg12[%c0_19, %c0_20] : memref<1x64xf32, #tpu.memory_space<vmem>>, vector<1x64xf32>
    %c0_21 = arith.constant 0 : index
    %c0_22 = arith.constant 0 : index
    %36 = vector.load %arg13[%c0_21, %c0_22] : memref<1x64xf32, #tpu.memory_space<vmem>>, vector<1x64xf32>
    %cst_23 = arith.constant dense<0.000000e+00> : vector<16x4xf32>
    %37 = tpu.matmul %32, %33, %cst_23 {dimension_numbers = #tpu.dot_dimension_numbers<[1], [0], [0], [1], [0, 0, 1, 1], [], []>} : vector<16x64xf32>, vector<64x4xf32>, vector<16x4xf32> -> vector<16x4xf32>
    %cst_24 = arith.constant 6.250000e-02 : f32
    %38 = vector.broadcast %cst_24 : f32 to vector<16x4xf32>
    %39 = arith.mulf %37, %38 : vector<16x4xf32>
    %40 = arith.mulf %32, %32 : vector<16x64xf32>
    %cst_25 = arith.constant dense<0.000000e+00> : vector<16x4xf32>
    %41 = tpu.matmul %40, %33, %cst_25 {dimension_numbers = #tpu.dot_dimension_numbers<[1], [0], [0], [1], [0, 0, 1, 1], [], []>} : vector<16x64xf32>, vector<64x4xf32>, vector<16x4xf32> -> vector<16x4xf32>
    %cst_26 = arith.constant 6.250000e-02 : f32
    %42 = vector.broadcast %cst_26 : f32 to vector<16x4xf32>
    %43 = arith.mulf %41, %42 : vector<16x4xf32>
    %44 = arith.mulf %39, %39 : vector<16x4xf32>
    %45 = arith.subf %43, %44 : vector<16x4xf32>
    %cst_27 = arith.constant 0.000000e+00 : f32
    %46 = vector.broadcast %cst_27 : f32 to vector<16x4xf32>
    %47 = arith.maximumf %45, %46 : vector<16x4xf32>
    %cst_28 = arith.constant 9.99999974E-6 : f32
    %48 = vector.broadcast %cst_28 : f32 to vector<16x4xf32>
    %49 = arith.addf %47, %48 : vector<16x4xf32>
    %50 = math.rsqrt %49 : vector<16x4xf32>
    %cst_29 = arith.constant dense<0.000000e+00> : vector<16x64xf32>
    %51 = tpu.matmul %39, %34, %cst_29 {dimension_numbers = #tpu.dot_dimension_numbers<[1], [0], [0], [1], [0, 0, 1, 1], [], []>} : vector<16x4xf32>, vector<4x64xf32>, vector<16x64xf32> -> vector<16x64xf32>
    %cst_30 = arith.constant dense<0.000000e+00> : vector<16x64xf32>
    %52 = tpu.matmul %50, %34, %cst_30 {dimension_numbers = #tpu.dot_dimension_numbers<[1], [0], [0], [1], [0, 0, 1, 1], [], []>} : vector<16x4xf32>, vector<4x64xf32>, vector<16x64xf32> -> vector<16x64xf32>
    %53 = arith.subf %32, %51 : vector<16x64xf32>
    %54 = arith.mulf %53, %52 : vector<16x64xf32>
    %55 = vector.broadcast %35 : vector<1x64xf32> to vector<16x64xf32>
    %56 = arith.mulf %54, %55 : vector<16x64xf32>
    %57 = vector.broadcast %36 : vector<1x64xf32> to vector<16x64xf32>
    %58 = arith.addf %56, %57 : vector<16x64xf32>
    %c0_31 = arith.constant 0 : index
    %c0_32 = arith.constant 0 : index
    %c0_33 = arith.constant 0 : index
    %59 = vector.load %arg26[%c0_31, %c0_32, %c0_33] : memref<2x8x64xf32, #tpu.memory_space<vmem>>, vector<1x8x64xf32>
    %60 = vector.shape_cast %59 : vector<1x8x64xf32> to vector<8x64xf32>
    %c1 = arith.constant 1 : index
    %c0_34 = arith.constant 0 : index
    %c0_35 = arith.constant 0 : index
    %61 = vector.load %arg26[%c1, %c0_34, %c0_35] : memref<2x8x64xf32, #tpu.memory_space<vmem>>, vector<1x8x64xf32>
    %62 = vector.shape_cast %61 : vector<1x8x64xf32> to vector<8x64xf32>
    %63 = vector.extract_strided_slice %58 {offsets = [0, 0], sizes = [16, 16], strides = [1, 1]} : vector<16x64xf32> to vector<16x16xf32>
    %64 = vector.extract_strided_slice %60 {offsets = [0, 0], sizes = [8, 16], strides = [1, 1]} : vector<8x64xf32> to vector<8x16xf32>
    %cst_36 = arith.constant dense<0.000000e+00> : vector<16x8xf32>
    %65 = tpu.matmul %63, %64, %cst_36 {dimension_numbers = #tpu.dot_dimension_numbers<[1], [1], [0], [0], [0, 0, 1, 0], [], []>} : vector<16x16xf32>, vector<8x16xf32>, vector<16x8xf32> -> vector<16x8xf32>
    %cst_37 = arith.constant dense<0xFF800000> : vector<16xf32>
    %66 = vector.multi_reduction <maximumf>, %65, %cst_37 [1] : vector<16x8xf32> to vector<16xf32>
    %67 = vector.shape_cast %66 : vector<16xf32> to vector<16x1xf32>
    %68 = vector.broadcast %67 : vector<16x1xf32> to vector<16x8xf32>
    %69 = arith.subf %65, %68 : vector<16x8xf32>
    %70 = math.exp %69 : vector<16x8xf32>
    %cst_38 = arith.constant dense<0.000000e+00> : vector<16xf32>
    %71 = vector.multi_reduction <add>, %70, %cst_38 [1] : vector<16x8xf32> to vector<16xf32>
    %72 = vector.shape_cast %71 : vector<16xf32> to vector<16x1xf32>
    %73 = tpu.reciprocal %72 {approx = true} : vector<16x1xf32> -> vector<16x1xf32>
    %74 = arith.mulf %72, %73 : vector<16x1xf32>
    %cst_39 = arith.constant 2.000000e+00 : f32
    %75 = vector.broadcast %cst_39 : f32 to vector<16x1xf32>
    %76 = arith.subf %75, %74 : vector<16x1xf32>
    %77 = arith.mulf %73, %76 : vector<16x1xf32>
    %78 = vector.broadcast %77 : vector<16x1xf32> to vector<16x8xf32>
    %79 = arith.mulf %70, %78 : vector<16x8xf32>
    %80 = vector.extract_strided_slice %62 {offsets = [0, 0], sizes = [8, 16], strides = [1, 1]} : vector<8x64xf32> to vector<8x16xf32>
    %cst_40 = arith.constant dense<0.000000e+00> : vector<16x16xf32>
    %81 = tpu.matmul %79, %80, %cst_40 {dimension_numbers = #tpu.dot_dimension_numbers<[1], [0], [0], [1], [0, 0, 1, 1], [], []>} : vector<16x8xf32>, vector<8x16xf32>, vector<16x16xf32> -> vector<16x16xf32>
    %c0_41 = arith.constant 0 : index
    %c0_42 = arith.constant 0 : index
    %82 = vector.load %arg25[%c0_41, %c0_42] : memref<16x64xf32, #tpu.memory_space<vmem>>, vector<16x16xf32>
    tpu.vector_store %arg25[%c0_41, %c0_42], %81 {strides = array<i32>} : memref<16x64xf32, #tpu.memory_space<vmem>>, vector<16x16xf32>,
    %83 = vector.extract_strided_slice %58 {offsets = [0, 16], sizes = [16, 16], strides = [1, 1]} : vector<16x64xf32> to vector<16x16xf32>
    %84 = vector.extract_strided_slice %60 {offsets = [0, 16], sizes = [8, 16], strides = [1, 1]} : vector<8x64xf32> to vector<8x16xf32>
    %cst_43 = arith.constant dense<0.000000e+00> : vector<16x8xf32>
    %85 = tpu.matmul %83, %84, %cst_43 {dimension_numbers = #tpu.dot_dimension_numbers<[1], [1], [0], [0], [0, 0, 1, 0], [], []>} : vector<16x16xf32>, vector<8x16xf32>, vector<16x8xf32> -> vector<16x8xf32>
    %cst_44 = arith.constant dense<0xFF800000> : vector<16xf32>
    %86 = vector.multi_reduction <maximumf>, %85, %cst_44 [1] : vector<16x8xf32> to vector<16xf32>
    %87 = vector.shape_cast %86 : vector<16xf32> to vector<16x1xf32>
    %88 = vector.broadcast %87 : vector<16x1xf32> to vector<16x8xf32>
    %89 = arith.subf %85, %88 : vector<16x8xf32>
    %90 = math.exp %89 : vector<16x8xf32>
    %cst_45 = arith.constant dense<0.000000e+00> : vector<16xf32>
    %91 = vector.multi_reduction <add>, %90, %cst_45 [1] : vector<16x8xf32> to vector<16xf32>
    %92 = vector.shape_cast %91 : vector<16xf32> to vector<16x1xf32>
    %93 = tpu.reciprocal %92 {approx = true} : vector<16x1xf32> -> vector<16x1xf32>
    %94 = arith.mulf %92, %93 : vector<16x1xf32>
    %cst_46 = arith.constant 2.000000e+00 : f32
    %95 = vector.broadcast %cst_46 : f32 to vector<16x1xf32>
    %96 = arith.subf %95, %94 : vector<16x1xf32>
    %97 = arith.mulf %93, %96 : vector<16x1xf32>
    %98 = vector.broadcast %97 : vector<16x1xf32> to vector<16x8xf32>
    %99 = arith.mulf %90, %98 : vector<16x8xf32>
    %100 = vector.extract_strided_slice %62 {offsets = [0, 16], sizes = [8, 16], strides = [1, 1]} : vector<8x64xf32> to vector<8x16xf32>
    %cst_47 = arith.constant dense<0.000000e+00> : vector<16x16xf32>
    %101 = tpu.matmul %99, %100, %cst_47 {dimension_numbers = #tpu.dot_dimension_numbers<[1], [0], [0], [1], [0, 0, 1, 1], [], []>} : vector<16x8xf32>, vector<8x16xf32>, vector<16x16xf32> -> vector<16x16xf32>
    %c0_48 = arith.constant 0 : index
    %c16 = arith.constant 16 : index
    %102 = vector.load %arg25[%c0_48, %c16] : memref<16x64xf32, #tpu.memory_space<vmem>>, vector<16x16xf32>
    tpu.vector_store %arg25[%c0_48, %c16], %101 {strides = array<i32>} : memref<16x64xf32, #tpu.memory_space<vmem>>, vector<16x16xf32>,
    %103 = vector.extract_strided_slice %58 {offsets = [0, 32], sizes = [16, 16], strides = [1, 1]} : vector<16x64xf32> to vector<16x16xf32>
    %104 = vector.extract_strided_slice %60 {offsets = [0, 32], sizes = [8, 16], strides = [1, 1]} : vector<8x64xf32> to vector<8x16xf32>
    %cst_49 = arith.constant dense<0.000000e+00> : vector<16x8xf32>
    %105 = tpu.matmul %103, %104, %cst_49 {dimension_numbers = #tpu.dot_dimension_numbers<[1], [1], [0], [0], [0, 0, 1, 0], [], []>} : vector<16x16xf32>, vector<8x16xf32>, vector<16x8xf32> -> vector<16x8xf32>
    %cst_50 = arith.constant dense<0xFF800000> : vector<16xf32>
    %106 = vector.multi_reduction <maximumf>, %105, %cst_50 [1] : vector<16x8xf32> to vector<16xf32>
    %107 = vector.shape_cast %106 : vector<16xf32> to vector<16x1xf32>
    %108 = vector.broadcast %107 : vector<16x1xf32> to vector<16x8xf32>
    %109 = arith.subf %105, %108 : vector<16x8xf32>
    %110 = math.exp %109 : vector<16x8xf32>
    %cst_51 = arith.constant dense<0.000000e+00> : vector<16xf32>
    %111 = vector.multi_reduction <add>, %110, %cst_51 [1] : vector<16x8xf32> to vector<16xf32>
    %112 = vector.shape_cast %111 : vector<16xf32> to vector<16x1xf32>
    %113 = tpu.reciprocal %112 {approx = true} : vector<16x1xf32> -> vector<16x1xf32>
    %114 = arith.mulf %112, %113 : vector<16x1xf32>
    %cst_52 = arith.constant 2.000000e+00 : f32
    %115 = vector.broadcast %cst_52 : f32 to vector<16x1xf32>
    %116 = arith.subf %115, %114 : vector<16x1xf32>
    %117 = arith.mulf %113, %116 : vector<16x1xf32>
    %118 = vector.broadcast %117 : vector<16x1xf32> to vector<16x8xf32>
    %119 = arith.mulf %110, %118 : vector<16x8xf32>
    %120 = vector.extract_strided_slice %62 {offsets = [0, 32], sizes = [8, 16], strides = [1, 1]} : vector<8x64xf32> to vector<8x16xf32>
    %cst_53 = arith.constant dense<0.000000e+00> : vector<16x16xf32>
    %121 = tpu.matmul %119, %120, %cst_53 {dimension_numbers = #tpu.dot_dimension_numbers<[1], [0], [0], [1], [0, 0, 1, 1], [], []>} : vector<16x8xf32>, vector<8x16xf32>, vector<16x16xf32> -> vector<16x16xf32>
    %c0_54 = arith.constant 0 : index
    %c32 = arith.constant 32 : index
    %122 = vector.load %arg25[%c0_54, %c32] : memref<16x64xf32, #tpu.memory_space<vmem>>, vector<16x16xf32>
    tpu.vector_store %arg25[%c0_54, %c32], %121 {strides = array<i32>} : memref<16x64xf32, #tpu.memory_space<vmem>>, vector<16x16xf32>,
    %123 = vector.extract_strided_slice %58 {offsets = [0, 48], sizes = [16, 16], strides = [1, 1]} : vector<16x64xf32> to vector<16x16xf32>
    %124 = vector.extract_strided_slice %60 {offsets = [0, 48], sizes = [8, 16], strides = [1, 1]} : vector<8x64xf32> to vector<8x16xf32>
    %cst_55 = arith.constant dense<0.000000e+00> : vector<16x8xf32>
    %125 = tpu.matmul %123, %124, %cst_55 {dimension_numbers = #tpu.dot_dimension_numbers<[1], [1], [0], [0], [0, 0, 1, 0], [], []>} : vector<16x16xf32>, vector<8x16xf32>, vector<16x8xf32> -> vector<16x8xf32>
    %cst_56 = arith.constant dense<0xFF800000> : vector<16xf32>
    %126 = vector.multi_reduction <maximumf>, %125, %cst_56 [1] : vector<16x8xf32> to vector<16xf32>
    %127 = vector.shape_cast %126 : vector<16xf32> to vector<16x1xf32>
    %128 = vector.broadcast %127 : vector<16x1xf32> to vector<16x8xf32>
    %129 = arith.subf %125, %128 : vector<16x8xf32>
    %130 = math.exp %129 : vector<16x8xf32>
    %cst_57 = arith.constant dense<0.000000e+00> : vector<16xf32>
    %131 = vector.multi_reduction <add>, %130, %cst_57 [1] : vector<16x8xf32> to vector<16xf32>
    %132 = vector.shape_cast %131 : vector<16xf32> to vector<16x1xf32>
    %133 = tpu.reciprocal %132 {approx = true} : vector<16x1xf32> -> vector<16x1xf32>
    %134 = arith.mulf %132, %133 : vector<16x1xf32>
    %cst_58 = arith.constant 2.000000e+00 : f32
    %135 = vector.broadcast %cst_58 : f32 to vector<16x1xf32>
    %136 = arith.subf %135, %134 : vector<16x1xf32>
    %137 = arith.mulf %133, %136 : vector<16x1xf32>
    %138 = vector.broadcast %137 : vector<16x1xf32> to vector<16x8xf32>
    %139 = arith.mulf %130, %138 : vector<16x8xf32>
    %140 = vector.extract_strided_slice %62 {offsets = [0, 48], sizes = [8, 16], strides = [1, 1]} : vector<8x64xf32> to vector<8x16xf32>
    %cst_59 = arith.constant dense<0.000000e+00> : vector<16x16xf32>
    %141 = tpu.matmul %139, %140, %cst_59 {dimension_numbers = #tpu.dot_dimension_numbers<[1], [0], [0], [1], [0, 0, 1, 1], [], []>} : vector<16x8xf32>, vector<8x16xf32>, vector<16x16xf32> -> vector<16x16xf32>
    %c0_60 = arith.constant 0 : index
    %c48 = arith.constant 48 : index
    %142 = vector.load %arg25[%c0_60, %c48] : memref<16x64xf32, #tpu.memory_space<vmem>>, vector<16x16xf32>
    tpu.vector_store %arg25[%c0_60, %c48], %141 {strides = array<i32>} : memref<16x64xf32, #tpu.memory_space<vmem>>, vector<16x16xf32>,
    %c0_61 = arith.constant 0 : index
    %c0_62 = arith.constant 0 : index
    %143 = vector.load %arg25[%c0_61, %c0_62] : memref<16x64xf32, #tpu.memory_space<vmem>>, vector<16x64xf32>
    %c0_63 = arith.constant 0 : index
    %c0_64 = arith.constant 0 : index
    %144 = vector.load %arg16[%c0_63, %c0_64] : memref<64x64xf32, #tpu.memory_space<vmem>>, vector<64x64xf32>
    %cst_65 = arith.constant dense<0.000000e+00> : vector<16x64xf32>
    %145 = tpu.matmul %143, %144, %cst_65 {dimension_numbers = #tpu.dot_dimension_numbers<[1], [0], [0], [1], [0, 0, 1, 1], [], []>} : vector<16x64xf32>, vector<64x64xf32>, vector<16x64xf32> -> vector<16x64xf32>
    %c0_66 = arith.constant 0 : index
    %c0_67 = arith.constant 0 : index
    %146 = vector.load %arg17[%c0_66, %c0_67] : memref<1x64xf32, #tpu.memory_space<vmem>>, vector<1x64xf32>
    %147 = vector.broadcast %146 : vector<1x64xf32> to vector<16x64xf32>
    %148 = arith.addf %145, %147 : vector<16x64xf32>
    %149 = arith.addf %0, %148 : vector<16x64xf32>
    %c0_68 = arith.constant 0 : index
    %c0_69 = arith.constant 0 : index
    %150 = vector.load %arg18[%c0_68, %c0_69] : memref<1x64xf32, #tpu.memory_space<vmem>>, vector<1x64xf32>
    %c0_70 = arith.constant 0 : index
    %c0_71 = arith.constant 0 : index
    %151 = vector.load %arg19[%c0_70, %c0_71] : memref<1x64xf32, #tpu.memory_space<vmem>>, vector<1x64xf32>
    %cst_72 = arith.constant dense<0.000000e+00> : vector<16xf32>
    %152 = vector.multi_reduction <add>, %149, %cst_72 [1] : vector<16x64xf32> to vector<16xf32>
    %153 = vector.shape_cast %152 : vector<16xf32> to vector<16x1xf32>
    %cst_73 = arith.constant 6.400000e+01 : f32
    %154 = vector.broadcast %cst_73 : f32 to vector<16x1xf32>
    %155 = arith.divf %153, %154 : vector<16x1xf32>
    %156 = vector.broadcast %155 : vector<16x1xf32> to vector<16x64xf32>
    %157 = arith.subf %149, %156 : vector<16x64xf32>
    %158 = arith.mulf %157, %157 : vector<16x64xf32>
    %cst_74 = arith.constant dense<0.000000e+00> : vector<16xf32>
    %159 = vector.multi_reduction <add>, %158, %cst_74 [1] : vector<16x64xf32> to vector<16xf32>
    %160 = vector.shape_cast %159 : vector<16xf32> to vector<16x1xf32>
    %cst_75 = arith.constant 6.400000e+01 : f32
    %161 = vector.broadcast %cst_75 : f32 to vector<16x1xf32>
    %162 = arith.divf %160, %161 : vector<16x1xf32>
    %163 = vector.broadcast %155 : vector<16x1xf32> to vector<16x64xf32>
    %164 = arith.subf %149, %163 : vector<16x64xf32>
    %cst_76 = arith.constant 9.99999974E-6 : f32
    %165 = vector.broadcast %cst_76 : f32 to vector<16x1xf32>
    %166 = arith.addf %162, %165 : vector<16x1xf32>
    %167 = math.rsqrt %166 : vector<16x1xf32>
    %168 = vector.broadcast %167 : vector<16x1xf32> to vector<16x64xf32>
    %169 = arith.mulf %164, %168 : vector<16x64xf32>
    %170 = vector.broadcast %150 : vector<1x64xf32> to vector<16x64xf32>
    %171 = arith.mulf %169, %170 : vector<16x64xf32>
    %172 = vector.broadcast %151 : vector<1x64xf32> to vector<16x64xf32>
    %173 = arith.addf %171, %172 : vector<16x64xf32>
    %c0_77 = arith.constant 0 : index
    %c0_78 = arith.constant 0 : index
    %174 = vector.load %arg20[%c0_77, %c0_78] : memref<64x256xf32, #tpu.memory_space<vmem>>, vector<64x256xf32>
    %cst_79 = arith.constant dense<0.000000e+00> : vector<16x256xf32>
    %175 = tpu.matmul %173, %174, %cst_79 {dimension_numbers = #tpu.dot_dimension_numbers<[1], [0], [0], [1], [0, 0, 1, 1], [], []>} : vector<16x64xf32>, vector<64x256xf32>, vector<16x256xf32> -> vector<16x256xf32>
    %c0_80 = arith.constant 0 : index
    %c0_81 = arith.constant 0 : index
    %176 = vector.load %arg21[%c0_80, %c0_81] : memref<1x256xf32, #tpu.memory_space<vmem>>, vector<1x256xf32>
    %177 = vector.broadcast %176 : vector<1x256xf32> to vector<16x256xf32>
    %178 = arith.addf %175, %177 : vector<16x256xf32>
    %cst_82 = arith.constant 5.000000e-01 : f32
    %179 = vector.broadcast %cst_82 : f32 to vector<16x256xf32>
    %180 = arith.mulf %179, %178 : vector<16x256xf32>
    %cst_83 = arith.constant 0.707106769 : f32
    %181 = vector.broadcast %cst_83 : f32 to vector<16x256xf32>
    %182 = arith.mulf %178, %181 : vector<16x256xf32>
    %183 = math.erf %182 : vector<16x256xf32>
    %cst_84 = arith.constant 1.000000e+00 : f32
    %184 = vector.broadcast %cst_84 : f32 to vector<16x256xf32>
    %185 = arith.addf %184, %183 : vector<16x256xf32>
    %186 = arith.mulf %180, %185 : vector<16x256xf32>
    %c0_85 = arith.constant 0 : index
    %c0_86 = arith.constant 0 : index
    %187 = vector.load %arg22[%c0_85, %c0_86] : memref<256x64xf32, #tpu.memory_space<vmem>>, vector<256x64xf32>
    %cst_87 = arith.constant dense<0.000000e+00> : vector<16x64xf32>
    %188 = tpu.matmul %186, %187, %cst_87 {dimension_numbers = #tpu.dot_dimension_numbers<[1], [0], [0], [1], [0, 0, 1, 1], [], []>} : vector<16x256xf32>, vector<256x64xf32>, vector<16x64xf32> -> vector<16x64xf32>
    %c0_88 = arith.constant 0 : index
    %c0_89 = arith.constant 0 : index
    %189 = vector.load %arg23[%c0_88, %c0_89] : memref<1x64xf32, #tpu.memory_space<vmem>>, vector<1x64xf32>
    %190 = vector.broadcast %189 : vector<1x64xf32> to vector<16x64xf32>
    %191 = arith.addf %188, %190 : vector<16x64xf32>
    %192 = arith.addf %149, %191 : vector<16x64xf32>
    %c0_90 = arith.constant 0 : index
    %c0_91 = arith.constant 0 : index
    %193 = vector.load %arg24[%c0_90, %c0_91] : memref<16x64xf32, #tpu.memory_space<vmem>>, vector<16x64xf32>
    tpu.vector_store %arg24[%c0_90, %c0_91], %192 {strides = array<i32>} : memref<16x64xf32, #tpu.memory_space<vmem>>, vector<16x64xf32>,
    return
  }
  func.func @transform_0(%arg0: i32, %arg1: i32) -> (i32, i32) {
    %c1_i32 = arith.constant 1 : i32
    %0 = arith.muli %arg0, %c1_i32 : i32
    %1 = arith.addi %0, %arg1 : i32
    %c0_i32 = arith.constant 0 : i32
    %c0_i32_0 = arith.constant 0 : i32
    return %1, %c0_i32 : i32, i32
  }
  func.func @transform_1(%arg0: i32, %arg1: i32) -> (i32, i32) {
    %c0_i32 = arith.constant 0 : i32
    %c0_i32_0 = arith.constant 0 : i32
    return %arg0, %c0_i32 : i32, i32
  }
  func.func @transform_2(%arg0: i32, %arg1: i32) -> (i32, i32) {
    %c0_i32 = arith.constant 0 : i32
    %c0_i32_0 = arith.constant 0 : i32
    %c0_i32_1 = arith.constant 0 : i32
    return %c0_i32, %c0_i32_0 : i32, i32
  }
  func.func @transform_3(%arg0: i32, %arg1: i32) -> (i32, i32) {
    %c0_i32 = arith.constant 0 : i32
    %c0_i32_0 = arith.constant 0 : i32
    %c0_i32_1 = arith.constant 0 : i32
    return %c0_i32, %c0_i32_0 : i32, i32
  }
  func.func @transform_4(%arg0: i32, %arg1: i32) -> (i32, i32) {
    %c0_i32 = arith.constant 0 : i32
    %c0_i32_0 = arith.constant 0 : i32
    %c0_i32_1 = arith.constant 0 : i32
    return %c0_i32, %c0_i32_0 : i32, i32
  }
  func.func @transform_5(%arg0: i32, %arg1: i32) -> (i32, i32) {
    %c0_i32 = arith.constant 0 : i32
    %c0_i32_0 = arith.constant 0 : i32
    %c0_i32_1 = arith.constant 0 : i32
    return %c0_i32, %c0_i32_0 : i32, i32
  }
  func.func @transform_6(%arg0: i32, %arg1: i32) -> (i32, i32) {
    %c0_i32 = arith.constant 0 : i32
    %c0_i32_0 = arith.constant 0 : i32
    %c0_i32_1 = arith.constant 0 : i32
    return %c0_i32, %c0_i32_0 : i32, i32
  }
  func.func @transform_7(%arg0: i32, %arg1: i32) -> (i32, i32) {
    %c0_i32 = arith.constant 0 : i32
    %c0_i32_0 = arith.constant 0 : i32
    %c0_i32_1 = arith.constant 0 : i32
    return %c0_i32, %c0_i32_0 : i32, i32
  }
  func.func @transform_8(%arg0: i32, %arg1: i32) -> (i32, i32) {
    %c0_i32 = arith.constant 0 : i32
    %c0_i32_0 = arith.constant 0 : i32
    %c0_i32_1 = arith.constant 0 : i32
    return %c0_i32, %c0_i32_0 : i32, i32
  }
  func.func @transform_9(%arg0: i32, %arg1: i32) -> (i32, i32) {
    %c0_i32 = arith.constant 0 : i32
    %c0_i32_0 = arith.constant 0 : i32
    %c0_i32_1 = arith.constant 0 : i32
    return %c0_i32, %c0_i32_0 : i32, i32
  }
  func.func @transform_10(%arg0: i32, %arg1: i32) -> (i32, i32) {
    %c0_i32 = arith.constant 0 : i32
    %c0_i32_0 = arith.constant 0 : i32
    %c0_i32_1 = arith.constant 0 : i32
    return %c0_i32, %c0_i32_0 : i32, i32
  }
  func.func @transform_11(%arg0: i32, %arg1: i32) -> (i32, i32) {
    %c0_i32 = arith.constant 0 : i32
    %c0_i32_0 = arith.constant 0 : i32
    %c0_i32_1 = arith.constant 0 : i32
    return %c0_i32, %c0_i32_0 : i32, i32
  }
  func.func @transform_12(%arg0: i32, %arg1: i32) -> (i32, i32) {
    %c0_i32 = arith.constant 0 : i32
    %c0_i32_0 = arith.constant 0 : i32
    %c0_i32_1 = arith.constant 0 : i32
    return %c0_i32, %c0_i32_0 : i32, i32
  }
  func.func @transform_13(%arg0: i32, %arg1: i32) -> (i32, i32) {
    %c0_i32 = arith.constant 0 : i32
    %c0_i32_0 = arith.constant 0 : i32
    %c0_i32_1 = arith.constant 0 : i32
    return %c0_i32, %c0_i32_0 : i32, i32
  }
  func.func @transform_14(%arg0: i32, %arg1: i32) -> (i32, i32) {
    %c0_i32 = arith.constant 0 : i32
    %c0_i32_0 = arith.constant 0 : i32
    %c0_i32_1 = arith.constant 0 : i32
    return %c0_i32, %c0_i32_0 : i32, i32
  }
  func.func @transform_15(%arg0: i32, %arg1: i32) -> (i32, i32) {
    %c0_i32 = arith.constant 0 : i32
    %c0_i32_0 = arith.constant 0 : i32
    %c0_i32_1 = arith.constant 0 : i32
    return %c0_i32, %c0_i32_0 : i32, i32
  }
  func.func @transform_16(%arg0: i32, %arg1: i32) -> (i32, i32) {
    %c0_i32 = arith.constant 0 : i32
    %c0_i32_0 = arith.constant 0 : i32
    %c0_i32_1 = arith.constant 0 : i32
    return %c0_i32, %c0_i32_0 : i32, i32
  }
  func.func @transform_17(%arg0: i32, %arg1: i32) -> (i32, i32) {
    %c0_i32 = arith.constant 0 : i32
    %c0_i32_0 = arith.constant 0 : i32
    %c0_i32_1 = arith.constant 0 : i32
    return %c0_i32, %c0_i32_0 : i32, i32
  }
  func.func @transform_18(%arg0: i32, %arg1: i32) -> (i32, i32) {
    %c0_i32 = arith.constant 0 : i32
    %c0_i32_0 = arith.constant 0 : i32
    %c0_i32_1 = arith.constant 0 : i32
    return %c0_i32, %c0_i32_0 : i32, i32
  }
  func.func @transform_19(%arg0: i32, %arg1: i32) -> (i32, i32) {
    %c0_i32 = arith.constant 0 : i32
    %c0_i32_0 = arith.constant 0 : i32
    %c0_i32_1 = arith.constant 0 : i32
    return %c0_i32, %c0_i32_0 : i32, i32
  }
  func.func @transform_20(%arg0: i32, %arg1: i32) -> (i32, i32) {
    %c0_i32 = arith.constant 0 : i32
    %c0_i32_0 = arith.constant 0 : i32
    %c0_i32_1 = arith.constant 0 : i32
    return %c0_i32, %c0_i32_0 : i32, i32
  }
  func.func @transform_21(%arg0: i32, %arg1: i32) -> (i32, i32) {
    %c0_i32 = arith.constant 0 : i32
    %c0_i32_0 = arith.constant 0 : i32
    %c0_i32_1 = arith.constant 0 : i32
    return %c0_i32, %c0_i32_0 : i32, i32
  }
  func.func @transform_22(%arg0: i32, %arg1: i32) -> (i32, i32) {
    %c1_i32 = arith.constant 1 : i32
    %0 = arith.muli %arg0, %c1_i32 : i32
    %1 = arith.addi %0, %arg1 : i32
    %c0_i32 = arith.constant 0 : i32
    %c0_i32_0 = arith.constant 0 : i32
    return %1, %c0_i32 : i32, i32
  }
}

module attributes {stable_mosaic.version = 11 : i64} {
  func.func @encoder_block_kernel(%arg0: i32, %arg1: i32, %arg2: memref<16x64xf32, #tpu.memory_space<vmem>>, %arg3: memref<8x64xf32, #tpu.memory_space<vmem>>, %arg4: memref<1x64xf32, #tpu.memory_space<vmem>>, %arg5: memref<1x64xf32, #tpu.memory_space<vmem>>, %arg6: memref<64x64xf32, #tpu.memory_space<vmem>>, %arg7: memref<1x64xf32, #tpu.memory_space<vmem>>, %arg8: memref<64x128xf32, #tpu.memory_space<vmem>>, %arg9: memref<1x128xf32, #tpu.memory_space<vmem>>, %arg10: memref<64x4xf32, #tpu.memory_space<vmem>>, %arg11: memref<4x64xf32, #tpu.memory_space<vmem>>, %arg12: memref<1x64xf32, #tpu.memory_space<vmem>>, %arg13: memref<1x64xf32, #tpu.memory_space<vmem>>, %arg14: memref<1x64xf32, #tpu.memory_space<vmem>>, %arg15: memref<1x64xf32, #tpu.memory_space<vmem>>, %arg16: memref<64x64xf32, #tpu.memory_space<vmem>>, %arg17: memref<1x64xf32, #tpu.memory_space<vmem>>, %arg18: memref<1x64xf32, #tpu.memory_space<vmem>>, %arg19: memref<1x64xf32, #tpu.memory_space<vmem>>, %arg20: memref<64x256xf32, #tpu.memory_space<vmem>>, %arg21: memref<1x256xf32, #tpu.memory_space<vmem>>, %arg22: memref<256x64xf32, #tpu.memory_space<vmem>>, %arg23: memref<1x64xf32, #tpu.memory_space<vmem>>, %arg24: memref<16x64xf32, #tpu.memory_space<vmem>>, %arg25: memref<16x64xf32, #tpu.memory_space<vmem>>, %arg26: memref<2x8x64xf32, #tpu.memory_space<vmem>>) attributes {dimension_semantics = [#tpu.dimension_semantics<parallel>, #tpu.dimension_semantics<arbitrary>], iteration_bounds = array<i64: 2, 1>, scalar_prefetch = 0 : i64, scratch_operands = 2 : i64, tpu.core_type = #tpu.core_type<tc>, window_params = [{transform_indices = @transform_0, window_bounds = array<i64: 16, 64>}, {transform_indices = @transform_1, window_bounds = array<i64: 8, 64>}, {pipeline_mode = #tpu.pipeline_mode<synchronous>, transform_indices = @transform_2, window_bounds = array<i64: 1, 64>}, {pipeline_mode = #tpu.pipeline_mode<synchronous>, transform_indices = @transform_3, window_bounds = array<i64: 1, 64>}, {pipeline_mode = #tpu.pipeline_mode<synchronous>, transform_indices = @transform_4, window_bounds = array<i64: 64, 64>}, {pipeline_mode = #tpu.pipeline_mode<synchronous>, transform_indices = @transform_5, window_bounds = array<i64: 1, 64>}, {pipeline_mode = #tpu.pipeline_mode<synchronous>, transform_indices = @transform_6, window_bounds = array<i64: 64, 128>}, {pipeline_mode = #tpu.pipeline_mode<synchronous>, transform_indices = @transform_7, window_bounds = array<i64: 1, 128>}, {pipeline_mode = #tpu.pipeline_mode<synchronous>, transform_indices = @transform_8, window_bounds = array<i64: 64, 4>}, {pipeline_mode = #tpu.pipeline_mode<synchronous>, transform_indices = @transform_9, window_bounds = array<i64: 4, 64>}, {pipeline_mode = #tpu.pipeline_mode<synchronous>, transform_indices = @transform_10, window_bounds = array<i64: 1, 64>}, {pipeline_mode = #tpu.pipeline_mode<synchronous>, transform_indices = @transform_11, window_bounds = array<i64: 1, 64>}, {pipeline_mode = #tpu.pipeline_mode<synchronous>, transform_indices = @transform_12, window_bounds = array<i64: 1, 64>}, {pipeline_mode = #tpu.pipeline_mode<synchronous>, transform_indices = @transform_13, window_bounds = array<i64: 1, 64>}, {pipeline_mode = #tpu.pipeline_mode<synchronous>, transform_indices = @transform_14, window_bounds = array<i64: 64, 64>}, {pipeline_mode = #tpu.pipeline_mode<synchronous>, transform_indices = @transform_15, window_bounds = array<i64: 1, 64>}, {pipeline_mode = #tpu.pipeline_mode<synchronous>, transform_indices = @transform_16, window_bounds = array<i64: 1, 64>}, {pipeline_mode = #tpu.pipeline_mode<synchronous>, transform_indices = @transform_17, window_bounds = array<i64: 1, 64>}, {pipeline_mode = #tpu.pipeline_mode<synchronous>, transform_indices = @transform_18, window_bounds = array<i64: 64, 256>}, {pipeline_mode = #tpu.pipeline_mode<synchronous>, transform_indices = @transform_19, window_bounds = array<i64: 1, 256>}, {pipeline_mode = #tpu.pipeline_mode<synchronous>, transform_indices = @transform_20, window_bounds = array<i64: 256, 64>}, {pipeline_mode = #tpu.pipeline_mode<synchronous>, transform_indices = @transform_21, window_bounds = array<i64: 1, 64>}, {transform_indices = @transform_22, window_bounds = array<i64: 16, 64>}]} {
    %c0 = arith.constant 0 : index
    %c0_0 = arith.constant 0 : index
    %0 = vector.load %arg2[%c0, %c0_0] : memref<16x64xf32, #tpu.memory_space<vmem>>, vector<16x64xf32>
    %c0_i32 = arith.constant 0 : i32
    %1 = arith.cmpi eq, %arg1, %c0_i32 : i32
    %2 = arith.extui %1 : i1 to i32
    %c0_i32_1 = arith.constant 0 : i32
    %3 = arith.cmpi ne, %2, %c0_i32_1 : i32
    scf.if %3 {
      %c0_92 = arith.constant 0 : index
      %c0_93 = arith.constant 0 : index
      %194 = vector.load %arg3[%c0_92, %c0_93] : memref<8x64xf32, #tpu.memory_space<vmem>>, vector<8x64xf32>
      %c0_94 = arith.constant 0 : index
      %c0_95 = arith.constant 0 : index
      %195 = vector.load %arg8[%c0_94, %c0_95] : memref<64x128xf32, #tpu.memory_space<vmem>>, vector<64x128xf32>
      %cst_96 = arith.constant dense<0.000000e+00> : vector<8x128xf32>
      %196 = tpu.matmul %194, %195, %cst_96 {dimension_numbers = #tpu.dot_dimension_numbers<[1], [0], [0], [1], [0, 0, 1, 1], [], []>} : vector<8x64xf32>, vector<64x128xf32>, vector<8x128xf32> -> vector<8x128xf32>
      %c0_97 = arith.constant 0 : index
      %c0_98 = arith.constant 0 : index
      %197 = vector.load %arg9[%c0_97, %c0_98] : memref<1x128xf32, #tpu.memory_space<vmem>>, vector<1x128xf32>
      %198 = vector.broadcast %197 : vector<1x128xf32> to vector<8x128xf32>
      %199 = arith.addf %196, %198 : vector<8x128xf32>
      %200 = vector.extract_strided_slice %199 {offsets = [0, 0], sizes = [8, 64], strides = [1, 1]} : vector<8x128xf32> to vector<8x64xf32>
      %c0_99 = arith.constant 0 : index
      %c0_100 = arith.constant 0 : index
      %201 = vector.load %arg10[%c0_99, %c0_100] : memref<64x4xf32, #tpu.memory_space<vmem>>, vector<64x4xf32>
      %c0_101 = arith.constant 0 : index
      %c0_102 = arith.constant 0 : index
      %202 = vector.load %arg11[%c0_101, %c0_102] : memref<4x64xf32, #tpu.memory_space<vmem>>, vector<4x64xf32>
      %c0_103 = arith.constant 0 : index
      %c0_104 = arith.constant 0 : index
      %203 = vector.load %arg14[%c0_103, %c0_104] : memref<1x64xf32, #tpu.memory_space<vmem>>, vector<1x64xf32>
      %c0_105 = arith.constant 0 : index
      %c0_106 = arith.constant 0 : index
      %204 = vector.load %arg15[%c0_105, %c0_106] : memref<1x64xf32, #tpu.memory_space<vmem>>, vector<1x64xf32>
      %cst_107 = arith.constant dense<0.000000e+00> : vector<8x4xf32>
      %205 = tpu.matmul %200, %201, %cst_107 {dimension_numbers = #tpu.dot_dimension_numbers<[1], [0], [0], [1], [0, 0, 1, 1], [], []>} : vector<8x64xf32>, vector<64x4xf32>, vector<8x4xf32> -> vector<8x4xf32>
      %cst_108 = arith.constant 6.250000e-02 : f32
      %206 = vector.broadcast %cst_108 : f32 to vector<8x4xf32>
      %207 = arith.mulf %205, %206 : vector<8x4xf32>
      %208 = arith.mulf %200, %200 : vector<8x64xf32>
      %cst_109 = arith.constant dense<0.000000e+00> : vector<8x4xf32>
      %209 = tpu.matmul %208, %201, %cst_109 {dimension_numbers = #tpu.dot_dimension_numbers<[1], [0], [0], [1], [0, 0, 1, 1], [], []>} : vector<8x64xf32>, vector<64x4xf32>, vector<8x4xf32> -> vector<8x4xf32>
      %cst_110 = arith.constant 6.250000e-02 : f32
      %210 = vector.broadcast %cst_110 : f32 to vector<8x4xf32>
      %211 = arith.mulf %209, %210 : vector<8x4xf32>
      %212 = arith.mulf %207, %207 : vector<8x4xf32>
      %213 = arith.subf %211, %212 : vector<8x4xf32>
      %cst_111 = arith.constant 0.000000e+00 : f32
      %214 = vector.broadcast %cst_111 : f32 to vector<8x4xf32>
      %215 = arith.maximumf %213, %214 : vector<8x4xf32>
      %cst_112 = arith.constant 9.99999974E-6 : f32
      %216 = vector.broadcast %cst_112 : f32 to vector<8x4xf32>
      %217 = arith.addf %215, %216 : vector<8x4xf32>
      %218 = math.rsqrt %217 : vector<8x4xf32>
      %cst_113 = arith.constant dense<0.000000e+00> : vector<8x64xf32>
      %219 = tpu.matmul %207, %202, %cst_113 {dimension_numbers = #tpu.dot_dimension_numbers<[1], [0], [0], [1], [0, 0, 1, 1], [], []>} : vector<8x4xf32>, vector<4x64xf32>, vector<8x64xf32> -> vector<8x64xf32>
      %cst_114 = arith.constant dense<0.000000e+00> : vector<8x64xf32>
      %220 = tpu.matmul %218, %202, %cst_114 {dimension_numbers = #tpu.dot_dimension_numbers<[1], [0], [0], [1], [0, 0, 1, 1], [], []>} : vector<8x4xf32>, vector<4x64xf32>, vector<8x64xf32> -> vector<8x64xf32>
      %221 = arith.subf %200, %219 : vector<8x64xf32>
      %222 = arith.mulf %221, %220 : vector<8x64xf32>
      %223 = vector.broadcast %203 : vector<1x64xf32> to vector<8x64xf32>
      %224 = arith.mulf %222, %223 : vector<8x64xf32>
      %225 = vector.broadcast %204 : vector<1x64xf32> to vector<8x64xf32>
      %226 = arith.addf %224, %225 : vector<8x64xf32>
      %c0_115 = arith.constant 0 : index
      %c0_116 = arith.constant 0 : index
      %c0_117 = arith.constant 0 : index
      %227 = vector.load %arg26[%c0_115, %c0_116, %c0_117] : memref<2x8x64xf32, #tpu.memory_space<vmem>>, vector<1x8x64xf32>
      %228 = vector.shape_cast %227 : vector<1x8x64xf32> to vector<8x64xf32>
      %229 = vector.shape_cast %226 : vector<8x64xf32> to vector<1x8x64xf32>
      tpu.vector_store %arg26[%c0_115, %c0_116, %c0_117], %229 {strides = array<i32>} : memref<2x8x64xf32, #tpu.memory_space<vmem>>, vector<1x8x64xf32>,
      %230 = vector.extract_strided_slice %199 {offsets = [0, 64], sizes = [8, 64], strides = [1, 1]} : vector<8x128xf32> to vector<8x64xf32>
      %c1_118 = arith.constant 1 : index
      %c0_119 = arith.constant 0 : index
      %c0_120 = arith.constant 0 : index
      %231 = vector.load %arg26[%c1_118, %c0_119, %c0_120] : memref<2x8x64xf32, #tpu.memory_space<vmem>>, vector<1x8x64xf32>
      %232 = vector.shape_cast %231 : vector<1x8x64xf32> to vector<8x64xf32>
      %233 = vector.shape_cast %230 : vector<8x64xf32> to vector<1x8x64xf32>
      tpu.vector_store %arg26[%c1_118, %c0_119, %c0_120], %233 {strides = array<i32>} : memref<2x8x64xf32, #tpu.memory_space<vmem>>, vector<1x8x64xf32>,
    } else {
    }
    %c0_2 = arith.constant 0 : index
    %c0_3 = arith.constant 0 : index
    %4 = vector.load %arg4[%c0_2, %c0_3] : memref<1x64xf32, #tpu.memory_space<vmem>>, vector<1x64xf32>
    %c0_4 = arith.constant 0 : index
    %c0_5 = arith.constant 0 : index
    %5 = vector.load %arg5[%c0_4, %c0_5] : memref<1x64xf32, #tpu.memory_space<vmem>>, vector<1x64xf32>
    %cst = arith.constant dense<0.000000e+00> : vector<16xf32>
    %6 = vector.multi_reduction <add>, %0, %cst [1] : vector<16x64xf32> to vector<16xf32>
    %7 = vector.shape_cast %6 : vector<16xf32> to vector<16x1xf32>
    %cst_6 = arith.constant 6.400000e+01 : f32
    %8 = vector.broadcast %cst_6 : f32 to vector<16x1xf32>
    %9 = arith.divf %7, %8 : vector<16x1xf32>
    %10 = vector.broadcast %9 : vector<16x1xf32> to vector<16x64xf32>
    %11 = arith.subf %0, %10 : vector<16x64xf32>
    %12 = arith.mulf %11, %11 : vector<16x64xf32>
    %cst_7 = arith.constant dense<0.000000e+00> : vector<16xf32>
    %13 = vector.multi_reduction <add>, %12, %cst_7 [1] : vector<16x64xf32> to vector<16xf32>
    %14 = vector.shape_cast %13 : vector<16xf32> to vector<16x1xf32>
    %cst_8 = arith.constant 6.400000e+01 : f32
    %15 = vector.broadcast %cst_8 : f32 to vector<16x1xf32>
    %16 = arith.divf %14, %15 : vector<16x1xf32>
    %17 = vector.broadcast %9 : vector<16x1xf32> to vector<16x64xf32>
    %18 = arith.subf %0, %17 : vector<16x64xf32>
    %cst_9 = arith.constant 9.99999974E-6 : f32
    %19 = vector.broadcast %cst_9 : f32 to vector<16x1xf32>
    %20 = arith.addf %16, %19 : vector<16x1xf32>
    %21 = math.rsqrt %20 : vector<16x1xf32>
    %22 = vector.broadcast %21 : vector<16x1xf32> to vector<16x64xf32>
    %23 = arith.mulf %18, %22 : vector<16x64xf32>
    %24 = vector.broadcast %4 : vector<1x64xf32> to vector<16x64xf32>
    %25 = arith.mulf %23, %24 : vector<16x64xf32>
    %26 = vector.broadcast %5 : vector<1x64xf32> to vector<16x64xf32>
    %27 = arith.addf %25, %26 : vector<16x64xf32>
    %c0_10 = arith.constant 0 : index
    %c0_11 = arith.constant 0 : index
    %28 = vector.load %arg6[%c0_10, %c0_11] : memref<64x64xf32, #tpu.memory_space<vmem>>, vector<64x64xf32>
    %cst_12 = arith.constant dense<0.000000e+00> : vector<16x64xf32>
    %29 = tpu.matmul %27, %28, %cst_12 {dimension_numbers = #tpu.dot_dimension_numbers<[1], [0], [0], [1], [0, 0, 1, 1], [], []>} : vector<16x64xf32>, vector<64x64xf32>, vector<16x64xf32> -> vector<16x64xf32>
    %c0_13 = arith.constant 0 : index
    %c0_14 = arith.constant 0 : index
    %30 = vector.load %arg7[%c0_13, %c0_14] : memref<1x64xf32, #tpu.memory_space<vmem>>, vector<1x64xf32>
    %31 = vector.broadcast %30 : vector<1x64xf32> to vector<16x64xf32>
    %32 = arith.addf %29, %31 : vector<16x64xf32>
    %c0_15 = arith.constant 0 : index
    %c0_16 = arith.constant 0 : index
    %33 = vector.load %arg10[%c0_15, %c0_16] : memref<64x4xf32, #tpu.memory_space<vmem>>, vector<64x4xf32>
    %c0_17 = arith.constant 0 : index
    %c0_18 = arith.constant 0 : index
    %34 = vector.load %arg11[%c0_17, %c0_18] : memref<4x64xf32, #tpu.memory_space<vmem>>, vector<4x64xf32>
    %c0_19 = arith.constant 0 : index
    %c0_20 = arith.constant 0 : index
    %35 = vector.load %arg12[%c0_19, %c0_20] : memref<1x64xf32, #tpu.memory_space<vmem>>, vector<1x64xf32>
    %c0_21 = arith.constant 0 : index
    %c0_22 = arith.constant 0 : index
    %36 = vector.load %arg13[%c0_21, %c0_22] : memref<1x64xf32, #tpu.memory_space<vmem>>, vector<1x64xf32>
    %cst_23 = arith.constant dense<0.000000e+00> : vector<16x4xf32>
    %37 = tpu.matmul %32, %33, %cst_23 {dimension_numbers = #tpu.dot_dimension_numbers<[1], [0], [0], [1], [0, 0, 1, 1], [], []>} : vector<16x64xf32>, vector<64x4xf32>, vector<16x4xf32> -> vector<16x4xf32>
    %cst_24 = arith.constant 6.250000e-02 : f32
    %38 = vector.broadcast %cst_24 : f32 to vector<16x4xf32>
    %39 = arith.mulf %37, %38 : vector<16x4xf32>
    %40 = arith.mulf %32, %32 : vector<16x64xf32>
    %cst_25 = arith.constant dense<0.000000e+00> : vector<16x4xf32>
    %41 = tpu.matmul %40, %33, %cst_25 {dimension_numbers = #tpu.dot_dimension_numbers<[1], [0], [0], [1], [0, 0, 1, 1], [], []>} : vector<16x64xf32>, vector<64x4xf32>, vector<16x4xf32> -> vector<16x4xf32>
    %cst_26 = arith.constant 6.250000e-02 : f32
    %42 = vector.broadcast %cst_26 : f32 to vector<16x4xf32>
    %43 = arith.mulf %41, %42 : vector<16x4xf32>
    %44 = arith.mulf %39, %39 : vector<16x4xf32>
    %45 = arith.subf %43, %44 : vector<16x4xf32>
    %cst_27 = arith.constant 0.000000e+00 : f32
    %46 = vector.broadcast %cst_27 : f32 to vector<16x4xf32>
    %47 = arith.maximumf %45, %46 : vector<16x4xf32>
    %cst_28 = arith.constant 9.99999974E-6 : f32
    %48 = vector.broadcast %cst_28 : f32 to vector<16x4xf32>
    %49 = arith.addf %47, %48 : vector<16x4xf32>
    %50 = math.rsqrt %49 : vector<16x4xf32>
    %cst_29 = arith.constant dense<0.000000e+00> : vector<16x64xf32>
    %51 = tpu.matmul %39, %34, %cst_29 {dimension_numbers = #tpu.dot_dimension_numbers<[1], [0], [0], [1], [0, 0, 1, 1], [], []>} : vector<16x4xf32>, vector<4x64xf32>, vector<16x64xf32> -> vector<16x64xf32>
    %cst_30 = arith.constant dense<0.000000e+00> : vector<16x64xf32>
    %52 = tpu.matmul %50, %34, %cst_30 {dimension_numbers = #tpu.dot_dimension_numbers<[1], [0], [0], [1], [0, 0, 1, 1], [], []>} : vector<16x4xf32>, vector<4x64xf32>, vector<16x64xf32> -> vector<16x64xf32>
    %53 = arith.subf %32, %51 : vector<16x64xf32>
    %54 = arith.mulf %53, %52 : vector<16x64xf32>
    %55 = vector.broadcast %35 : vector<1x64xf32> to vector<16x64xf32>
    %56 = arith.mulf %54, %55 : vector<16x64xf32>
    %57 = vector.broadcast %36 : vector<1x64xf32> to vector<16x64xf32>
    %58 = arith.addf %56, %57 : vector<16x64xf32>
    %c0_31 = arith.constant 0 : index
    %c0_32 = arith.constant 0 : index
    %c0_33 = arith.constant 0 : index
    %59 = vector.load %arg26[%c0_31, %c0_32, %c0_33] : memref<2x8x64xf32, #tpu.memory_space<vmem>>, vector<1x8x64xf32>
    %60 = vector.shape_cast %59 : vector<1x8x64xf32> to vector<8x64xf32>
    %c1 = arith.constant 1 : index
    %c0_34 = arith.constant 0 : index
    %c0_35 = arith.constant 0 : index
    %61 = vector.load %arg26[%c1, %c0_34, %c0_35] : memref<2x8x64xf32, #tpu.memory_space<vmem>>, vector<1x8x64xf32>
    %62 = vector.shape_cast %61 : vector<1x8x64xf32> to vector<8x64xf32>
    %63 = vector.extract_strided_slice %58 {offsets = [0, 0], sizes = [16, 16], strides = [1, 1]} : vector<16x64xf32> to vector<16x16xf32>
    %64 = vector.extract_strided_slice %60 {offsets = [0, 0], sizes = [8, 16], strides = [1, 1]} : vector<8x64xf32> to vector<8x16xf32>
    %cst_36 = arith.constant dense<0.000000e+00> : vector<16x8xf32>
    %65 = tpu.matmul %63, %64, %cst_36 {dimension_numbers = #tpu.dot_dimension_numbers<[1], [1], [0], [0], [0, 0, 1, 0], [], []>} : vector<16x16xf32>, vector<8x16xf32>, vector<16x8xf32> -> vector<16x8xf32>
    %cst_37 = arith.constant dense<0xFF800000> : vector<16xf32>
    %66 = vector.multi_reduction <maximumf>, %65, %cst_37 [1] : vector<16x8xf32> to vector<16xf32>
    %67 = vector.shape_cast %66 : vector<16xf32> to vector<16x1xf32>
    %68 = vector.broadcast %67 : vector<16x1xf32> to vector<16x8xf32>
    %69 = arith.subf %65, %68 : vector<16x8xf32>
    %70 = math.exp %69 : vector<16x8xf32>
    %cst_38 = arith.constant dense<0.000000e+00> : vector<16xf32>
    %71 = vector.multi_reduction <add>, %70, %cst_38 [1] : vector<16x8xf32> to vector<16xf32>
    %72 = vector.shape_cast %71 : vector<16xf32> to vector<16x1xf32>
    %73 = tpu.reciprocal %72 {approx = true} : vector<16x1xf32> -> vector<16x1xf32>
    %74 = arith.mulf %72, %73 : vector<16x1xf32>
    %cst_39 = arith.constant 2.000000e+00 : f32
    %75 = vector.broadcast %cst_39 : f32 to vector<16x1xf32>
    %76 = arith.subf %75, %74 : vector<16x1xf32>
    %77 = arith.mulf %73, %76 : vector<16x1xf32>
    %78 = vector.broadcast %77 : vector<16x1xf32> to vector<16x8xf32>
    %79 = arith.mulf %70, %78 : vector<16x8xf32>
    %80 = vector.extract_strided_slice %62 {offsets = [0, 0], sizes = [8, 16], strides = [1, 1]} : vector<8x64xf32> to vector<8x16xf32>
    %cst_40 = arith.constant dense<0.000000e+00> : vector<16x16xf32>
    %81 = tpu.matmul %79, %80, %cst_40 {dimension_numbers = #tpu.dot_dimension_numbers<[1], [0], [0], [1], [0, 0, 1, 1], [], []>} : vector<16x8xf32>, vector<8x16xf32>, vector<16x16xf32> -> vector<16x16xf32>
    %c0_41 = arith.constant 0 : index
    %c0_42 = arith.constant 0 : index
    %82 = vector.load %arg25[%c0_41, %c0_42] : memref<16x64xf32, #tpu.memory_space<vmem>>, vector<16x16xf32>
    tpu.vector_store %arg25[%c0_41, %c0_42], %81 {strides = array<i32>} : memref<16x64xf32, #tpu.memory_space<vmem>>, vector<16x16xf32>,
    %83 = vector.extract_strided_slice %58 {offsets = [0, 16], sizes = [16, 16], strides = [1, 1]} : vector<16x64xf32> to vector<16x16xf32>
    %84 = vector.extract_strided_slice %60 {offsets = [0, 16], sizes = [8, 16], strides = [1, 1]} : vector<8x64xf32> to vector<8x16xf32>
    %cst_43 = arith.constant dense<0.000000e+00> : vector<16x8xf32>
    %85 = tpu.matmul %83, %84, %cst_43 {dimension_numbers = #tpu.dot_dimension_numbers<[1], [1], [0], [0], [0, 0, 1, 0], [], []>} : vector<16x16xf32>, vector<8x16xf32>, vector<16x8xf32> -> vector<16x8xf32>
    %cst_44 = arith.constant dense<0xFF800000> : vector<16xf32>
    %86 = vector.multi_reduction <maximumf>, %85, %cst_44 [1] : vector<16x8xf32> to vector<16xf32>
    %87 = vector.shape_cast %86 : vector<16xf32> to vector<16x1xf32>
    %88 = vector.broadcast %87 : vector<16x1xf32> to vector<16x8xf32>
    %89 = arith.subf %85, %88 : vector<16x8xf32>
    %90 = math.exp %89 : vector<16x8xf32>
    %cst_45 = arith.constant dense<0.000000e+00> : vector<16xf32>
    %91 = vector.multi_reduction <add>, %90, %cst_45 [1] : vector<16x8xf32> to vector<16xf32>
    %92 = vector.shape_cast %91 : vector<16xf32> to vector<16x1xf32>
    %93 = tpu.reciprocal %92 {approx = true} : vector<16x1xf32> -> vector<16x1xf32>
    %94 = arith.mulf %92, %93 : vector<16x1xf32>
    %cst_46 = arith.constant 2.000000e+00 : f32
    %95 = vector.broadcast %cst_46 : f32 to vector<16x1xf32>
    %96 = arith.subf %95, %94 : vector<16x1xf32>
    %97 = arith.mulf %93, %96 : vector<16x1xf32>
    %98 = vector.broadcast %97 : vector<16x1xf32> to vector<16x8xf32>
    %99 = arith.mulf %90, %98 : vector<16x8xf32>
    %100 = vector.extract_strided_slice %62 {offsets = [0, 16], sizes = [8, 16], strides = [1, 1]} : vector<8x64xf32> to vector<8x16xf32>
    %cst_47 = arith.constant dense<0.000000e+00> : vector<16x16xf32>
    %101 = tpu.matmul %99, %100, %cst_47 {dimension_numbers = #tpu.dot_dimension_numbers<[1], [0], [0], [1], [0, 0, 1, 1], [], []>} : vector<16x8xf32>, vector<8x16xf32>, vector<16x16xf32> -> vector<16x16xf32>
    %c0_48 = arith.constant 0 : index
    %c16 = arith.constant 16 : index
    %102 = vector.load %arg25[%c0_48, %c16] : memref<16x64xf32, #tpu.memory_space<vmem>>, vector<16x16xf32>
    tpu.vector_store %arg25[%c0_48, %c16], %101 {strides = array<i32>} : memref<16x64xf32, #tpu.memory_space<vmem>>, vector<16x16xf32>,
    %103 = vector.extract_strided_slice %58 {offsets = [0, 32], sizes = [16, 16], strides = [1, 1]} : vector<16x64xf32> to vector<16x16xf32>
    %104 = vector.extract_strided_slice %60 {offsets = [0, 32], sizes = [8, 16], strides = [1, 1]} : vector<8x64xf32> to vector<8x16xf32>
    %cst_49 = arith.constant dense<0.000000e+00> : vector<16x8xf32>
    %105 = tpu.matmul %103, %104, %cst_49 {dimension_numbers = #tpu.dot_dimension_numbers<[1], [1], [0], [0], [0, 0, 1, 0], [], []>} : vector<16x16xf32>, vector<8x16xf32>, vector<16x8xf32> -> vector<16x8xf32>
    %cst_50 = arith.constant dense<0xFF800000> : vector<16xf32>
    %106 = vector.multi_reduction <maximumf>, %105, %cst_50 [1] : vector<16x8xf32> to vector<16xf32>
    %107 = vector.shape_cast %106 : vector<16xf32> to vector<16x1xf32>
    %108 = vector.broadcast %107 : vector<16x1xf32> to vector<16x8xf32>
    %109 = arith.subf %105, %108 : vector<16x8xf32>
    %110 = math.exp %109 : vector<16x8xf32>
    %cst_51 = arith.constant dense<0.000000e+00> : vector<16xf32>
    %111 = vector.multi_reduction <add>, %110, %cst_51 [1] : vector<16x8xf32> to vector<16xf32>
    %112 = vector.shape_cast %111 : vector<16xf32> to vector<16x1xf32>
    %113 = tpu.reciprocal %112 {approx = true} : vector<16x1xf32> -> vector<16x1xf32>
    %114 = arith.mulf %112, %113 : vector<16x1xf32>
    %cst_52 = arith.constant 2.000000e+00 : f32
    %115 = vector.broadcast %cst_52 : f32 to vector<16x1xf32>
    %116 = arith.subf %115, %114 : vector<16x1xf32>
    %117 = arith.mulf %113, %116 : vector<16x1xf32>
    %118 = vector.broadcast %117 : vector<16x1xf32> to vector<16x8xf32>
    %119 = arith.mulf %110, %118 : vector<16x8xf32>
    %120 = vector.extract_strided_slice %62 {offsets = [0, 32], sizes = [8, 16], strides = [1, 1]} : vector<8x64xf32> to vector<8x16xf32>
    %cst_53 = arith.constant dense<0.000000e+00> : vector<16x16xf32>
    %121 = tpu.matmul %119, %120, %cst_53 {dimension_numbers = #tpu.dot_dimension_numbers<[1], [0], [0], [1], [0, 0, 1, 1], [], []>} : vector<16x8xf32>, vector<8x16xf32>, vector<16x16xf32> -> vector<16x16xf32>
    %c0_54 = arith.constant 0 : index
    %c32 = arith.constant 32 : index
    %122 = vector.load %arg25[%c0_54, %c32] : memref<16x64xf32, #tpu.memory_space<vmem>>, vector<16x16xf32>
    tpu.vector_store %arg25[%c0_54, %c32], %121 {strides = array<i32>} : memref<16x64xf32, #tpu.memory_space<vmem>>, vector<16x16xf32>,
    %123 = vector.extract_strided_slice %58 {offsets = [0, 48], sizes = [16, 16], strides = [1, 1]} : vector<16x64xf32> to vector<16x16xf32>
    %124 = vector.extract_strided_slice %60 {offsets = [0, 48], sizes = [8, 16], strides = [1, 1]} : vector<8x64xf32> to vector<8x16xf32>
    %cst_55 = arith.constant dense<0.000000e+00> : vector<16x8xf32>
    %125 = tpu.matmul %123, %124, %cst_55 {dimension_numbers = #tpu.dot_dimension_numbers<[1], [1], [0], [0], [0, 0, 1, 0], [], []>} : vector<16x16xf32>, vector<8x16xf32>, vector<16x8xf32> -> vector<16x8xf32>
    %cst_56 = arith.constant dense<0xFF800000> : vector<16xf32>
    %126 = vector.multi_reduction <maximumf>, %125, %cst_56 [1] : vector<16x8xf32> to vector<16xf32>
    %127 = vector.shape_cast %126 : vector<16xf32> to vector<16x1xf32>
    %128 = vector.broadcast %127 : vector<16x1xf32> to vector<16x8xf32>
    %129 = arith.subf %125, %128 : vector<16x8xf32>
    %130 = math.exp %129 : vector<16x8xf32>
    %cst_57 = arith.constant dense<0.000000e+00> : vector<16xf32>
    %131 = vector.multi_reduction <add>, %130, %cst_57 [1] : vector<16x8xf32> to vector<16xf32>
    %132 = vector.shape_cast %131 : vector<16xf32> to vector<16x1xf32>
    %133 = tpu.reciprocal %132 {approx = true} : vector<16x1xf32> -> vector<16x1xf32>
    %134 = arith.mulf %132, %133 : vector<16x1xf32>
    %cst_58 = arith.constant 2.000000e+00 : f32
    %135 = vector.broadcast %cst_58 : f32 to vector<16x1xf32>
    %136 = arith.subf %135, %134 : vector<16x1xf32>
    %137 = arith.mulf %133, %136 : vector<16x1xf32>
    %138 = vector.broadcast %137 : vector<16x1xf32> to vector<16x8xf32>
    %139 = arith.mulf %130, %138 : vector<16x8xf32>
    %140 = vector.extract_strided_slice %62 {offsets = [0, 48], sizes = [8, 16], strides = [1, 1]} : vector<8x64xf32> to vector<8x16xf32>
    %cst_59 = arith.constant dense<0.000000e+00> : vector<16x16xf32>
    %141 = tpu.matmul %139, %140, %cst_59 {dimension_numbers = #tpu.dot_dimension_numbers<[1], [0], [0], [1], [0, 0, 1, 1], [], []>} : vector<16x8xf32>, vector<8x16xf32>, vector<16x16xf32> -> vector<16x16xf32>
    %c0_60 = arith.constant 0 : index
    %c48 = arith.constant 48 : index
    %142 = vector.load %arg25[%c0_60, %c48] : memref<16x64xf32, #tpu.memory_space<vmem>>, vector<16x16xf32>
    tpu.vector_store %arg25[%c0_60, %c48], %141 {strides = array<i32>} : memref<16x64xf32, #tpu.memory_space<vmem>>, vector<16x16xf32>,
    %c0_61 = arith.constant 0 : index
    %c0_62 = arith.constant 0 : index
    %143 = vector.load %arg25[%c0_61, %c0_62] : memref<16x64xf32, #tpu.memory_space<vmem>>, vector<16x64xf32>
    %c0_63 = arith.constant 0 : index
    %c0_64 = arith.constant 0 : index
    %144 = vector.load %arg16[%c0_63, %c0_64] : memref<64x64xf32, #tpu.memory_space<vmem>>, vector<64x64xf32>
    %cst_65 = arith.constant dense<0.000000e+00> : vector<16x64xf32>
    %145 = tpu.matmul %143, %144, %cst_65 {dimension_numbers = #tpu.dot_dimension_numbers<[1], [0], [0], [1], [0, 0, 1, 1], [], []>} : vector<16x64xf32>, vector<64x64xf32>, vector<16x64xf32> -> vector<16x64xf32>
    %c0_66 = arith.constant 0 : index
    %c0_67 = arith.constant 0 : index
    %146 = vector.load %arg17[%c0_66, %c0_67] : memref<1x64xf32, #tpu.memory_space<vmem>>, vector<1x64xf32>
    %147 = vector.broadcast %146 : vector<1x64xf32> to vector<16x64xf32>
    %148 = arith.addf %145, %147 : vector<16x64xf32>
    %149 = arith.addf %0, %148 : vector<16x64xf32>
    %c0_68 = arith.constant 0 : index
    %c0_69 = arith.constant 0 : index
    %150 = vector.load %arg18[%c0_68, %c0_69] : memref<1x64xf32, #tpu.memory_space<vmem>>, vector<1x64xf32>
    %c0_70 = arith.constant 0 : index
    %c0_71 = arith.constant 0 : index
    %151 = vector.load %arg19[%c0_70, %c0_71] : memref<1x64xf32, #tpu.memory_space<vmem>>, vector<1x64xf32>
    %cst_72 = arith.constant dense<0.000000e+00> : vector<16xf32>
    %152 = vector.multi_reduction <add>, %149, %cst_72 [1] : vector<16x64xf32> to vector<16xf32>
    %153 = vector.shape_cast %152 : vector<16xf32> to vector<16x1xf32>
    %cst_73 = arith.constant 6.400000e+01 : f32
    %154 = vector.broadcast %cst_73 : f32 to vector<16x1xf32>
    %155 = arith.divf %153, %154 : vector<16x1xf32>
    %156 = vector.broadcast %155 : vector<16x1xf32> to vector<16x64xf32>
    %157 = arith.subf %149, %156 : vector<16x64xf32>
    %158 = arith.mulf %157, %157 : vector<16x64xf32>
    %cst_74 = arith.constant dense<0.000000e+00> : vector<16xf32>
    %159 = vector.multi_reduction <add>, %158, %cst_74 [1] : vector<16x64xf32> to vector<16xf32>
    %160 = vector.shape_cast %159 : vector<16xf32> to vector<16x1xf32>
    %cst_75 = arith.constant 6.400000e+01 : f32
    %161 = vector.broadcast %cst_75 : f32 to vector<16x1xf32>
    %162 = arith.divf %160, %161 : vector<16x1xf32>
    %163 = vector.broadcast %155 : vector<16x1xf32> to vector<16x64xf32>
    %164 = arith.subf %149, %163 : vector<16x64xf32>
    %cst_76 = arith.constant 9.99999974E-6 : f32
    %165 = vector.broadcast %cst_76 : f32 to vector<16x1xf32>
    %166 = arith.addf %162, %165 : vector<16x1xf32>
    %167 = math.rsqrt %166 : vector<16x1xf32>
    %168 = vector.broadcast %167 : vector<16x1xf32> to vector<16x64xf32>
    %169 = arith.mulf %164, %168 : vector<16x64xf32>
    %170 = vector.broadcast %150 : vector<1x64xf32> to vector<16x64xf32>
    %171 = arith.mulf %169, %170 : vector<16x64xf32>
    %172 = vector.broadcast %151 : vector<1x64xf32> to vector<16x64xf32>
    %173 = arith.addf %171, %172 : vector<16x64xf32>
    %c0_77 = arith.constant 0 : index
    %c0_78 = arith.constant 0 : index
    %174 = vector.load %arg20[%c0_77, %c0_78] : memref<64x256xf32, #tpu.memory_space<vmem>>, vector<64x256xf32>
    %cst_79 = arith.constant dense<0.000000e+00> : vector<16x256xf32>
    %175 = tpu.matmul %173, %174, %cst_79 {dimension_numbers = #tpu.dot_dimension_numbers<[1], [0], [0], [1], [0, 0, 1, 1], [], []>} : vector<16x64xf32>, vector<64x256xf32>, vector<16x256xf32> -> vector<16x256xf32>
    %c0_80 = arith.constant 0 : index
    %c0_81 = arith.constant 0 : index
    %176 = vector.load %arg21[%c0_80, %c0_81] : memref<1x256xf32, #tpu.memory_space<vmem>>, vector<1x256xf32>
    %177 = vector.broadcast %176 : vector<1x256xf32> to vector<16x256xf32>
    %178 = arith.addf %175, %177 : vector<16x256xf32>
    %cst_82 = arith.constant 5.000000e-01 : f32
    %179 = vector.broadcast %cst_82 : f32 to vector<16x256xf32>
    %180 = arith.mulf %179, %178 : vector<16x256xf32>
    %cst_83 = arith.constant 0.707106769 : f32
    %181 = vector.broadcast %cst_83 : f32 to vector<16x256xf32>
    %182 = arith.mulf %178, %181 : vector<16x256xf32>
    %183 = math.erf %182 : vector<16x256xf32>
    %cst_84 = arith.constant 1.000000e+00 : f32
    %184 = vector.broadcast %cst_84 : f32 to vector<16x256xf32>
    %185 = arith.addf %184, %183 : vector<16x256xf32>
    %186 = arith.mulf %180, %185 : vector<16x256xf32>
    %c0_85 = arith.constant 0 : index
    %c0_86 = arith.constant 0 : index
    %187 = vector.load %arg22[%c0_85, %c0_86] : memref<256x64xf32, #tpu.memory_space<vmem>>, vector<256x64xf32>
    %cst_87 = arith.constant dense<0.000000e+00> : vector<16x64xf32>
    %188 = tpu.matmul %186, %187, %cst_87 {dimension_numbers = #tpu.dot_dimension_numbers<[1], [0], [0], [1], [0, 0, 1, 1], [], []>} : vector<16x256xf32>, vector<256x64xf32>, vector<16x64xf32> -> vector<16x64xf32>
    %c0_88 = arith.constant 0 : index
    %c0_89 = arith.constant 0 : index
    %189 = vector.load %arg23[%c0_88, %c0_89] : memref<1x64xf32, #tpu.memory_space<vmem>>, vector<1x64xf32>
    %190 = vector.broadcast %189 : vector<1x64xf32> to vector<16x64xf32>
    %191 = arith.addf %188, %190 : vector<16x64xf32>
    %192 = arith.addf %149, %191 : vector<16x64xf32>
    %c0_90 = arith.constant 0 : index
    %c0_91 = arith.constant 0 : index
    %193 = vector.load %arg24[%c0_90, %c0_91] : memref<16x64xf32, #tpu.memory_space<vmem>>, vector<16x64xf32>
    tpu.vector_store %arg24[%c0_90, %c0_91], %192 {strides = array<i32>} : memref<16x64xf32, #tpu.memory_space<vmem>>, vector<16x64xf32>,
    return
  }
  func.func @transform_0(%arg0: i32, %arg1: i32) -> (i32, i32) {
    %c1_i32 = arith.constant 1 : i32
    %0 = arith.muli %arg0, %c1_i32 : i32
    %1 = arith.addi %0, %arg1 : i32
    %c0_i32 = arith.constant 0 : i32
    %c0_i32_0 = arith.constant 0 : i32
    return %1, %c0_i32 : i32, i32
  }
  func.func @transform_1(%arg0: i32, %arg1: i32) -> (i32, i32) {
    %c0_i32 = arith.constant 0 : i32
    %c0_i32_0 = arith.constant 0 : i32
    return %arg0, %c0_i32 : i32, i32
  }
  func.func @transform_2(%arg0: i32, %arg1: i32) -> (i32, i32) {
    %c0_i32 = arith.constant 0 : i32
    %c0_i32_0 = arith.constant 0 : i32
    %c0_i32_1 = arith.constant 0 : i32
    return %c0_i32, %c0_i32_0 : i32, i32
  }
  func.func @transform_3(%arg0: i32, %arg1: i32) -> (i32, i32) {
    %c0_i32 = arith.constant 0 : i32
    %c0_i32_0 = arith.constant 0 : i32
    %c0_i32_1 = arith.constant 0 : i32
    return %c0_i32, %c0_i32_0 : i32, i32
  }
  func.func @transform_4(%arg0: i32, %arg1: i32) -> (i32, i32) {
    %c0_i32 = arith.constant 0 : i32
    %c0_i32_0 = arith.constant 0 : i32
    %c0_i32_1 = arith.constant 0 : i32
    return %c0_i32, %c0_i32_0 : i32, i32
  }
  func.func @transform_5(%arg0: i32, %arg1: i32) -> (i32, i32) {
    %c0_i32 = arith.constant 0 : i32
    %c0_i32_0 = arith.constant 0 : i32
    %c0_i32_1 = arith.constant 0 : i32
    return %c0_i32, %c0_i32_0 : i32, i32
  }
  func.func @transform_6(%arg0: i32, %arg1: i32) -> (i32, i32) {
    %c0_i32 = arith.constant 0 : i32
    %c0_i32_0 = arith.constant 0 : i32
    %c0_i32_1 = arith.constant 0 : i32
    return %c0_i32, %c0_i32_0 : i32, i32
  }
  func.func @transform_7(%arg0: i32, %arg1: i32) -> (i32, i32) {
    %c0_i32 = arith.constant 0 : i32
    %c0_i32_0 = arith.constant 0 : i32
    %c0_i32_1 = arith.constant 0 : i32
    return %c0_i32, %c0_i32_0 : i32, i32
  }
  func.func @transform_8(%arg0: i32, %arg1: i32) -> (i32, i32) {
    %c0_i32 = arith.constant 0 : i32
    %c0_i32_0 = arith.constant 0 : i32
    %c0_i32_1 = arith.constant 0 : i32
    return %c0_i32, %c0_i32_0 : i32, i32
  }
  func.func @transform_9(%arg0: i32, %arg1: i32) -> (i32, i32) {
    %c0_i32 = arith.constant 0 : i32
    %c0_i32_0 = arith.constant 0 : i32
    %c0_i32_1 = arith.constant 0 : i32
    return %c0_i32, %c0_i32_0 : i32, i32
  }
  func.func @transform_10(%arg0: i32, %arg1: i32) -> (i32, i32) {
    %c0_i32 = arith.constant 0 : i32
    %c0_i32_0 = arith.constant 0 : i32
    %c0_i32_1 = arith.constant 0 : i32
    return %c0_i32, %c0_i32_0 : i32, i32
  }
  func.func @transform_11(%arg0: i32, %arg1: i32) -> (i32, i32) {
    %c0_i32 = arith.constant 0 : i32
    %c0_i32_0 = arith.constant 0 : i32
    %c0_i32_1 = arith.constant 0 : i32
    return %c0_i32, %c0_i32_0 : i32, i32
  }
  func.func @transform_12(%arg0: i32, %arg1: i32) -> (i32, i32) {
    %c0_i32 = arith.constant 0 : i32
    %c0_i32_0 = arith.constant 0 : i32
    %c0_i32_1 = arith.constant 0 : i32
    return %c0_i32, %c0_i32_0 : i32, i32
  }
  func.func @transform_13(%arg0: i32, %arg1: i32) -> (i32, i32) {
    %c0_i32 = arith.constant 0 : i32
    %c0_i32_0 = arith.constant 0 : i32
    %c0_i32_1 = arith.constant 0 : i32
    return %c0_i32, %c0_i32_0 : i32, i32
  }
  func.func @transform_14(%arg0: i32, %arg1: i32) -> (i32, i32) {
    %c0_i32 = arith.constant 0 : i32
    %c0_i32_0 = arith.constant 0 : i32
    %c0_i32_1 = arith.constant 0 : i32
    return %c0_i32, %c0_i32_0 : i32, i32
  }
  func.func @transform_15(%arg0: i32, %arg1: i32) -> (i32, i32) {
    %c0_i32 = arith.constant 0 : i32
    %c0_i32_0 = arith.constant 0 : i32
    %c0_i32_1 = arith.constant 0 : i32
    return %c0_i32, %c0_i32_0 : i32, i32
  }
  func.func @transform_16(%arg0: i32, %arg1: i32) -> (i32, i32) {
    %c0_i32 = arith.constant 0 : i32
    %c0_i32_0 = arith.constant 0 : i32
    %c0_i32_1 = arith.constant 0 : i32
    return %c0_i32, %c0_i32_0 : i32, i32
  }
  func.func @transform_17(%arg0: i32, %arg1: i32) -> (i32, i32) {
    %c0_i32 = arith.constant 0 : i32
    %c0_i32_0 = arith.constant 0 : i32
    %c0_i32_1 = arith.constant 0 : i32
    return %c0_i32, %c0_i32_0 : i32, i32
  }
  func.func @transform_18(%arg0: i32, %arg1: i32) -> (i32, i32) {
    %c0_i32 = arith.constant 0 : i32
    %c0_i32_0 = arith.constant 0 : i32
    %c0_i32_1 = arith.constant 0 : i32
    return %c0_i32, %c0_i32_0 : i32, i32
  }
  func.func @transform_19(%arg0: i32, %arg1: i32) -> (i32, i32) {
    %c0_i32 = arith.constant 0 : i32
    %c0_i32_0 = arith.constant 0 : i32
    %c0_i32_1 = arith.constant 0 : i32
    return %c0_i32, %c0_i32_0 : i32, i32
  }
  func.func @transform_20(%arg0: i32, %arg1: i32) -> (i32, i32) {
    %c0_i32 = arith.constant 0 : i32
    %c0_i32_0 = arith.constant 0 : i32
    %c0_i32_1 = arith.constant 0 : i32
    return %c0_i32, %c0_i32_0 : i32, i32
  }
  func.func @transform_21(%arg0: i32, %arg1: i32) -> (i32, i32) {
    %c0_i32 = arith.constant 0 : i32
    %c0_i32_0 = arith.constant 0 : i32
    %c0_i32_1 = arith.constant 0 : i32
    return %c0_i32, %c0_i32_0 : i32, i32
  }
  func.func @transform_22(%arg0: i32, %arg1: i32) -> (i32, i32) {
    %c1_i32 = arith.constant 1 : i32
    %0 = arith.muli %arg0, %c1_i32 : i32
    %1 = arith.addi %0, %arg1 : i32
    %c0_i32 = arith.constant 0 : i32
    %c0_i32_0 = arith.constant 0 : i32
    return %1, %c0_i32 : i32, i32
  }
}

</mosaic_0001>

<llo_original>
// kernel: tpu_custom_call.1
$region0: #{tpu_custom_call.1}
  #allocation0 [shape = 'u32[]', space=smem, size = 0x4, offset = 0x4, fixed_abs, tag = 'smem constant byte address 0x4 - core index']
  #allocation1 [shape = 'u32[144,128]{1,0:T(1,128)}', space=vmem, size = 0x12000, scoped, tag = 'internal scratch']
  #allocation2 [shape = 'f32[16,64]{1,0:T(8,128)}', space=vmem, size = 0x2000, scoped, tag = 'scratch operand']
  #allocation3 [shape = 'f32[2,8,64]{2,1,0:T(8,128)}', space=vmem, size = 0x2000, scoped, tag = 'scratch operand']
  %s0 = inlined_call_operand.vmem [shape: f32[32,64], index: 0, kind: input, shape index: {}]
  %s1 = inlined_call_operand.vmem [shape: f32[16,64], index: 1, kind: input, shape index: {}]
  %s2 = inlined_call_operand.vmem [shape: f32[1,64], index: 2, kind: input, shape index: {}]
  %s3 = inlined_call_operand.vmem [shape: f32[1,64], index: 3, kind: input, shape index: {}]
  %s4 = inlined_call_operand.vmem [shape: f32[64,64], index: 4, kind: input, shape index: {}]
  %s5 = inlined_call_operand.vmem [shape: f32[1,64], index: 5, kind: input, shape index: {}]
  %s6 = inlined_call_operand.vmem [shape: f32[64,128], index: 6, kind: input, shape index: {}]
  %s7 = inlined_call_operand.vmem [shape: f32[1,128], index: 7, kind: input, shape index: {}]
  %s8 = inlined_call_operand.vmem [shape: f32[64,4], index: 8, kind: input, shape index: {}]
  %s9 = inlined_call_operand.vmem [shape: f32[4,64], index: 9, kind: input, shape index: {}]
  %s10 = inlined_call_operand.vmem [shape: f32[1,64], index: 10, kind: input, shape index: {}]
  %s11 = inlined_call_operand.vmem [shape: f32[1,64], index: 11, kind: input, shape index: {}]
  %s12 = inlined_call_operand.vmem [shape: f32[1,64], index: 12, kind: input, shape index: {}]
  %s13 = inlined_call_operand.vmem [shape: f32[1,64], index: 13, kind: input, shape index: {}]
  %s14 = inlined_call_operand.vmem [shape: f32[64,64], index: 14, kind: input, shape index: {}]
  %s15 = inlined_call_operand.vmem [shape: f32[1,64], index: 15, kind: input, shape index: {}]
  %s16 = inlined_call_operand.vmem [shape: f32[1,64], index: 16, kind: input, shape index: {}]
  %s17 = inlined_call_operand.vmem [shape: f32[1,64], index: 17, kind: input, shape index: {}]
  %s18 = inlined_call_operand.vmem [shape: f32[64,256], index: 18, kind: input, shape index: {}]
  %s19 = inlined_call_operand.vmem [shape: f32[1,256], index: 19, kind: input, shape index: {}]
  %s20 = inlined_call_operand.vmem [shape: f32[256,64], index: 20, kind: input, shape index: {}]
  %s21 = inlined_call_operand.vmem [shape: f32[1,64], index: 21, kind: input, shape index: {}]
  %s22 = inlined_call_operand.hbm [shape: f32[32,64], index: 22, kind: output, shape index: {}]
  %s23 = sld [smem:[#allocation0]]
  $region125: #{tpu_custom_call.1} parent=0
    _
  %s25 = ssub.s32 1, %s23
  %s26 = scalar_select 0, %s25, %s23
  $region1: #{tpu_custom_call.1} parent=0
    #allocation4 [shape = 'u8[16384]{0}', space=vmem, size = 0x4000, scoped, tag = 'output window, operand 0']
    #allocation5 [shape = 's32[2]{0}', space=sflag, size = 0x8, scoped, tag = 'scoped memory for tpu_custom_call.1']
    %27 = vsyncpa [#allocation5], 0
    %s28 = scalar_lea.sflag [#allocation5], 1
    %29 = vsyncpa %s28, 0
    loop: start=0, step=1, limit=4
    $region2: #{tpu_custom_call.1} parent=1 // loop_pre_header
      _
    $region3: #{tpu_custom_call.1} parent=1 // loop_header
      %s31 = sphi 0, %s35
      %p32 = scmp.ge.s32.totalorder %s31, 4
      %s38 = sphi 0, %s50
      %s39 = sphi 0, %s46
      %s40 = sphi 0, %s38
      %s41 = sphi 0, %s39
      %s42 = sphi 0, %s40
      %s43 = sphi 0, %s41
      %s55 = sphi 0, %s57
      %s58 = sphi 0, %s55
      %s59 = sphi 0, %s58
      %s75 = sphi 0, %s59
      %s81 = sphi 0, %s83
      %s84 = sphi 0, %s81
      %s85 = sphi 0, %s84
      %s101 = sphi 0, %s85
      %s105 = sphi 0, %s105
      %s107 = sphi 0, %s105
      %s108 = sphi 0, %s107
      %s122 = sphi 0, %s108
      %s126 = sphi 0, %s126
      %s128 = sphi 0, %s126
      %s129 = sphi 0, %s128
      %s143 = sphi 0, %s129
      %s147 = sphi 0, %s147
      %s149 = sphi 0, %s147
      %s150 = sphi 0, %s149
      %s164 = sphi 0, %s150
      %s168 = sphi 0, %s168
      %s170 = sphi 0, %s168
      %s171 = sphi 0, %s170
      %s185 = sphi 0, %s171
      %s189 = sphi 0, %s189
      %s191 = sphi 0, %s189
      %s192 = sphi 0, %s191
      %s206 = sphi 0, %s192
      %s210 = sphi 0, %s210
      %s212 = sphi 0, %s210
      %s213 = sphi 0, %s212
      %s227 = sphi 0, %s213
      %s231 = sphi 0, %s231
      %s233 = sphi 0, %s231
      %s234 = sphi 0, %s233
      %s248 = sphi 0, %s234
      %s252 = sphi 0, %s252
      %s254 = sphi 0, %s252
      %s255 = sphi 0, %s254
      %s269 = sphi 0, %s255
      %s273 = sphi 0, %s273
      %s275 = sphi 0, %s273
      %s276 = sphi 0, %s275
      %s290 = sphi 0, %s276
      %s294 = sphi 0, %s294
      %s296 = sphi 0, %s294
      %s297 = sphi 0, %s296
      %s311 = sphi 0, %s297
      %s315 = sphi 0, %s315
      %s317 = sphi 0, %s315
      %s318 = sphi 0, %s317
      %s332 = sphi 0, %s318
      %s336 = sphi 0, %s336
      %s338 = sphi 0, %s336
      %s339 = sphi 0, %s338
      %s353 = sphi 0, %s339
      %s357 = sphi 0, %s357
      %s359 = sphi 0, %s357
      %s360 = sphi 0, %s359
      %s374 = sphi 0, %s360
      %s378 = sphi 0, %s378
      %s380 = sphi 0, %s378
      %s381 = sphi 0, %s380
      %s395 = sphi 0, %s381
      %s399 = sphi 0, %s399
      %s401 = sphi 0, %s399
      %s402 = sphi 0, %s401
      %s416 = sphi 0, %s402
      %s420 = sphi 0, %s420
      %s422 = sphi 0, %s420
      %s423 = sphi 0, %s422
      %s437 = sphi 0, %s423
      %s441 = sphi 0, %s441
      %s443 = sphi 0, %s441
      %s444 = sphi 0, %s443
      %s458 = sphi 0, %s444
      %s462 = sphi 0, %s462
      %s464 = sphi 0, %s462
      %s465 = sphi 0, %s464
      %s479 = sphi 0, %s465
      %s483 = sphi 0, %s483
      %s485 = sphi 0, %s483
      %s486 = sphi 0, %s485
      %s500 = sphi 0, %s486
      %s504 = sphi 0, %s504
      %s506 = sphi 0, %s504
      %s507 = sphi 0, %s506
      %s521 = sphi 0, %s507
      %s529 = sphi 0, %s531
      %s532 = sphi 0, %s529
      %s533 = sphi 0, %s532
      %s549 = sphi 0, %s533
    $region4: #{tpu_custom_call.1} parent=1 // loop_header_branch
      %34 = sbr.rel (%p32) target = $region8
    $region5: #{tpu_custom_call.1} parent=1 // loop_body
      %s36 = ssub.s32 %s31, 1
      %s37 = ssub.s32 %s31, 2
      %s44 = sadd.s32 1, %s39
      %p45 = scmp.ge.s32.totalorder %s44, 1
      %s46 = scalar_select %p45, 0, %s44
      %s47 = sadd.s32 1, %s38
      %s48 = scalar_select %p45, %s47, %s38
      %p49 = scmp.ge.s32.totalorder %s48, 2
      %s50 = scalar_select %p49, 0, %s48
      %s51 = sadd.s32 %s38, %s39
      %s52 = sadd.s32 %s50, %s46
      %s53 = ssub.s32 %s51, %s52
      %p54 = scmp.eq.s32.totalorder %s53, 0
      %s56 = sadd.s32 %s55, 1
      %s57 = scalar_select %p54, %s55, %s56
      %p60 = pneg %p54
      %p61 = scmp.eq.s32.totalorder %s31, 1
      %p62 = por %p60, %p61
      %p63 = scmp.ne.s32.totalorder %s55, %s58
      %p64 = scmp.eq.s32.totalorder %s31, 0
      %p65 = por %p63, %p64
      %p66 = scmp.ne.s32.totalorder %s55, %s58
      %p67 = scmp.eq.s32.totalorder %s36, 1
      %p68 = por %p66, %p67
      %p69 = scmp.ne.s32.totalorder %s58, %s59
      %p70 = scmp.eq.s32.totalorder %s36, 0
      %p71 = por %p69, %p70
      %p72 = scmp.ne.s32.totalorder %s58, %s59
      %p73 = scmp.eq.s32.totalorder %s37, 1
      %p74 = por %p72, %p73
      %p76 = scmp.ne.s32.totalorder %s59, %s75
      %p77 = scmp.eq.s32.totalorder %s37, 0
      %p78 = por %p76, %p77
      %s79 = ssub.s32 %s38, %s50
      %p80 = scmp.eq.s32.totalorder %s79, 0
      %s82 = sadd.s32 %s81, 1
      %s83 = scalar_select %p80, %s81, %s82
      %p86 = pneg %p80
      %p87 = scmp.eq.s32.totalorder %s31, 1
      %p88 = por %p86, %p87
      %p89 = scmp.ne.s32.totalorder %s81, %s84
      %p90 = scmp.eq.s32.totalorder %s31, 0
      %p91 = por %p89, %p90
      %p92 = scmp.ne.s32.totalorder %s81, %s84
      %p93 = scmp.eq.s32.totalorder %s36, 1
      %p94 = por %p92, %p93
      %p95 = scmp.ne.s32.totalorder %s84, %s85
      %p96 = scmp.eq.s32.totalorder %s36, 0
      %p97 = por %p95, %p96
      %p98 = scmp.ne.s32.totalorder %s84, %s85
      %p99 = scmp.eq.s32.totalorder %s37, 1
      %p100 = por %p98, %p99
      %p102 = scmp.ne.s32.totalorder %s85, %s101
      %p103 = scmp.eq.s32.totalorder %s37, 0
      %p104 = por %p102, %p103
      %s106 = sadd.s32 %s105, 1
      %p109 = scmp.eq.s32.totalorder %s31, 1
      %p110 = scmp.ne.s32.totalorder %s105, %s107
      %p111 = scmp.eq.s32.totalorder %s31, 0
      %p112 = por %p110, %p111
      %p113 = scmp.ne.s32.totalorder %s105, %s107
      %p114 = scmp.eq.s32.totalorder %s36, 1
      %p115 = por %p113, %p114
      %p116 = scmp.ne.s32.totalorder %s107, %s108
      %p117 = scmp.eq.s32.totalorder %s36, 0
      %p118 = por %p116, %p117
      %p119 = scmp.ne.s32.totalorder %s107, %s108
      %p120 = scmp.eq.s32.totalorder %s37, 1
      %p121 = por %p119, %p120
      %p123 = scmp.ne.s32.totalorder %s108, %s122
      %p124 = scmp.eq.s32.totalorder %s37, 0
      %p125 = por %p123, %p124
      %s127 = sadd.s32 %s126, 1
      %p130 = scmp.eq.s32.totalorder %s31, 1
      %p131 = scmp.ne.s32.totalorder %s126, %s128
      %p132 = scmp.eq.s32.totalorder %s31, 0
      %p133 = por %p131, %p132
      %p134 = scmp.ne.s32.totalorder %s126, %s128
      %p135 = scmp.eq.s32.totalorder %s36, 1
      %p136 = por %p134, %p135
      %p137 = scmp.ne.s32.totalorder %s128, %s129
      %p138 = scmp.eq.s32.totalorder %s36, 0
      %p139 = por %p137, %p138
      %p140 = scmp.ne.s32.totalorder %s128, %s129
      %p141 = scmp.eq.s32.totalorder %s37, 1
      %p142 = por %p140, %p141
      %p144 = scmp.ne.s32.totalorder %s129, %s143
      %p145 = scmp.eq.s32.totalorder %s37, 0
      %p146 = por %p144, %p145
      %s148 = sadd.s32 %s147, 1
      %p151 = scmp.eq.s32.totalorder %s31, 1
      %p152 = scmp.ne.s32.totalorder %s147, %s149
      %p153 = scmp.eq.s32.totalorder %s31, 0
      %p154 = por %p152, %p153
      %p155 = scmp.ne.s32.totalorder %s147, %s149
      %p156 = scmp.eq.s32.totalorder %s36, 1
      %p157 = por %p155, %p156
      %p158 = scmp.ne.s32.totalorder %s149, %s150
      %p159 = scmp.eq.s32.totalorder %s36, 0
      %p160 = por %p158, %p159
      %p161 = scmp.ne.s32.totalorder %s149, %s150
      %p162 = scmp.eq.s32.totalorder %s37, 1
      %p163 = por %p161, %p162
      %p165 = scmp.ne.s32.totalorder %s150, %s164
      %p166 = scmp.eq.s32.totalorder %s37, 0
      %p167 = por %p165, %p166
      %s169 = sadd.s32 %s168, 1
      %p172 = scmp.eq.s32.totalorder %s31, 1
      %p173 = scmp.ne.s32.totalorder %s168, %s170
      %p174 = scmp.eq.s32.totalorder %s31, 0
      %p175 = por %p173, %p174
      %p176 = scmp.ne.s32.totalorder %s168, %s170
      %p177 = scmp.eq.s32.totalorder %s36, 1
      %p178 = por %p176, %p177
      %p179 = scmp.ne.s32.totalorder %s170, %s171
      %p180 = scmp.eq.s32.totalorder %s36, 0
      %p181 = por %p179, %p180
      %p182 = scmp.ne.s32.totalorder %s170, %s171
      %p183 = scmp.eq.s32.totalorder %s37, 1
      %p184 = por %p182, %p183
      %p186 = scmp.ne.s32.totalorder %s171, %s185
      %p187 = scmp.eq.s32.totalorder %s37, 0
      %p188 = por %p186, %p187
      %s190 = sadd.s32 %s189, 1
      %p193 = scmp.eq.s32.totalorder %s31, 1
      %p194 = scmp.ne.s32.totalorder %s189, %s191
      %p195 = scmp.eq.s32.totalorder %s31, 0
      %p196 = por %p194, %p195
      %p197 = scmp.ne.s32.totalorder %s189, %s191
      %p198 = scmp.eq.s32.totalorder %s36, 1
      %p199 = por %p197, %p198
      %p200 = scmp.ne.s32.totalorder %s191, %s192
      %p201 = scmp.eq.s32.totalorder %s36, 0
      %p202 = por %p200, %p201
      %p203 = scmp.ne.s32.totalorder %s191, %s192
      %p204 = scmp.eq.s32.totalorder %s37, 1
      %p205 = por %p203, %p204
      %p207 = scmp.ne.s32.totalorder %s192, %s206
      %p208 = scmp.eq.s32.totalorder %s37, 0
      %p209 = por %p207, %p208
      %s211 = sadd.s32 %s210, 1
      %p214 = scmp.eq.s32.totalorder %s31, 1
      %p215 = scmp.ne.s32.totalorder %s210, %s212
      %p216 = scmp.eq.s32.totalorder %s31, 0
      %p217 = por %p215, %p216
      %p218 = scmp.ne.s32.totalorder %s210, %s212
      %p219 = scmp.eq.s32.totalorder %s36, 1
      %p220 = por %p218, %p219
      %p221 = scmp.ne.s32.totalorder %s212, %s213
      %p222 = scmp.eq.s32.totalorder %s36, 0
      %p223 = por %p221, %p222
      %p224 = scmp.ne.s32.totalorder %s212, %s213
      %p225 = scmp.eq.s32.totalorder %s37, 1
      %p226 = por %p224, %p225
      %p228 = scmp.ne.s32.totalorder %s213, %s227
      %p229 = scmp.eq.s32.totalorder %s37, 0
      %p230 = por %p228, %p229
      %s232 = sadd.s32 %s231, 1
      %p235 = scmp.eq.s32.totalorder %s31, 1
      %p236 = scmp.ne.s32.totalorder %s231, %s233
      %p237 = scmp.eq.s32.totalorder %s31, 0
      %p238 = por %p236, %p237
      %p239 = scmp.ne.s32.totalorder %s231, %s233
      %p240 = scmp.eq.s32.totalorder %s36, 1
      %p241 = por %p239, %p240
      %p242 = scmp.ne.s32.totalorder %s233, %s234
      %p243 = scmp.eq.s32.totalorder %s36, 0
      %p244 = por %p242, %p243
      %p245 = scmp.ne.s32.totalorder %s233, %s234
      %p246 = scmp.eq.s32.totalorder %s37, 1
      %p247 = por %p245, %p246
      %p249 = scmp.ne.s32.totalorder %s234, %s248
      %p250 = scmp.eq.s32.totalorder %s37, 0
      %p251 = por %p249, %p250
      %s253 = sadd.s32 %s252, 1
      %p256 = scmp.eq.s32.totalorder %s31, 1
      %p257 = scmp.ne.s32.totalorder %s252, %s254
      %p258 = scmp.eq.s32.totalorder %s31, 0
      %p259 = por %p257, %p258
      %p260 = scmp.ne.s32.totalorder %s252, %s254
      %p261 = scmp.eq.s32.totalorder %s36, 1
      %p262 = por %p260, %p261
      %p263 = scmp.ne.s32.totalorder %s254, %s255
      %p264 = scmp.eq.s32.totalorder %s36, 0
      %p265 = por %p263, %p264
      %p266 = scmp.ne.s32.totalorder %s254, %s255
      %p267 = scmp.eq.s32.totalorder %s37, 1
      %p268 = por %p266, %p267
      %p270 = scmp.ne.s32.totalorder %s255, %s269
      %p271 = scmp.eq.s32.totalorder %s37, 0
      %p272 = por %p270, %p271
      %s274 = sadd.s32 %s273, 1
      %p277 = scmp.eq.s32.totalorder %s31, 1
      %p278 = scmp.ne.s32.totalorder %s273, %s275
      %p279 = scmp.eq.s32.totalorder %s31, 0
      %p280 = por %p278, %p279
      %p281 = scmp.ne.s32.totalorder %s273, %s275
      %p282 = scmp.eq.s32.totalorder %s36, 1
      %p283 = por %p281, %p282
      %p284 = scmp.ne.s32.totalorder %s275, %s276
      %p285 = scmp.eq.s32.totalorder %s36, 0
      %p286 = por %p284, %p285
      %p287 = scmp.ne.s32.totalorder %s275, %s276
      %p288 = scmp.eq.s32.totalorder %s37, 1
      %p289 = por %p287, %p288
      %p291 = scmp.ne.s32.totalorder %s276, %s290
      %p292 = scmp.eq.s32.totalorder %s37, 0
      %p293 = por %p291, %p292
      %s295 = sadd.s32 %s294, 1
      %p298 = scmp.eq.s32.totalorder %s31, 1
      %p299 = scmp.ne.s32.totalorder %s294, %s296
      %p300 = scmp.eq.s32.totalorder %s31, 0
      %p301 = por %p299, %p300
      %p302 = scmp.ne.s32.totalorder %s294, %s296
      %p303 = scmp.eq.s32.totalorder %s36, 1
      %p304 = por %p302, %p303
      %p305 = scmp.ne.s32.totalorder %s296, %s297
      %p306 = scmp.eq.s32.totalorder %s36, 0
      %p307 = por %p305, %p306
      %p308 = scmp.ne.s32.totalorder %s296, %s297
      %p309 = scmp.eq.s32.totalorder %s37, 1
      %p310 = por %p308, %p309
      %p312 = scmp.ne.s32.totalorder %s297, %s311
      %p313 = scmp.eq.s32.totalorder %s37, 0
      %p314 = por %p312, %p313
      %s316 = sadd.s32 %s315, 1
      %p319 = scmp.eq.s32.totalorder %s31, 1
      %p320 = scmp.ne.s32.totalorder %s315, %s317
      %p321 = scmp.eq.s32.totalorder %s31, 0
      %p322 = por %p320, %p321
      %p323 = scmp.ne.s32.totalorder %s315, %s317
      %p324 = scmp.eq.s32.totalorder %s36, 1
      %p325 = por %p323, %p324
      %p326 = scmp.ne.s32.totalorder %s317, %s318
      %p327 = scmp.eq.s32.totalorder %s36, 0
      %p328 = por %p326, %p327
      %p329 = scmp.ne.s32.totalorder %s317, %s318
      %p330 = scmp.eq.s32.totalorder %s37, 1
      %p331 = por %p329, %p330
      %p333 = scmp.ne.s32.totalorder %s318, %s332
      %p334 = scmp.eq.s32.totalorder %s37, 0
      %p335 = por %p333, %p334
      %s337 = sadd.s32 %s336, 1
      %p340 = scmp.eq.s32.totalorder %s31, 1
      %p341 = scmp.ne.s32.totalorder %s336, %s338
      %p342 = scmp.eq.s32.totalorder %s31, 0
      %p343 = por %p341, %p342
      %p344 = scmp.ne.s32.totalorder %s336, %s338
      %p345 = scmp.eq.s32.totalorder %s36, 1
      %p346 = por %p344, %p345
      %p347 = scmp.ne.s32.totalorder %s338, %s339
      %p348 = scmp.eq.s32.totalorder %s36, 0
      %p349 = por %p347, %p348
      %p350 = scmp.ne.s32.totalorder %s338, %s339
      %p351 = scmp.eq.s32.totalorder %s37, 1
      %p352 = por %p350, %p351
      %p354 = scmp.ne.s32.totalorder %s339, %s353
      %p355 = scmp.eq.s32.totalorder %s37, 0
      %p356 = por %p354, %p355
      %s358 = sadd.s32 %s357, 1
      %p361 = scmp.eq.s32.totalorder %s31, 1
      %p362 = scmp.ne.s32.totalorder %s357, %s359
      %p363 = scmp.eq.s32.totalorder %s31, 0
      %p364 = por %p362, %p363
      %p365 = scmp.ne.s32.totalorder %s357, %s359
      %p366 = scmp.eq.s32.totalorder %s36, 1
      %p367 = por %p365, %p366
      %p368 = scmp.ne.s32.totalorder %s359, %s360
      %p369 = scmp.eq.s32.totalorder %s36, 0
      %p370 = por %p368, %p369
      %p371 = scmp.ne.s32.totalorder %s359, %s360
      %p372 = scmp.eq.s32.totalorder %s37, 1
      %p373 = por %p371, %p372
      %p375 = scmp.ne.s32.totalorder %s360, %s374
      %p376 = scmp.eq.s32.totalorder %s37, 0
      %p377 = por %p375, %p376
      %s379 = sadd.s32 %s378, 1
      %p382 = scmp.eq.s32.totalorder %s31, 1
      %p383 = scmp.ne.s32.totalorder %s378, %s380
      %p384 = scmp.eq.s32.totalorder %s31, 0
      %p385 = por %p383, %p384
      %p386 = scmp.ne.s32.totalorder %s378, %s380
      %p387 = scmp.eq.s32.totalorder %s36, 1
      %p388 = por %p386, %p387
      %p389 = scmp.ne.s32.totalorder %s380, %s381
      %p390 = scmp.eq.s32.totalorder %s36, 0
      %p391 = por %p389, %p390
      %p392 = scmp.ne.s32.totalorder %s380, %s381
      %p393 = scmp.eq.s32.totalorder %s37, 1
      %p394 = por %p392, %p393
      %p396 = scmp.ne.s32.totalorder %s381, %s395
      %p397 = scmp.eq.s32.totalorder %s37, 0
      %p398 = por %p396, %p397
      %s400 = sadd.s32 %s399, 1
      %p403 = scmp.eq.s32.totalorder %s31, 1
      %p404 = scmp.ne.s32.totalorder %s399, %s401
      %p405 = scmp.eq.s32.totalorder %s31, 0
      %p406 = por %p404, %p405
      %p407 = scmp.ne.s32.totalorder %s399, %s401
      %p408 = scmp.eq.s32.totalorder %s36, 1
      %p409 = por %p407, %p408
      %p410 = scmp.ne.s32.totalorder %s401, %s402
      %p411 = scmp.eq.s32.totalorder %s36, 0
      %p412 = por %p410, %p411
      %p413 = scmp.ne.s32.totalorder %s401, %s402
      %p414 = scmp.eq.s32.totalorder %s37, 1
      %p415 = por %p413, %p414
      %p417 = scmp.ne.s32.totalorder %s402, %s416
      %p418 = scmp.eq.s32.totalorder %s37, 0
      %p419 = por %p417, %p418
      %s421 = sadd.s32 %s420, 1
      %p424 = scmp.eq.s32.totalorder %s31, 1
      %p425 = scmp.ne.s32.totalorder %s420, %s422
      %p426 = scmp.eq.s32.totalorder %s31, 0
      %p427 = por %p425, %p426
      %p428 = scmp.ne.s32.totalorder %s420, %s422
      %p429 = scmp.eq.s32.totalorder %s36, 1
      %p430 = por %p428, %p429
      %p431 = scmp.ne.s32.totalorder %s422, %s423
      %p432 = scmp.eq.s32.totalorder %s36, 0
      %p433 = por %p431, %p432
      %p434 = scmp.ne.s32.totalorder %s422, %s423
      %p435 = scmp.eq.s32.totalorder %s37, 1
      %p436 = por %p434, %p435
      %p438 = scmp.ne.s32.totalorder %s423, %s437
      %p439 = scmp.eq.s32.totalorder %s37, 0
      %p440 = por %p438, %p439
      %s442 = sadd.s32 %s441, 1
      %p445 = scmp.eq.s32.totalorder %s31, 1
      %p446 = scmp.ne.s32.totalorder %s441, %s443
      %p447 = scmp.eq.s32.totalorder %s31, 0
      %p448 = por %p446, %p447
      %p449 = scmp.ne.s32.totalorder %s441, %s443
      %p450 = scmp.eq.s32.totalorder %s36, 1
      %p451 = por %p449, %p450
      %p452 = scmp.ne.s32.totalorder %s443, %s444
      %p453 = scmp.eq.s32.totalorder %s36, 0
      %p454 = por %p452, %p453
      %p455 = scmp.ne.s32.totalorder %s443, %s444
      %p456 = scmp.eq.s32.totalorder %s37, 1
      %p457 = por %p455, %p456
      %p459 = scmp.ne.s32.totalorder %s444, %s458
      %p460 = scmp.eq.s32.totalorder %s37, 0
      %p461 = por %p459, %p460
      %s463 = sadd.s32 %s462, 1
      %p466 = scmp.eq.s32.totalorder %s31, 1
      %p467 = scmp.ne.s32.totalorder %s462, %s464
      %p468 = scmp.eq.s32.totalorder %s31, 0
      %p469 = por %p467, %p468
      %p470 = scmp.ne.s32.totalorder %s462, %s464
      %p471 = scmp.eq.s32.totalorder %s36, 1
      %p472 = por %p470, %p471
      %p473 = scmp.ne.s32.totalorder %s464, %s465
      %p474 = scmp.eq.s32.totalorder %s36, 0
      %p475 = por %p473, %p474
      %p476 = scmp.ne.s32.totalorder %s464, %s465
      %p477 = scmp.eq.s32.totalorder %s37, 1
      %p478 = por %p476, %p477
      %p480 = scmp.ne.s32.totalorder %s465, %s479
      %p481 = scmp.eq.s32.totalorder %s37, 0
      %p482 = por %p480, %p481
      %s484 = sadd.s32 %s483, 1
      %p487 = scmp.eq.s32.totalorder %s31, 1
      %p488 = scmp.ne.s32.totalorder %s483, %s485
      %p489 = scmp.eq.s32.totalorder %s31, 0
      %p490 = por %p488, %p489
      %p491 = scmp.ne.s32.totalorder %s483, %s485
      %p492 = scmp.eq.s32.totalorder %s36, 1
      %p493 = por %p491, %p492
      %p494 = scmp.ne.s32.totalorder %s485, %s486
      %p495 = scmp.eq.s32.totalorder %s36, 0
      %p496 = por %p494, %p495
      %p497 = scmp.ne.s32.totalorder %s485, %s486
      %p498 = scmp.eq.s32.totalorder %s37, 1
      %p499 = por %p497, %p498
      %p501 = scmp.ne.s32.totalorder %s486, %s500
      %p502 = scmp.eq.s32.totalorder %s37, 0
      %p503 = por %p501, %p502
      %s505 = sadd.s32 %s504, 1
      %p508 = scmp.eq.s32.totalorder %s31, 1
      %p509 = scmp.ne.s32.totalorder %s504, %s506
      %p510 = scmp.eq.s32.totalorder %s31, 0
      %p511 = por %p509, %p510
      %p512 = scmp.ne.s32.totalorder %s504, %s506
      %p513 = scmp.eq.s32.totalorder %s36, 1
      %p514 = por %p512, %p513
      %p515 = scmp.ne.s32.totalorder %s506, %s507
      %p516 = scmp.eq.s32.totalorder %s36, 0
      %p517 = por %p515, %p516
      %p518 = scmp.ne.s32.totalorder %s506, %s507
      %p519 = scmp.eq.s32.totalorder %s37, 1
      %p520 = por %p518, %p519
      %p522 = scmp.ne.s32.totalorder %s507, %s521
      %p523 = scmp.eq.s32.totalorder %s37, 0
      %p524 = por %p522, %p523
      %s525 = sadd.s32 %s38, %s39
      %s526 = sadd.s32 %s50, %s46
      %s527 = ssub.s32 %s525, %s526
      %p528 = scmp.eq.s32.totalorder %s527, 0
      %s530 = sadd.s32 %s529, 1
      %s531 = scalar_select %p528, %s529, %s530
      %p534 = pneg %p528
      %p535 = scmp.eq.s32.totalorder %s31, 1
      %p536 = por %p534, %p535
      %p537 = scmp.ne.s32.totalorder %s529, %s532
      %p538 = scmp.eq.s32.totalorder %s31, 0
      %p539 = por %p537, %p538
      %p540 = scmp.ne.s32.totalorder %s529, %s532
      %p541 = scmp.eq.s32.totalorder %s36, 1
      %p542 = por %p540, %p541
      %p543 = scmp.ne.s32.totalorder %s532, %s533
      %p544 = scmp.eq.s32.totalorder %s36, 0
      %p545 = por %p543, %p544
      %p546 = scmp.ne.s32.totalorder %s532, %s533
      %p547 = scmp.eq.s32.totalorder %s37, 1
      %p548 = por %p546, %p547
      %p550 = scmp.ne.s32.totalorder %s533, %s549
      %p551 = scmp.eq.s32.totalorder %s37, 0
      %p552 = por %p550, %p551
      %p553 = scmp.le.s32.totalorder 1, %s31
      %p554 = scmp.lt.s32.totalorder %s31, 3
      %p555 = pnand %p553, %p554
      %p556 = pneg %p555
      // Predicated region
      $region9: #{tpu_custom_call.1} parent=5 // pred_check
        _
      $region10: #{tpu_custom_call.1} parent=5 // pred_check_branch
        %558 = sbr.rel (%p555) target = $region12
      $region11: #{tpu_custom_call.1} parent=5 // pred_region
        %s559 = ssub.s32 %s31, 1
        // Predicated region
        $region13: #{tpu_custom_call.1} parent=11 // pred_check
          %p560 = pneg %p118
        $region14: #{tpu_custom_call.1} parent=11 // pred_check_branch
          %562 = sbr.rel (%p560) target = $region16
        $region15: #{tpu_custom_call.1} parent=11 // pred_region
          _
        $region16: #{tpu_custom_call.1} parent=11 // pred_fallthru
          _
        // Predicated region
        $region17: #{tpu_custom_call.1} parent=11 // pred_check
          %p563 = pneg %p139
        $region18: #{tpu_custom_call.1} parent=11 // pred_check_branch
          %565 = sbr.rel (%p563) target = $region20
        $region19: #{tpu_custom_call.1} parent=11 // pred_region
          _
        $region20: #{tpu_custom_call.1} parent=11 // pred_fallthru
          _
        // Predicated region
        $region21: #{tpu_custom_call.1} parent=11 // pred_check
          %p566 = pneg %p160
        $region22: #{tpu_custom_call.1} parent=11 // pred_check_branch
          %568 = sbr.rel (%p566) target = $region24
        $region23: #{tpu_custom_call.1} parent=11 // pred_region
          _
        $region24: #{tpu_custom_call.1} parent=11 // pred_fallthru
          _
        // Predicated region
        $region25: #{tpu_custom_call.1} parent=11 // pred_check
          %p569 = pneg %p181
        $region26: #{tpu_custom_call.1} parent=11 // pred_check_branch
          %571 = sbr.rel (%p569) target = $region28
        $region27: #{tpu_custom_call.1} parent=11 // pred_region
          _
        $region28: #{tpu_custom_call.1} parent=11 // pred_fallthru
          _
        // Predicated region
        $region29: #{tpu_custom_call.1} parent=11 // pred_check
          %p572 = pneg %p202
        $region30: #{tpu_custom_call.1} parent=11 // pred_check_branch
          %574 = sbr.rel (%p572) target = $region32
        $region31: #{tpu_custom_call.1} parent=11 // pred_region
          _
        $region32: #{tpu_custom_call.1} parent=11 // pred_fallthru
          _
        // Predicated region
        $region33: #{tpu_custom_call.1} parent=11 // pred_check
          %p575 = pneg %p223
        $region34: #{tpu_custom_call.1} parent=11 // pred_check_branch
          %577 = sbr.rel (%p575) target = $region36
        $region35: #{tpu_custom_call.1} parent=11 // pred_region
          _
        $region36: #{tpu_custom_call.1} parent=11 // pred_fallthru
          _
        // Predicated region
        $region37: #{tpu_custom_call.1} parent=11 // pred_check
          %p578 = pneg %p244
        $region38: #{tpu_custom_call.1} parent=11 // pred_check_branch
          %580 = sbr.rel (%p578) target = $region40
        $region39: #{tpu_custom_call.1} parent=11 // pred_region
          _
        $region40: #{tpu_custom_call.1} parent=11 // pred_fallthru
          _
        // Predicated region
        $region41: #{tpu_custom_call.1} parent=11 // pred_check
          %p581 = pneg %p265
        $region42: #{tpu_custom_call.1} parent=11 // pred_check_branch
          %583 = sbr.rel (%p581) target = $region44
        $region43: #{tpu_custom_call.1} parent=11 // pred_region
          _
        $region44: #{tpu_custom_call.1} parent=11 // pred_fallthru
          _
        // Predicated region
        $region45: #{tpu_custom_call.1} parent=11 // pred_check
          %p584 = pneg %p286
        $region46: #{tpu_custom_call.1} parent=11 // pred_check_branch
          %586 = sbr.rel (%p584) target = $region48
        $region47: #{tpu_custom_call.1} parent=11 // pred_region
          _
        $region48: #{tpu_custom_call.1} parent=11 // pred_fallthru
          _
        // Predicated region
        $region49: #{tpu_custom_call.1} parent=11 // pred_check
          %p587 = pneg %p307
        $region50: #{tpu_custom_call.1} parent=11 // pred_check_branch
          %589 = sbr.rel (%p587) target = $region52
        $region51: #{tpu_custom_call.1} parent=11 // pred_region
          _
        $region52: #{tpu_custom_call.1} parent=11 // pred_fallthru
          _
        // Predicated region
        $region53: #{tpu_custom_call.1} parent=11 // pred_check
          %p590 = pneg %p328
        $region54: #{tpu_custom_call.1} parent=11 // pred_check_branch
          %592 = sbr.rel (%p590) target = $region56
        $region55: #{tpu_custom_call.1} parent=11 // pred_region
          _
        $region56: #{tpu_custom_call.1} parent=11 // pred_fallthru
          _
        // Predicated region
        $region57: #{tpu_custom_call.1} parent=11 // pred_check
          %p593 = pneg %p349
        $region58: #{tpu_custom_call.1} parent=11 // pred_check_branch
          %595 = sbr.rel (%p593) target = $region60
        $region59: #{tpu_custom_call.1} parent=11 // pred_region
          _
        $region60: #{tpu_custom_call.1} parent=11 // pred_fallthru
          _
        // Predicated region
        $region61: #{tpu_custom_call.1} parent=11 // pred_check
          %p596 = pneg %p370
        $region62: #{tpu_custom_call.1} parent=11 // pred_check_branch
          %598 = sbr.rel (%p596) target = $region64
        $region63: #{tpu_custom_call.1} parent=11 // pred_region
          _
        $region64: #{tpu_custom_call.1} parent=11 // pred_fallthru
          _
        // Predicated region
        $region65: #{tpu_custom_call.1} parent=11 // pred_check
          %p599 = pneg %p391
        $region66: #{tpu_custom_call.1} parent=11 // pred_check_branch
          %601 = sbr.rel (%p599) target = $region68
        $region67: #{tpu_custom_call.1} parent=11 // pred_region
          _
        $region68: #{tpu_custom_call.1} parent=11 // pred_fallthru
          _
        // Predicated region
        $region69: #{tpu_custom_call.1} parent=11 // pred_check
          %p602 = pneg %p412
        $region70: #{tpu_custom_call.1} parent=11 // pred_check_branch
          %604 = sbr.rel (%p602) target = $region72
        $region71: #{tpu_custom_call.1} parent=11 // pred_region
          _
        $region72: #{tpu_custom_call.1} parent=11 // pred_fallthru
          _
        // Predicated region
        $region73: #{tpu_custom_call.1} parent=11 // pred_check
          %p605 = pneg %p433
        $region74: #{tpu_custom_call.1} parent=11 // pred_check_branch
          %607 = sbr.rel (%p605) target = $region76
        $region75: #{tpu_custom_call.1} parent=11 // pred_region
          _
        $region76: #{tpu_custom_call.1} parent=11 // pred_fallthru
          _
        // Predicated region
        $region77: #{tpu_custom_call.1} parent=11 // pred_check
          %p608 = pneg %p454
        $region78: #{tpu_custom_call.1} parent=11 // pred_check_branch
          %610 = sbr.rel (%p608) target = $region80
        $region79: #{tpu_custom_call.1} parent=11 // pred_region
          _
        $region80: #{tpu_custom_call.1} parent=11 // pred_fallthru
          _
        // Predicated region
        $region81: #{tpu_custom_call.1} parent=11 // pred_check
          %p611 = pneg %p475
        $region82: #{tpu_custom_call.1} parent=11 // pred_check_branch
          %613 = sbr.rel (%p611) target = $region84
        $region83: #{tpu_custom_call.1} parent=11 // pred_region
          _
        $region84: #{tpu_custom_call.1} parent=11 // pred_fallthru
          _
        // Predicated region
        $region85: #{tpu_custom_call.1} parent=11 // pred_check
          %p614 = pneg %p496
        $region86: #{tpu_custom_call.1} parent=11 // pred_check_branch
          %616 = sbr.rel (%p614) target = $region88
        $region87: #{tpu_custom_call.1} parent=11 // pred_region
          _
        $region88: #{tpu_custom_call.1} parent=11 // pred_fallthru
          _
        // Predicated region
        $region89: #{tpu_custom_call.1} parent=11 // pred_check
          %p617 = pneg %p517
        $region90: #{tpu_custom_call.1} parent=11 // pred_check_branch
          %619 = sbr.rel (%p617) target = $region92
        $region91: #{tpu_custom_call.1} parent=11 // pred_region
          _
        $region92: #{tpu_custom_call.1} parent=11 // pred_fallthru
          _
      $region12: #{tpu_custom_call.1} parent=5 // pred_fallthru
        _
      %p620 = scmp.lt.s32.totalorder %s31, 2
      // Predicated region
      $region93: #{tpu_custom_call.1} parent=5 // pred_check
        %p621 = pneg %p620
      $region94: #{tpu_custom_call.1} parent=5 // pred_check_branch
        %623 = sbr.rel (%p621) target = $region96
      $region95: #{tpu_custom_call.1} parent=5 // pred_region
        // Predicated region
        $region97: #{tpu_custom_call.1} parent=95 // pred_check
          %p624 = pneg %p65
        $region98: #{tpu_custom_call.1} parent=95 // pred_check_branch
          %626 = sbr.rel (%p624) target = $region100
        $region99: #{tpu_custom_call.1} parent=95 // pred_region
          %s627 = sadd.s32 %s38, %s39
          %s628 = smul.u32 2, %s627
          %p629 = scmp.lt.s32.totalorder %s628, 3
          %s630 = scalar_select %p629, %s628, 3
          %s631 = smul.addr %s630, 8
          %s632 = scalar_lea.vmem %s0, %s631
          %s633 = sadd.s32 %s38, %s39
          %s634 = smul.u32 2, %s633
        $region100: #{tpu_custom_call.1} parent=95 // pred_fallthru
          _
        // Predicated region
        $region101: #{tpu_custom_call.1} parent=95 // pred_check
          %p635 = pneg %p91
        $region102: #{tpu_custom_call.1} parent=95 // pred_check_branch
          %637 = sbr.rel (%p635) target = $region104
        $region103: #{tpu_custom_call.1} parent=95 // pred_region
          %p638 = scmp.lt.s32.totalorder %s38, 1
          %s639 = scalar_select %p638, %s38, 1
          %s640 = smul.addr %s639, 8
          %s641 = scalar_lea.vmem %s1, %s640
        $region104: #{tpu_custom_call.1} parent=95 // pred_fallthru
          _
      $region96: #{tpu_custom_call.1} parent=5 // pred_fallthru
        _
      %p642 = scmp.le.s32.totalorder 1, %s31
      %p643 = scmp.lt.s32.totalorder %s31, 3
      %p644 = pnand %p642, %p643
      %p645 = pneg %p644
      // Predicated region
      $region105: #{tpu_custom_call.1} parent=5 // pred_check
        _
      $region106: #{tpu_custom_call.1} parent=5 // pred_check_branch
        %647 = sbr.rel (%p644) target = $region108
      $region107: #{tpu_custom_call.1} parent=5 // pred_region
        %s648 = ssub.s32 %s31, 1
        %s649 = sadd.s32 %s40, %s41
        %s650 = smul.u32 2, %s649
        %p651 = scmp.lt.s32.totalorder %s650, 3
        %s652 = scalar_select %p651, %s650, 3
        %s653 = smul.addr %s652, 8
        %s654 = scalar_lea.vmem %s0, %s653
        %p655 = pneg %p71
        %p656 = pneg %p68
        %p657 = scmp.lt.s32.totalorder %s40, 1
        %s658 = scalar_select %p657, %s40, 1
        %s659 = smul.addr %s658, 8
        %s660 = scalar_lea.vmem %s1, %s659
        %p661 = pneg %p97
        %p662 = pneg %p94
        %p663 = pneg %p118
        %p664 = pneg %p115
        %p665 = pneg %p139
        %p666 = pneg %p136
        %p667 = pneg %p160
        %p668 = pneg %p157
        %p669 = pneg %p181
        %p670 = pneg %p178
        %p671 = pneg %p202
        %p672 = pneg %p199
        %p673 = pneg %p223
        %p674 = pneg %p220
        %p675 = pneg %p244
        %p676 = pneg %p241
        %p677 = pneg %p265
        %p678 = pneg %p262
        %p679 = pneg %p286
        %p680 = pneg %p283
        %p681 = pneg %p307
        %p682 = pneg %p304
        %p683 = pneg %p328
        %p684 = pneg %p325
        %p685 = pneg %p349
        %p686 = pneg %p346
        %p687 = pneg %p370
        %p688 = pneg %p367
        %p689 = pneg %p391
        %p690 = pneg %p388
        %p691 = pneg %p412
        %p692 = pneg %p409
        %p693 = pneg %p433
        %p694 = pneg %p430
        %p695 = pneg %p454
        %p696 = pneg %p451
        %p697 = pneg %p475
        %p698 = pneg %p472
        %p699 = pneg %p496
        %p700 = pneg %p493
        %p701 = pneg %p517
        %p702 = pneg %p514
        %p703 = pneg %p545
        %p704 = pneg %p542
        %s705 = sand.u32 %s532, 1
        %s706 = scalar_lea.sflag [#allocation5], %s705
        %s707 = sand.u32 %s532, 1
        %s708 = smul.addr %s707, 16
        %s709 = scalar_lea.vmem [#allocation4], %s708
        %s710 = sadd.s32 %s40, %s41
        %s711 = smul.u32 2, %s710
        %p712 = scmp.lt.s32.totalorder %s711, 3
        %s713 = scalar_select %p712, %s711, 3
        %s714 = smul.addr %s713, 8
        %s715 = scalar_lea.vmem %s0, %s714
        %s716 = sadd.s32 %s40, %s41
        %s717 = smul.u32 2, %s716
        %p718 = scmp.lt.s32.totalorder %s40, 1
        %s719 = scalar_select %p718, %s40, 1
        %s720 = smul.addr %s719, 8
        %s721 = scalar_lea.vmem %s1, %s720
        %s722 = sadd.s32 %s40, %s41
        %s723 = smul.u32 2, %s722
        %v724 = vld [vmem:[%s715] sm:$0xff]
        %v725 = vld [vmem:[%s715 + $0x8] sm:$0xff]
        %p726 = scmp.eq.s32.totalorder %s41, 0
        // Predicated region
        $region109: #{tpu_custom_call.1} parent=107 // pred_check
          %p727 = pneg %p726
        $region110: #{tpu_custom_call.1} parent=107 // pred_check_branch
          %729 = sbr.rel (%p727) target = $region112
        $region111: #{tpu_custom_call.1} parent=107 // pred_region
          %v730 = vld [vmem:[%s721] sm:$0xff]
          %v731 = vld [vmem:[%s6] sm:$0xff]
          %v732 = vld [vmem:[%s6 + $0x8] sm:$0xff]
          %v733 = vld [vmem:[%s6 + $0x10] sm:$0xff]
          %v734 = vld [vmem:[%s6 + $0x18] sm:$0xff]
          %v735 = vld [vmem:[%s6 + $0x20] sm:$0xff]
          %v736 = vld [vmem:[%s6 + $0x28] sm:$0xff]
          %v737 = vld [vmem:[%s6 + $0x30] sm:$0xff]
          %v738 = vld [vmem:[%s6 + $0x38] sm:$0xff]
          %v739 = vld [vmem:[%s7] sm:$0x1]
          %v741 = vlaneseq
          %v742 = vshrl.u32 %v741, 7
          %v743 = vsub.s32 0, %v742
          %v744 = vrot.slane %v739, %v743
          %vm746 = vcmask 523264
          %v748 = vsel %vm746, %v730, 0
          %750 = vmatprep.subr.mxu0 0.0
          %751 = vmatpush1.msra.mxu0 0.0
          %752 = vmatprep.subr.mxu0 0.0
          %753 = vmatpush1.msra.mxu0 0.0
          %754 = vmatprep.subr.mxu0 0.0
          %755 = vmatpush1.msra.mxu0 0.0
          %756 = vmatprep.subr.mxu0 0.0
          %757 = vmatpush1.msra.mxu0 0.0
          %758 = vmatprep.subr.mxu0 0.0
          %759 = vmatpush1.msra.mxu0 0.0
          %760 = vmatprep.subr.mxu0 0.0
          %761 = vmatpush1.msra.mxu0 0.0
          %762 = vmatprep.subr.mxu0 0.0
          %763 = vmatpush1.msra.mxu0 0.0
          %764 = vmatprep.subr.mxu0 0.0
          %765 = vmatpush1.msra.mxu0 0.0
          %766 = vmatprep.subr.mxu0 0.0
          %767 = vmatpush1.msra.mxu0 %v738
          %768 = vmatprep.subr.mxu0 0.0
          %769 = vmatpush1.msra.mxu0 %v737
          %770 = vmatprep.subr.mxu0 0.0
          %771 = vmatpush1.msra.mxu0 %v736
          %772 = vmatprep.subr.mxu0 0.0
          %773 = vmatpush1.msra.mxu0 %v735
          %774 = vmatprep.subr.mxu0 0.0
          %775 = vmatpush1.msra.mxu0 %v734
          %776 = vmatprep.subr.mxu0 0.0
          %777 = vmatpush1.msra.mxu0 %v733
          %778 = vmatprep.subr.mxu0 0.0
          %779 = vmatpush1.msra.mxu0 %v732
          %780 = vmatprep.subr.mxu0 0.0
          %781 = vmatpush1.msra.mxu0 %v731
          %782 = vmatprep.subr.mxu0 0.0
          %783 = vmatpush2.msra.mxu0 0.0
          %784 = vmatprep.subr.mxu0 0.0
          %785 = vmatpush2.msra.mxu0 0.0
          %786 = vmatprep.subr.mxu0 0.0
          %787 = vmatpush2.msra.mxu0 0.0
          %788 = vmatprep.subr.mxu0 0.0
          %789 = vmatpush2.msra.mxu0 0.0
          %790 = vmatprep.subr.mxu0 0.0
          %791 = vmatpush2.msra.mxu0 0.0
          %792 = vmatprep.subr.mxu0 0.0
          %793 = vmatpush2.msra.mxu0 0.0
          %794 = vmatprep.subr.mxu0 0.0
          %795 = vmatpush2.msra.mxu0 0.0
          %796 = vmatprep.subr.mxu0 0.0
          %797 = vmatpush2.msra.mxu0 0.0
          %798 = vmatprep.subr.mxu0 0.0
          %799 = vmatpush2.msra.mxu0 0.0
          %800 = vmatprep.subr.mxu0 0.0
          %801 = vmatpush2.msra.mxu0 0.0
          %802 = vmatprep.subr.mxu0 0.0
          %803 = vmatpush2.msra.mxu0 0.0
          %804 = vmatprep.subr.mxu0 0.0
          %805 = vmatpush2.msra.mxu0 0.0
          %806 = vmatprep.subr.mxu0 0.0
          %807 = vmatpush2.msra.mxu0 0.0
          %808 = vmatprep.subr.mxu0 0.0
          %809 = vmatpush2.msra.mxu0 0.0
          %810 = vmatprep.subr.mxu0 0.0
          %811 = vmatpush2.msra.mxu0 0.0
          %812 = vmatprep.subr.mxu0 0.0
          %813 = vmatpush2.msra.mxu0 0.0
          %814 = vmatprep.mubr.f32.mxu0 0.0
          %815 = vmatmul.mubr.f32.gmra.mxu0 %v748
          %v816 = vpop.f32.mrf.mxu0
          %v817 = vadd.f32 %v744, %v816
          %v818 = vpop.f32.mrf.mxu0
          %819 = vdwg.mxu0
          %v820 = vld [vmem:[%s8] sm:$0xff]
          %v821 = vld [vmem:[%s8 + $0x8] sm:$0xff]
          %v822 = vld [vmem:[%s8 + $0x10] sm:$0xff]
          %v823 = vld [vmem:[%s8 + $0x18] sm:$0xff]
          %v824 = vld [vmem:[%s8 + $0x20] sm:$0xff]
          %v825 = vld [vmem:[%s8 + $0x28] sm:$0xff]
          %v826 = vld [vmem:[%s8 + $0x30] sm:$0xff]
          %v827 = vld [vmem:[%s8 + $0x38] sm:$0xff]
          %v828 = vld [vmem:[%s9] sm:$0xf]
          %v829 = vld [vmem:[%s12] sm:$0x1]
          %v830 = vld [vmem:[%s13] sm:$0x1]
          %v832 = vsel %vm746, %v817, 0
          %834 = vmatprep.subr.mxu0 0.0
          %835 = vmatpush1.msra.mxu0 0.0
          %836 = vmatprep.subr.mxu0 0.0
          %837 = vmatpush1.msra.mxu0 0.0
          %838 = vmatprep.subr.mxu0 0.0
          %839 = vmatpush1.msra.mxu0 0.0
          %840 = vmatprep.subr.mxu0 0.0
          %841 = vmatpush1.msra.mxu0 0.0
          %842 = vmatprep.subr.mxu0 0.0
          %843 = vmatpush1.msra.mxu0 0.0
          %844 = vmatprep.subr.mxu0 0.0
          %845 = vmatpush1.msra.mxu0 0.0
          %846 = vmatprep.subr.mxu0 0.0
          %847 = vmatpush1.msra.mxu0 0.0
          %848 = vmatprep.subr.mxu0 0.0
          %849 = vmatpush1.msra.mxu0 0.0
          %850 = vmatprep.subr.mxu0 0.0
          %851 = vmatpush1.msra.mxu0 %v827
          %852 = vmatprep.subr.mxu0 0.0
          %853 = vmatpush1.msra.mxu0 %v826
          %854 = vmatprep.subr.mxu0 0.0
          %855 = vmatpush1.msra.mxu0 %v825
          %856 = vmatprep.subr.mxu0 0.0
          %857 = vmatpush1.msra.mxu0 %v824
          %858 = vmatprep.subr.mxu0 0.0
          %859 = vmatpush1.msra.mxu0 %v823
          %860 = vmatprep.subr.mxu0 0.0
          %861 = vmatpush1.msra.mxu0 %v822
          %862 = vmatprep.subr.mxu0 0.0
          %863 = vmatpush1.msra.mxu0 %v821
          %864 = vmatprep.subr.mxu0 0.0
          %865 = vmatpush1.msra.mxu0 %v820
          %866 = vmatprep.subr.mxu0 0.0
          %867 = vmatpush2.msra.mxu0 0.0
          %868 = vmatprep.subr.mxu0 0.0
          %869 = vmatpush2.msra.mxu0 0.0
          %870 = vmatprep.subr.mxu0 0.0
          %871 = vmatpush2.msra.mxu0 0.0
          %872 = vmatprep.subr.mxu0 0.0
          %873 = vmatpush2.msra.mxu0 0.0
          %874 = vmatprep.subr.mxu0 0.0
          %875 = vmatpush2.msra.mxu0 0.0
          %876 = vmatprep.subr.mxu0 0.0
          %877 = vmatpush2.msra.mxu0 0.0
          %878 = vmatprep.subr.mxu0 0.0
          %879 = vmatpush2.msra.mxu0 0.0
          %880 = vmatprep.subr.mxu0 0.0
          %881 = vmatpush2.msra.mxu0 0.0
          %882 = vmatprep.subr.mxu0 0.0
          %883 = vmatpush2.msra.mxu0 0.0
          %884 = vmatprep.subr.mxu0 0.0
          %885 = vmatpush2.msra.mxu0 0.0
          %886 = vmatprep.subr.mxu0 0.0
          %887 = vmatpush2.msra.mxu0 0.0
          %888 = vmatprep.subr.mxu0 0.0
          %889 = vmatpush2.msra.mxu0 0.0
          %890 = vmatprep.subr.mxu0 0.0
          %891 = vmatpush2.msra.mxu0 0.0
          %892 = vmatprep.subr.mxu0 0.0
          %893 = vmatpush2.msra.mxu0 0.0
          %894 = vmatprep.subr.mxu0 0.0
          %895 = vmatpush2.msra.mxu0 0.0
          %896 = vmatprep.subr.mxu0 0.0
          %897 = vmatpush2.msra.mxu0 0.0
          %898 = vmatprep.mubr.f32.mxu0 0.0
          %899 = vmatmul.mubr.f32.gmra.mxu0 %v832
          %v900 = vpop.f32.mrf.mxu0
          %v901 = vadd.f32 0.0, %v900
          %v902 = vpop.f32.mrf.mxu0
          %903 = vdwg.mxu0
          %v904 = vmul.f32 %v901, 0.0625
          %v905 = vmul.f32 %v817, %v817
          %v907 = vsel %vm746, %v905, 0
          %909 = vmatprep.subr.mxu0 0.0
          %910 = vmatpush1.msra.mxu0 0.0
          %911 = vmatprep.subr.mxu0 0.0
          %912 = vmatpush1.msra.mxu0 0.0
          %913 = vmatprep.subr.mxu0 0.0
          %914 = vmatpush1.msra.mxu0 0.0
          %915 = vmatprep.subr.mxu0 0.0
          %916 = vmatpush1.msra.mxu0 0.0
          %917 = vmatprep.subr.mxu0 0.0
          %918 = vmatpush1.msra.mxu0 0.0
          %919 = vmatprep.subr.mxu0 0.0
          %920 = vmatpush1.msra.mxu0 0.0
          %921 = vmatprep.subr.mxu0 0.0
          %922 = vmatpush1.msra.mxu0 0.0
          %923 = vmatprep.subr.mxu0 0.0
          %924 = vmatpush1.msra.mxu0 0.0
          %925 = vmatprep.subr.mxu0 0.0
          %926 = vmatpush1.msra.mxu0 %v827
          %927 = vmatprep.subr.mxu0 0.0
          %928 = vmatpush1.msra.mxu0 %v826
          %929 = vmatprep.subr.mxu0 0.0
          %930 = vmatpush1.msra.mxu0 %v825
          %931 = vmatprep.subr.mxu0 0.0
          %932 = vmatpush1.msra.mxu0 %v824
          %933 = vmatprep.subr.mxu0 0.0
          %934 = vmatpush1.msra.mxu0 %v823
          %935 = vmatprep.subr.mxu0 0.0
          %936 = vmatpush1.msra.mxu0 %v822
          %937 = vmatprep.subr.mxu0 0.0
          %938 = vmatpush1.msra.mxu0 %v821
          %939 = vmatprep.subr.mxu0 0.0
          %940 = vmatpush1.msra.mxu0 %v820
          %941 = vmatprep.subr.mxu0 0.0
          %942 = vmatpush2.msra.mxu0 0.0
          %943 = vmatprep.subr.mxu0 0.0
          %944 = vmatpush2.msra.mxu0 0.0
          %945 = vmatprep.subr.mxu0 0.0
          %946 = vmatpush2.msra.mxu0 0.0
          %947 = vmatprep.subr.mxu0 0.0
          %948 = vmatpush2.msra.mxu0 0.0
          %949 = vmatprep.subr.mxu0 0.0
          %950 = vmatpush2.msra.mxu0 0.0
          %951 = vmatprep.subr.mxu0 0.0
          %952 = vmatpush2.msra.mxu0 0.0
          %953 = vmatprep.subr.mxu0 0.0
          %954 = vmatpush2.msra.mxu0 0.0
          %955 = vmatprep.subr.mxu0 0.0
          %956 = vmatpush2.msra.mxu0 0.0
          %957 = vmatprep.subr.mxu0 0.0
          %958 = vmatpush2.msra.mxu0 0.0
          %959 = vmatprep.subr.mxu0 0.0
          %960 = vmatpush2.msra.mxu0 0.0
          %961 = vmatprep.subr.mxu0 0.0
          %962 = vmatpush2.msra.mxu0 0.0
          %963 = vmatprep.subr.mxu0 0.0
          %964 = vmatpush2.msra.mxu0 0.0
          %965 = vmatprep.subr.mxu0 0.0
          %966 = vmatpush2.msra.mxu0 0.0
          %967 = vmatprep.subr.mxu0 0.0
          %968 = vmatpush2.msra.mxu0 0.0
          %969 = vmatprep.subr.mxu0 0.0
          %970 = vmatpush2.msra.mxu0 0.0
          %971 = vmatprep.subr.mxu0 0.0
          %972 = vmatpush2.msra.mxu0 0.0
          %973 = vmatprep.mubr.f32.mxu0 0.0
          %974 = vmatmul.mubr.f32.gmra.mxu0 %v907
          %v975 = vpop.f32.mrf.mxu0
          %v976 = vadd.f32 0.0, %v975
          %v977 = vpop.f32.mrf.mxu0
          %978 = vdwg.mxu0
          %v979 = vmul.f32 %v976, 0.0625
          %v980 = vmul.f32 %v904, %v904
          %v981 = vsub.f32 %v979, %v980
          %v982 = vmax.f32 %v981, 0.0
          %v983 = vadd.f32 %v982, 1e-05
          %v984 = vrsqrt.pop %v983
          %vm985 = vcmask 31744
          %v987 = vsel %vm985, %v904, 0
          %vm989 = vcmask 1043456
          %v991 = vsel %vm989, %v828, 0
          %993 = vmatprep.subr.mxu0 0.0
          %994 = vmatpush1.msra.mxu0 0.0
          %995 = vmatprep.subr.mxu0 0.0
          %996 = vmatpush1.msra.mxu0 0.0
          %997 = vmatprep.subr.mxu0 0.0
          %998 = vmatpush1.msra.mxu0 0.0
          %999 = vmatprep.subr.mxu0 0.0
          %1000 = vmatpush1.msra.mxu0 0.0
          %1001 = vmatprep.subr.mxu0 0.0
          %1002 = vmatpush1.msra.mxu0 0.0
          %1003 = vmatprep.subr.mxu0 0.0
          %1004 = vmatpush1.msra.mxu0 0.0
          %1005 = vmatprep.subr.mxu0 0.0
          %1006 = vmatpush1.msra.mxu0 0.0
          %1007 = vmatprep.subr.mxu0 0.0
          %1008 = vmatpush1.msra.mxu0 0.0
          %1009 = vmatprep.subr.mxu0 0.0
          %1010 = vmatpush1.msra.mxu0 0.0
          %1011 = vmatprep.subr.mxu0 0.0
          %1012 = vmatpush1.msra.mxu0 0.0
          %1013 = vmatprep.subr.mxu0 0.0
          %1014 = vmatpush1.msra.mxu0 0.0
          %1015 = vmatprep.subr.mxu0 0.0
          %1016 = vmatpush1.msra.mxu0 0.0
          %1017 = vmatprep.subr.mxu0 0.0
          %1018 = vmatpush1.msra.mxu0 0.0
          %1019 = vmatprep.subr.mxu0 0.0
          %1020 = vmatpush1.msra.mxu0 0.0
          %1021 = vmatprep.subr.mxu0 0.0
          %1022 = vmatpush1.msra.mxu0 0.0
          %1023 = vmatprep.subr.mxu0 0.0
          %1024 = vmatpush1.msra.mxu0 %v991
          %1025 = vmatprep.subr.mxu0 0.0
          %1026 = vmatpush2.msra.mxu0 0.0
          %1027 = vmatprep.subr.mxu0 0.0
          %1028 = vmatpush2.msra.mxu0 0.0
          %1029 = vmatprep.subr.mxu0 0.0
          %1030 = vmatpush2.msra.mxu0 0.0
          %1031 = vmatprep.subr.mxu0 0.0
          %1032 = vmatpush2.msra.mxu0 0.0
          %1033 = vmatprep.subr.mxu0 0.0
          %1034 = vmatpush2.msra.mxu0 0.0
          %1035 = vmatprep.subr.mxu0 0.0
          %1036 = vmatpush2.msra.mxu0 0.0
          %1037 = vmatprep.subr.mxu0 0.0
          %1038 = vmatpush2.msra.mxu0 0.0
          %1039 = vmatprep.subr.mxu0 0.0
          %1040 = vmatpush2.msra.mxu0 0.0
          %1041 = vmatprep.subr.mxu0 0.0
          %1042 = vmatpush2.msra.mxu0 0.0
          %1043 = vmatprep.subr.mxu0 0.0
          %1044 = vmatpush2.msra.mxu0 0.0
          %1045 = vmatprep.subr.mxu0 0.0
          %1046 = vmatpush2.msra.mxu0 0.0
          %1047 = vmatprep.subr.mxu0 0.0
          %1048 = vmatpush2.msra.mxu0 0.0
          %1049 = vmatprep.subr.mxu0 0.0
          %1050 = vmatpush2.msra.mxu0 0.0
          %1051 = vmatprep.subr.mxu0 0.0
          %1052 = vmatpush2.msra.mxu0 0.0
          %1053 = vmatprep.subr.mxu0 0.0
          %1054 = vmatpush2.msra.mxu0 0.0
          %1055 = vmatprep.subr.mxu0 0.0
          %1056 = vmatpush2.msra.mxu0 0.0
          %1057 = vmatprep.mubr.f32.mxu0 0.0
          %1058 = vmatmul.mubr.f32.gmra.mxu0 %v987
          %v1059 = vpop.f32.mrf.mxu0
          %v1060 = vadd.f32 0.0, %v1059
          %v1061 = vpop.f32.mrf.mxu0
          %1062 = vdwg.mxu0
          %v1064 = vsel %vm985, %v984, 0
          %1066 = vmatprep.subr.mxu0 0.0
          %1067 = vmatpush1.msra.mxu0 0.0
          %1068 = vmatprep.subr.mxu0 0.0
          %1069 = vmatpush1.msra.mxu0 0.0
          %1070 = vmatprep.subr.mxu0 0.0
          %1071 = vmatpush1.msra.mxu0 0.0
          %1072 = vmatprep.subr.mxu0 0.0
          %1073 = vmatpush1.msra.mxu0 0.0
          %1074 = vmatprep.subr.mxu0 0.0
          %1075 = vmatpush1.msra.mxu0 0.0
          %1076 = vmatprep.subr.mxu0 0.0
          %1077 = vmatpush1.msra.mxu0 0.0
          %1078 = vmatprep.subr.mxu0 0.0
          %1079 = vmatpush1.msra.mxu0 0.0
          %1080 = vmatprep.subr.mxu0 0.0
          %1081 = vmatpush1.msra.mxu0 0.0
          %1082 = vmatprep.subr.mxu0 0.0
          %1083 = vmatpush1.msra.mxu0 0.0
          %1084 = vmatprep.subr.mxu0 0.0
          %1085 = vmatpush1.msra.mxu0 0.0
          %1086 = vmatprep.subr.mxu0 0.0
          %1087 = vmatpush1.msra.mxu0 0.0
          %1088 = vmatprep.subr.mxu0 0.0
          %1089 = vmatpush1.msra.mxu0 0.0
          %1090 = vmatprep.subr.mxu0 0.0
          %1091 = vmatpush1.msra.mxu0 0.0
          %1092 = vmatprep.subr.mxu0 0.0
          %1093 = vmatpush1.msra.mxu0 0.0
          %1094 = vmatprep.subr.mxu0 0.0
          %1095 = vmatpush1.msra.mxu0 0.0
          %1096 = vmatprep.subr.mxu0 0.0
          %1097 = vmatpush1.msra.mxu0 %v991
          %1098 = vmatprep.subr.mxu0 0.0
          %1099 = vmatpush2.msra.mxu0 0.0
          %1100 = vmatprep.subr.mxu0 0.0
          %1101 = vmatpush2.msra.mxu0 0.0
          %1102 = vmatprep.subr.mxu0 0.0
          %1103 = vmatpush2.msra.mxu0 0.0
          %1104 = vmatprep.subr.mxu0 0.0
          %1105 = vmatpush2.msra.mxu0 0.0
          %1106 = vmatprep.subr.mxu0 0.0
          %1107 = vmatpush2.msra.mxu0 0.0
          %1108 = vmatprep.subr.mxu0 0.0
          %1109 = vmatpush2.msra.mxu0 0.0
          %1110 = vmatprep.subr.mxu0 0.0
          %1111 = vmatpush2.msra.mxu0 0.0
          %1112 = vmatprep.subr.mxu0 0.0
          %1113 = vmatpush2.msra.mxu0 0.0
          %1114 = vmatprep.subr.mxu0 0.0
          %1115 = vmatpush2.msra.mxu0 0.0
          %1116 = vmatprep.subr.mxu0 0.0
          %1117 = vmatpush2.msra.mxu0 0.0
          %1118 = vmatprep.subr.mxu0 0.0
          %1119 = vmatpush2.msra.mxu0 0.0
          %1120 = vmatprep.subr.mxu0 0.0
          %1121 = vmatpush2.msra.mxu0 0.0
          %1122 = vmatprep.subr.mxu0 0.0
          %1123 = vmatpush2.msra.mxu0 0.0
          %1124 = vmatprep.subr.mxu0 0.0
          %1125 = vmatpush2.msra.mxu0 0.0
          %1126 = vmatprep.subr.mxu0 0.0
          %1127 = vmatpush2.msra.mxu0 0.0
          %1128 = vmatprep.subr.mxu0 0.0
          %1129 = vmatpush2.msra.mxu0 0.0
          %1130 = vmatprep.mubr.f32.mxu0 0.0
          %1131 = vmatmul.mubr.f32.gmra.mxu0 %v1064
          %v1132 = vpop.f32.mrf.mxu0
          %v1133 = vadd.f32 0.0, %v1132
          %v1134 = vpop.f32.mrf.mxu0
          %1135 = vdwg.mxu0
          %v1136 = vsub.f32 %v817, %v1060
          %v1137 = vmul.f32 %v1136, %v1133
          %v1139 = vlaneseq
          %v1140 = vshrl.u32 %v1139, 7
          %v1141 = vsub.s32 0, %v1140
          %v1142 = vrot.slane %v829, %v1141
          %v1144 = vmul.f32 %v1137, %v1142
          %v1146 = vlaneseq
          %v1147 = vshrl.u32 %v1146, 7
          %v1148 = vsub.s32 0, %v1147
          %v1149 = vrot.slane %v830, %v1148
          %v1151 = vadd.f32 %v1144, %v1149
          %1152 = vst.msk [vmem:[#allocation3] sm:$0xff] %vm746, %v1151
          %1153 = vrot.lane.b32.xlu0 %v817, 64
          %v1154 = vpop.permute.xlu0 %1153
          %s1156 = scalar_lea.vmem [#allocation3], 8
          %1157 = vst.msk [vmem:[%s1156] sm:$0xff] %vm746, %v1154
        $region112: #{tpu_custom_call.1} parent=107 // pred_fallthru
          _
        %v1158 = vld [vmem:[%s2] sm:$0x1]
        %v1159 = vld [vmem:[%s3] sm:$0x1]
        %vm1160 = vcmask 523264
        %v1161 = vsel %vm1160, %v724, 0.0
        %1162 = vadd.xlane.f32.xlu0 %v1161
        %v1163 = vpop.xlane.xlu0 %1162
        %v1164 = vsel %vm1160, %v725, 0.0
        %1165 = vadd.xlane.f32.xlu0 %v1164
        %v1166 = vpop.xlane.xlu0 %1165
        %v1167 = vrcp.pop 64.0
        %v1168 = vmul.f32 %v1163, %v1167
        %v1169 = vmul.f32 %v1166, %v1167
        %v1170 = vsub.f32 %v724, %v1168
        %v1171 = vsub.f32 %v725, %v1169
        %v1172 = vmul.f32 %v1170, %v1170
        %v1173 = vmul.f32 %v1171, %v1171
        %v1174 = vsel %vm1160, %v1172, 0.0
        %1175 = vadd.xlane.f32.xlu0 %v1174
        %v1176 = vpop.xlane.xlu0 %1175
        %v1177 = vsel %vm1160, %v1173, 0.0
        %1178 = vadd.xlane.f32.xlu0 %v1177
        %v1179 = vpop.xlane.xlu0 %1178
        %v1180 = vmul.f32 %v1176, %v1167
        %v1181 = vmul.f32 %v1179, %v1167
        %v1182 = vadd.f32 %v1180, 1e-05
        %v1183 = vadd.f32 %v1181, 1e-05
        %v1184 = vrsqrt.pop %v1182
        %v1185 = vrsqrt.pop %v1183
        %v1186 = vmul.f32 %v1170, %v1184
        %v1187 = vmul.f32 %v1171, %v1185
        %v1189 = vlaneseq
        %v1190 = vshrl.u32 %v1189, 7
        %v1191 = vsub.s32 0, %v1190
        %v1192 = vrot.slane %v1158, %v1191
        %v1194 = vmul.f32 %v1186, %v1192
        %v1195 = vmul.f32 %v1187, %v1192
        %v1197 = vlaneseq
        %v1198 = vshrl.u32 %v1197, 7
        %v1199 = vsub.s32 0, %v1198
        %v1200 = vrot.slane %v1159, %v1199
        %v1202 = vadd.f32 %v1194, %v1200
        %v1203 = vadd.f32 %v1195, %v1200
        %v1204 = vld [vmem:[%s4] sm:$0xff]
        %v1205 = vld [vmem:[%s4 + $0x8] sm:$0xff]
        %v1206 = vld [vmem:[%s4 + $0x10] sm:$0xff]
        %v1207 = vld [vmem:[%s4 + $0x18] sm:$0xff]
        %v1208 = vld [vmem:[%s4 + $0x20] sm:$0xff]
        %v1209 = vld [vmem:[%s4 + $0x28] sm:$0xff]
        %v1210 = vld [vmem:[%s4 + $0x30] sm:$0xff]
        %v1211 = vld [vmem:[%s4 + $0x38] sm:$0xff]
        %v1212 = vld [vmem:[%s5] sm:$0x1]
        %v1214 = vlaneseq
        %v1215 = vshrl.u32 %v1214, 7
        %v1216 = vsub.s32 0, %v1215
        %v1217 = vrot.slane %v1212, %v1216
        %v1220 = vsel %vm1160, %v1202, 0
        %v1223 = vsel %vm1160, %v1203, 0
        %1225 = vmatprep.subr.mxu0 0.0
        %1226 = vmatpush1.msra.mxu0 0.0
        %1227 = vmatprep.subr.mxu0 0.0
        %1228 = vmatpush1.msra.mxu0 0.0
        %1229 = vmatprep.subr.mxu0 0.0
        %1230 = vmatpush1.msra.mxu0 0.0
        %1231 = vmatprep.subr.mxu0 0.0
        %1232 = vmatpush1.msra.mxu0 0.0
        %1233 = vmatprep.subr.mxu0 0.0
        %1234 = vmatpush1.msra.mxu0 0.0
        %1235 = vmatprep.subr.mxu0 0.0
        %1236 = vmatpush1.msra.mxu0 0.0
        %1237 = vmatprep.subr.mxu0 0.0
        %1238 = vmatpush1.msra.mxu0 0.0
        %1239 = vmatprep.subr.mxu0 0.0
        %1240 = vmatpush1.msra.mxu0 0.0
        %1241 = vmatprep.subr.mxu0 0.0
        %1242 = vmatpush1.msra.mxu0 %v1211
        %1243 = vmatprep.subr.mxu0 0.0
        %1244 = vmatpush1.msra.mxu0 %v1210
        %1245 = vmatprep.subr.mxu0 0.0
        %1246 = vmatpush1.msra.mxu0 %v1209
        %1247 = vmatprep.subr.mxu0 0.0
        %1248 = vmatpush1.msra.mxu0 %v1208
        %1249 = vmatprep.subr.mxu0 0.0
        %1250 = vmatpush1.msra.mxu0 %v1207
        %1251 = vmatprep.subr.mxu0 0.0
        %1252 = vmatpush1.msra.mxu0 %v1206
        %1253 = vmatprep.subr.mxu0 0.0
        %1254 = vmatpush1.msra.mxu0 %v1205
        %1255 = vmatprep.subr.mxu0 0.0
        %1256 = vmatpush1.msra.mxu0 %v1204
        %1257 = vmatprep.subr.mxu0 0.0
        %1258 = vmatpush2.msra.mxu0 0.0
        %1259 = vmatprep.subr.mxu0 0.0
        %1260 = vmatpush2.msra.mxu0 0.0
        %1261 = vmatprep.subr.mxu0 0.0
        %1262 = vmatpush2.msra.mxu0 0.0
        %1263 = vmatprep.subr.mxu0 0.0
        %1264 = vmatpush2.msra.mxu0 0.0
        %1265 = vmatprep.subr.mxu0 0.0
        %1266 = vmatpush2.msra.mxu0 0.0
        %1267 = vmatprep.subr.mxu0 0.0
        %1268 = vmatpush2.msra.mxu0 0.0
        %1269 = vmatprep.subr.mxu0 0.0
        %1270 = vmatpush2.msra.mxu0 0.0
        %1271 = vmatprep.subr.mxu0 0.0
        %1272 = vmatpush2.msra.mxu0 0.0
        %1273 = vmatprep.subr.mxu0 0.0
        %1274 = vmatpush2.msra.mxu0 0.0
        %1275 = vmatprep.subr.mxu0 0.0
        %1276 = vmatpush2.msra.mxu0 0.0
        %1277 = vmatprep.subr.mxu0 0.0
        %1278 = vmatpush2.msra.mxu0 0.0
        %1279 = vmatprep.subr.mxu0 0.0
        %1280 = vmatpush2.msra.mxu0 0.0
        %1281 = vmatprep.subr.mxu0 0.0
        %1282 = vmatpush2.msra.mxu0 0.0
        %1283 = vmatprep.subr.mxu0 0.0
        %1284 = vmatpush2.msra.mxu0 0.0
        %1285 = vmatprep.subr.mxu0 0.0
        %1286 = vmatpush2.msra.mxu0 0.0
        %1287 = vmatprep.subr.mxu0 0.0
        %1288 = vmatpush2.msra.mxu0 0.0
        %1289 = vmatprep.mubr.f32.mxu0 0.0
        %1290 = vmatmul.mubr.f32.gmra.mxu0 %v1220
        %v1291 = vpop.f32.mrf.mxu0
        %v1292 = vadd.f32 %v1217, %v1291
        %v1293 = vpop.f32.mrf.mxu0
        %1294 = vmatprep.mubr.f32.mxu0 0.0
        %1295 = vmatmul.mubr.f32.gmra.mxu0 %v1223
        %v1296 = vpop.f32.mrf.mxu0
        %v1297 = vadd.f32 %v1217, %v1296
        %v1298 = vpop.f32.mrf.mxu0
        %1299 = vdwg.mxu0
        %v1300 = vld [vmem:[%s8] sm:$0xff]
        %v1301 = vld [vmem:[%s8 + $0x8] sm:$0xff]
        %v1302 = vld [vmem:[%s8 + $0x10] sm:$0xff]
        %v1303 = vld [vmem:[%s8 + $0x18] sm:$0xff]
        %v1304 = vld [vmem:[%s8 + $0x20] sm:$0xff]
        %v1305 = vld [vmem:[%s8 + $0x28] sm:$0xff]
        %v1306 = vld [vmem:[%s8 + $0x30] sm:$0xff]
        %v1307 = vld [vmem:[%s8 + $0x38] sm:$0xff]
        %v1308 = vld [vmem:[%s9] sm:$0xf]
        %v1309 = vld [vmem:[%s10] sm:$0x1]
        %v1310 = vld [vmem:[%s11] sm:$0x1]
        %v1312 = vsel %vm1160, %v1292, 0
        %v1315 = vsel %vm1160, %v1297, 0
        %1317 = vmatprep.subr.mxu0 0.0
        %1318 = vmatpush1.msra.mxu0 0.0
        %1319 = vmatprep.subr.mxu0 0.0
        %1320 = vmatpush1.msra.mxu0 0.0
        %1321 = vmatprep.subr.mxu0 0.0
        %1322 = vmatpush1.msra.mxu0 0.0
        %1323 = vmatprep.subr.mxu0 0.0
        %1324 = vmatpush1.msra.mxu0 0.0
        %1325 = vmatprep.subr.mxu0 0.0
        %1326 = vmatpush1.msra.mxu0 0.0
        %1327 = vmatprep.subr.mxu0 0.0
        %1328 = vmatpush1.msra.mxu0 0.0
        %1329 = vmatprep.subr.mxu0 0.0
        %1330 = vmatpush1.msra.mxu0 0.0
        %1331 = vmatprep.subr.mxu0 0.0
        %1332 = vmatpush1.msra.mxu0 0.0
        %1333 = vmatprep.subr.mxu0 0.0
        %1334 = vmatpush1.msra.mxu0 %v1307
        %1335 = vmatprep.subr.mxu0 0.0
        %1336 = vmatpush1.msra.mxu0 %v1306
        %1337 = vmatprep.subr.mxu0 0.0
        %1338 = vmatpush1.msra.mxu0 %v1305
        %1339 = vmatprep.subr.mxu0 0.0
        %1340 = vmatpush1.msra.mxu0 %v1304
        %1341 = vmatprep.subr.mxu0 0.0
        %1342 = vmatpush1.msra.mxu0 %v1303
        %1343 = vmatprep.subr.mxu0 0.0
        %1344 = vmatpush1.msra.mxu0 %v1302
        %1345 = vmatprep.subr.mxu0 0.0
        %1346 = vmatpush1.msra.mxu0 %v1301
        %1347 = vmatprep.subr.mxu0 0.0
        %1348 = vmatpush1.msra.mxu0 %v1300
        %1349 = vmatprep.subr.mxu0 0.0
        %1350 = vmatpush2.msra.mxu0 0.0
        %1351 = vmatprep.subr.mxu0 0.0
        %1352 = vmatpush2.msra.mxu0 0.0
        %1353 = vmatprep.subr.mxu0 0.0
        %1354 = vmatpush2.msra.mxu0 0.0
        %1355 = vmatprep.subr.mxu0 0.0
        %1356 = vmatpush2.msra.mxu0 0.0
        %1357 = vmatprep.subr.mxu0 0.0
        %1358 = vmatpush2.msra.mxu0 0.0
        %1359 = vmatprep.subr.mxu0 0.0
        %1360 = vmatpush2.msra.mxu0 0.0
        %1361 = vmatprep.subr.mxu0 0.0
        %1362 = vmatpush2.msra.mxu0 0.0
        %1363 = vmatprep.subr.mxu0 0.0
        %1364 = vmatpush2.msra.mxu0 0.0
        %1365 = vmatprep.subr.mxu0 0.0
        %1366 = vmatpush2.msra.mxu0 0.0
        %1367 = vmatprep.subr.mxu0 0.0
        %1368 = vmatpush2.msra.mxu0 0.0
        %1369 = vmatprep.subr.mxu0 0.0
        %1370 = vmatpush2.msra.mxu0 0.0
        %1371 = vmatprep.subr.mxu0 0.0
        %1372 = vmatpush2.msra.mxu0 0.0
        %1373 = vmatprep.subr.mxu0 0.0
        %1374 = vmatpush2.msra.mxu0 0.0
        %1375 = vmatprep.subr.mxu0 0.0
        %1376 = vmatpush2.msra.mxu0 0.0
        %1377 = vmatprep.subr.mxu0 0.0
        %1378 = vmatpush2.msra.mxu0 0.0
        %1379 = vmatprep.subr.mxu0 0.0
        %1380 = vmatpush2.msra.mxu0 0.0
        %1381 = vmatprep.mubr.f32.mxu0 0.0
        %1382 = vmatmul.mubr.f32.gmra.mxu0 %v1312
        %v1383 = vpop.f32.mrf.mxu0
        %v1384 = vadd.f32 0.0, %v1383
        %v1385 = vpop.f32.mrf.mxu0
        %1386 = vmatprep.mubr.f32.mxu0 0.0
        %1387 = vmatmul.mubr.f32.gmra.mxu0 %v1315
        %v1388 = vpop.f32.mrf.mxu0
        %v1389 = vadd.f32 0.0, %v1388
        %v1390 = vpop.f32.mrf.mxu0
        %1391 = vdwg.mxu0
        %v1392 = vmul.f32 %v1384, 0.0625
        %v1393 = vmul.f32 %v1389, 0.0625
        %v1394 = vmul.f32 %v1292, %v1292
        %v1395 = vmul.f32 %v1297, %v1297
        %v1397 = vsel %vm1160, %v1394, 0
        %v1400 = vsel %vm1160, %v1395, 0
        %1402 = vmatprep.subr.mxu0 0.0
        %1403 = vmatpush1.msra.mxu0 0.0
        %1404 = vmatprep.subr.mxu0 0.0
        %1405 = vmatpush1.msra.mxu0 0.0
        %1406 = vmatprep.subr.mxu0 0.0
        %1407 = vmatpush1.msra.mxu0 0.0
        %1408 = vmatprep.subr.mxu0 0.0
        %1409 = vmatpush1.msra.mxu0 0.0
        %1410 = vmatprep.subr.mxu0 0.0
        %1411 = vmatpush1.msra.mxu0 0.0
        %1412 = vmatprep.subr.mxu0 0.0
        %1413 = vmatpush1.msra.mxu0 0.0
        %1414 = vmatprep.subr.mxu0 0.0
        %1415 = vmatpush1.msra.mxu0 0.0
        %1416 = vmatprep.subr.mxu0 0.0
        %1417 = vmatpush1.msra.mxu0 0.0
        %1418 = vmatprep.subr.mxu0 0.0
        %1419 = vmatpush1.msra.mxu0 %v1307
        %1420 = vmatprep.subr.mxu0 0.0
        %1421 = vmatpush1.msra.mxu0 %v1306
        %1422 = vmatprep.subr.mxu0 0.0
        %1423 = vmatpush1.msra.mxu0 %v1305
        %1424 = vmatprep.subr.mxu0 0.0
        %1425 = vmatpush1.msra.mxu0 %v1304
        %1426 = vmatprep.subr.mxu0 0.0
        %1427 = vmatpush1.msra.mxu0 %v1303
        %1428 = vmatprep.subr.mxu0 0.0
        %1429 = vmatpush1.msra.mxu0 %v1302
        %1430 = vmatprep.subr.mxu0 0.0
        %1431 = vmatpush1.msra.mxu0 %v1301
        %1432 = vmatprep.subr.mxu0 0.0
        %1433 = vmatpush1.msra.mxu0 %v1300
        %1434 = vmatprep.subr.mxu0 0.0
        %1435 = vmatpush2.msra.mxu0 0.0
        %1436 = vmatprep.subr.mxu0 0.0
        %1437 = vmatpush2.msra.mxu0 0.0
        %1438 = vmatprep.subr.mxu0 0.0
        %1439 = vmatpush2.msra.mxu0 0.0
        %1440 = vmatprep.subr.mxu0 0.0
        %1441 = vmatpush2.msra.mxu0 0.0
        %1442 = vmatprep.subr.mxu0 0.0
        %1443 = vmatpush2.msra.mxu0 0.0
        %1444 = vmatprep.subr.mxu0 0.0
        %1445 = vmatpush2.msra.mxu0 0.0
        %1446 = vmatprep.subr.mxu0 0.0
        %1447 = vmatpush2.msra.mxu0 0.0
        %1448 = vmatprep.subr.mxu0 0.0
        %1449 = vmatpush2.msra.mxu0 0.0
        %1450 = vmatprep.subr.mxu0 0.0
        %1451 = vmatpush2.msra.mxu0 0.0
        %1452 = vmatprep.subr.mxu0 0.0
        %1453 = vmatpush2.msra.mxu0 0.0
        %1454 = vmatprep.subr.mxu0 0.0
        %1455 = vmatpush2.msra.mxu0 0.0
        %1456 = vmatprep.subr.mxu0 0.0
        %1457 = vmatpush2.msra.mxu0 0.0
        %1458 = vmatprep.subr.mxu0 0.0
        %1459 = vmatpush2.msra.mxu0 0.0
        %1460 = vmatprep.subr.mxu0 0.0
        %1461 = vmatpush2.msra.mxu0 0.0
        %1462 = vmatprep.subr.mxu0 0.0
        %1463 = vmatpush2.msra.mxu0 0.0
        %1464 = vmatprep.subr.mxu0 0.0
        %1465 = vmatpush2.msra.mxu0 0.0
        %1466 = vmatprep.mubr.f32.mxu0 0.0
        %1467 = vmatmul.mubr.f32.gmra.mxu0 %v1397
        %v1468 = vpop.f32.mrf.mxu0
        %v1469 = vadd.f32 0.0, %v1468
        %v1470 = vpop.f32.mrf.mxu0
        %1471 = vmatprep.mubr.f32.mxu0 0.0
        %1472 = vmatmul.mubr.f32.gmra.mxu0 %v1400
        %v1473 = vpop.f32.mrf.mxu0
        %v1474 = vadd.f32 0.0, %v1473
        %v1475 = vpop.f32.mrf.mxu0
        %1476 = vdwg.mxu0
        %v1477 = vmul.f32 %v1469, 0.0625
        %v1478 = vmul.f32 %v1474, 0.0625
        %v1479 = vmul.f32 %v1392, %v1392
        %v1480 = vmul.f32 %v1393, %v1393
        %v1481 = vsub.f32 %v1477, %v1479
        %v1482 = vsub.f32 %v1478, %v1480
        %v1483 = vmax.f32 %v1481, 0.0
        %v1484 = vmax.f32 %v1482, 0.0
        %v1485 = vadd.f32 %v1483, 1e-05
        %v1486 = vadd.f32 %v1484, 1e-05
        %v1487 = vrsqrt.pop %v1485
        %v1488 = vrsqrt.pop %v1486
        %vm1489 = vcmask 31744
        %v1491 = vsel %vm1489, %v1392, 0
        %v1494 = vsel %vm1489, %v1393, 0
        %vm1496 = vcmask 1043456
        %v1498 = vsel %vm1496, %v1308, 0
        %1500 = vmatprep.subr.mxu0 0.0
        %1501 = vmatpush1.msra.mxu0 0.0
        %1502 = vmatprep.subr.mxu0 0.0
        %1503 = vmatpush1.msra.mxu0 0.0
        %1504 = vmatprep.subr.mxu0 0.0
        %1505 = vmatpush1.msra.mxu0 0.0
        %1506 = vmatprep.subr.mxu0 0.0
        %1507 = vmatpush1.msra.mxu0 0.0
        %1508 = vmatprep.subr.mxu0 0.0
        %1509 = vmatpush1.msra.mxu0 0.0
        %1510 = vmatprep.subr.mxu0 0.0
        %1511 = vmatpush1.msra.mxu0 0.0
        %1512 = vmatprep.subr.mxu0 0.0
        %1513 = vmatpush1.msra.mxu0 0.0
        %1514 = vmatprep.subr.mxu0 0.0
        %1515 = vmatpush1.msra.mxu0 0.0
        %1516 = vmatprep.subr.mxu0 0.0
        %1517 = vmatpush1.msra.mxu0 0.0
        %1518 = vmatprep.subr.mxu0 0.0
        %1519 = vmatpush1.msra.mxu0 0.0
        %1520 = vmatprep.subr.mxu0 0.0
        %1521 = vmatpush1.msra.mxu0 0.0
        %1522 = vmatprep.subr.mxu0 0.0
        %1523 = vmatpush1.msra.mxu0 0.0
        %1524 = vmatprep.subr.mxu0 0.0
        %1525 = vmatpush1.msra.mxu0 0.0
        %1526 = vmatprep.subr.mxu0 0.0
        %1527 = vmatpush1.msra.mxu0 0.0
        %1528 = vmatprep.subr.mxu0 0.0
        %1529 = vmatpush1.msra.mxu0 0.0
        %1530 = vmatprep.subr.mxu0 0.0
        %1531 = vmatpush1.msra.mxu0 %v1498
        %1532 = vmatprep.subr.mxu0 0.0
        %1533 = vmatpush2.msra.mxu0 0.0
        %1534 = vmatprep.subr.mxu0 0.0
        %1535 = vmatpush2.msra.mxu0 0.0
        %1536 = vmatprep.subr.mxu0 0.0
        %1537 = vmatpush2.msra.mxu0 0.0
        %1538 = vmatprep.subr.mxu0 0.0
        %1539 = vmatpush2.msra.mxu0 0.0
        %1540 = vmatprep.subr.mxu0 0.0
        %1541 = vmatpush2.msra.mxu0 0.0
        %1542 = vmatprep.subr.mxu0 0.0
        %1543 = vmatpush2.msra.mxu0 0.0
        %1544 = vmatprep.subr.mxu0 0.0
        %1545 = vmatpush2.msra.mxu0 0.0
        %1546 = vmatprep.subr.mxu0 0.0
        %1547 = vmatpush2.msra.mxu0 0.0
        %1548 = vmatprep.subr.mxu0 0.0
        %1549 = vmatpush2.msra.mxu0 0.0
        %1550 = vmatprep.subr.mxu0 0.0
        %1551 = vmatpush2.msra.mxu0 0.0
        %1552 = vmatprep.subr.mxu0 0.0
        %1553 = vmatpush2.msra.mxu0 0.0
        %1554 = vmatprep.subr.mxu0 0.0
        %1555 = vmatpush2.msra.mxu0 0.0
        %1556 = vmatprep.subr.mxu0 0.0
        %1557 = vmatpush2.msra.mxu0 0.0
        %1558 = vmatprep.subr.mxu0 0.0
        %1559 = vmatpush2.msra.mxu0 0.0
        %1560 = vmatprep.subr.mxu0 0.0
        %1561 = vmatpush2.msra.mxu0 0.0
        %1562 = vmatprep.subr.mxu0 0.0
        %1563 = vmatpush2.msra.mxu0 0.0
        %1564 = vmatprep.mubr.f32.mxu0 0.0
        %1565 = vmatmul.mubr.f32.gmra.mxu0 %v1491
        %v1566 = vpop.f32.mrf.mxu0
        %v1567 = vadd.f32 0.0, %v1566
        %v1568 = vpop.f32.mrf.mxu0
        %1569 = vmatprep.mubr.f32.mxu0 0.0
        %1570 = vmatmul.mubr.f32.gmra.mxu0 %v1494
        %v1571 = vpop.f32.mrf.mxu0
        %v1572 = vadd.f32 0.0, %v1571
        %v1573 = vpop.f32.mrf.mxu0
        %1574 = vdwg.mxu0
        %v1576 = vsel %vm1489, %v1487, 0
        %v1579 = vsel %vm1489, %v1488, 0
        %1581 = vmatprep.subr.mxu0 0.0
        %1582 = vmatpush1.msra.mxu0 0.0
        %1583 = vmatprep.subr.mxu0 0.0
        %1584 = vmatpush1.msra.mxu0 0.0
        %1585 = vmatprep.subr.mxu0 0.0
        %1586 = vmatpush1.msra.mxu0 0.0
        %1587 = vmatprep.subr.mxu0 0.0
        %1588 = vmatpush1.msra.mxu0 0.0
        %1589 = vmatprep.subr.mxu0 0.0
        %1590 = vmatpush1.msra.mxu0 0.0
        %1591 = vmatprep.subr.mxu0 0.0
        %1592 = vmatpush1.msra.mxu0 0.0
        %1593 = vmatprep.subr.mxu0 0.0
        %1594 = vmatpush1.msra.mxu0 0.0
        %1595 = vmatprep.subr.mxu0 0.0
        %1596 = vmatpush1.msra.mxu0 0.0
        %1597 = vmatprep.subr.mxu0 0.0
        %1598 = vmatpush1.msra.mxu0 0.0
        %1599 = vmatprep.subr.mxu0 0.0
        %1600 = vmatpush1.msra.mxu0 0.0
        %1601 = vmatprep.subr.mxu0 0.0
        %1602 = vmatpush1.msra.mxu0 0.0
        %1603 = vmatprep.subr.mxu0 0.0
        %1604 = vmatpush1.msra.mxu0 0.0
        %1605 = vmatprep.subr.mxu0 0.0
        %1606 = vmatpush1.msra.mxu0 0.0
        %1607 = vmatprep.subr.mxu0 0.0
        %1608 = vmatpush1.msra.mxu0 0.0
        %1609 = vmatprep.subr.mxu0 0.0
        %1610 = vmatpush1.msra.mxu0 0.0
        %1611 = vmatprep.subr.mxu0 0.0
        %1612 = vmatpush1.msra.mxu0 %v1498
        %1613 = vmatprep.subr.mxu0 0.0
        %1614 = vmatpush2.msra.mxu0 0.0
        %1615 = vmatprep.subr.mxu0 0.0
        %1616 = vmatpush2.msra.mxu0 0.0
        %1617 = vmatprep.subr.mxu0 0.0
        %1618 = vmatpush2.msra.mxu0 0.0
        %1619 = vmatprep.subr.mxu0 0.0
        %1620 = vmatpush2.msra.mxu0 0.0
        %1621 = vmatprep.subr.mxu0 0.0
        %1622 = vmatpush2.msra.mxu0 0.0
        %1623 = vmatprep.subr.mxu0 0.0
        %1624 = vmatpush2.msra.mxu0 0.0
        %1625 = vmatprep.subr.mxu0 0.0
        %1626 = vmatpush2.msra.mxu0 0.0
        %1627 = vmatprep.subr.mxu0 0.0
        %1628 = vmatpush2.msra.mxu0 0.0
        %1629 = vmatprep.subr.mxu0 0.0
        %1630 = vmatpush2.msra.mxu0 0.0
        %1631 = vmatprep.subr.mxu0 0.0
        %1632 = vmatpush2.msra.mxu0 0.0
        %1633 = vmatprep.subr.mxu0 0.0
        %1634 = vmatpush2.msra.mxu0 0.0
        %1635 = vmatprep.subr.mxu0 0.0
        %1636 = vmatpush2.msra.mxu0 0.0
        %1637 = vmatprep.subr.mxu0 0.0
        %1638 = vmatpush2.msra.mxu0 0.0
        %1639 = vmatprep.subr.mxu0 0.0
        %1640 = vmatpush2.msra.mxu0 0.0
        %1641 = vmatprep.subr.mxu0 0.0
        %1642 = vmatpush2.msra.mxu0 0.0
        %1643 = vmatprep.subr.mxu0 0.0
        %1644 = vmatpush2.msra.mxu0 0.0
        %1645 = vmatprep.mubr.f32.mxu0 0.0
        %1646 = vmatmul.mubr.f32.gmra.mxu0 %v1576
        %v1647 = vpop.f32.mrf.mxu0
        %v1648 = vadd.f32 0.0, %v1647
        %v1649 = vpop.f32.mrf.mxu0
        %1650 = vmatprep.mubr.f32.mxu0 0.0
        %1651 = vmatmul.mubr.f32.gmra.mxu0 %v1579
        %v1652 = vpop.f32.mrf.mxu0
        %v1653 = vadd.f32 0.0, %v1652
        %v1654 = vpop.f32.mrf.mxu0
        %1655 = vdwg.mxu0
        %v1656 = vsub.f32 %v1292, %v1567
        %v1657 = vsub.f32 %v1297, %v1572
        %v1658 = vmul.f32 %v1656, %v1648
        %v1659 = vmul.f32 %v1657, %v1653
        %v1661 = vlaneseq
        %v1662 = vshrl.u32 %v1661, 7
        %v1663 = vsub.s32 0, %v1662
        %v1664 = vrot.slane %v1309, %v1663
        %v1666 = vmul.f32 %v1658, %v1664
        %v1667 = vmul.f32 %v1659, %v1664
        %v1669 = vlaneseq
        %v1670 = vshrl.u32 %v1669, 7
        %v1671 = vsub.s32 0, %v1670
        %v1672 = vrot.slane %v1310, %v1671
        %v1674 = vadd.f32 %v1666, %v1672
        %v1675 = vadd.f32 %v1667, %v1672
        %v1676 = vld [vmem:[#allocation3] sm:$0xff]
        %s1677 = scalar_lea.vmem [#allocation3], 8
        %v1678 = vld [vmem:[%s1677] sm:$0xff]
        %vm1679 = vcmask 130048
        %v1681 = vsel %vm1679, %v1674, 0
        %v1684 = vsel %vm1679, %v1675, 0
        %v1687 = vsel %vm1679, %v1676, 0
        %1689 = vmatprep.subr.mxu0 0.0
        %1690 = vmatpush1.xpose.msra.mxu0 0.0
        %1691 = vmatprep.subr.mxu0 0.0
        %1692 = vmatpush1.xpose.msra.mxu0 0.0
        %1693 = vmatprep.subr.mxu0 0.0
        %1694 = vmatpush1.xpose.msra.mxu0 0.0
        %1695 = vmatprep.subr.mxu0 0.0
        %1696 = vmatpush1.xpose.msra.mxu0 0.0
        %1697 = vmatprep.subr.mxu0 0.0
        %1698 = vmatpush1.xpose.msra.mxu0 0.0
        %1699 = vmatprep.subr.mxu0 0.0
        %1700 = vmatpush1.xpose.msra.mxu0 0.0
        %1701 = vmatprep.subr.mxu0 0.0
        %1702 = vmatpush1.xpose.msra.mxu0 0.0
        %1703 = vmatprep.subr.mxu0 0.0
        %1704 = vmatpush1.xpose.msra.mxu0 0.0
        %1705 = vmatprep.subr.mxu0 0.0
        %1706 = vmatpush1.xpose.msra.mxu0 0.0
        %1707 = vmatprep.subr.mxu0 0.0
        %1708 = vmatpush1.xpose.msra.mxu0 0.0
        %1709 = vmatprep.subr.mxu0 0.0
        %1710 = vmatpush1.xpose.msra.mxu0 0.0
        %1711 = vmatprep.subr.mxu0 0.0
        %1712 = vmatpush1.xpose.msra.mxu0 0.0
        %1713 = vmatprep.subr.mxu0 0.0
        %1714 = vmatpush1.xpose.msra.mxu0 0.0
        %1715 = vmatprep.subr.mxu0 0.0
        %1716 = vmatpush1.xpose.msra.mxu0 0.0
        %1717 = vmatprep.subr.mxu0 0.0
        %1718 = vmatpush1.xpose.msra.mxu0 0.0
        %1719 = vmatprep.subr.mxu0 0.0
        %1720 = vmatpush1.xpose.msra.mxu0 %v1687
        %1721 = vmatprep.subr.mxu0 0.0
        %1722 = vmatpush2.xpose.msra.mxu0 0.0
        %1723 = vmatprep.subr.mxu0 0.0
        %1724 = vmatpush2.xpose.msra.mxu0 0.0
        %1725 = vmatprep.subr.mxu0 0.0
        %1726 = vmatpush2.xpose.msra.mxu0 0.0
        %1727 = vmatprep.subr.mxu0 0.0
        %1728 = vmatpush2.xpose.msra.mxu0 0.0
        %1729 = vmatprep.subr.mxu0 0.0
        %1730 = vmatpush2.xpose.msra.mxu0 0.0
        %1731 = vmatprep.subr.mxu0 0.0
        %1732 = vmatpush2.xpose.msra.mxu0 0.0
        %1733 = vmatprep.subr.mxu0 0.0
        %1734 = vmatpush2.xpose.msra.mxu0 0.0
        %1735 = vmatprep.subr.mxu0 0.0
        %1736 = vmatpush2.xpose.msra.mxu0 0.0
        %1737 = vmatprep.subr.mxu0 0.0
        %1738 = vmatpush2.xpose.msra.mxu0 0.0
        %1739 = vmatprep.subr.mxu0 0.0
        %1740 = vmatpush2.xpose.msra.mxu0 0.0
        %1741 = vmatprep.subr.mxu0 0.0
        %1742 = vmatpush2.xpose.msra.mxu0 0.0
        %1743 = vmatprep.subr.mxu0 0.0
        %1744 = vmatpush2.xpose.msra.mxu0 0.0
        %1745 = vmatprep.subr.mxu0 0.0
        %1746 = vmatpush2.xpose.msra.mxu0 0.0
        %1747 = vmatprep.subr.mxu0 0.0
        %1748 = vmatpush2.xpose.msra.mxu0 0.0
        %1749 = vmatprep.subr.mxu0 0.0
        %1750 = vmatpush2.xpose.msra.mxu0 0.0
        %1751 = vmatprep.subr.mxu0 0.0
        %1752 = vmatpush2.xpose.msra.mxu0 0.0
        %1753 = vmatprep.mubr.f32.mxu0 0.0
        %1754 = vmatmul.mubr.f32.gmra.mxu0 %v1681
        %v1755 = vpop.f32.mrf.mxu0
        %v1756 = vadd.f32 0.0, %v1755
        %v1757 = vpop.f32.mrf.mxu0
        %1758 = vmatprep.mubr.f32.mxu0 0.0
        %1759 = vmatmul.mubr.f32.gmra.mxu0 %v1684
        %v1760 = vpop.f32.mrf.mxu0
        %v1761 = vadd.f32 0.0, %v1760
        %v1762 = vpop.f32.mrf.mxu0
        %1763 = vdwg.mxu0
        %vm1764 = vcmask 64512
        %v1765 = vsel %vm1764, %v1756, -inf
        %1766 = vmax.xlane.f32.xlu0 %v1765
        %v1767 = vpop.xlane.xlu0 %1766
        %v1768 = vsel %vm1764, %v1761, -inf
        %1769 = vmax.xlane.f32.xlu0 %v1768
        %v1770 = vpop.xlane.xlu0 %1769
        %v1771 = vsub.f32 %v1756, %v1767
        %v1772 = vsub.f32 %v1761, %v1770
        %v1773 = vmul.f32 %v1771, 1.442695
        %v1774 = vpow.pop %v1773
        %v1775 = vmul.f32 %v1772, 1.442695
        %v1776 = vpow.pop %v1775
        %v1777 = vsel %vm1764, %v1774, 0.0
        %1778 = vadd.xlane.f32.xlu0 %v1777
        %v1779 = vpop.xlane.xlu0 %1778
        %v1780 = vsel %vm1764, %v1776, 0.0
        %1781 = vadd.xlane.f32.xlu0 %v1780
        %v1782 = vpop.xlane.xlu0 %1781
        %v1783 = vrcp.pop %v1779
        %v1784 = vrcp.pop %v1782
        %v1785 = vmul.f32 %v1779, %v1783
        %v1786 = vmul.f32 %v1782, %v1784
        %v1787 = vsub.f32 2.0, %v1785
        %v1788 = vsub.f32 2.0, %v1786
        %v1789 = vmul.f32 %v1783, %v1787
        %v1790 = vmul.f32 %v1784, %v1788
        %v1791 = vmul.f32 %v1774, %v1789
        %v1792 = vmul.f32 %v1776, %v1790
        %v1794 = vsel %vm1764, %v1791, 0
        %v1797 = vsel %vm1764, %v1792, 0
        %1799 = vmatprep.subr.mxu0 0.0
        %1800 = vmatpush1.msra.mxu0 0.0
        %1801 = vmatprep.subr.mxu0 0.0
        %1802 = vmatpush1.msra.mxu0 0.0
        %1803 = vmatprep.subr.mxu0 0.0
        %1804 = vmatpush1.msra.mxu0 0.0
        %1805 = vmatprep.subr.mxu0 0.0
        %1806 = vmatpush1.msra.mxu0 0.0
        %1807 = vmatprep.subr.mxu0 0.0
        %1808 = vmatpush1.msra.mxu0 0.0
        %1809 = vmatprep.subr.mxu0 0.0
        %1810 = vmatpush1.msra.mxu0 0.0
        %1811 = vmatprep.subr.mxu0 0.0
        %1812 = vmatpush1.msra.mxu0 0.0
        %1813 = vmatprep.subr.mxu0 0.0
        %1814 = vmatpush1.msra.mxu0 0.0
        %1815 = vmatprep.subr.mxu0 0.0
        %1816 = vmatpush1.msra.mxu0 0.0
        %1817 = vmatprep.subr.mxu0 0.0
        %1818 = vmatpush1.msra.mxu0 0.0
        %1819 = vmatprep.subr.mxu0 0.0
        %1820 = vmatpush1.msra.mxu0 0.0
        %1821 = vmatprep.subr.mxu0 0.0
        %1822 = vmatpush1.msra.mxu0 0.0
        %1823 = vmatprep.subr.mxu0 0.0
        %1824 = vmatpush1.msra.mxu0 0.0
        %1825 = vmatprep.subr.mxu0 0.0
        %1826 = vmatpush1.msra.mxu0 0.0
        %1827 = vmatprep.subr.mxu0 0.0
        %1828 = vmatpush1.msra.mxu0 0.0
        %1829 = vmatprep.subr.mxu0 0.0
        %1830 = vmatpush1.msra.mxu0 %v1678
        %1831 = vmatprep.subr.mxu0 0.0
        %1832 = vmatpush2.msra.mxu0 0.0
        %1833 = vmatprep.subr.mxu0 0.0
        %1834 = vmatpush2.msra.mxu0 0.0
        %1835 = vmatprep.subr.mxu0 0.0
        %1836 = vmatpush2.msra.mxu0 0.0
        %1837 = vmatprep.subr.mxu0 0.0
        %1838 = vmatpush2.msra.mxu0 0.0
        %1839 = vmatprep.subr.mxu0 0.0
        %1840 = vmatpush2.msra.mxu0 0.0
        %1841 = vmatprep.subr.mxu0 0.0
        %1842 = vmatpush2.msra.mxu0 0.0
        %1843 = vmatprep.subr.mxu0 0.0
        %1844 = vmatpush2.msra.mxu0 0.0
        %1845 = vmatprep.subr.mxu0 0.0
        %1846 = vmatpush2.msra.mxu0 0.0
        %1847 = vmatprep.subr.mxu0 0.0
        %1848 = vmatpush2.msra.mxu0 0.0
        %1849 = vmatprep.subr.mxu0 0.0
        %1850 = vmatpush2.msra.mxu0 0.0
        %1851 = vmatprep.subr.mxu0 0.0
        %1852 = vmatpush2.msra.mxu0 0.0
        %1853 = vmatprep.subr.mxu0 0.0
        %1854 = vmatpush2.msra.mxu0 0.0
        %1855 = vmatprep.subr.mxu0 0.0
        %1856 = vmatpush2.msra.mxu0 0.0
        %1857 = vmatprep.subr.mxu0 0.0
        %1858 = vmatpush2.msra.mxu0 0.0
        %1859 = vmatprep.subr.mxu0 0.0
        %1860 = vmatpush2.msra.mxu0 0.0
        %1861 = vmatprep.subr.mxu0 0.0
        %1862 = vmatpush2.msra.mxu0 0.0
        %1863 = vmatprep.mubr.f32.mxu0 0.0
        %1864 = vmatmul.mubr.f32.gmra.mxu0 %v1794
        %v1865 = vpop.f32.mrf.mxu0
        %v1866 = vadd.f32 0.0, %v1865
        %v1867 = vpop.f32.mrf.mxu0
        %1868 = vmatprep.mubr.f32.mxu0 0.0
        %1869 = vmatmul.mubr.f32.gmra.mxu0 %v1797
        %v1870 = vpop.f32.mrf.mxu0
        %v1871 = vadd.f32 0.0, %v1870
        %v1872 = vpop.f32.mrf.mxu0
        %1873 = vdwg.mxu0
        %1874 = vst.msk [vmem:[#allocation2] sm:$0xff] %vm1679, %v1866
        %1875 = vst.msk [vmem:[#allocation2 + $0x8] sm:$0xff] %vm1679, %v1871
        %1876 = vrot.lane.b32.xlu0 %v1674, 112
        %v1877 = vpop.permute.xlu0 %1876
        %1878 = vrot.lane.b32.xlu0 %v1675, 112
        %v1879 = vpop.permute.xlu0 %1878
        %1880 = vrot.lane.b32.xlu0 %v1676, 112
        %v1881 = vpop.permute.xlu0 %1880
        %v1882 = vsel %vm1679, %v1877, 0
        %v1884 = vsel %vm1679, %v1879, 0
        %v1886 = vsel %vm1679, %v1881, 0
        %1888 = vmatprep.subr.mxu0 0.0
        %1889 = vmatpush1.xpose.msra.mxu0 0.0
        %1890 = vmatprep.subr.mxu0 0.0
        %1891 = vmatpush1.xpose.msra.mxu0 0.0
        %1892 = vmatprep.subr.mxu0 0.0
        %1893 = vmatpush1.xpose.msra.mxu0 0.0
        %1894 = vmatprep.subr.mxu0 0.0
        %1895 = vmatpush1.xpose.msra.mxu0 0.0
        %1896 = vmatprep.subr.mxu0 0.0
        %1897 = vmatpush1.xpose.msra.mxu0 0.0
        %1898 = vmatprep.subr.mxu0 0.0
        %1899 = vmatpush1.xpose.msra.mxu0 0.0
        %1900 = vmatprep.subr.mxu0 0.0
        %1901 = vmatpush1.xpose.msra.mxu0 0.0
        %1902 = vmatprep.subr.mxu0 0.0
        %1903 = vmatpush1.xpose.msra.mxu0 0.0
        %1904 = vmatprep.subr.mxu0 0.0
        %1905 = vmatpush1.xpose.msra.mxu0 0.0
        %1906 = vmatprep.subr.mxu0 0.0
        %1907 = vmatpush1.xpose.msra.mxu0 0.0
        %1908 = vmatprep.subr.mxu0 0.0
        %1909 = vmatpush1.xpose.msra.mxu0 0.0
        %1910 = vmatprep.subr.mxu0 0.0
        %1911 = vmatpush1.xpose.msra.mxu0 0.0
        %1912 = vmatprep.subr.mxu0 0.0
        %1913 = vmatpush1.xpose.msra.mxu0 0.0
        %1914 = vmatprep.subr.mxu0 0.0
        %1915 = vmatpush1.xpose.msra.mxu0 0.0
        %1916 = vmatprep.subr.mxu0 0.0
        %1917 = vmatpush1.xpose.msra.mxu0 0.0
        %1918 = vmatprep.subr.mxu0 0.0
        %1919 = vmatpush1.xpose.msra.mxu0 %v1886
        %1920 = vmatprep.subr.mxu0 0.0
        %1921 = vmatpush2.xpose.msra.mxu0 0.0
        %1922 = vmatprep.subr.mxu0 0.0
        %1923 = vmatpush2.xpose.msra.mxu0 0.0
        %1924 = vmatprep.subr.mxu0 0.0
        %1925 = vmatpush2.xpose.msra.mxu0 0.0
        %1926 = vmatprep.subr.mxu0 0.0
        %1927 = vmatpush2.xpose.msra.mxu0 0.0
        %1928 = vmatprep.subr.mxu0 0.0
        %1929 = vmatpush2.xpose.msra.mxu0 0.0
        %1930 = vmatprep.subr.mxu0 0.0
        %1931 = vmatpush2.xpose.msra.mxu0 0.0
        %1932 = vmatprep.subr.mxu0 0.0
        %1933 = vmatpush2.xpose.msra.mxu0 0.0
        %1934 = vmatprep.subr.mxu0 0.0
        %1935 = vmatpush2.xpose.msra.mxu0 0.0
        %1936 = vmatprep.subr.mxu0 0.0
        %1937 = vmatpush2.xpose.msra.mxu0 0.0
        %1938 = vmatprep.subr.mxu0 0.0
        %1939 = vmatpush2.xpose.msra.mxu0 0.0
        %1940 = vmatprep.subr.mxu0 0.0
        %1941 = vmatpush2.xpose.msra.mxu0 0.0
        %1942 = vmatprep.subr.mxu0 0.0
        %1943 = vmatpush2.xpose.msra.mxu0 0.0
        %1944 = vmatprep.subr.mxu0 0.0
        %1945 = vmatpush2.xpose.msra.mxu0 0.0
        %1946 = vmatprep.subr.mxu0 0.0
        %1947 = vmatpush2.xpose.msra.mxu0 0.0
        %1948 = vmatprep.subr.mxu0 0.0
        %1949 = vmatpush2.xpose.msra.mxu0 0.0
        %1950 = vmatprep.subr.mxu0 0.0
        %1951 = vmatpush2.xpose.msra.mxu0 0.0
        %1952 = vmatprep.mubr.f32.mxu0 0.0
        %1953 = vmatmul.mubr.f32.gmra.mxu0 %v1882
        %v1954 = vpop.f32.mrf.mxu0
        %v1955 = vadd.f32 0.0, %v1954
        %v1956 = vpop.f32.mrf.mxu0
        %1957 = vmatprep.mubr.f32.mxu0 0.0
        %1958 = vmatmul.mubr.f32.gmra.mxu0 %v1884
        %v1959 = vpop.f32.mrf.mxu0
        %v1960 = vadd.f32 0.0, %v1959
        %v1961 = vpop.f32.mrf.mxu0
        %1962 = vdwg.mxu0
        %v1963 = vsel %vm1764, %v1955, -inf
        %1964 = vmax.xlane.f32.xlu0 %v1963
        %v1965 = vpop.xlane.xlu0 %1964
        %v1966 = vsel %vm1764, %v1960, -inf
        %1967 = vmax.xlane.f32.xlu0 %v1966
        %v1968 = vpop.xlane.xlu0 %1967
        %v1969 = vsub.f32 %v1955, %v1965
        %v1970 = vsub.f32 %v1960, %v1968
        %v1971 = vmul.f32 %v1969, 1.442695
        %v1972 = vpow.pop %v1971
        %v1973 = vmul.f32 %v1970, 1.442695
        %v1974 = vpow.pop %v1973
        %v1975 = vsel %vm1764, %v1972, 0.0
        %1976 = vadd.xlane.f32.xlu0 %v1975
        %v1977 = vpop.xlane.xlu0 %1976
        %v1978 = vsel %vm1764, %v1974, 0.0
        %1979 = vadd.xlane.f32.xlu0 %v1978
        %v1980 = vpop.xlane.xlu0 %1979
        %v1981 = vrcp.pop %v1977
        %v1982 = vrcp.pop %v1980
        %v1983 = vmul.f32 %v1977, %v1981
        %v1984 = vmul.f32 %v1980, %v1982
        %v1985 = vsub.f32 2.0, %v1983
        %v1986 = vsub.f32 2.0, %v1984
        %v1987 = vmul.f32 %v1981, %v1985
        %v1988 = vmul.f32 %v1982, %v1986
        %v1989 = vmul.f32 %v1972, %v1987
        %v1990 = vmul.f32 %v1974, %v1988
        %1992 = vrot.lane.b32.xlu0 %v1678, 112
        %v1993 = vpop.permute.xlu0 %1992
        %v1996 = vsel %vm1764, %v1989, 0
        %v1999 = vsel %vm1764, %v1990, 0
        %2001 = vmatprep.subr.mxu0 0.0
        %2002 = vmatpush1.msra.mxu0 0.0
        %2003 = vmatprep.subr.mxu0 0.0
        %2004 = vmatpush1.msra.mxu0 0.0
        %2005 = vmatprep.subr.mxu0 0.0
        %2006 = vmatpush1.msra.mxu0 0.0
        %2007 = vmatprep.subr.mxu0 0.0
        %2008 = vmatpush1.msra.mxu0 0.0
        %2009 = vmatprep.subr.mxu0 0.0
        %2010 = vmatpush1.msra.mxu0 0.0
        %2011 = vmatprep.subr.mxu0 0.0
        %2012 = vmatpush1.msra.mxu0 0.0
        %2013 = vmatprep.subr.mxu0 0.0
        %2014 = vmatpush1.msra.mxu0 0.0
        %2015 = vmatprep.subr.mxu0 0.0
        %2016 = vmatpush1.msra.mxu0 0.0
        %2017 = vmatprep.subr.mxu0 0.0
        %2018 = vmatpush1.msra.mxu0 0.0
        %2019 = vmatprep.subr.mxu0 0.0
        %2020 = vmatpush1.msra.mxu0 0.0
        %2021 = vmatprep.subr.mxu0 0.0
        %2022 = vmatpush1.msra.mxu0 0.0
        %2023 = vmatprep.subr.mxu0 0.0
        %2024 = vmatpush1.msra.mxu0 0.0
        %2025 = vmatprep.subr.mxu0 0.0
        %2026 = vmatpush1.msra.mxu0 0.0
        %2027 = vmatprep.subr.mxu0 0.0
        %2028 = vmatpush1.msra.mxu0 0.0
        %2029 = vmatprep.subr.mxu0 0.0
        %2030 = vmatpush1.msra.mxu0 0.0
        %2031 = vmatprep.subr.mxu0 0.0
        %2032 = vmatpush1.msra.mxu0 %v1993
        %2033 = vmatprep.subr.mxu0 0.0
        %2034 = vmatpush2.msra.mxu0 0.0
        %2035 = vmatprep.subr.mxu0 0.0
        %2036 = vmatpush2.msra.mxu0 0.0
        %2037 = vmatprep.subr.mxu0 0.0
        %2038 = vmatpush2.msra.mxu0 0.0
        %2039 = vmatprep.subr.mxu0 0.0
        %2040 = vmatpush2.msra.mxu0 0.0
        %2041 = vmatprep.subr.mxu0 0.0
        %2042 = vmatpush2.msra.mxu0 0.0
        %2043 = vmatprep.subr.mxu0 0.0
        %2044 = vmatpush2.msra.mxu0 0.0
        %2045 = vmatprep.subr.mxu0 0.0
        %2046 = vmatpush2.msra.mxu0 0.0
        %2047 = vmatprep.subr.mxu0 0.0
        %2048 = vmatpush2.msra.mxu0 0.0
        %2049 = vmatprep.subr.mxu0 0.0
        %2050 = vmatpush2.msra.mxu0 0.0
        %2051 = vmatprep.subr.mxu0 0.0
        %2052 = vmatpush2.msra.mxu0 0.0
        %2053 = vmatprep.subr.mxu0 0.0
        %2054 = vmatpush2.msra.mxu0 0.0
        %2055 = vmatprep.subr.mxu0 0.0
        %2056 = vmatpush2.msra.mxu0 0.0
        %2057 = vmatprep.subr.mxu0 0.0
        %2058 = vmatpush2.msra.mxu0 0.0
        %2059 = vmatprep.subr.mxu0 0.0
        %2060 = vmatpush2.msra.mxu0 0.0
        %2061 = vmatprep.subr.mxu0 0.0
        %2062 = vmatpush2.msra.mxu0 0.0
        %2063 = vmatprep.subr.mxu0 0.0
        %2064 = vmatpush2.msra.mxu0 0.0
        %2065 = vmatprep.mubr.f32.mxu0 0.0
        %2066 = vmatmul.mubr.f32.gmra.mxu0 %v1996
        %v2067 = vpop.f32.mrf.mxu0
        %v2068 = vadd.f32 0.0, %v2067
        %v2069 = vpop.f32.mrf.mxu0
        %2070 = vmatprep.mubr.f32.mxu0 0.0
        %2071 = vmatmul.mubr.f32.gmra.mxu0 %v1999
        %v2072 = vpop.f32.mrf.mxu0
        %v2073 = vadd.f32 0.0, %v2072
        %v2074 = vpop.f32.mrf.mxu0
        %2075 = vdwg.mxu0
        %2078 = vrot.lane.b32.xlu0 %v2068, 16
        %v2079 = vpop.permute.xlu0 %2078
        %2080 = vrot.lane.b32.xlu0 %v2073, 16
        %v2081 = vpop.permute.xlu0 %2080
        %vm2084 = vcmask 261248
        %2085 = vst.msk [vmem:[#allocation2] sm:$0xff] %vm2084, %v2079
        %2086 = vst.msk [vmem:[#allocation2 + $0x8] sm:$0xff] %vm2084, %v2081
        %2087 = vrot.lane.b32.xlu0 %v1674, 96
        %v2088 = vpop.permute.xlu0 %2087
        %2089 = vrot.lane.b32.xlu0 %v1675, 96
        %v2090 = vpop.permute.xlu0 %2089
        %2091 = vrot.lane.b32.xlu0 %v1676, 96
        %v2092 = vpop.permute.xlu0 %2091
        %v2093 = vsel %vm1679, %v2088, 0
        %v2095 = vsel %vm1679, %v2090, 0
        %v2097 = vsel %vm1679, %v2092, 0
        %2099 = vmatprep.subr.mxu0 0.0
        %2100 = vmatpush1.xpose.msra.mxu0 0.0
        %2101 = vmatprep.subr.mxu0 0.0
        %2102 = vmatpush1.xpose.msra.mxu0 0.0
        %2103 = vmatprep.subr.mxu0 0.0
        %2104 = vmatpush1.xpose.msra.mxu0 0.0
        %2105 = vmatprep.subr.mxu0 0.0
        %2106 = vmatpush1.xpose.msra.mxu0 0.0
        %2107 = vmatprep.subr.mxu0 0.0
        %2108 = vmatpush1.xpose.msra.mxu0 0.0
        %2109 = vmatprep.subr.mxu0 0.0
        %2110 = vmatpush1.xpose.msra.mxu0 0.0
        %2111 = vmatprep.subr.mxu0 0.0
        %2112 = vmatpush1.xpose.msra.mxu0 0.0
        %2113 = vmatprep.subr.mxu0 0.0
        %2114 = vmatpush1.xpose.msra.mxu0 0.0
        %2115 = vmatprep.subr.mxu0 0.0
        %2116 = vmatpush1.xpose.msra.mxu0 0.0
        %2117 = vmatprep.subr.mxu0 0.0
        %2118 = vmatpush1.xpose.msra.mxu0 0.0
        %2119 = vmatprep.subr.mxu0 0.0
        %2120 = vmatpush1.xpose.msra.mxu0 0.0
        %2121 = vmatprep.subr.mxu0 0.0
        %2122 = vmatpush1.xpose.msra.mxu0 0.0
        %2123 = vmatprep.subr.mxu0 0.0
        %2124 = vmatpush1.xpose.msra.mxu0 0.0
        %2125 = vmatprep.subr.mxu0 0.0
        %2126 = vmatpush1.xpose.msra.mxu0 0.0
        %2127 = vmatprep.subr.mxu0 0.0
        %2128 = vmatpush1.xpose.msra.mxu0 0.0
        %2129 = vmatprep.subr.mxu0 0.0
        %2130 = vmatpush1.xpose.msra.mxu0 %v2097
        %2131 = vmatprep.subr.mxu0 0.0
        %2132 = vmatpush2.xpose.msra.mxu0 0.0
        %2133 = vmatprep.subr.mxu0 0.0
        %2134 = vmatpush2.xpose.msra.mxu0 0.0
        %2135 = vmatprep.subr.mxu0 0.0
        %2136 = vmatpush2.xpose.msra.mxu0 0.0
        %2137 = vmatprep.subr.mxu0 0.0
        %2138 = vmatpush2.xpose.msra.mxu0 0.0
        %2139 = vmatprep.subr.mxu0 0.0
        %2140 = vmatpush2.xpose.msra.mxu0 0.0
        %2141 = vmatprep.subr.mxu0 0.0
        %2142 = vmatpush2.xpose.msra.mxu0 0.0
        %2143 = vmatprep.subr.mxu0 0.0
        %2144 = vmatpush2.xpose.msra.mxu0 0.0
        %2145 = vmatprep.subr.mxu0 0.0
        %2146 = vmatpush2.xpose.msra.mxu0 0.0
        %2147 = vmatprep.subr.mxu0 0.0
        %2148 = vmatpush2.xpose.msra.mxu0 0.0
        %2149 = vmatprep.subr.mxu0 0.0
        %2150 = vmatpush2.xpose.msra.mxu0 0.0
        %2151 = vmatprep.subr.mxu0 0.0
        %2152 = vmatpush2.xpose.msra.mxu0 0.0
        %2153 = vmatprep.subr.mxu0 0.0
        %2154 = vmatpush2.xpose.msra.mxu0 0.0
        %2155 = vmatprep.subr.mxu0 0.0
        %2156 = vmatpush2.xpose.msra.mxu0 0.0
        %2157 = vmatprep.subr.mxu0 0.0
        %2158 = vmatpush2.xpose.msra.mxu0 0.0
        %2159 = vmatprep.subr.mxu0 0.0
        %2160 = vmatpush2.xpose.msra.mxu0 0.0
        %2161 = vmatprep.subr.mxu0 0.0
        %2162 = vmatpush2.xpose.msra.mxu0 0.0
        %2163 = vmatprep.mubr.f32.mxu0 0.0
        %2164 = vmatmul.mubr.f32.gmra.mxu0 %v2093
        %v2165 = vpop.f32.mrf.mxu0
        %v2166 = vadd.f32 0.0, %v2165
        %v2167 = vpop.f32.mrf.mxu0
        %2168 = vmatprep.mubr.f32.mxu0 0.0
        %2169 = vmatmul.mubr.f32.gmra.mxu0 %v2095
        %v2170 = vpop.f32.mrf.mxu0
        %v2171 = vadd.f32 0.0, %v2170
        %v2172 = vpop.f32.mrf.mxu0
        %2173 = vdwg.mxu0
        %v2174 = vsel %vm1764, %v2166, -inf
        %2175 = vmax.xlane.f32.xlu0 %v2174
        %v2176 = vpop.xlane.xlu0 %2175
        %v2177 = vsel %vm1764, %v2171, -inf
        %2178 = vmax.xlane.f32.xlu0 %v2177
        %v2179 = vpop.xlane.xlu0 %2178
        %v2180 = vsub.f32 %v2166, %v2176
        %v2181 = vsub.f32 %v2171, %v2179
        %v2182 = vmul.f32 %v2180, 1.442695
        %v2183 = vpow.pop %v2182
        %v2184 = vmul.f32 %v2181, 1.442695
        %v2185 = vpow.pop %v2184
        %v2186 = vsel %vm1764, %v2183, 0.0
        %2187 = vadd.xlane.f32.xlu0 %v2186
        %v2188 = vpop.xlane.xlu0 %2187
        %v2189 = vsel %vm1764, %v2185, 0.0
        %2190 = vadd.xlane.f32.xlu0 %v2189
        %v2191 = vpop.xlane.xlu0 %2190
        %v2192 = vrcp.pop %v2188
        %v2193 = vrcp.pop %v2191
        %v2194 = vmul.f32 %v2188, %v2192
        %v2195 = vmul.f32 %v2191, %v2193
        %v2196 = vsub.f32 2.0, %v2194
        %v2197 = vsub.f32 2.0, %v2195
        %v2198 = vmul.f32 %v2192, %v2196
        %v2199 = vmul.f32 %v2193, %v2197
        %v2200 = vmul.f32 %v2183, %v2198
        %v2201 = vmul.f32 %v2185, %v2199
        %2202 = vrot.lane.b32.xlu0 %v1678, 96
        %v2203 = vpop.permute.xlu0 %2202
        %v2206 = vsel %vm1764, %v2200, 0
        %v2209 = vsel %vm1764, %v2201, 0
        %2211 = vmatprep.subr.mxu0 0.0
        %2212 = vmatpush1.msra.mxu0 0.0
        %2213 = vmatprep.subr.mxu0 0.0
        %2214 = vmatpush1.msra.mxu0 0.0
        %2215 = vmatprep.subr.mxu0 0.0
        %2216 = vmatpush1.msra.mxu0 0.0
        %2217 = vmatprep.subr.mxu0 0.0
        %2218 = vmatpush1.msra.mxu0 0.0
        %2219 = vmatprep.subr.mxu0 0.0
        %2220 = vmatpush1.msra.mxu0 0.0
        %2221 = vmatprep.subr.mxu0 0.0
        %2222 = vmatpush1.msra.mxu0 0.0
        %2223 = vmatprep.subr.mxu0 0.0
        %2224 = vmatpush1.msra.mxu0 0.0
        %2225 = vmatprep.subr.mxu0 0.0
        %2226 = vmatpush1.msra.mxu0 0.0
        %2227 = vmatprep.subr.mxu0 0.0
        %2228 = vmatpush1.msra.mxu0 0.0
        %2229 = vmatprep.subr.mxu0 0.0
        %2230 = vmatpush1.msra.mxu0 0.0
        %2231 = vmatprep.subr.mxu0 0.0
        %2232 = vmatpush1.msra.mxu0 0.0
        %2233 = vmatprep.subr.mxu0 0.0
        %2234 = vmatpush1.msra.mxu0 0.0
        %2235 = vmatprep.subr.mxu0 0.0
        %2236 = vmatpush1.msra.mxu0 0.0
        %2237 = vmatprep.subr.mxu0 0.0
        %2238 = vmatpush1.msra.mxu0 0.0
        %2239 = vmatprep.subr.mxu0 0.0
        %2240 = vmatpush1.msra.mxu0 0.0
        %2241 = vmatprep.subr.mxu0 0.0
        %2242 = vmatpush1.msra.mxu0 %v2203
        %2243 = vmatprep.subr.mxu0 0.0
        %2244 = vmatpush2.msra.mxu0 0.0
        %2245 = vmatprep.subr.mxu0 0.0
        %2246 = vmatpush2.msra.mxu0 0.0
        %2247 = vmatprep.subr.mxu0 0.0
        %2248 = vmatpush2.msra.mxu0 0.0
        %2249 = vmatprep.subr.mxu0 0.0
        %2250 = vmatpush2.msra.mxu0 0.0
        %2251 = vmatprep.subr.mxu0 0.0
        %2252 = vmatpush2.msra.mxu0 0.0
        %2253 = vmatprep.subr.mxu0 0.0
        %2254 = vmatpush2.msra.mxu0 0.0
        %2255 = vmatprep.subr.mxu0 0.0
        %2256 = vmatpush2.msra.mxu0 0.0
        %2257 = vmatprep.subr.mxu0 0.0
        %2258 = vmatpush2.msra.mxu0 0.0
        %2259 = vmatprep.subr.mxu0 0.0
        %2260 = vmatpush2.msra.mxu0 0.0
        %2261 = vmatprep.subr.mxu0 0.0
        %2262 = vmatpush2.msra.mxu0 0.0
        %2263 = vmatprep.subr.mxu0 0.0
        %2264 = vmatpush2.msra.mxu0 0.0
        %2265 = vmatprep.subr.mxu0 0.0
        %2266 = vmatpush2.msra.mxu0 0.0
        %2267 = vmatprep.subr.mxu0 0.0
        %2268 = vmatpush2.msra.mxu0 0.0
        %2269 = vmatprep.subr.mxu0 0.0
        %2270 = vmatpush2.msra.mxu0 0.0
        %2271 = vmatprep.subr.mxu0 0.0
        %2272 = vmatpush2.msra.mxu0 0.0
        %2273 = vmatprep.subr.mxu0 0.0
        %2274 = vmatpush2.msra.mxu0 0.0
        %2275 = vmatprep.mubr.f32.mxu0 0.0
        %2276 = vmatmul.mubr.f32.gmra.mxu0 %v2206
        %v2277 = vpop.f32.mrf.mxu0
        %v2278 = vadd.f32 0.0, %v2277
        %v2279 = vpop.f32.mrf.mxu0
        %2280 = vmatprep.mubr.f32.mxu0 0.0
        %2281 = vmatmul.mubr.f32.gmra.mxu0 %v2209
        %v2282 = vpop.f32.mrf.mxu0
        %v2283 = vadd.f32 0.0, %v2282
        %v2284 = vpop.f32.mrf.mxu0
        %2285 = vdwg.mxu0
        %2288 = vrot.lane.b32.xlu0 %v2278, 32
        %v2289 = vpop.permute.xlu0 %2288
        %2290 = vrot.lane.b32.xlu0 %v2283, 32
        %v2291 = vpop.permute.xlu0 %2290
        %vm2294 = vcmask 392448
        %2295 = vst.msk [vmem:[#allocation2] sm:$0xff] %vm2294, %v2289
        %2296 = vst.msk [vmem:[#allocation2 + $0x8] sm:$0xff] %vm2294, %v2291
        %2297 = vrot.lane.b32.xlu0 %v1674, 80
        %v2298 = vpop.permute.xlu0 %2297
        %2299 = vrot.lane.b32.xlu0 %v1675, 80
        %v2300 = vpop.permute.xlu0 %2299
        %2301 = vrot.lane.b32.xlu0 %v1676, 80
        %v2302 = vpop.permute.xlu0 %2301
        %v2303 = vsel %vm1679, %v2298, 0
        %v2305 = vsel %vm1679, %v2300, 0
        %v2307 = vsel %vm1679, %v2302, 0
        %2309 = vmatprep.subr.mxu0 0.0
        %2310 = vmatpush1.xpose.msra.mxu0 0.0
        %2311 = vmatprep.subr.mxu0 0.0
        %2312 = vmatpush1.xpose.msra.mxu0 0.0
        %2313 = vmatprep.subr.mxu0 0.0
        %2314 = vmatpush1.xpose.msra.mxu0 0.0
        %2315 = vmatprep.subr.mxu0 0.0
        %2316 = vmatpush1.xpose.msra.mxu0 0.0
        %2317 = vmatprep.subr.mxu0 0.0
        %2318 = vmatpush1.xpose.msra.mxu0 0.0
        %2319 = vmatprep.subr.mxu0 0.0
        %2320 = vmatpush1.xpose.msra.mxu0 0.0
        %2321 = vmatprep.subr.mxu0 0.0
        %2322 = vmatpush1.xpose.msra.mxu0 0.0
        %2323 = vmatprep.subr.mxu0 0.0
        %2324 = vmatpush1.xpose.msra.mxu0 0.0
        %2325 = vmatprep.subr.mxu0 0.0
        %2326 = vmatpush1.xpose.msra.mxu0 0.0
        %2327 = vmatprep.subr.mxu0 0.0
        %2328 = vmatpush1.xpose.msra.mxu0 0.0
        %2329 = vmatprep.subr.mxu0 0.0
        %2330 = vmatpush1.xpose.msra.mxu0 0.0
        %2331 = vmatprep.subr.mxu0 0.0
        %2332 = vmatpush1.xpose.msra.mxu0 0.0
        %2333 = vmatprep.subr.mxu0 0.0
        %2334 = vmatpush1.xpose.msra.mxu0 0.0
        %2335 = vmatprep.subr.mxu0 0.0
        %2336 = vmatpush1.xpose.msra.mxu0 0.0
        %2337 = vmatprep.subr.mxu0 0.0
        %2338 = vmatpush1.xpose.msra.mxu0 0.0
        %2339 = vmatprep.subr.mxu0 0.0
        %2340 = vmatpush1.xpose.msra.mxu0 %v2307
        %2341 = vmatprep.subr.mxu0 0.0
        %2342 = vmatpush2.xpose.msra.mxu0 0.0
        %2343 = vmatprep.subr.mxu0 0.0
        %2344 = vmatpush2.xpose.msra.mxu0 0.0
        %2345 = vmatprep.subr.mxu0 0.0
        %2346 = vmatpush2.xpose.msra.mxu0 0.0
        %2347 = vmatprep.subr.mxu0 0.0
        %2348 = vmatpush2.xpose.msra.mxu0 0.0
        %2349 = vmatprep.subr.mxu0 0.0
        %2350 = vmatpush2.xpose.msra.mxu0 0.0
        %2351 = vmatprep.subr.mxu0 0.0
        %2352 = vmatpush2.xpose.msra.mxu0 0.0
        %2353 = vmatprep.subr.mxu0 0.0
        %2354 = vmatpush2.xpose.msra.mxu0 0.0
        %2355 = vmatprep.subr.mxu0 0.0
        %2356 = vmatpush2.xpose.msra.mxu0 0.0
        %2357 = vmatprep.subr.mxu0 0.0
        %2358 = vmatpush2.xpose.msra.mxu0 0.0
        %2359 = vmatprep.subr.mxu0 0.0
        %2360 = vmatpush2.xpose.msra.mxu0 0.0
        %2361 = vmatprep.subr.mxu0 0.0
        %2362 = vmatpush2.xpose.msra.mxu0 0.0
        %2363 = vmatprep.subr.mxu0 0.0
        %2364 = vmatpush2.xpose.msra.mxu0 0.0
        %2365 = vmatprep.subr.mxu0 0.0
        %2366 = vmatpush2.xpose.msra.mxu0 0.0
        %2367 = vmatprep.subr.mxu0 0.0
        %2368 = vmatpush2.xpose.msra.mxu0 0.0
        %2369 = vmatprep.subr.mxu0 0.0
        %2370 = vmatpush2.xpose.msra.mxu0 0.0
        %2371 = vmatprep.subr.mxu0 0.0
        %2372 = vmatpush2.xpose.msra.mxu0 0.0
        %2373 = vmatprep.mubr.f32.mxu0 0.0
        %2374 = vmatmul.mubr.f32.gmra.mxu0 %v2303
        %v2375 = vpop.f32.mrf.mxu0
        %v2376 = vadd.f32 0.0, %v2375
        %v2377 = vpop.f32.mrf.mxu0
        %2378 = vmatprep.mubr.f32.mxu0 0.0
        %2379 = vmatmul.mubr.f32.gmra.mxu0 %v2305
        %v2380 = vpop.f32.mrf.mxu0
        %v2381 = vadd.f32 0.0, %v2380
        %v2382 = vpop.f32.mrf.mxu0
        %2383 = vdwg.mxu0
        %v2384 = vsel %vm1764, %v2376, -inf
        %2385 = vmax.xlane.f32.xlu0 %v2384
        %v2386 = vpop.xlane.xlu0 %2385
        %v2387 = vsel %vm1764, %v2381, -inf
        %2388 = vmax.xlane.f32.xlu0 %v2387
        %v2389 = vpop.xlane.xlu0 %2388
        %v2390 = vsub.f32 %v2376, %v2386
        %v2391 = vsub.f32 %v2381, %v2389
        %v2392 = vmul.f32 %v2390, 1.442695
        %v2393 = vpow.pop %v2392
        %v2394 = vmul.f32 %v2391, 1.442695
        %v2395 = vpow.pop %v2394
        %v2396 = vsel %vm1764, %v2393, 0.0
        %2397 = vadd.xlane.f32.xlu0 %v2396
        %v2398 = vpop.xlane.xlu0 %2397
        %v2399 = vsel %vm1764, %v2395, 0.0
        %2400 = vadd.xlane.f32.xlu0 %v2399
        %v2401 = vpop.xlane.xlu0 %2400
        %v2402 = vrcp.pop %v2398
        %v2403 = vrcp.pop %v2401
        %v2404 = vmul.f32 %v2398, %v2402
        %v2405 = vmul.f32 %v2401, %v2403
        %v2406 = vsub.f32 2.0, %v2404
        %v2407 = vsub.f32 2.0, %v2405
        %v2408 = vmul.f32 %v2402, %v2406
        %v2409 = vmul.f32 %v2403, %v2407
        %v2410 = vmul.f32 %v2393, %v2408
        %v2411 = vmul.f32 %v2395, %v2409
        %2412 = vrot.lane.b32.xlu0 %v1678, 80
        %v2413 = vpop.permute.xlu0 %2412
        %v2416 = vsel %vm1764, %v2410, 0
        %v2419 = vsel %vm1764, %v2411, 0
        %2421 = vmatprep.subr.mxu0 0.0
        %2422 = vmatpush1.msra.mxu0 0.0
        %2423 = vmatprep.subr.mxu0 0.0
        %2424 = vmatpush1.msra.mxu0 0.0
        %2425 = vmatprep.subr.mxu0 0.0
        %2426 = vmatpush1.msra.mxu0 0.0
        %2427 = vmatprep.subr.mxu0 0.0
        %2428 = vmatpush1.msra.mxu0 0.0
        %2429 = vmatprep.subr.mxu0 0.0
        %2430 = vmatpush1.msra.mxu0 0.0
        %2431 = vmatprep.subr.mxu0 0.0
        %2432 = vmatpush1.msra.mxu0 0.0
        %2433 = vmatprep.subr.mxu0 0.0
        %2434 = vmatpush1.msra.mxu0 0.0
        %2435 = vmatprep.subr.mxu0 0.0
        %2436 = vmatpush1.msra.mxu0 0.0
        %2437 = vmatprep.subr.mxu0 0.0
        %2438 = vmatpush1.msra.mxu0 0.0
        %2439 = vmatprep.subr.mxu0 0.0
        %2440 = vmatpush1.msra.mxu0 0.0
        %2441 = vmatprep.subr.mxu0 0.0
        %2442 = vmatpush1.msra.mxu0 0.0
        %2443 = vmatprep.subr.mxu0 0.0
        %2444 = vmatpush1.msra.mxu0 0.0
        %2445 = vmatprep.subr.mxu0 0.0
        %2446 = vmatpush1.msra.mxu0 0.0
        %2447 = vmatprep.subr.mxu0 0.0
        %2448 = vmatpush1.msra.mxu0 0.0
        %2449 = vmatprep.subr.mxu0 0.0
        %2450 = vmatpush1.msra.mxu0 0.0
        %2451 = vmatprep.subr.mxu0 0.0
        %2452 = vmatpush1.msra.mxu0 %v2413
        %2453 = vmatprep.subr.mxu0 0.0
        %2454 = vmatpush2.msra.mxu0 0.0
        %2455 = vmatprep.subr.mxu0 0.0
        %2456 = vmatpush2.msra.mxu0 0.0
        %2457 = vmatprep.subr.mxu0 0.0
        %2458 = vmatpush2.msra.mxu0 0.0
        %2459 = vmatprep.subr.mxu0 0.0
        %2460 = vmatpush2.msra.mxu0 0.0
        %2461 = vmatprep.subr.mxu0 0.0
        %2462 = vmatpush2.msra.mxu0 0.0
        %2463 = vmatprep.subr.mxu0 0.0
        %2464 = vmatpush2.msra.mxu0 0.0
        %2465 = vmatprep.subr.mxu0 0.0
        %2466 = vmatpush2.msra.mxu0 0.0
        %2467 = vmatprep.subr.mxu0 0.0
        %2468 = vmatpush2.msra.mxu0 0.0
        %2469 = vmatprep.subr.mxu0 0.0
        %2470 = vmatpush2.msra.mxu0 0.0
        %2471 = vmatprep.subr.mxu0 0.0
        %2472 = vmatpush2.msra.mxu0 0.0
        %2473 = vmatprep.subr.mxu0 0.0
        %2474 = vmatpush2.msra.mxu0 0.0
        %2475 = vmatprep.subr.mxu0 0.0
        %2476 = vmatpush2.msra.mxu0 0.0
        %2477 = vmatprep.subr.mxu0 0.0
        %2478 = vmatpush2.msra.mxu0 0.0
        %2479 = vmatprep.subr.mxu0 0.0
        %2480 = vmatpush2.msra.mxu0 0.0
        %2481 = vmatprep.subr.mxu0 0.0
        %2482 = vmatpush2.msra.mxu0 0.0
        %2483 = vmatprep.subr.mxu0 0.0
        %2484 = vmatpush2.msra.mxu0 0.0
        %2485 = vmatprep.mubr.f32.mxu0 0.0
        %2486 = vmatmul.mubr.f32.gmra.mxu0 %v2416
        %v2487 = vpop.f32.mrf.mxu0
        %v2488 = vadd.f32 0.0, %v2487
        %v2489 = vpop.f32.mrf.mxu0
        %2490 = vmatprep.mubr.f32.mxu0 0.0
        %2491 = vmatmul.mubr.f32.gmra.mxu0 %v2419
        %v2492 = vpop.f32.mrf.mxu0
        %v2493 = vadd.f32 0.0, %v2492
        %v2494 = vpop.f32.mrf.mxu0
        %2495 = vdwg.mxu0
        %2498 = vrot.lane.b32.xlu0 %v2488, 48
        %v2499 = vpop.permute.xlu0 %2498
        %2500 = vrot.lane.b32.xlu0 %v2493, 48
        %v2501 = vpop.permute.xlu0 %2500
        %vm2504 = vcmask 523648
        %2505 = vst.msk [vmem:[#allocation2] sm:$0xff] %vm2504, %v2499
        %2506 = vst.msk [vmem:[#allocation2 + $0x8] sm:$0xff] %vm2504, %v2501
        %v2507 = vld [vmem:[#allocation2] sm:$0xff]
        %v2508 = vld [vmem:[#allocation2 + $0x8] sm:$0xff]
        %v2509 = vld [vmem:[%s14] sm:$0xff]
        %v2510 = vld [vmem:[%s14 + $0x8] sm:$0xff]
        %v2511 = vld [vmem:[%s14 + $0x10] sm:$0xff]
        %v2512 = vld [vmem:[%s14 + $0x18] sm:$0xff]
        %v2513 = vld [vmem:[%s14 + $0x20] sm:$0xff]
        %v2514 = vld [vmem:[%s14 + $0x28] sm:$0xff]
        %v2515 = vld [vmem:[%s14 + $0x30] sm:$0xff]
        %v2516 = vld [vmem:[%s14 + $0x38] sm:$0xff]
        %v2517 = vld [vmem:[%s15] sm:$0x1]
        %v2519 = vlaneseq
        %v2520 = vshrl.u32 %v2519, 7
        %v2521 = vsub.s32 0, %v2520
        %v2522 = vrot.slane %v2517, %v2521
        %v2525 = vsel %vm1160, %v2507, 0
        %v2528 = vsel %vm1160, %v2508, 0
        %2530 = vmatprep.subr.mxu0 0.0
        %2531 = vmatpush1.msra.mxu0 0.0
        %2532 = vmatprep.subr.mxu0 0.0
        %2533 = vmatpush1.msra.mxu0 0.0
        %2534 = vmatprep.subr.mxu0 0.0
        %2535 = vmatpush1.msra.mxu0 0.0
        %2536 = vmatprep.subr.mxu0 0.0
        %2537 = vmatpush1.msra.mxu0 0.0
        %2538 = vmatprep.subr.mxu0 0.0
        %2539 = vmatpush1.msra.mxu0 0.0
        %2540 = vmatprep.subr.mxu0 0.0
        %2541 = vmatpush1.msra.mxu0 0.0
        %2542 = vmatprep.subr.mxu0 0.0
        %2543 = vmatpush1.msra.mxu0 0.0
        %2544 = vmatprep.subr.mxu0 0.0
        %2545 = vmatpush1.msra.mxu0 0.0
        %2546 = vmatprep.subr.mxu0 0.0
        %2547 = vmatpush1.msra.mxu0 %v2516
        %2548 = vmatprep.subr.mxu0 0.0
        %2549 = vmatpush1.msra.mxu0 %v2515
        %2550 = vmatprep.subr.mxu0 0.0
        %2551 = vmatpush1.msra.mxu0 %v2514
        %2552 = vmatprep.subr.mxu0 0.0
        %2553 = vmatpush1.msra.mxu0 %v2513
        %2554 = vmatprep.subr.mxu0 0.0
        %2555 = vmatpush1.msra.mxu0 %v2512
        %2556 = vmatprep.subr.mxu0 0.0
        %2557 = vmatpush1.msra.mxu0 %v2511
        %2558 = vmatprep.subr.mxu0 0.0
        %2559 = vmatpush1.msra.mxu0 %v2510
        %2560 = vmatprep.subr.mxu0 0.0
        %2561 = vmatpush1.msra.mxu0 %v2509
        %2562 = vmatprep.subr.mxu0 0.0
        %2563 = vmatpush2.msra.mxu0 0.0
        %2564 = vmatprep.subr.mxu0 0.0
        %2565 = vmatpush2.msra.mxu0 0.0
        %2566 = vmatprep.subr.mxu0 0.0
        %2567 = vmatpush2.msra.mxu0 0.0
        %2568 = vmatprep.subr.mxu0 0.0
        %2569 = vmatpush2.msra.mxu0 0.0
        %2570 = vmatprep.subr.mxu0 0.0
        %2571 = vmatpush2.msra.mxu0 0.0
        %2572 = vmatprep.subr.mxu0 0.0
        %2573 = vmatpush2.msra.mxu0 0.0
        %2574 = vmatprep.subr.mxu0 0.0
        %2575 = vmatpush2.msra.mxu0 0.0
        %2576 = vmatprep.subr.mxu0 0.0
        %2577 = vmatpush2.msra.mxu0 0.0
        %2578 = vmatprep.subr.mxu0 0.0
        %2579 = vmatpush2.msra.mxu0 0.0
        %2580 = vmatprep.subr.mxu0 0.0
        %2581 = vmatpush2.msra.mxu0 0.0
        %2582 = vmatprep.subr.mxu0 0.0
        %2583 = vmatpush2.msra.mxu0 0.0
        %2584 = vmatprep.subr.mxu0 0.0
        %2585 = vmatpush2.msra.mxu0 0.0
        %2586 = vmatprep.subr.mxu0 0.0
        %2587 = vmatpush2.msra.mxu0 0.0
        %2588 = vmatprep.subr.mxu0 0.0
        %2589 = vmatpush2.msra.mxu0 0.0
        %2590 = vmatprep.subr.mxu0 0.0
        %2591 = vmatpush2.msra.mxu0 0.0
        %2592 = vmatprep.subr.mxu0 0.0
        %2593 = vmatpush2.msra.mxu0 0.0
        %2594 = vmatprep.mubr.f32.mxu0 0.0
        %2595 = vmatmul.mubr.f32.gmra.mxu0 %v2525
        %v2596 = vpop.f32.mrf.mxu0
        %v2597 = vadd.f32 %v2522, %v2596
        %v2598 = vpop.f32.mrf.mxu0
        %2599 = vmatprep.mubr.f32.mxu0 0.0
        %2600 = vmatmul.mubr.f32.gmra.mxu0 %v2528
        %v2601 = vpop.f32.mrf.mxu0
        %v2602 = vadd.f32 %v2522, %v2601
        %v2603 = vpop.f32.mrf.mxu0
        %2604 = vdwg.mxu0
        %v2605 = vadd.f32 %v724, %v2597
        %v2606 = vadd.f32 %v725, %v2602
        %v2607 = vld [vmem:[%s16] sm:$0x1]
        %v2608 = vld [vmem:[%s17] sm:$0x1]
        %v2609 = vsel %vm1160, %v2605, 0.0
        %2610 = vadd.xlane.f32.xlu0 %v2609
        %v2611 = vpop.xlane.xlu0 %2610
        %v2612 = vsel %vm1160, %v2606, 0.0
        %2613 = vadd.xlane.f32.xlu0 %v2612
        %v2614 = vpop.xlane.xlu0 %2613
        %v2615 = vmul.f32 %v2611, %v1167
        %v2616 = vmul.f32 %v2614, %v1167
        %v2617 = vsub.f32 %v2605, %v2615
        %v2618 = vsub.f32 %v2606, %v2616
        %v2619 = vmul.f32 %v2617, %v2617
        %v2620 = vmul.f32 %v2618, %v2618
        %v2621 = vsel %vm1160, %v2619, 0.0
        %2622 = vadd.xlane.f32.xlu0 %v2621
        %v2623 = vpop.xlane.xlu0 %2622
        %v2624 = vsel %vm1160, %v2620, 0.0
        %2625 = vadd.xlane.f32.xlu0 %v2624
        %v2626 = vpop.xlane.xlu0 %2625
        %v2627 = vmul.f32 %v2623, %v1167
        %v2628 = vmul.f32 %v2626, %v1167
        %v2629 = vadd.f32 %v2627, 1e-05
        %v2630 = vadd.f32 %v2628, 1e-05
        %v2631 = vrsqrt.pop %v2629
        %v2632 = vrsqrt.pop %v2630
        %v2633 = vmul.f32 %v2617, %v2631
        %v2634 = vmul.f32 %v2618, %v2632
        %v2636 = vlaneseq
        %v2637 = vshrl.u32 %v2636, 7
        %v2638 = vsub.s32 0, %v2637
        %v2639 = vrot.slane %v2607, %v2638
        %v2641 = vmul.f32 %v2633, %v2639
        %v2642 = vmul.f32 %v2634, %v2639
        %v2644 = vlaneseq
        %v2645 = vshrl.u32 %v2644, 7
        %v2646 = vsub.s32 0, %v2645
        %v2647 = vrot.slane %v2608, %v2646
        %v2649 = vadd.f32 %v2641, %v2647
        %v2650 = vadd.f32 %v2642, %v2647
        %v2651 = vld [vmem:[%s18] sm:$0xff]
        %v2652 = vld [vmem:[%s18 + $0x8] sm:$0xff]
        %v2653 = vld [vmem:[%s18 + $0x10] sm:$0xff]
        %v2654 = vld [vmem:[%s18 + $0x18] sm:$0xff]
        %v2655 = vld [vmem:[%s18 + $0x20] sm:$0xff]
        %v2656 = vld [vmem:[%s18 + $0x28] sm:$0xff]
        %v2657 = vld [vmem:[%s18 + $0x30] sm:$0xff]
        %v2658 = vld [vmem:[%s18 + $0x38] sm:$0xff]
        %v2659 = vld [vmem:[%s18 + $0x40] sm:$0xff]
        %v2660 = vld [vmem:[%s18 + $0x48] sm:$0xff]
        %v2661 = vld [vmem:[%s18 + $0x50] sm:$0xff]
        %v2662 = vld [vmem:[%s18 + $0x58] sm:$0xff]
        %v2663 = vld [vmem:[%s18 + $0x60] sm:$0xff]
        %v2664 = vld [vmem:[%s18 + $0x68] sm:$0xff]
        %v2665 = vld [vmem:[%s18 + $0x70] sm:$0xff]
        %v2666 = vld [vmem:[%s18 + $0x78] sm:$0xff]
        %v2667 = vld [vmem:[%s19] sm:$0x3]
        %v2669 = vlaneseq
        %v2670 = vshrl.u32 %v2669, 7
        %v2671 = vsub.s32 0, %v2670
        %v2672 = vrot.slane %v2667, %v2671
        %v2673 = vlaneseq
        %v2674 = vshrl.u32 %v2673, 7
        %v2675 = vsub.s32 1, %v2674
        %v2676 = vrot.slane %v2667, %v2675
        %v2680 = vsel %vm1160, %v2649, 0
        %v2683 = vsel %vm1160, %v2650, 0
        %2685 = vmatprep.subr.mxu0 0.0
        %2686 = vmatpush1.msra.mxu0 0.0
        %2687 = vmatprep.subr.mxu0 0.0
        %2688 = vmatpush1.msra.mxu0 0.0
        %2689 = vmatprep.subr.mxu0 0.0
        %2690 = vmatpush1.msra.mxu0 0.0
        %2691 = vmatprep.subr.mxu0 0.0
        %2692 = vmatpush1.msra.mxu0 0.0
        %2693 = vmatprep.subr.mxu0 0.0
        %2694 = vmatpush1.msra.mxu0 0.0
        %2695 = vmatprep.subr.mxu0 0.0
        %2696 = vmatpush1.msra.mxu0 0.0
        %2697 = vmatprep.subr.mxu0 0.0
        %2698 = vmatpush1.msra.mxu0 0.0
        %2699 = vmatprep.subr.mxu0 0.0
        %2700 = vmatpush1.msra.mxu0 0.0
        %2701 = vmatprep.subr.mxu0 %v2666
        %2702 = vmatpush1.msra.mxu0 %v2665
        %2703 = vmatprep.subr.mxu0 %v2664
        %2704 = vmatpush1.msra.mxu0 %v2663
        %2705 = vmatprep.subr.mxu0 %v2662
        %2706 = vmatpush1.msra.mxu0 %v2661
        %2707 = vmatprep.subr.mxu0 %v2660
        %2708 = vmatpush1.msra.mxu0 %v2659
        %2709 = vmatprep.subr.mxu0 %v2658
        %2710 = vmatpush1.msra.mxu0 %v2657
        %2711 = vmatprep.subr.mxu0 %v2656
        %2712 = vmatpush1.msra.mxu0 %v2655
        %2713 = vmatprep.subr.mxu0 %v2654
        %2714 = vmatpush1.msra.mxu0 %v2653
        %2715 = vmatprep.subr.mxu0 %v2652
        %2716 = vmatpush1.msra.mxu0 %v2651
        %2717 = vmatprep.subr.mxu0 0.0
        %2718 = vmatpush2.msra.mxu0 0.0
        %2719 = vmatprep.subr.mxu0 0.0
        %2720 = vmatpush2.msra.mxu0 0.0
        %2721 = vmatprep.subr.mxu0 0.0
        %2722 = vmatpush2.msra.mxu0 0.0
        %2723 = vmatprep.subr.mxu0 0.0
        %2724 = vmatpush2.msra.mxu0 0.0
        %2725 = vmatprep.subr.mxu0 0.0
        %2726 = vmatpush2.msra.mxu0 0.0
        %2727 = vmatprep.subr.mxu0 0.0
        %2728 = vmatpush2.msra.mxu0 0.0
        %2729 = vmatprep.subr.mxu0 0.0
        %2730 = vmatpush2.msra.mxu0 0.0
        %2731 = vmatprep.subr.mxu0 0.0
        %2732 = vmatpush2.msra.mxu0 0.0
        %2733 = vmatprep.subr.mxu0 0.0
        %2734 = vmatpush2.msra.mxu0 0.0
        %2735 = vmatprep.subr.mxu0 0.0
        %2736 = vmatpush2.msra.mxu0 0.0
        %2737 = vmatprep.subr.mxu0 0.0
        %2738 = vmatpush2.msra.mxu0 0.0
        %2739 = vmatprep.subr.mxu0 0.0
        %2740 = vmatpush2.msra.mxu0 0.0
        %2741 = vmatprep.subr.mxu0 0.0
        %2742 = vmatpush2.msra.mxu0 0.0
        %2743 = vmatprep.subr.mxu0 0.0
        %2744 = vmatpush2.msra.mxu0 0.0
        %2745 = vmatprep.subr.mxu0 0.0
        %2746 = vmatpush2.msra.mxu0 0.0
        %2747 = vmatprep.subr.mxu0 0.0
        %2748 = vmatpush2.msra.mxu0 0.0
        %2749 = vmatprep.mubr.f32.mxu0 0.0
        %2750 = vmatmul.mubr.f32.gmra.mxu0 %v2680
        %v2751 = vpop.f32.mrf.mxu0
        %v2752 = vadd.f32 %v2672, %v2751
        %v2753 = vpop.f32.mrf.mxu0
        %v2754 = vadd.f32 %v2676, %v2753
        %2755 = vmatprep.mubr.f32.mxu0 0.0
        %2756 = vmatmul.mubr.f32.gmra.mxu0 %v2683
        %v2757 = vpop.f32.mrf.mxu0
        %v2758 = vadd.f32 %v2672, %v2757
        %v2759 = vpop.f32.mrf.mxu0
        %v2760 = vadd.f32 %v2676, %v2759
        %2761 = vdwg.mxu0
        %v2762 = vmul.f32 %v2752, 0.5
        %v2763 = vmul.f32 %v2754, 0.5
        %v2764 = vmul.f32 %v2758, 0.5
        %v2765 = vmul.f32 %v2760, 0.5
        %v2766 = vmul.f32 %v2752, 0.70710677
        %v2767 = vmul.f32 %v2754, 0.70710677
        %v2768 = vmul.f32 %v2758, 0.70710677
        %v2769 = vmul.f32 %v2760, 0.70710677
        %v2770 = verf.f32.pop %v2766
        %v2771 = verf.f32.pop %v2767
        %v2772 = verf.f32.pop %v2768
        %v2773 = verf.f32.pop %v2769
        %v2774 = vadd.f32 %v2770, 1.0
        %v2775 = vadd.f32 %v2771, 1.0
        %v2776 = vadd.f32 %v2772, 1.0
        %v2777 = vadd.f32 %v2773, 1.0
        %v2778 = vmul.f32 %v2762, %v2774
        %v2779 = vmul.f32 %v2763, %v2775
        %v2780 = vmul.f32 %v2764, %v2776
        %v2781 = vmul.f32 %v2765, %v2777
        %v2782 = vld [vmem:[%s20] sm:$0xff]
        %v2783 = vld [vmem:[%s20 + $0x8] sm:$0xff]
        %v2784 = vld [vmem:[%s20 + $0x10] sm:$0xff]
        %v2785 = vld [vmem:[%s20 + $0x18] sm:$0xff]
        %v2786 = vld [vmem:[%s20 + $0x20] sm:$0xff]
        %v2787 = vld [vmem:[%s20 + $0x28] sm:$0xff]
        %v2788 = vld [vmem:[%s20 + $0x30] sm:$0xff]
        %v2789 = vld [vmem:[%s20 + $0x38] sm:$0xff]
        %v2790 = vld [vmem:[%s20 + $0x40] sm:$0xff]
        %v2791 = vld [vmem:[%s20 + $0x48] sm:$0xff]
        %v2792 = vld [vmem:[%s20 + $0x50] sm:$0xff]
        %v2793 = vld [vmem:[%s20 + $0x58] sm:$0xff]
        %v2794 = vld [vmem:[%s20 + $0x60] sm:$0xff]
        %v2795 = vld [vmem:[%s20 + $0x68] sm:$0xff]
        %v2796 = vld [vmem:[%s20 + $0x70] sm:$0xff]
        %v2797 = vld [vmem:[%s20 + $0x78] sm:$0xff]
        %v2798 = vld [vmem:[%s20 + $0x80] sm:$0xff]
        %v2799 = vld [vmem:[%s20 + $0x88] sm:$0xff]
        %v2800 = vld [vmem:[%s20 + $0x90] sm:$0xff]
        %v2801 = vld [vmem:[%s20 + $0x98] sm:$0xff]
        %v2802 = vld [vmem:[%s20 + $0xa0] sm:$0xff]
        %v2803 = vld [vmem:[%s20 + $0xa8] sm:$0xff]
        %v2804 = vld [vmem:[%s20 + $0xb0] sm:$0xff]
        %v2805 = vld [vmem:[%s20 + $0xb8] sm:$0xff]
        %v2806 = vld [vmem:[%s20 + $0xc0] sm:$0xff]
        %v2807 = vld [vmem:[%s20 + $0xc8] sm:$0xff]
        %v2808 = vld [vmem:[%s20 + $0xd0] sm:$0xff]
        %v2809 = vld [vmem:[%s20 + $0xd8] sm:$0xff]
        %v2810 = vld [vmem:[%s20 + $0xe0] sm:$0xff]
        %v2811 = vld [vmem:[%s20 + $0xe8] sm:$0xff]
        %v2812 = vld [vmem:[%s20 + $0xf0] sm:$0xff]
        %v2813 = vld [vmem:[%s20 + $0xf8] sm:$0xff]
        %v2814 = vld [vmem:[%s21] sm:$0x1]
        %v2816 = vlaneseq
        %v2817 = vshrl.u32 %v2816, 7
        %v2818 = vsub.s32 0, %v2817
        %v2819 = vrot.slane %v2814, %v2818
        %2821 = vmatprep.subr.mxu0 0.0
        %2822 = vmatpush1.msra.mxu0 %v2797
        %2823 = vmatprep.subr.mxu0 0.0
        %2824 = vmatpush1.msra.mxu0 %v2796
        %2825 = vmatprep.subr.mxu0 0.0
        %2826 = vmatpush1.msra.mxu0 %v2795
        %2827 = vmatprep.subr.mxu0 0.0
        %2828 = vmatpush1.msra.mxu0 %v2794
        %2829 = vmatprep.subr.mxu0 0.0
        %2830 = vmatpush1.msra.mxu0 %v2793
        %2831 = vmatprep.subr.mxu0 0.0
        %2832 = vmatpush1.msra.mxu0 %v2792
        %2833 = vmatprep.subr.mxu0 0.0
        %2834 = vmatpush1.msra.mxu0 %v2791
        %2835 = vmatprep.subr.mxu0 0.0
        %2836 = vmatpush1.msra.mxu0 %v2790
        %2837 = vmatprep.subr.mxu0 0.0
        %2838 = vmatpush1.msra.mxu0 %v2789
        %2839 = vmatprep.subr.mxu0 0.0
        %2840 = vmatpush1.msra.mxu0 %v2788
        %2841 = vmatprep.subr.mxu0 0.0
        %2842 = vmatpush1.msra.mxu0 %v2787
        %2843 = vmatprep.subr.mxu0 0.0
        %2844 = vmatpush1.msra.mxu0 %v2786
        %2845 = vmatprep.subr.mxu0 0.0
        %2846 = vmatpush1.msra.mxu0 %v2785
        %2847 = vmatprep.subr.mxu0 0.0
        %2848 = vmatpush1.msra.mxu0 %v2784
        %2849 = vmatprep.subr.mxu0 0.0
        %2850 = vmatpush1.msra.mxu0 %v2783
        %2851 = vmatprep.subr.mxu0 0.0
        %2852 = vmatpush1.msra.mxu0 %v2782
        %2853 = vmatprep.subr.mxu0 0.0
        %2854 = vmatpush2.msra.mxu0 %v2813
        %2855 = vmatprep.subr.mxu0 0.0
        %2856 = vmatpush2.msra.mxu0 %v2812
        %2857 = vmatprep.subr.mxu0 0.0
        %2858 = vmatpush2.msra.mxu0 %v2811
        %2859 = vmatprep.subr.mxu0 0.0
        %2860 = vmatpush2.msra.mxu0 %v2810
        %2861 = vmatprep.subr.mxu0 0.0
        %2862 = vmatpush2.msra.mxu0 %v2809
        %2863 = vmatprep.subr.mxu0 0.0
        %2864 = vmatpush2.msra.mxu0 %v2808
        %2865 = vmatprep.subr.mxu0 0.0
        %2866 = vmatpush2.msra.mxu0 %v2807
        %2867 = vmatprep.subr.mxu0 0.0
        %2868 = vmatpush2.msra.mxu0 %v2806
        %2869 = vmatprep.subr.mxu0 0.0
        %2870 = vmatpush2.msra.mxu0 %v2805
        %2871 = vmatprep.subr.mxu0 0.0
        %2872 = vmatpush2.msra.mxu0 %v2804
        %2873 = vmatprep.subr.mxu0 0.0
        %2874 = vmatpush2.msra.mxu0 %v2803
        %2875 = vmatprep.subr.mxu0 0.0
        %2876 = vmatpush2.msra.mxu0 %v2802
        %2877 = vmatprep.subr.mxu0 0.0
        %2878 = vmatpush2.msra.mxu0 %v2801
        %2879 = vmatprep.subr.mxu0 0.0
        %2880 = vmatpush2.msra.mxu0 %v2800
        %2881 = vmatprep.subr.mxu0 0.0
        %2882 = vmatpush2.msra.mxu0 %v2799
        %2883 = vmatprep.subr.mxu0 0.0
        %2884 = vmatpush2.msra.mxu0 %v2798
        %2885 = vmatprep.mubr.f32.mxu0 %v2779
        %2886 = vmatmul.mubr.f32.gmra.mxu0 %v2778
        %v2887 = vpop.f32.mrf.mxu0
        %v2888 = vadd.f32 %v2819, %v2887
        %v2889 = vpop.f32.mrf.mxu0
        %2890 = vmatprep.mubr.f32.mxu0 %v2781
        %2891 = vmatmul.mubr.f32.gmra.mxu0 %v2780
        %v2892 = vpop.f32.mrf.mxu0
        %v2893 = vadd.f32 %v2819, %v2892
        %v2894 = vpop.f32.mrf.mxu0
        %2895 = vdwg.mxu0
        %v2896 = vadd.f32 %v2605, %v2888
        %v2897 = vadd.f32 %v2606, %v2893
        %2898 = vst.msk [vmem:[%s709] sm:$0xff] %vm1160, %v2896
        %2899 = vst.msk [vmem:[%s709 + $0x8] sm:$0xff] %vm1160, %v2897
        %s2900 = sand.u32 %s532, 1
        %s2901 = scalar_lea.sflag [#allocation5], %s2900
        %s2902 = sand.u32 %s532, 1
        %s2903 = smul.addr %s2902, 16
        %s2904 = scalar_lea.vmem [#allocation4], %s2903
        // Predicated region
        $region113: #{tpu_custom_call.1} parent=107 // pred_check
          %p2905 = pneg %p542
        $region114: #{tpu_custom_call.1} parent=107 // pred_check_branch
          %2907 = sbr.rel (%p2905) target = $region116
        $region115: #{tpu_custom_call.1} parent=107 // pred_region
          %s2908 = sadd.s32 %s40, %s41
          %s2909 = smul.u32 2, %s2908
          %s2911 = ssub.s32 256, 256
          %2912 = vsyncadd %s2901, %s2911
          %s2913 = smul.addr %s2909, 128
          %s2914 = scalar_lea.hbm %s22, %s2913
          %s2915 = sshll.u32 %s2904, 4
          %s2916 = int_to_ptr.vmem [resolvable:$true] %s2915
          %2921 = dma.vmem_to_hbm [thread:$0]  %s2916, 256, %s2914, %s2901, 128, 128, 8
        $region116: #{tpu_custom_call.1} parent=107 // pred_fallthru
          _
      $region108: #{tpu_custom_call.1} parent=5 // pred_fallthru
        _
      %p2922 = scmp.le.s32.totalorder 2, %s31
      // Predicated region
      $region117: #{tpu_custom_call.1} parent=5 // pred_check
        %p2923 = pneg %p2922
      $region118: #{tpu_custom_call.1} parent=5 // pred_check_branch
        %2925 = sbr.rel (%p2923) target = $region120
      $region119: #{tpu_custom_call.1} parent=5 // pred_region
        %s2926 = ssub.s32 %s31, 2
        // Predicated region
        $region121: #{tpu_custom_call.1} parent=119 // pred_check
          %p2927 = pneg %p548
        $region122: #{tpu_custom_call.1} parent=119 // pred_check_branch
          %2929 = sbr.rel (%p2927) target = $region124
        $region123: #{tpu_custom_call.1} parent=119 // pred_region
          %s2930 = sand.u32 %s533, 1
          %s2931 = scalar_lea.sflag [#allocation5], %s2930
          %s2932 = sand.u32 %s533, 1
          %s2933 = smul.addr %s2932, 16
          %s2934 = scalar_lea.vmem [#allocation4], %s2933
          %2935 = dma.done %s2931, 256
        $region124: #{tpu_custom_call.1} parent=119 // pred_fallthru
          _
      $region120: #{tpu_custom_call.1} parent=5 // pred_fallthru
        _
    $region6: #{tpu_custom_call.1} parent=1 // loop_footer
      %s35 = sadd.s32 1, %s31
    $region7: #{tpu_custom_call.1} parent=1 // loop_footer_branch
      %30 = sbr.rel target = $region3
    $region8: #{tpu_custom_call.1} parent=1 // loop_exit
      _
    %2936 = vsyncpa [#allocation5], 1
    %s2937 = scalar_lea.sflag [#allocation5], 1
    %2938 = vsyncpa %s2937, 1

// kernel: tpu_custom_call.1
$region0: #{tpu_custom_call.1}
  #allocation0 [shape = 'u32[]', space=smem, size = 0x4, offset = 0x4, fixed_abs, tag = 'smem constant byte address 0x4 - core index']
  #allocation1 [shape = 'u32[144,128]{1,0:T(1,128)}', space=vmem, size = 0x12000, scoped, tag = 'internal scratch']
  #allocation2 [shape = 'f32[16,64]{1,0:T(8,128)}', space=vmem, size = 0x2000, scoped, tag = 'scratch operand']
  #allocation3 [shape = 'f32[2,8,64]{2,1,0:T(8,128)}', space=vmem, size = 0x2000, scoped, tag = 'scratch operand']
  %s0 = inlined_call_operand.vmem [shape: f32[32,64], index: 0, kind: input, shape index: {}]
  %s1 = inlined_call_operand.vmem [shape: f32[16,64], index: 1, kind: input, shape index: {}]
  %s2 = inlined_call_operand.vmem [shape: f32[1,64], index: 2, kind: input, shape index: {}]
  %s3 = inlined_call_operand.vmem [shape: f32[1,64], index: 3, kind: input, shape index: {}]
  %s4 = inlined_call_operand.vmem [shape: f32[64,64], index: 4, kind: input, shape index: {}]
  %s5 = inlined_call_operand.vmem [shape: f32[1,64], index: 5, kind: input, shape index: {}]
  %s6 = inlined_call_operand.vmem [shape: f32[64,128], index: 6, kind: input, shape index: {}]
  %s7 = inlined_call_operand.vmem [shape: f32[1,128], index: 7, kind: input, shape index: {}]
  %s8 = inlined_call_operand.vmem [shape: f32[64,4], index: 8, kind: input, shape index: {}]
  %s9 = inlined_call_operand.vmem [shape: f32[4,64], index: 9, kind: input, shape index: {}]
  %s10 = inlined_call_operand.vmem [shape: f32[1,64], index: 10, kind: input, shape index: {}]
  %s11 = inlined_call_operand.vmem [shape: f32[1,64], index: 11, kind: input, shape index: {}]
  %s12 = inlined_call_operand.vmem [shape: f32[1,64], index: 12, kind: input, shape index: {}]
  %s13 = inlined_call_operand.vmem [shape: f32[1,64], index: 13, kind: input, shape index: {}]
  %s14 = inlined_call_operand.vmem [shape: f32[64,64], index: 14, kind: input, shape index: {}]
  %s15 = inlined_call_operand.vmem [shape: f32[1,64], index: 15, kind: input, shape index: {}]
  %s16 = inlined_call_operand.vmem [shape: f32[1,64], index: 16, kind: input, shape index: {}]
  %s17 = inlined_call_operand.vmem [shape: f32[1,64], index: 17, kind: input, shape index: {}]
  %s18 = inlined_call_operand.vmem [shape: f32[64,256], index: 18, kind: input, shape index: {}]
  %s19 = inlined_call_operand.vmem [shape: f32[1,256], index: 19, kind: input, shape index: {}]
  %s20 = inlined_call_operand.vmem [shape: f32[256,64], index: 20, kind: input, shape index: {}]
  %s21 = inlined_call_operand.vmem [shape: f32[1,64], index: 21, kind: input, shape index: {}]
  %s22 = inlined_call_operand.hbm [shape: f32[32,64], index: 22, kind: output, shape index: {}]
  %s23 = sld [smem:[#allocation0]]
  $region125: #{tpu_custom_call.1} parent=0
    _
  %s25 = ssub.s32 1, %s23
  %s26 = scalar_select 0, %s25, %s23
  $region1: #{tpu_custom_call.1} parent=0
    #allocation4 [shape = 'u8[16384]{0}', space=vmem, size = 0x4000, scoped, tag = 'output window, operand 0']
    #allocation5 [shape = 's32[2]{0}', space=sflag, size = 0x8, scoped, tag = 'scoped memory for tpu_custom_call.1']
    %27 = vsyncpa [#allocation5], 0
    %s28 = scalar_lea.sflag [#allocation5], 1
    %29 = vsyncpa %s28, 0
    loop: start=0, step=1, limit=4
    $region2: #{tpu_custom_call.1} parent=1 // loop_pre_header
      _
    $region3: #{tpu_custom_call.1} parent=1 // loop_header
      %s31 = sphi 0, %s35
      %p32 = scmp.ge.s32.totalorder %s31, 4
      %s38 = sphi 0, %s50
      %s39 = sphi 0, %s46
      %s40 = sphi 0, %s38
      %s41 = sphi 0, %s39
      %s42 = sphi 0, %s40
      %s43 = sphi 0, %s41
      %s55 = sphi 0, %s57
      %s58 = sphi 0, %s55
      %s59 = sphi 0, %s58
      %s75 = sphi 0, %s59
      %s81 = sphi 0, %s83
      %s84 = sphi 0, %s81
      %s85 = sphi 0, %s84
      %s101 = sphi 0, %s85
      %s105 = sphi 0, %s105
      %s107 = sphi 0, %s105
      %s108 = sphi 0, %s107
      %s122 = sphi 0, %s108
      %s126 = sphi 0, %s126
      %s128 = sphi 0, %s126
      %s129 = sphi 0, %s128
      %s143 = sphi 0, %s129
      %s147 = sphi 0, %s147
      %s149 = sphi 0, %s147
      %s150 = sphi 0, %s149
      %s164 = sphi 0, %s150
      %s168 = sphi 0, %s168
      %s170 = sphi 0, %s168
      %s171 = sphi 0, %s170
      %s185 = sphi 0, %s171
      %s189 = sphi 0, %s189
      %s191 = sphi 0, %s189
      %s192 = sphi 0, %s191
      %s206 = sphi 0, %s192
      %s210 = sphi 0, %s210
      %s212 = sphi 0, %s210
      %s213 = sphi 0, %s212
      %s227 = sphi 0, %s213
      %s231 = sphi 0, %s231
      %s233 = sphi 0, %s231
      %s234 = sphi 0, %s233
      %s248 = sphi 0, %s234
      %s252 = sphi 0, %s252
      %s254 = sphi 0, %s252
      %s255 = sphi 0, %s254
      %s269 = sphi 0, %s255
      %s273 = sphi 0, %s273
      %s275 = sphi 0, %s273
      %s276 = sphi 0, %s275
      %s290 = sphi 0, %s276
      %s294 = sphi 0, %s294
      %s296 = sphi 0, %s294
      %s297 = sphi 0, %s296
      %s311 = sphi 0, %s297
      %s315 = sphi 0, %s315
      %s317 = sphi 0, %s315
      %s318 = sphi 0, %s317
      %s332 = sphi 0, %s318
      %s336 = sphi 0, %s336
      %s338 = sphi 0, %s336
      %s339 = sphi 0, %s338
      %s353 = sphi 0, %s339
      %s357 = sphi 0, %s357
      %s359 = sphi 0, %s357
      %s360 = sphi 0, %s359
      %s374 = sphi 0, %s360
      %s378 = sphi 0, %s378
      %s380 = sphi 0, %s378
      %s381 = sphi 0, %s380
      %s395 = sphi 0, %s381
      %s399 = sphi 0, %s399
      %s401 = sphi 0, %s399
      %s402 = sphi 0, %s401
      %s416 = sphi 0, %s402
      %s420 = sphi 0, %s420
      %s422 = sphi 0, %s420
      %s423 = sphi 0, %s422
      %s437 = sphi 0, %s423
      %s441 = sphi 0, %s441
      %s443 = sphi 0, %s441
      %s444 = sphi 0, %s443
      %s458 = sphi 0, %s444
      %s462 = sphi 0, %s462
      %s464 = sphi 0, %s462
      %s465 = sphi 0, %s464
      %s479 = sphi 0, %s465
      %s483 = sphi 0, %s483
      %s485 = sphi 0, %s483
      %s486 = sphi 0, %s485
      %s500 = sphi 0, %s486
      %s504 = sphi 0, %s504
      %s506 = sphi 0, %s504
      %s507 = sphi 0, %s506
      %s521 = sphi 0, %s507
      %s529 = sphi 0, %s531
      %s532 = sphi 0, %s529
      %s533 = sphi 0, %s532
      %s549 = sphi 0, %s533
    $region4: #{tpu_custom_call.1} parent=1 // loop_header_branch
      %34 = sbr.rel (%p32) target = $region8
    $region5: #{tpu_custom_call.1} parent=1 // loop_body
      %s36 = ssub.s32 %s31, 1
      %s37 = ssub.s32 %s31, 2
      %s44 = sadd.s32 1, %s39
      %p45 = scmp.ge.s32.totalorder %s44, 1
      %s46 = scalar_select %p45, 0, %s44
      %s47 = sadd.s32 1, %s38
      %s48 = scalar_select %p45, %s47, %s38
      %p49 = scmp.ge.s32.totalorder %s48, 2
      %s50 = scalar_select %p49, 0, %s48
      %s51 = sadd.s32 %s38, %s39
      %s52 = sadd.s32 %s50, %s46
      %s53 = ssub.s32 %s51, %s52
      %p54 = scmp.eq.s32.totalorder %s53, 0
      %s56 = sadd.s32 %s55, 1
      %s57 = scalar_select %p54, %s55, %s56
      %p60 = pneg %p54
      %p61 = scmp.eq.s32.totalorder %s31, 1
      %p62 = por %p60, %p61
      %p63 = scmp.ne.s32.totalorder %s55, %s58
      %p64 = scmp.eq.s32.totalorder %s31, 0
      %p65 = por %p63, %p64
      %p66 = scmp.ne.s32.totalorder %s55, %s58
      %p67 = scmp.eq.s32.totalorder %s36, 1
      %p68 = por %p66, %p67
      %p69 = scmp.ne.s32.totalorder %s58, %s59
      %p70 = scmp.eq.s32.totalorder %s36, 0
      %p71 = por %p69, %p70
      %p72 = scmp.ne.s32.totalorder %s58, %s59
      %p73 = scmp.eq.s32.totalorder %s37, 1
      %p74 = por %p72, %p73
      %p76 = scmp.ne.s32.totalorder %s59, %s75
      %p77 = scmp.eq.s32.totalorder %s37, 0
      %p78 = por %p76, %p77
      %s79 = ssub.s32 %s38, %s50
      %p80 = scmp.eq.s32.totalorder %s79, 0
      %s82 = sadd.s32 %s81, 1
      %s83 = scalar_select %p80, %s81, %s82
      %p86 = pneg %p80
      %p87 = scmp.eq.s32.totalorder %s31, 1
      %p88 = por %p86, %p87
      %p89 = scmp.ne.s32.totalorder %s81, %s84
      %p90 = scmp.eq.s32.totalorder %s31, 0
      %p91 = por %p89, %p90
      %p92 = scmp.ne.s32.totalorder %s81, %s84
      %p93 = scmp.eq.s32.totalorder %s36, 1
      %p94 = por %p92, %p93
      %p95 = scmp.ne.s32.totalorder %s84, %s85
      %p96 = scmp.eq.s32.totalorder %s36, 0
      %p97 = por %p95, %p96
      %p98 = scmp.ne.s32.totalorder %s84, %s85
      %p99 = scmp.eq.s32.totalorder %s37, 1
      %p100 = por %p98, %p99
      %p102 = scmp.ne.s32.totalorder %s85, %s101
      %p103 = scmp.eq.s32.totalorder %s37, 0
      %p104 = por %p102, %p103
      %s106 = sadd.s32 %s105, 1
      %p109 = scmp.eq.s32.totalorder %s31, 1
      %p110 = scmp.ne.s32.totalorder %s105, %s107
      %p111 = scmp.eq.s32.totalorder %s31, 0
      %p112 = por %p110, %p111
      %p113 = scmp.ne.s32.totalorder %s105, %s107
      %p114 = scmp.eq.s32.totalorder %s36, 1
      %p115 = por %p113, %p114
      %p116 = scmp.ne.s32.totalorder %s107, %s108
      %p117 = scmp.eq.s32.totalorder %s36, 0
      %p118 = por %p116, %p117
      %p119 = scmp.ne.s32.totalorder %s107, %s108
      %p120 = scmp.eq.s32.totalorder %s37, 1
      %p121 = por %p119, %p120
      %p123 = scmp.ne.s32.totalorder %s108, %s122
      %p124 = scmp.eq.s32.totalorder %s37, 0
      %p125 = por %p123, %p124
      %s127 = sadd.s32 %s126, 1
      %p130 = scmp.eq.s32.totalorder %s31, 1
      %p131 = scmp.ne.s32.totalorder %s126, %s128
      %p132 = scmp.eq.s32.totalorder %s31, 0
      %p133 = por %p131, %p132
      %p134 = scmp.ne.s32.totalorder %s126, %s128
      %p135 = scmp.eq.s32.totalorder %s36, 1
      %p136 = por %p134, %p135
      %p137 = scmp.ne.s32.totalorder %s128, %s129
      %p138 = scmp.eq.s32.totalorder %s36, 0
      %p139 = por %p137, %p138
      %p140 = scmp.ne.s32.totalorder %s128, %s129
      %p141 = scmp.eq.s32.totalorder %s37, 1
      %p142 = por %p140, %p141
      %p144 = scmp.ne.s32.totalorder %s129, %s143
      %p145 = scmp.eq.s32.totalorder %s37, 0
      %p146 = por %p144, %p145
      %s148 = sadd.s32 %s147, 1
      %p151 = scmp.eq.s32.totalorder %s31, 1
      %p152 = scmp.ne.s32.totalorder %s147, %s149
      %p153 = scmp.eq.s32.totalorder %s31, 0
      %p154 = por %p152, %p153
      %p155 = scmp.ne.s32.totalorder %s147, %s149
      %p156 = scmp.eq.s32.totalorder %s36, 1
      %p157 = por %p155, %p156
      %p158 = scmp.ne.s32.totalorder %s149, %s150
      %p159 = scmp.eq.s32.totalorder %s36, 0
      %p160 = por %p158, %p159
      %p161 = scmp.ne.s32.totalorder %s149, %s150
      %p162 = scmp.eq.s32.totalorder %s37, 1
      %p163 = por %p161, %p162
      %p165 = scmp.ne.s32.totalorder %s150, %s164
      %p166 = scmp.eq.s32.totalorder %s37, 0
      %p167 = por %p165, %p166
      %s169 = sadd.s32 %s168, 1
      %p172 = scmp.eq.s32.totalorder %s31, 1
      %p173 = scmp.ne.s32.totalorder %s168, %s170
      %p174 = scmp.eq.s32.totalorder %s31, 0
      %p175 = por %p173, %p174
      %p176 = scmp.ne.s32.totalorder %s168, %s170
      %p177 = scmp.eq.s32.totalorder %s36, 1
      %p178 = por %p176, %p177
      %p179 = scmp.ne.s32.totalorder %s170, %s171
      %p180 = scmp.eq.s32.totalorder %s36, 0
      %p181 = por %p179, %p180
      %p182 = scmp.ne.s32.totalorder %s170, %s171
      %p183 = scmp.eq.s32.totalorder %s37, 1
      %p184 = por %p182, %p183
      %p186 = scmp.ne.s32.totalorder %s171, %s185
      %p187 = scmp.eq.s32.totalorder %s37, 0
      %p188 = por %p186, %p187
      %s190 = sadd.s32 %s189, 1
      %p193 = scmp.eq.s32.totalorder %s31, 1
      %p194 = scmp.ne.s32.totalorder %s189, %s191
      %p195 = scmp.eq.s32.totalorder %s31, 0
      %p196 = por %p194, %p195
      %p197 = scmp.ne.s32.totalorder %s189, %s191
      %p198 = scmp.eq.s32.totalorder %s36, 1
      %p199 = por %p197, %p198
      %p200 = scmp.ne.s32.totalorder %s191, %s192
      %p201 = scmp.eq.s32.totalorder %s36, 0
      %p202 = por %p200, %p201
      %p203 = scmp.ne.s32.totalorder %s191, %s192
      %p204 = scmp.eq.s32.totalorder %s37, 1
      %p205 = por %p203, %p204
      %p207 = scmp.ne.s32.totalorder %s192, %s206
      %p208 = scmp.eq.s32.totalorder %s37, 0
      %p209 = por %p207, %p208
      %s211 = sadd.s32 %s210, 1
      %p214 = scmp.eq.s32.totalorder %s31, 1
      %p215 = scmp.ne.s32.totalorder %s210, %s212
      %p216 = scmp.eq.s32.totalorder %s31, 0
      %p217 = por %p215, %p216
      %p218 = scmp.ne.s32.totalorder %s210, %s212
      %p219 = scmp.eq.s32.totalorder %s36, 1
      %p220 = por %p218, %p219
      %p221 = scmp.ne.s32.totalorder %s212, %s213
      %p222 = scmp.eq.s32.totalorder %s36, 0
      %p223 = por %p221, %p222
      %p224 = scmp.ne.s32.totalorder %s212, %s213
      %p225 = scmp.eq.s32.totalorder %s37, 1
      %p226 = por %p224, %p225
      %p228 = scmp.ne.s32.totalorder %s213, %s227
      %p229 = scmp.eq.s32.totalorder %s37, 0
      %p230 = por %p228, %p229
      %s232 = sadd.s32 %s231, 1
      %p235 = scmp.eq.s32.totalorder %s31, 1
      %p236 = scmp.ne.s32.totalorder %s231, %s233
      %p237 = scmp.eq.s32.totalorder %s31, 0
      %p238 = por %p236, %p237
      %p239 = scmp.ne.s32.totalorder %s231, %s233
      %p240 = scmp.eq.s32.totalorder %s36, 1
      %p241 = por %p239, %p240
      %p242 = scmp.ne.s32.totalorder %s233, %s234
      %p243 = scmp.eq.s32.totalorder %s36, 0
      %p244 = por %p242, %p243
      %p245 = scmp.ne.s32.totalorder %s233, %s234
      %p246 = scmp.eq.s32.totalorder %s37, 1
      %p247 = por %p245, %p246
      %p249 = scmp.ne.s32.totalorder %s234, %s248
      %p250 = scmp.eq.s32.totalorder %s37, 0
      %p251 = por %p249, %p250
      %s253 = sadd.s32 %s252, 1
      %p256 = scmp.eq.s32.totalorder %s31, 1
      %p257 = scmp.ne.s32.totalorder %s252, %s254
      %p258 = scmp.eq.s32.totalorder %s31, 0
      %p259 = por %p257, %p258
      %p260 = scmp.ne.s32.totalorder %s252, %s254
      %p261 = scmp.eq.s32.totalorder %s36, 1
      %p262 = por %p260, %p261
      %p263 = scmp.ne.s32.totalorder %s254, %s255
      %p264 = scmp.eq.s32.totalorder %s36, 0
      %p265 = por %p263, %p264
      %p266 = scmp.ne.s32.totalorder %s254, %s255
      %p267 = scmp.eq.s32.totalorder %s37, 1
      %p268 = por %p266, %p267
      %p270 = scmp.ne.s32.totalorder %s255, %s269
      %p271 = scmp.eq.s32.totalorder %s37, 0
      %p272 = por %p270, %p271
      %s274 = sadd.s32 %s273, 1
      %p277 = scmp.eq.s32.totalorder %s31, 1
      %p278 = scmp.ne.s32.totalorder %s273, %s275
      %p279 = scmp.eq.s32.totalorder %s31, 0
      %p280 = por %p278, %p279
      %p281 = scmp.ne.s32.totalorder %s273, %s275
      %p282 = scmp.eq.s32.totalorder %s36, 1
      %p283 = por %p281, %p282
      %p284 = scmp.ne.s32.totalorder %s275, %s276
      %p285 = scmp.eq.s32.totalorder %s36, 0
      %p286 = por %p284, %p285
      %p287 = scmp.ne.s32.totalorder %s275, %s276
      %p288 = scmp.eq.s32.totalorder %s37, 1
      %p289 = por %p287, %p288
      %p291 = scmp.ne.s32.totalorder %s276, %s290
      %p292 = scmp.eq.s32.totalorder %s37, 0
      %p293 = por %p291, %p292
      %s295 = sadd.s32 %s294, 1
      %p298 = scmp.eq.s32.totalorder %s31, 1
      %p299 = scmp.ne.s32.totalorder %s294, %s296
      %p300 = scmp.eq.s32.totalorder %s31, 0
      %p301 = por %p299, %p300
      %p302 = scmp.ne.s32.totalorder %s294, %s296
      %p303 = scmp.eq.s32.totalorder %s36, 1
      %p304 = por %p302, %p303
      %p305 = scmp.ne.s32.totalorder %s296, %s297
      %p306 = scmp.eq.s32.totalorder %s36, 0
      %p307 = por %p305, %p306
      %p308 = scmp.ne.s32.totalorder %s296, %s297
      %p309 = scmp.eq.s32.totalorder %s37, 1
      %p310 = por %p308, %p309
      %p312 = scmp.ne.s32.totalorder %s297, %s311
      %p313 = scmp.eq.s32.totalorder %s37, 0
      %p314 = por %p312, %p313
      %s316 = sadd.s32 %s315, 1
      %p319 = scmp.eq.s32.totalorder %s31, 1
      %p320 = scmp.ne.s32.totalorder %s315, %s317
      %p321 = scmp.eq.s32.totalorder %s31, 0
      %p322 = por %p320, %p321
      %p323 = scmp.ne.s32.totalorder %s315, %s317
      %p324 = scmp.eq.s32.totalorder %s36, 1
      %p325 = por %p323, %p324
      %p326 = scmp.ne.s32.totalorder %s317, %s318
      %p327 = scmp.eq.s32.totalorder %s36, 0
      %p328 = por %p326, %p327
      %p329 = scmp.ne.s32.totalorder %s317, %s318
      %p330 = scmp.eq.s32.totalorder %s37, 1
      %p331 = por %p329, %p330
      %p333 = scmp.ne.s32.totalorder %s318, %s332
      %p334 = scmp.eq.s32.totalorder %s37, 0
      %p335 = por %p333, %p334
      %s337 = sadd.s32 %s336, 1
      %p340 = scmp.eq.s32.totalorder %s31, 1
      %p341 = scmp.ne.s32.totalorder %s336, %s338
      %p342 = scmp.eq.s32.totalorder %s31, 0
      %p343 = por %p341, %p342
      %p344 = scmp.ne.s32.totalorder %s336, %s338
      %p345 = scmp.eq.s32.totalorder %s36, 1
      %p346 = por %p344, %p345
      %p347 = scmp.ne.s32.totalorder %s338, %s339
      %p348 = scmp.eq.s32.totalorder %s36, 0
      %p349 = por %p347, %p348
      %p350 = scmp.ne.s32.totalorder %s338, %s339
      %p351 = scmp.eq.s32.totalorder %s37, 1
      %p352 = por %p350, %p351
      %p354 = scmp.ne.s32.totalorder %s339, %s353
      %p355 = scmp.eq.s32.totalorder %s37, 0
      %p356 = por %p354, %p355
      %s358 = sadd.s32 %s357, 1
      %p361 = scmp.eq.s32.totalorder %s31, 1
      %p362 = scmp.ne.s32.totalorder %s357, %s359
      %p363 = scmp.eq.s32.totalorder %s31, 0
      %p364 = por %p362, %p363
      %p365 = scmp.ne.s32.totalorder %s357, %s359
      %p366 = scmp.eq.s32.totalorder %s36, 1
      %p367 = por %p365, %p366
      %p368 = scmp.ne.s32.totalorder %s359, %s360
      %p369 = scmp.eq.s32.totalorder %s36, 0
      %p370 = por %p368, %p369
      %p371 = scmp.ne.s32.totalorder %s359, %s360
      %p372 = scmp.eq.s32.totalorder %s37, 1
      %p373 = por %p371, %p372
      %p375 = scmp.ne.s32.totalorder %s360, %s374
      %p376 = scmp.eq.s32.totalorder %s37, 0
      %p377 = por %p375, %p376
      %s379 = sadd.s32 %s378, 1
      %p382 = scmp.eq.s32.totalorder %s31, 1
      %p383 = scmp.ne.s32.totalorder %s378, %s380
      %p384 = scmp.eq.s32.totalorder %s31, 0
      %p385 = por %p383, %p384
      %p386 = scmp.ne.s32.totalorder %s378, %s380
      %p387 = scmp.eq.s32.totalorder %s36, 1
      %p388 = por %p386, %p387
      %p389 = scmp.ne.s32.totalorder %s380, %s381
      %p390 = scmp.eq.s32.totalorder %s36, 0
      %p391 = por %p389, %p390
      %p392 = scmp.ne.s32.totalorder %s380, %s381
      %p393 = scmp.eq.s32.totalorder %s37, 1
      %p394 = por %p392, %p393
      %p396 = scmp.ne.s32.totalorder %s381, %s395
      %p397 = scmp.eq.s32.totalorder %s37, 0
      %p398 = por %p396, %p397
      %s400 = sadd.s32 %s399, 1
      %p403 = scmp.eq.s32.totalorder %s31, 1
      %p404 = scmp.ne.s32.totalorder %s399, %s401
      %p405 = scmp.eq.s32.totalorder %s31, 0
      %p406 = por %p404, %p405
      %p407 = scmp.ne.s32.totalorder %s399, %s401
      %p408 = scmp.eq.s32.totalorder %s36, 1
      %p409 = por %p407, %p408
      %p410 = scmp.ne.s32.totalorder %s401, %s402
      %p411 = scmp.eq.s32.totalorder %s36, 0
      %p412 = por %p410, %p411
      %p413 = scmp.ne.s32.totalorder %s401, %s402
      %p414 = scmp.eq.s32.totalorder %s37, 1
      %p415 = por %p413, %p414
      %p417 = scmp.ne.s32.totalorder %s402, %s416
      %p418 = scmp.eq.s32.totalorder %s37, 0
      %p419 = por %p417, %p418
      %s421 = sadd.s32 %s420, 1
      %p424 = scmp.eq.s32.totalorder %s31, 1
      %p425 = scmp.ne.s32.totalorder %s420, %s422
      %p426 = scmp.eq.s32.totalorder %s31, 0
      %p427 = por %p425, %p426
      %p428 = scmp.ne.s32.totalorder %s420, %s422
      %p429 = scmp.eq.s32.totalorder %s36, 1
      %p430 = por %p428, %p429
      %p431 = scmp.ne.s32.totalorder %s422, %s423
      %p432 = scmp.eq.s32.totalorder %s36, 0
      %p433 = por %p431, %p432
      %p434 = scmp.ne.s32.totalorder %s422, %s423
      %p435 = scmp.eq.s32.totalorder %s37, 1
      %p436 = por %p434, %p435
      %p438 = scmp.ne.s32.totalorder %s423, %s437
      %p439 = scmp.eq.s32.totalorder %s37, 0
      %p440 = por %p438, %p439
      %s442 = sadd.s32 %s441, 1
      %p445 = scmp.eq.s32.totalorder %s31, 1
      %p446 = scmp.ne.s32.totalorder %s441, %s443
      %p447 = scmp.eq.s32.totalorder %s31, 0
      %p448 = por %p446, %p447
      %p449 = scmp.ne.s32.totalorder %s441, %s443
      %p450 = scmp.eq.s32.totalorder %s36, 1
      %p451 = por %p449, %p450
      %p452 = scmp.ne.s32.totalorder %s443, %s444
      %p453 = scmp.eq.s32.totalorder %s36, 0
      %p454 = por %p452, %p453
      %p455 = scmp.ne.s32.totalorder %s443, %s444
      %p456 = scmp.eq.s32.totalorder %s37, 1
      %p457 = por %p455, %p456
      %p459 = scmp.ne.s32.totalorder %s444, %s458
      %p460 = scmp.eq.s32.totalorder %s37, 0
      %p461 = por %p459, %p460
      %s463 = sadd.s32 %s462, 1
      %p466 = scmp.eq.s32.totalorder %s31, 1
      %p467 = scmp.ne.s32.totalorder %s462, %s464
      %p468 = scmp.eq.s32.totalorder %s31, 0
      %p469 = por %p467, %p468
      %p470 = scmp.ne.s32.totalorder %s462, %s464
      %p471 = scmp.eq.s32.totalorder %s36, 1
      %p472 = por %p470, %p471
      %p473 = scmp.ne.s32.totalorder %s464, %s465
      %p474 = scmp.eq.s32.totalorder %s36, 0
      %p475 = por %p473, %p474
      %p476 = scmp.ne.s32.totalorder %s464, %s465
      %p477 = scmp.eq.s32.totalorder %s37, 1
      %p478 = por %p476, %p477
      %p480 = scmp.ne.s32.totalorder %s465, %s479
      %p481 = scmp.eq.s32.totalorder %s37, 0
      %p482 = por %p480, %p481
      %s484 = sadd.s32 %s483, 1
      %p487 = scmp.eq.s32.totalorder %s31, 1
      %p488 = scmp.ne.s32.totalorder %s483, %s485
      %p489 = scmp.eq.s32.totalorder %s31, 0
      %p490 = por %p488, %p489
      %p491 = scmp.ne.s32.totalorder %s483, %s485
      %p492 = scmp.eq.s32.totalorder %s36, 1
      %p493 = por %p491, %p492
      %p494 = scmp.ne.s32.totalorder %s485, %s486
      %p495 = scmp.eq.s32.totalorder %s36, 0
      %p496 = por %p494, %p495
      %p497 = scmp.ne.s32.totalorder %s485, %s486
      %p498 = scmp.eq.s32.totalorder %s37, 1
      %p499 = por %p497, %p498
      %p501 = scmp.ne.s32.totalorder %s486, %s500
      %p502 = scmp.eq.s32.totalorder %s37, 0
      %p503 = por %p501, %p502
      %s505 = sadd.s32 %s504, 1
      %p508 = scmp.eq.s32.totalorder %s31, 1
      %p509 = scmp.ne.s32.totalorder %s504, %s506
      %p510 = scmp.eq.s32.totalorder %s31, 0
      %p511 = por %p509, %p510
      %p512 = scmp.ne.s32.totalorder %s504, %s506
      %p513 = scmp.eq.s32.totalorder %s36, 1
      %p514 = por %p512, %p513
      %p515 = scmp.ne.s32.totalorder %s506, %s507
      %p516 = scmp.eq.s32.totalorder %s36, 0
      %p517 = por %p515, %p516
      %p518 = scmp.ne.s32.totalorder %s506, %s507
      %p519 = scmp.eq.s32.totalorder %s37, 1
      %p520 = por %p518, %p519
      %p522 = scmp.ne.s32.totalorder %s507, %s521
      %p523 = scmp.eq.s32.totalorder %s37, 0
      %p524 = por %p522, %p523
      %s525 = sadd.s32 %s38, %s39
      %s526 = sadd.s32 %s50, %s46
      %s527 = ssub.s32 %s525, %s526
      %p528 = scmp.eq.s32.totalorder %s527, 0
      %s530 = sadd.s32 %s529, 1
      %s531 = scalar_select %p528, %s529, %s530
      %p534 = pneg %p528
      %p535 = scmp.eq.s32.totalorder %s31, 1
      %p536 = por %p534, %p535
      %p537 = scmp.ne.s32.totalorder %s529, %s532
      %p538 = scmp.eq.s32.totalorder %s31, 0
      %p539 = por %p537, %p538
      %p540 = scmp.ne.s32.totalorder %s529, %s532
      %p541 = scmp.eq.s32.totalorder %s36, 1
      %p542 = por %p540, %p541
      %p543 = scmp.ne.s32.totalorder %s532, %s533
      %p544 = scmp.eq.s32.totalorder %s36, 0
      %p545 = por %p543, %p544
      %p546 = scmp.ne.s32.totalorder %s532, %s533
      %p547 = scmp.eq.s32.totalorder %s37, 1
      %p548 = por %p546, %p547
      %p550 = scmp.ne.s32.totalorder %s533, %s549
      %p551 = scmp.eq.s32.totalorder %s37, 0
      %p552 = por %p550, %p551
      %p553 = scmp.le.s32.totalorder 1, %s31
      %p554 = scmp.lt.s32.totalorder %s31, 3
      %p555 = pnand %p553, %p554
      %p556 = pneg %p555
      // Predicated region
      $region9: #{tpu_custom_call.1} parent=5 // pred_check
        _
      $region10: #{tpu_custom_call.1} parent=5 // pred_check_branch
        %558 = sbr.rel (%p555) target = $region12
      $region11: #{tpu_custom_call.1} parent=5 // pred_region
        %s559 = ssub.s32 %s31, 1
        // Predicated region
        $region13: #{tpu_custom_call.1} parent=11 // pred_check
          %p560 = pneg %p118
        $region14: #{tpu_custom_call.1} parent=11 // pred_check_branch
          %562 = sbr.rel (%p560) target = $region16
        $region15: #{tpu_custom_call.1} parent=11 // pred_region
          _
        $region16: #{tpu_custom_call.1} parent=11 // pred_fallthru
          _
        // Predicated region
        $region17: #{tpu_custom_call.1} parent=11 // pred_check
          %p563 = pneg %p139
        $region18: #{tpu_custom_call.1} parent=11 // pred_check_branch
          %565 = sbr.rel (%p563) target = $region20
        $region19: #{tpu_custom_call.1} parent=11 // pred_region
          _
        $region20: #{tpu_custom_call.1} parent=11 // pred_fallthru
          _
        // Predicated region
        $region21: #{tpu_custom_call.1} parent=11 // pred_check
          %p566 = pneg %p160
        $region22: #{tpu_custom_call.1} parent=11 // pred_check_branch
          %568 = sbr.rel (%p566) target = $region24
        $region23: #{tpu_custom_call.1} parent=11 // pred_region
          _
        $region24: #{tpu_custom_call.1} parent=11 // pred_fallthru
          _
        // Predicated region
        $region25: #{tpu_custom_call.1} parent=11 // pred_check
          %p569 = pneg %p181
        $region26: #{tpu_custom_call.1} parent=11 // pred_check_branch
          %571 = sbr.rel (%p569) target = $region28
        $region27: #{tpu_custom_call.1} parent=11 // pred_region
          _
        $region28: #{tpu_custom_call.1} parent=11 // pred_fallthru
          _
        // Predicated region
        $region29: #{tpu_custom_call.1} parent=11 // pred_check
          %p572 = pneg %p202
        $region30: #{tpu_custom_call.1} parent=11 // pred_check_branch
          %574 = sbr.rel (%p572) target = $region32
        $region31: #{tpu_custom_call.1} parent=11 // pred_region
          _
        $region32: #{tpu_custom_call.1} parent=11 // pred_fallthru
          _
        // Predicated region
        $region33: #{tpu_custom_call.1} parent=11 // pred_check
          %p575 = pneg %p223
        $region34: #{tpu_custom_call.1} parent=11 // pred_check_branch
          %577 = sbr.rel (%p575) target = $region36
        $region35: #{tpu_custom_call.1} parent=11 // pred_region
          _
        $region36: #{tpu_custom_call.1} parent=11 // pred_fallthru
          _
        // Predicated region
        $region37: #{tpu_custom_call.1} parent=11 // pred_check
          %p578 = pneg %p244
        $region38: #{tpu_custom_call.1} parent=11 // pred_check_branch
          %580 = sbr.rel (%p578) target = $region40
        $region39: #{tpu_custom_call.1} parent=11 // pred_region
          _
        $region40: #{tpu_custom_call.1} parent=11 // pred_fallthru
          _
        // Predicated region
        $region41: #{tpu_custom_call.1} parent=11 // pred_check
          %p581 = pneg %p265
        $region42: #{tpu_custom_call.1} parent=11 // pred_check_branch
          %583 = sbr.rel (%p581) target = $region44
        $region43: #{tpu_custom_call.1} parent=11 // pred_region
          _
        $region44: #{tpu_custom_call.1} parent=11 // pred_fallthru
          _
        // Predicated region
        $region45: #{tpu_custom_call.1} parent=11 // pred_check
          %p584 = pneg %p286
        $region46: #{tpu_custom_call.1} parent=11 // pred_check_branch
          %586 = sbr.rel (%p584) target = $region48
        $region47: #{tpu_custom_call.1} parent=11 // pred_region
          _
        $region48: #{tpu_custom_call.1} parent=11 // pred_fallthru
          _
        // Predicated region
        $region49: #{tpu_custom_call.1} parent=11 // pred_check
          %p587 = pneg %p307
        $region50: #{tpu_custom_call.1} parent=11 // pred_check_branch
          %589 = sbr.rel (%p587) target = $region52
        $region51: #{tpu_custom_call.1} parent=11 // pred_region
          _
        $region52: #{tpu_custom_call.1} parent=11 // pred_fallthru
          _
        // Predicated region
        $region53: #{tpu_custom_call.1} parent=11 // pred_check
          %p590 = pneg %p328
        $region54: #{tpu_custom_call.1} parent=11 // pred_check_branch
          %592 = sbr.rel (%p590) target = $region56
        $region55: #{tpu_custom_call.1} parent=11 // pred_region
          _
        $region56: #{tpu_custom_call.1} parent=11 // pred_fallthru
          _
        // Predicated region
        $region57: #{tpu_custom_call.1} parent=11 // pred_check
          %p593 = pneg %p349
        $region58: #{tpu_custom_call.1} parent=11 // pred_check_branch
          %595 = sbr.rel (%p593) target = $region60
        $region59: #{tpu_custom_call.1} parent=11 // pred_region
          _
        $region60: #{tpu_custom_call.1} parent=11 // pred_fallthru
          _
        // Predicated region
        $region61: #{tpu_custom_call.1} parent=11 // pred_check
          %p596 = pneg %p370
        $region62: #{tpu_custom_call.1} parent=11 // pred_check_branch
          %598 = sbr.rel (%p596) target = $region64
        $region63: #{tpu_custom_call.1} parent=11 // pred_region
          _
        $region64: #{tpu_custom_call.1} parent=11 // pred_fallthru
          _
        // Predicated region
        $region65: #{tpu_custom_call.1} parent=11 // pred_check
          %p599 = pneg %p391
        $region66: #{tpu_custom_call.1} parent=11 // pred_check_branch
          %601 = sbr.rel (%p599) target = $region68
        $region67: #{tpu_custom_call.1} parent=11 // pred_region
          _
        $region68: #{tpu_custom_call.1} parent=11 // pred_fallthru
          _
        // Predicated region
        $region69: #{tpu_custom_call.1} parent=11 // pred_check
          %p602 = pneg %p412
        $region70: #{tpu_custom_call.1} parent=11 // pred_check_branch
          %604 = sbr.rel (%p602) target = $region72
        $region71: #{tpu_custom_call.1} parent=11 // pred_region
          _
        $region72: #{tpu_custom_call.1} parent=11 // pred_fallthru
          _
        // Predicated region
        $region73: #{tpu_custom_call.1} parent=11 // pred_check
          %p605 = pneg %p433
        $region74: #{tpu_custom_call.1} parent=11 // pred_check_branch
          %607 = sbr.rel (%p605) target = $region76
        $region75: #{tpu_custom_call.1} parent=11 // pred_region
          _
        $region76: #{tpu_custom_call.1} parent=11 // pred_fallthru
          _
        // Predicated region
        $region77: #{tpu_custom_call.1} parent=11 // pred_check
          %p608 = pneg %p454
        $region78: #{tpu_custom_call.1} parent=11 // pred_check_branch
          %610 = sbr.rel (%p608) target = $region80
        $region79: #{tpu_custom_call.1} parent=11 // pred_region
          _
        $region80: #{tpu_custom_call.1} parent=11 // pred_fallthru
          _
        // Predicated region
        $region81: #{tpu_custom_call.1} parent=11 // pred_check
          %p611 = pneg %p475
        $region82: #{tpu_custom_call.1} parent=11 // pred_check_branch
          %613 = sbr.rel (%p611) target = $region84
        $region83: #{tpu_custom_call.1} parent=11 // pred_region
          _
        $region84: #{tpu_custom_call.1} parent=11 // pred_fallthru
          _
        // Predicated region
        $region85: #{tpu_custom_call.1} parent=11 // pred_check
          %p614 = pneg %p496
        $region86: #{tpu_custom_call.1} parent=11 // pred_check_branch
          %616 = sbr.rel (%p614) target = $region88
        $region87: #{tpu_custom_call.1} parent=11 // pred_region
          _
        $region88: #{tpu_custom_call.1} parent=11 // pred_fallthru
          _
        // Predicated region
        $region89: #{tpu_custom_call.1} parent=11 // pred_check
          %p617 = pneg %p517
        $region90: #{tpu_custom_call.1} parent=11 // pred_check_branch
          %619 = sbr.rel (%p617) target = $region92
        $region91: #{tpu_custom_call.1} parent=11 // pred_region
          _
        $region92: #{tpu_custom_call.1} parent=11 // pred_fallthru
          _
      $region12: #{tpu_custom_call.1} parent=5 // pred_fallthru
        _
      %p620 = scmp.lt.s32.totalorder %s31, 2
      // Predicated region
      $region93: #{tpu_custom_call.1} parent=5 // pred_check
        %p621 = pneg %p620
      $region94: #{tpu_custom_call.1} parent=5 // pred_check_branch
        %623 = sbr.rel (%p621) target = $region96
      $region95: #{tpu_custom_call.1} parent=5 // pred_region
        // Predicated region
        $region97: #{tpu_custom_call.1} parent=95 // pred_check
          %p624 = pneg %p65
        $region98: #{tpu_custom_call.1} parent=95 // pred_check_branch
          %626 = sbr.rel (%p624) target = $region100
        $region99: #{tpu_custom_call.1} parent=95 // pred_region
          %s627 = sadd.s32 %s38, %s39
          %s628 = smul.u32 2, %s627
          %p629 = scmp.lt.s32.totalorder %s628, 3
          %s630 = scalar_select %p629, %s628, 3
          %s631 = smul.addr %s630, 8
          %s632 = scalar_lea.vmem %s0, %s631
          %s633 = sadd.s32 %s38, %s39
          %s634 = smul.u32 2, %s633
        $region100: #{tpu_custom_call.1} parent=95 // pred_fallthru
          _
        // Predicated region
        $region101: #{tpu_custom_call.1} parent=95 // pred_check
          %p635 = pneg %p91
        $region102: #{tpu_custom_call.1} parent=95 // pred_check_branch
          %637 = sbr.rel (%p635) target = $region104
        $region103: #{tpu_custom_call.1} parent=95 // pred_region
          %p638 = scmp.lt.s32.totalorder %s38, 1
          %s639 = scalar_select %p638, %s38, 1
          %s640 = smul.addr %s639, 8
          %s641 = scalar_lea.vmem %s1, %s640
        $region104: #{tpu_custom_call.1} parent=95 // pred_fallthru
          _
      $region96: #{tpu_custom_call.1} parent=5 // pred_fallthru
        _
      %p642 = scmp.le.s32.totalorder 1, %s31
      %p643 = scmp.lt.s32.totalorder %s31, 3
      %p644 = pnand %p642, %p643
      %p645 = pneg %p644
      // Predicated region
      $region105: #{tpu_custom_call.1} parent=5 // pred_check
        _
      $region106: #{tpu_custom_call.1} parent=5 // pred_check_branch
        %647 = sbr.rel (%p644) target = $region108
      $region107: #{tpu_custom_call.1} parent=5 // pred_region
        %s648 = ssub.s32 %s31, 1
        %s649 = sadd.s32 %s40, %s41
        %s650 = smul.u32 2, %s649
        %p651 = scmp.lt.s32.totalorder %s650, 3
        %s652 = scalar_select %p651, %s650, 3
        %s653 = smul.addr %s652, 8
        %s654 = scalar_lea.vmem %s0, %s653
        %p655 = pneg %p71
        %p656 = pneg %p68
        %p657 = scmp.lt.s32.totalorder %s40, 1
        %s658 = scalar_select %p657, %s40, 1
        %s659 = smul.addr %s658, 8
        %s660 = scalar_lea.vmem %s1, %s659
        %p661 = pneg %p97
        %p662 = pneg %p94
        %p663 = pneg %p118
        %p664 = pneg %p115
        %p665 = pneg %p139
        %p666 = pneg %p136
        %p667 = pneg %p160
        %p668 = pneg %p157
        %p669 = pneg %p181
        %p670 = pneg %p178
        %p671 = pneg %p202
        %p672 = pneg %p199
        %p673 = pneg %p223
        %p674 = pneg %p220
        %p675 = pneg %p244
        %p676 = pneg %p241
        %p677 = pneg %p265
        %p678 = pneg %p262
        %p679 = pneg %p286
        %p680 = pneg %p283
        %p681 = pneg %p307
        %p682 = pneg %p304
        %p683 = pneg %p328
        %p684 = pneg %p325
        %p685 = pneg %p349
        %p686 = pneg %p346
        %p687 = pneg %p370
        %p688 = pneg %p367
        %p689 = pneg %p391
        %p690 = pneg %p388
        %p691 = pneg %p412
        %p692 = pneg %p409
        %p693 = pneg %p433
        %p694 = pneg %p430
        %p695 = pneg %p454
        %p696 = pneg %p451
        %p697 = pneg %p475
        %p698 = pneg %p472
        %p699 = pneg %p496
        %p700 = pneg %p493
        %p701 = pneg %p517
        %p702 = pneg %p514
        %p703 = pneg %p545
        %p704 = pneg %p542
        %s705 = sand.u32 %s532, 1
        %s706 = scalar_lea.sflag [#allocation5], %s705
        %s707 = sand.u32 %s532, 1
        %s708 = smul.addr %s707, 16
        %s709 = scalar_lea.vmem [#allocation4], %s708
        %s710 = sadd.s32 %s40, %s41
        %s711 = smul.u32 2, %s710
        %p712 = scmp.lt.s32.totalorder %s711, 3
        %s713 = scalar_select %p712, %s711, 3
        %s714 = smul.addr %s713, 8
        %s715 = scalar_lea.vmem %s0, %s714
        %s716 = sadd.s32 %s40, %s41
        %s717 = smul.u32 2, %s716
        %p718 = scmp.lt.s32.totalorder %s40, 1
        %s719 = scalar_select %p718, %s40, 1
        %s720 = smul.addr %s719, 8
        %s721 = scalar_lea.vmem %s1, %s720
        %s722 = sadd.s32 %s40, %s41
        %s723 = smul.u32 2, %s722
        %v724 = vld [vmem:[%s715] sm:$0xff]
        %v725 = vld [vmem:[%s715 + $0x8] sm:$0xff]
        %p726 = scmp.eq.s32.totalorder %s41, 0
        // Predicated region
        $region109: #{tpu_custom_call.1} parent=107 // pred_check
          %p727 = pneg %p726
        $region110: #{tpu_custom_call.1} parent=107 // pred_check_branch
          %729 = sbr.rel (%p727) target = $region112
        $region111: #{tpu_custom_call.1} parent=107 // pred_region
          %v730 = vld [vmem:[%s721] sm:$0xff]
          %v731 = vld [vmem:[%s6] sm:$0xff]
          %v732 = vld [vmem:[%s6 + $0x8] sm:$0xff]
          %v733 = vld [vmem:[%s6 + $0x10] sm:$0xff]
          %v734 = vld [vmem:[%s6 + $0x18] sm:$0xff]
          %v735 = vld [vmem:[%s6 + $0x20] sm:$0xff]
          %v736 = vld [vmem:[%s6 + $0x28] sm:$0xff]
          %v737 = vld [vmem:[%s6 + $0x30] sm:$0xff]
          %v738 = vld [vmem:[%s6 + $0x38] sm:$0xff]
          %v739 = vld [vmem:[%s7] sm:$0x1]
          %v741 = vlaneseq
          %v742 = vshrl.u32 %v741, 7
          %v743 = vsub.s32 0, %v742
          %v744 = vrot.slane %v739, %v743
          %vm746 = vcmask 523264
          %v748 = vsel %vm746, %v730, 0
          %750 = vmatprep.subr.mxu0 0.0
          %751 = vmatpush1.msra.mxu0 0.0
          %752 = vmatprep.subr.mxu0 0.0
          %753 = vmatpush1.msra.mxu0 0.0
          %754 = vmatprep.subr.mxu0 0.0
          %755 = vmatpush1.msra.mxu0 0.0
          %756 = vmatprep.subr.mxu0 0.0
          %757 = vmatpush1.msra.mxu0 0.0
          %758 = vmatprep.subr.mxu0 0.0
          %759 = vmatpush1.msra.mxu0 0.0
          %760 = vmatprep.subr.mxu0 0.0
          %761 = vmatpush1.msra.mxu0 0.0
          %762 = vmatprep.subr.mxu0 0.0
          %763 = vmatpush1.msra.mxu0 0.0
          %764 = vmatprep.subr.mxu0 0.0
          %765 = vmatpush1.msra.mxu0 0.0
          %766 = vmatprep.subr.mxu0 0.0
          %767 = vmatpush1.msra.mxu0 %v738
          %768 = vmatprep.subr.mxu0 0.0
          %769 = vmatpush1.msra.mxu0 %v737
          %770 = vmatprep.subr.mxu0 0.0
          %771 = vmatpush1.msra.mxu0 %v736
          %772 = vmatprep.subr.mxu0 0.0
          %773 = vmatpush1.msra.mxu0 %v735
          %774 = vmatprep.subr.mxu0 0.0
          %775 = vmatpush1.msra.mxu0 %v734
          %776 = vmatprep.subr.mxu0 0.0
          %777 = vmatpush1.msra.mxu0 %v733
          %778 = vmatprep.subr.mxu0 0.0
          %779 = vmatpush1.msra.mxu0 %v732
          %780 = vmatprep.subr.mxu0 0.0
          %781 = vmatpush1.msra.mxu0 %v731
          %782 = vmatprep.subr.mxu0 0.0
          %783 = vmatpush2.msra.mxu0 0.0
          %784 = vmatprep.subr.mxu0 0.0
          %785 = vmatpush2.msra.mxu0 0.0
          %786 = vmatprep.subr.mxu0 0.0
          %787 = vmatpush2.msra.mxu0 0.0
          %788 = vmatprep.subr.mxu0 0.0
          %789 = vmatpush2.msra.mxu0 0.0
          %790 = vmatprep.subr.mxu0 0.0
          %791 = vmatpush2.msra.mxu0 0.0
          %792 = vmatprep.subr.mxu0 0.0
          %793 = vmatpush2.msra.mxu0 0.0
          %794 = vmatprep.subr.mxu0 0.0
          %795 = vmatpush2.msra.mxu0 0.0
          %796 = vmatprep.subr.mxu0 0.0
          %797 = vmatpush2.msra.mxu0 0.0
          %798 = vmatprep.subr.mxu0 0.0
          %799 = vmatpush2.msra.mxu0 0.0
          %800 = vmatprep.subr.mxu0 0.0
          %801 = vmatpush2.msra.mxu0 0.0
          %802 = vmatprep.subr.mxu0 0.0
          %803 = vmatpush2.msra.mxu0 0.0
          %804 = vmatprep.subr.mxu0 0.0
          %805 = vmatpush2.msra.mxu0 0.0
          %806 = vmatprep.subr.mxu0 0.0
          %807 = vmatpush2.msra.mxu0 0.0
          %808 = vmatprep.subr.mxu0 0.0
          %809 = vmatpush2.msra.mxu0 0.0
          %810 = vmatprep.subr.mxu0 0.0
          %811 = vmatpush2.msra.mxu0 0.0
          %812 = vmatprep.subr.mxu0 0.0
          %813 = vmatpush2.msra.mxu0 0.0
          %814 = vmatprep.mubr.f32.mxu0 0.0
          %815 = vmatmul.mubr.f32.gmra.mxu0 %v748
          %v816 = vpop.f32.mrf.mxu0
          %v817 = vadd.f32 %v744, %v816
          %v818 = vpop.f32.mrf.mxu0
          %819 = vdwg.mxu0
          %v820 = vld [vmem:[%s8] sm:$0xff]
          %v821 = vld [vmem:[%s8 + $0x8] sm:$0xff]
          %v822 = vld [vmem:[%s8 + $0x10] sm:$0xff]
          %v823 = vld [vmem:[%s8 + $0x18] sm:$0xff]
          %v824 = vld [vmem:[%s8 + $0x20] sm:$0xff]
          %v825 = vld [vmem:[%s8 + $0x28] sm:$0xff]
          %v826 = vld [vmem:[%s8 + $0x30] sm:$0xff]
          %v827 = vld [vmem:[%s8 + $0x38] sm:$0xff]
          %v828 = vld [vmem:[%s9] sm:$0xf]
          %v829 = vld [vmem:[%s12] sm:$0x1]
          %v830 = vld [vmem:[%s13] sm:$0x1]
          %v832 = vsel %vm746, %v817, 0
          %834 = vmatprep.subr.mxu0 0.0
          %835 = vmatpush1.msra.mxu0 0.0
          %836 = vmatprep.subr.mxu0 0.0
          %837 = vmatpush1.msra.mxu0 0.0
          %838 = vmatprep.subr.mxu0 0.0
          %839 = vmatpush1.msra.mxu0 0.0
          %840 = vmatprep.subr.mxu0 0.0
          %841 = vmatpush1.msra.mxu0 0.0
          %842 = vmatprep.subr.mxu0 0.0
          %843 = vmatpush1.msra.mxu0 0.0
          %844 = vmatprep.subr.mxu0 0.0
          %845 = vmatpush1.msra.mxu0 0.0
          %846 = vmatprep.subr.mxu0 0.0
          %847 = vmatpush1.msra.mxu0 0.0
          %848 = vmatprep.subr.mxu0 0.0
          %849 = vmatpush1.msra.mxu0 0.0
          %850 = vmatprep.subr.mxu0 0.0
          %851 = vmatpush1.msra.mxu0 %v827
          %852 = vmatprep.subr.mxu0 0.0
          %853 = vmatpush1.msra.mxu0 %v826
          %854 = vmatprep.subr.mxu0 0.0
          %855 = vmatpush1.msra.mxu0 %v825
          %856 = vmatprep.subr.mxu0 0.0
          %857 = vmatpush1.msra.mxu0 %v824
          %858 = vmatprep.subr.mxu0 0.0
          %859 = vmatpush1.msra.mxu0 %v823
          %860 = vmatprep.subr.mxu0 0.0
          %861 = vmatpush1.msra.mxu0 %v822
          %862 = vmatprep.subr.mxu0 0.0
          %863 = vmatpush1.msra.mxu0 %v821
          %864 = vmatprep.subr.mxu0 0.0
          %865 = vmatpush1.msra.mxu0 %v820
          %866 = vmatprep.subr.mxu0 0.0
          %867 = vmatpush2.msra.mxu0 0.0
          %868 = vmatprep.subr.mxu0 0.0
          %869 = vmatpush2.msra.mxu0 0.0
          %870 = vmatprep.subr.mxu0 0.0
          %871 = vmatpush2.msra.mxu0 0.0
          %872 = vmatprep.subr.mxu0 0.0
          %873 = vmatpush2.msra.mxu0 0.0
          %874 = vmatprep.subr.mxu0 0.0
          %875 = vmatpush2.msra.mxu0 0.0
          %876 = vmatprep.subr.mxu0 0.0
          %877 = vmatpush2.msra.mxu0 0.0
          %878 = vmatprep.subr.mxu0 0.0
          %879 = vmatpush2.msra.mxu0 0.0
          %880 = vmatprep.subr.mxu0 0.0
          %881 = vmatpush2.msra.mxu0 0.0
          %882 = vmatprep.subr.mxu0 0.0
          %883 = vmatpush2.msra.mxu0 0.0
          %884 = vmatprep.subr.mxu0 0.0
          %885 = vmatpush2.msra.mxu0 0.0
          %886 = vmatprep.subr.mxu0 0.0
          %887 = vmatpush2.msra.mxu0 0.0
          %888 = vmatprep.subr.mxu0 0.0
          %889 = vmatpush2.msra.mxu0 0.0
          %890 = vmatprep.subr.mxu0 0.0
          %891 = vmatpush2.msra.mxu0 0.0
          %892 = vmatprep.subr.mxu0 0.0
          %893 = vmatpush2.msra.mxu0 0.0
          %894 = vmatprep.subr.mxu0 0.0
          %895 = vmatpush2.msra.mxu0 0.0
          %896 = vmatprep.subr.mxu0 0.0
          %897 = vmatpush2.msra.mxu0 0.0
          %898 = vmatprep.mubr.f32.mxu0 0.0
          %899 = vmatmul.mubr.f32.gmra.mxu0 %v832
          %v900 = vpop.f32.mrf.mxu0
          %v901 = vadd.f32 0.0, %v900
          %v902 = vpop.f32.mrf.mxu0
          %903 = vdwg.mxu0
          %v904 = vmul.f32 %v901, 0.0625
          %v905 = vmul.f32 %v817, %v817
          %v907 = vsel %vm746, %v905, 0
          %909 = vmatprep.subr.mxu0 0.0
          %910 = vmatpush1.msra.mxu0 0.0
          %911 = vmatprep.subr.mxu0 0.0
          %912 = vmatpush1.msra.mxu0 0.0
          %913 = vmatprep.subr.mxu0 0.0
          %914 = vmatpush1.msra.mxu0 0.0
          %915 = vmatprep.subr.mxu0 0.0
          %916 = vmatpush1.msra.mxu0 0.0
          %917 = vmatprep.subr.mxu0 0.0
          %918 = vmatpush1.msra.mxu0 0.0
          %919 = vmatprep.subr.mxu0 0.0
          %920 = vmatpush1.msra.mxu0 0.0
          %921 = vmatprep.subr.mxu0 0.0
          %922 = vmatpush1.msra.mxu0 0.0
          %923 = vmatprep.subr.mxu0 0.0
          %924 = vmatpush1.msra.mxu0 0.0
          %925 = vmatprep.subr.mxu0 0.0
          %926 = vmatpush1.msra.mxu0 %v827
          %927 = vmatprep.subr.mxu0 0.0
          %928 = vmatpush1.msra.mxu0 %v826
          %929 = vmatprep.subr.mxu0 0.0
          %930 = vmatpush1.msra.mxu0 %v825
          %931 = vmatprep.subr.mxu0 0.0
          %932 = vmatpush1.msra.mxu0 %v824
          %933 = vmatprep.subr.mxu0 0.0
          %934 = vmatpush1.msra.mxu0 %v823
          %935 = vmatprep.subr.mxu0 0.0
          %936 = vmatpush1.msra.mxu0 %v822
          %937 = vmatprep.subr.mxu0 0.0
          %938 = vmatpush1.msra.mxu0 %v821
          %939 = vmatprep.subr.mxu0 0.0
          %940 = vmatpush1.msra.mxu0 %v820
          %941 = vmatprep.subr.mxu0 0.0
          %942 = vmatpush2.msra.mxu0 0.0
          %943 = vmatprep.subr.mxu0 0.0
          %944 = vmatpush2.msra.mxu0 0.0
          %945 = vmatprep.subr.mxu0 0.0
          %946 = vmatpush2.msra.mxu0 0.0
          %947 = vmatprep.subr.mxu0 0.0
          %948 = vmatpush2.msra.mxu0 0.0
          %949 = vmatprep.subr.mxu0 0.0
          %950 = vmatpush2.msra.mxu0 0.0
          %951 = vmatprep.subr.mxu0 0.0
          %952 = vmatpush2.msra.mxu0 0.0
          %953 = vmatprep.subr.mxu0 0.0
          %954 = vmatpush2.msra.mxu0 0.0
          %955 = vmatprep.subr.mxu0 0.0
          %956 = vmatpush2.msra.mxu0 0.0
          %957 = vmatprep.subr.mxu0 0.0
          %958 = vmatpush2.msra.mxu0 0.0
          %959 = vmatprep.subr.mxu0 0.0
          %960 = vmatpush2.msra.mxu0 0.0
          %961 = vmatprep.subr.mxu0 0.0
          %962 = vmatpush2.msra.mxu0 0.0
          %963 = vmatprep.subr.mxu0 0.0
          %964 = vmatpush2.msra.mxu0 0.0
          %965 = vmatprep.subr.mxu0 0.0
          %966 = vmatpush2.msra.mxu0 0.0
          %967 = vmatprep.subr.mxu0 0.0
          %968 = vmatpush2.msra.mxu0 0.0
          %969 = vmatprep.subr.mxu0 0.0
          %970 = vmatpush2.msra.mxu0 0.0
          %971 = vmatprep.subr.mxu0 0.0
          %972 = vmatpush2.msra.mxu0 0.0
          %973 = vmatprep.mubr.f32.mxu0 0.0
          %974 = vmatmul.mubr.f32.gmra.mxu0 %v907
          %v975 = vpop.f32.mrf.mxu0
          %v976 = vadd.f32 0.0, %v975
          %v977 = vpop.f32.mrf.mxu0
          %978 = vdwg.mxu0
          %v979 = vmul.f32 %v976, 0.0625
          %v980 = vmul.f32 %v904, %v904
          %v981 = vsub.f32 %v979, %v980
          %v982 = vmax.f32 %v981, 0.0
          %v983 = vadd.f32 %v982, 1e-05
          %v984 = vrsqrt.pop %v983
          %vm985 = vcmask 31744
          %v987 = vsel %vm985, %v904, 0
          %vm989 = vcmask 1043456
          %v991 = vsel %vm989, %v828, 0
          %993 = vmatprep.subr.mxu0 0.0
          %994 = vmatpush1.msra.mxu0 0.0
          %995 = vmatprep.subr.mxu0 0.0
          %996 = vmatpush1.msra.mxu0 0.0
          %997 = vmatprep.subr.mxu0 0.0
          %998 = vmatpush1.msra.mxu0 0.0
          %999 = vmatprep.subr.mxu0 0.0
          %1000 = vmatpush1.msra.mxu0 0.0
          %1001 = vmatprep.subr.mxu0 0.0
          %1002 = vmatpush1.msra.mxu0 0.0
          %1003 = vmatprep.subr.mxu0 0.0
          %1004 = vmatpush1.msra.mxu0 0.0
          %1005 = vmatprep.subr.mxu0 0.0
          %1006 = vmatpush1.msra.mxu0 0.0
          %1007 = vmatprep.subr.mxu0 0.0
          %1008 = vmatpush1.msra.mxu0 0.0
          %1009 = vmatprep.subr.mxu0 0.0
          %1010 = vmatpush1.msra.mxu0 0.0
          %1011 = vmatprep.subr.mxu0 0.0
          %1012 = vmatpush1.msra.mxu0 0.0
          %1013 = vmatprep.subr.mxu0 0.0
          %1014 = vmatpush1.msra.mxu0 0.0
          %1015 = vmatprep.subr.mxu0 0.0
          %1016 = vmatpush1.msra.mxu0 0.0
          %1017 = vmatprep.subr.mxu0 0.0
          %1018 = vmatpush1.msra.mxu0 0.0
          %1019 = vmatprep.subr.mxu0 0.0
          %1020 = vmatpush1.msra.mxu0 0.0
          %1021 = vmatprep.subr.mxu0 0.0
          %1022 = vmatpush1.msra.mxu0 0.0
          %1023 = vmatprep.subr.mxu0 0.0
          %1024 = vmatpush1.msra.mxu0 %v991
          %1025 = vmatprep.subr.mxu0 0.0
          %1026 = vmatpush2.msra.mxu0 0.0
          %1027 = vmatprep.subr.mxu0 0.0
          %1028 = vmatpush2.msra.mxu0 0.0
          %1029 = vmatprep.subr.mxu0 0.0
          %1030 = vmatpush2.msra.mxu0 0.0
          %1031 = vmatprep.subr.mxu0 0.0
          %1032 = vmatpush2.msra.mxu0 0.0
          %1033 = vmatprep.subr.mxu0 0.0
          %1034 = vmatpush2.msra.mxu0 0.0
          %1035 = vmatprep.subr.mxu0 0.0
          %1036 = vmatpush2.msra.mxu0 0.0
          %1037 = vmatprep.subr.mxu0 0.0
          %1038 = vmatpush2.msra.mxu0 0.0
          %1039 = vmatprep.subr.mxu0 0.0
          %1040 = vmatpush2.msra.mxu0 0.0
          %1041 = vmatprep.subr.mxu0 0.0
          %1042 = vmatpush2.msra.mxu0 0.0
          %1043 = vmatprep.subr.mxu0 0.0
          %1044 = vmatpush2.msra.mxu0 0.0
          %1045 = vmatprep.subr.mxu0 0.0
          %1046 = vmatpush2.msra.mxu0 0.0
          %1047 = vmatprep.subr.mxu0 0.0
          %1048 = vmatpush2.msra.mxu0 0.0
          %1049 = vmatprep.subr.mxu0 0.0
          %1050 = vmatpush2.msra.mxu0 0.0
          %1051 = vmatprep.subr.mxu0 0.0
          %1052 = vmatpush2.msra.mxu0 0.0
          %1053 = vmatprep.subr.mxu0 0.0
          %1054 = vmatpush2.msra.mxu0 0.0
          %1055 = vmatprep.subr.mxu0 0.0
          %1056 = vmatpush2.msra.mxu0 0.0
          %1057 = vmatprep.mubr.f32.mxu0 0.0
          %1058 = vmatmul.mubr.f32.gmra.mxu0 %v987
          %v1059 = vpop.f32.mrf.mxu0
          %v1060 = vadd.f32 0.0, %v1059
          %v1061 = vpop.f32.mrf.mxu0
          %1062 = vdwg.mxu0
          %v1064 = vsel %vm985, %v984, 0
          %1066 = vmatprep.subr.mxu0 0.0
          %1067 = vmatpush1.msra.mxu0 0.0
          %1068 = vmatprep.subr.mxu0 0.0
          %1069 = vmatpush1.msra.mxu0 0.0
          %1070 = vmatprep.subr.mxu0 0.0
          %1071 = vmatpush1.msra.mxu0 0.0
          %1072 = vmatprep.subr.mxu0 0.0
          %1073 = vmatpush1.msra.mxu0 0.0
          %1074 = vmatprep.subr.mxu0 0.0
          %1075 = vmatpush1.msra.mxu0 0.0
          %1076 = vmatprep.subr.mxu0 0.0
          %1077 = vmatpush1.msra.mxu0 0.0
          %1078 = vmatprep.subr.mxu0 0.0
          %1079 = vmatpush1.msra.mxu0 0.0
          %1080 = vmatprep.subr.mxu0 0.0
          %1081 = vmatpush1.msra.mxu0 0.0
          %1082 = vmatprep.subr.mxu0 0.0
          %1083 = vmatpush1.msra.mxu0 0.0
          %1084 = vmatprep.subr.mxu0 0.0
          %1085 = vmatpush1.msra.mxu0 0.0
          %1086 = vmatprep.subr.mxu0 0.0
          %1087 = vmatpush1.msra.mxu0 0.0
          %1088 = vmatprep.subr.mxu0 0.0
          %1089 = vmatpush1.msra.mxu0 0.0
          %1090 = vmatprep.subr.mxu0 0.0
          %1091 = vmatpush1.msra.mxu0 0.0
          %1092 = vmatprep.subr.mxu0 0.0
          %1093 = vmatpush1.msra.mxu0 0.0
          %1094 = vmatprep.subr.mxu0 0.0
          %1095 = vmatpush1.msra.mxu0 0.0
          %1096 = vmatprep.subr.mxu0 0.0
          %1097 = vmatpush1.msra.mxu0 %v991
          %1098 = vmatprep.subr.mxu0 0.0
          %1099 = vmatpush2.msra.mxu0 0.0
          %1100 = vmatprep.subr.mxu0 0.0
          %1101 = vmatpush2.msra.mxu0 0.0
          %1102 = vmatprep.subr.mxu0 0.0
          %1103 = vmatpush2.msra.mxu0 0.0
          %1104 = vmatprep.subr.mxu0 0.0
          %1105 = vmatpush2.msra.mxu0 0.0
          %1106 = vmatprep.subr.mxu0 0.0
          %1107 = vmatpush2.msra.mxu0 0.0
          %1108 = vmatprep.subr.mxu0 0.0
          %1109 = vmatpush2.msra.mxu0 0.0
          %1110 = vmatprep.subr.mxu0 0.0
          %1111 = vmatpush2.msra.mxu0 0.0
          %1112 = vmatprep.subr.mxu0 0.0
          %1113 = vmatpush2.msra.mxu0 0.0
          %1114 = vmatprep.subr.mxu0 0.0
          %1115 = vmatpush2.msra.mxu0 0.0
          %1116 = vmatprep.subr.mxu0 0.0
          %1117 = vmatpush2.msra.mxu0 0.0
          %1118 = vmatprep.subr.mxu0 0.0
          %1119 = vmatpush2.msra.mxu0 0.0
          %1120 = vmatprep.subr.mxu0 0.0
          %1121 = vmatpush2.msra.mxu0 0.0
          %1122 = vmatprep.subr.mxu0 0.0
          %1123 = vmatpush2.msra.mxu0 0.0
          %1124 = vmatprep.subr.mxu0 0.0
          %1125 = vmatpush2.msra.mxu0 0.0
          %1126 = vmatprep.subr.mxu0 0.0
          %1127 = vmatpush2.msra.mxu0 0.0
          %1128 = vmatprep.subr.mxu0 0.0
          %1129 = vmatpush2.msra.mxu0 0.0
          %1130 = vmatprep.mubr.f32.mxu0 0.0
          %1131 = vmatmul.mubr.f32.gmra.mxu0 %v1064
          %v1132 = vpop.f32.mrf.mxu0
          %v1133 = vadd.f32 0.0, %v1132
          %v1134 = vpop.f32.mrf.mxu0
          %1135 = vdwg.mxu0
          %v1136 = vsub.f32 %v817, %v1060
          %v1137 = vmul.f32 %v1136, %v1133
          %v1139 = vlaneseq
          %v1140 = vshrl.u32 %v1139, 7
          %v1141 = vsub.s32 0, %v1140
          %v1142 = vrot.slane %v829, %v1141
          %v1144 = vmul.f32 %v1137, %v1142
          %v1146 = vlaneseq
          %v1147 = vshrl.u32 %v1146, 7
          %v1148 = vsub.s32 0, %v1147
          %v1149 = vrot.slane %v830, %v1148
          %v1151 = vadd.f32 %v1144, %v1149
          %1152 = vst.msk [vmem:[#allocation3] sm:$0xff] %vm746, %v1151
          %1153 = vrot.lane.b32.xlu0 %v817, 64
          %v1154 = vpop.permute.xlu0 %1153
          %s1156 = scalar_lea.vmem [#allocation3], 8
          %1157 = vst.msk [vmem:[%s1156] sm:$0xff] %vm746, %v1154
        $region112: #{tpu_custom_call.1} parent=107 // pred_fallthru
          _
        %v1158 = vld [vmem:[%s2] sm:$0x1]
        %v1159 = vld [vmem:[%s3] sm:$0x1]
        %vm1160 = vcmask 523264
        %v1161 = vsel %vm1160, %v724, 0.0
        %1162 = vadd.xlane.f32.xlu0 %v1161
        %v1163 = vpop.xlane.xlu0 %1162
        %v1164 = vsel %vm1160, %v725, 0.0
        %1165 = vadd.xlane.f32.xlu0 %v1164
        %v1166 = vpop.xlane.xlu0 %1165
        %v1167 = vrcp.pop 64.0
        %v1168 = vmul.f32 %v1163, %v1167
        %v1169 = vmul.f32 %v1166, %v1167
        %v1170 = vsub.f32 %v724, %v1168
        %v1171 = vsub.f32 %v725, %v1169
        %v1172 = vmul.f32 %v1170, %v1170
        %v1173 = vmul.f32 %v1171, %v1171
        %v1174 = vsel %vm1160, %v1172, 0.0
        %1175 = vadd.xlane.f32.xlu0 %v1174
        %v1176 = vpop.xlane.xlu0 %1175
        %v1177 = vsel %vm1160, %v1173, 0.0
        %1178 = vadd.xlane.f32.xlu0 %v1177
        %v1179 = vpop.xlane.xlu0 %1178
        %v1180 = vmul.f32 %v1176, %v1167
        %v1181 = vmul.f32 %v1179, %v1167
        %v1182 = vadd.f32 %v1180, 1e-05
        %v1183 = vadd.f32 %v1181, 1e-05
        %v1184 = vrsqrt.pop %v1182
        %v1185 = vrsqrt.pop %v1183
        %v1186 = vmul.f32 %v1170, %v1184
        %v1187 = vmul.f32 %v1171, %v1185
        %v1189 = vlaneseq
        %v1190 = vshrl.u32 %v1189, 7
        %v1191 = vsub.s32 0, %v1190
        %v1192 = vrot.slane %v1158, %v1191
        %v1194 = vmul.f32 %v1186, %v1192
        %v1195 = vmul.f32 %v1187, %v1192
        %v1197 = vlaneseq
        %v1198 = vshrl.u32 %v1197, 7
        %v1199 = vsub.s32 0, %v1198
        %v1200 = vrot.slane %v1159, %v1199
        %v1202 = vadd.f32 %v1194, %v1200
        %v1203 = vadd.f32 %v1195, %v1200
        %v1204 = vld [vmem:[%s4] sm:$0xff]
        %v1205 = vld [vmem:[%s4 + $0x8] sm:$0xff]
        %v1206 = vld [vmem:[%s4 + $0x10] sm:$0xff]
        %v1207 = vld [vmem:[%s4 + $0x18] sm:$0xff]
        %v1208 = vld [vmem:[%s4 + $0x20] sm:$0xff]
        %v1209 = vld [vmem:[%s4 + $0x28] sm:$0xff]
        %v1210 = vld [vmem:[%s4 + $0x30] sm:$0xff]
        %v1211 = vld [vmem:[%s4 + $0x38] sm:$0xff]
        %v1212 = vld [vmem:[%s5] sm:$0x1]
        %v1214 = vlaneseq
        %v1215 = vshrl.u32 %v1214, 7
        %v1216 = vsub.s32 0, %v1215
        %v1217 = vrot.slane %v1212, %v1216
        %v1220 = vsel %vm1160, %v1202, 0
        %v1223 = vsel %vm1160, %v1203, 0
        %1225 = vmatprep.subr.mxu0 0.0
        %1226 = vmatpush1.msra.mxu0 0.0
        %1227 = vmatprep.subr.mxu0 0.0
        %1228 = vmatpush1.msra.mxu0 0.0
        %1229 = vmatprep.subr.mxu0 0.0
        %1230 = vmatpush1.msra.mxu0 0.0
        %1231 = vmatprep.subr.mxu0 0.0
        %1232 = vmatpush1.msra.mxu0 0.0
        %1233 = vmatprep.subr.mxu0 0.0
        %1234 = vmatpush1.msra.mxu0 0.0
        %1235 = vmatprep.subr.mxu0 0.0
        %1236 = vmatpush1.msra.mxu0 0.0
        %1237 = vmatprep.subr.mxu0 0.0
        %1238 = vmatpush1.msra.mxu0 0.0
        %1239 = vmatprep.subr.mxu0 0.0
        %1240 = vmatpush1.msra.mxu0 0.0
        %1241 = vmatprep.subr.mxu0 0.0
        %1242 = vmatpush1.msra.mxu0 %v1211
        %1243 = vmatprep.subr.mxu0 0.0
        %1244 = vmatpush1.msra.mxu0 %v1210
        %1245 = vmatprep.subr.mxu0 0.0
        %1246 = vmatpush1.msra.mxu0 %v1209
        %1247 = vmatprep.subr.mxu0 0.0
        %1248 = vmatpush1.msra.mxu0 %v1208
        %1249 = vmatprep.subr.mxu0 0.0
        %1250 = vmatpush1.msra.mxu0 %v1207
        %1251 = vmatprep.subr.mxu0 0.0
        %1252 = vmatpush1.msra.mxu0 %v1206
        %1253 = vmatprep.subr.mxu0 0.0
        %1254 = vmatpush1.msra.mxu0 %v1205
        %1255 = vmatprep.subr.mxu0 0.0
        %1256 = vmatpush1.msra.mxu0 %v1204
        %1257 = vmatprep.subr.mxu0 0.0
        %1258 = vmatpush2.msra.mxu0 0.0
        %1259 = vmatprep.subr.mxu0 0.0
        %1260 = vmatpush2.msra.mxu0 0.0
        %1261 = vmatprep.subr.mxu0 0.0
        %1262 = vmatpush2.msra.mxu0 0.0
        %1263 = vmatprep.subr.mxu0 0.0
        %1264 = vmatpush2.msra.mxu0 0.0
        %1265 = vmatprep.subr.mxu0 0.0
        %1266 = vmatpush2.msra.mxu0 0.0
        %1267 = vmatprep.subr.mxu0 0.0
        %1268 = vmatpush2.msra.mxu0 0.0
        %1269 = vmatprep.subr.mxu0 0.0
        %1270 = vmatpush2.msra.mxu0 0.0
        %1271 = vmatprep.subr.mxu0 0.0
        %1272 = vmatpush2.msra.mxu0 0.0
        %1273 = vmatprep.subr.mxu0 0.0
        %1274 = vmatpush2.msra.mxu0 0.0
        %1275 = vmatprep.subr.mxu0 0.0
        %1276 = vmatpush2.msra.mxu0 0.0
        %1277 = vmatprep.subr.mxu0 0.0
        %1278 = vmatpush2.msra.mxu0 0.0
        %1279 = vmatprep.subr.mxu0 0.0
        %1280 = vmatpush2.msra.mxu0 0.0
        %1281 = vmatprep.subr.mxu0 0.0
        %1282 = vmatpush2.msra.mxu0 0.0
        %1283 = vmatprep.subr.mxu0 0.0
        %1284 = vmatpush2.msra.mxu0 0.0
        %1285 = vmatprep.subr.mxu0 0.0
        %1286 = vmatpush2.msra.mxu0 0.0
        %1287 = vmatprep.subr.mxu0 0.0
        %1288 = vmatpush2.msra.mxu0 0.0
        %1289 = vmatprep.mubr.f32.mxu0 0.0
        %1290 = vmatmul.mubr.f32.gmra.mxu0 %v1220
        %v1291 = vpop.f32.mrf.mxu0
        %v1292 = vadd.f32 %v1217, %v1291
        %v1293 = vpop.f32.mrf.mxu0
        %1294 = vmatprep.mubr.f32.mxu0 0.0
        %1295 = vmatmul.mubr.f32.gmra.mxu0 %v1223
        %v1296 = vpop.f32.mrf.mxu0
        %v1297 = vadd.f32 %v1217, %v1296
        %v1298 = vpop.f32.mrf.mxu0
        %1299 = vdwg.mxu0
        %v1300 = vld [vmem:[%s8] sm:$0xff]
        %v1301 = vld [vmem:[%s8 + $0x8] sm:$0xff]
        %v1302 = vld [vmem:[%s8 + $0x10] sm:$0xff]
        %v1303 = vld [vmem:[%s8 + $0x18] sm:$0xff]
        %v1304 = vld [vmem:[%s8 + $0x20] sm:$0xff]
        %v1305 = vld [vmem:[%s8 + $0x28] sm:$0xff]
        %v1306 = vld [vmem:[%s8 + $0x30] sm:$0xff]
        %v1307 = vld [vmem:[%s8 + $0x38] sm:$0xff]
        %v1308 = vld [vmem:[%s9] sm:$0xf]
        %v1309 = vld [vmem:[%s10] sm:$0x1]
        %v1310 = vld [vmem:[%s11] sm:$0x1]
        %v1312 = vsel %vm1160, %v1292, 0
        %v1315 = vsel %vm1160, %v1297, 0
        %1317 = vmatprep.subr.mxu0 0.0
        %1318 = vmatpush1.msra.mxu0 0.0
        %1319 = vmatprep.subr.mxu0 0.0
        %1320 = vmatpush1.msra.mxu0 0.0
        %1321 = vmatprep.subr.mxu0 0.0
        %1322 = vmatpush1.msra.mxu0 0.0
        %1323 = vmatprep.subr.mxu0 0.0
        %1324 = vmatpush1.msra.mxu0 0.0
        %1325 = vmatprep.subr.mxu0 0.0
        %1326 = vmatpush1.msra.mxu0 0.0
        %1327 = vmatprep.subr.mxu0 0.0
        %1328 = vmatpush1.msra.mxu0 0.0
        %1329 = vmatprep.subr.mxu0 0.0
        %1330 = vmatpush1.msra.mxu0 0.0
        %1331 = vmatprep.subr.mxu0 0.0
        %1332 = vmatpush1.msra.mxu0 0.0
        %1333 = vmatprep.subr.mxu0 0.0
        %1334 = vmatpush1.msra.mxu0 %v1307
        %1335 = vmatprep.subr.mxu0 0.0
        %1336 = vmatpush1.msra.mxu0 %v1306
        %1337 = vmatprep.subr.mxu0 0.0
        %1338 = vmatpush1.msra.mxu0 %v1305
        %1339 = vmatprep.subr.mxu0 0.0
        %1340 = vmatpush1.msra.mxu0 %v1304
        %1341 = vmatprep.subr.mxu0 0.0
        %1342 = vmatpush1.msra.mxu0 %v1303
        %1343 = vmatprep.subr.mxu0 0.0
        %1344 = vmatpush1.msra.mxu0 %v1302
        %1345 = vmatprep.subr.mxu0 0.0
        %1346 = vmatpush1.msra.mxu0 %v1301
        %1347 = vmatprep.subr.mxu0 0.0
        %1348 = vmatpush1.msra.mxu0 %v1300
        %1349 = vmatprep.subr.mxu0 0.0
        %1350 = vmatpush2.msra.mxu0 0.0
        %1351 = vmatprep.subr.mxu0 0.0
        %1352 = vmatpush2.msra.mxu0 0.0
        %1353 = vmatprep.subr.mxu0 0.0
        %1354 = vmatpush2.msra.mxu0 0.0
        %1355 = vmatprep.subr.mxu0 0.0
        %1356 = vmatpush2.msra.mxu0 0.0
        %1357 = vmatprep.subr.mxu0 0.0
        %1358 = vmatpush2.msra.mxu0 0.0
        %1359 = vmatprep.subr.mxu0 0.0
        %1360 = vmatpush2.msra.mxu0 0.0
        %1361 = vmatprep.subr.mxu0 0.0
        %1362 = vmatpush2.msra.mxu0 0.0
        %1363 = vmatprep.subr.mxu0 0.0
        %1364 = vmatpush2.msra.mxu0 0.0
        %1365 = vmatprep.subr.mxu0 0.0
        %1366 = vmatpush2.msra.mxu0 0.0
        %1367 = vmatprep.subr.mxu0 0.0
        %1368 = vmatpush2.msra.mxu0 0.0
        %1369 = vmatprep.subr.mxu0 0.0
        %1370 = vmatpush2.msra.mxu0 0.0
        %1371 = vmatprep.subr.mxu0 0.0
        %1372 = vmatpush2.msra.mxu0 0.0
        %1373 = vmatprep.subr.mxu0 0.0
        %1374 = vmatpush2.msra.mxu0 0.0
        %1375 = vmatprep.subr.mxu0 0.0
        %1376 = vmatpush2.msra.mxu0 0.0
        %1377 = vmatprep.subr.mxu0 0.0
        %1378 = vmatpush2.msra.mxu0 0.0
        %1379 = vmatprep.subr.mxu0 0.0
        %1380 = vmatpush2.msra.mxu0 0.0
        %1381 = vmatprep.mubr.f32.mxu0 0.0
        %1382 = vmatmul.mubr.f32.gmra.mxu0 %v1312
        %v1383 = vpop.f32.mrf.mxu0
        %v1384 = vadd.f32 0.0, %v1383
        %v1385 = vpop.f32.mrf.mxu0
        %1386 = vmatprep.mubr.f32.mxu0 0.0
        %1387 = vmatmul.mubr.f32.gmra.mxu0 %v1315
        %v1388 = vpop.f32.mrf.mxu0
        %v1389 = vadd.f32 0.0, %v1388
        %v1390 = vpop.f32.mrf.mxu0
        %1391 = vdwg.mxu0
        %v1392 = vmul.f32 %v1384, 0.0625
        %v1393 = vmul.f32 %v1389, 0.0625
        %v1394 = vmul.f32 %v1292, %v1292
        %v1395 = vmul.f32 %v1297, %v1297
        %v1397 = vsel %vm1160, %v1394, 0
        %v1400 = vsel %vm1160, %v1395, 0
        %1402 = vmatprep.subr.mxu0 0.0
        %1403 = vmatpush1.msra.mxu0 0.0
        %1404 = vmatprep.subr.mxu0 0.0
        %1405 = vmatpush1.msra.mxu0 0.0
        %1406 = vmatprep.subr.mxu0 0.0
        %1407 = vmatpush1.msra.mxu0 0.0
        %1408 = vmatprep.subr.mxu0 0.0
        %1409 = vmatpush1.msra.mxu0 0.0
        %1410 = vmatprep.subr.mxu0 0.0
        %1411 = vmatpush1.msra.mxu0 0.0
        %1412 = vmatprep.subr.mxu0 0.0
        %1413 = vmatpush1.msra.mxu0 0.0
        %1414 = vmatprep.subr.mxu0 0.0
        %1415 = vmatpush1.msra.mxu0 0.0
        %1416 = vmatprep.subr.mxu0 0.0
        %1417 = vmatpush1.msra.mxu0 0.0
        %1418 = vmatprep.subr.mxu0 0.0
        %1419 = vmatpush1.msra.mxu0 %v1307
        %1420 = vmatprep.subr.mxu0 0.0
        %1421 = vmatpush1.msra.mxu0 %v1306
        %1422 = vmatprep.subr.mxu0 0.0
        %1423 = vmatpush1.msra.mxu0 %v1305
        %1424 = vmatprep.subr.mxu0 0.0
        %1425 = vmatpush1.msra.mxu0 %v1304
        %1426 = vmatprep.subr.mxu0 0.0
        %1427 = vmatpush1.msra.mxu0 %v1303
        %1428 = vmatprep.subr.mxu0 0.0
        %1429 = vmatpush1.msra.mxu0 %v1302
        %1430 = vmatprep.subr.mxu0 0.0
        %1431 = vmatpush1.msra.mxu0 %v1301
        %1432 = vmatprep.subr.mxu0 0.0
        %1433 = vmatpush1.msra.mxu0 %v1300
        %1434 = vmatprep.subr.mxu0 0.0
        %1435 = vmatpush2.msra.mxu0 0.0
        %1436 = vmatprep.subr.mxu0 0.0
        %1437 = vmatpush2.msra.mxu0 0.0
        %1438 = vmatprep.subr.mxu0 0.0
        %1439 = vmatpush2.msra.mxu0 0.0
        %1440 = vmatprep.subr.mxu0 0.0
        %1441 = vmatpush2.msra.mxu0 0.0
        %1442 = vmatprep.subr.mxu0 0.0
        %1443 = vmatpush2.msra.mxu0 0.0
        %1444 = vmatprep.subr.mxu0 0.0
        %1445 = vmatpush2.msra.mxu0 0.0
        %1446 = vmatprep.subr.mxu0 0.0
        %1447 = vmatpush2.msra.mxu0 0.0
        %1448 = vmatprep.subr.mxu0 0.0
        %1449 = vmatpush2.msra.mxu0 0.0
        %1450 = vmatprep.subr.mxu0 0.0
        %1451 = vmatpush2.msra.mxu0 0.0
        %1452 = vmatprep.subr.mxu0 0.0
        %1453 = vmatpush2.msra.mxu0 0.0
        %1454 = vmatprep.subr.mxu0 0.0
        %1455 = vmatpush2.msra.mxu0 0.0
        %1456 = vmatprep.subr.mxu0 0.0
        %1457 = vmatpush2.msra.mxu0 0.0
        %1458 = vmatprep.subr.mxu0 0.0
        %1459 = vmatpush2.msra.mxu0 0.0
        %1460 = vmatprep.subr.mxu0 0.0
        %1461 = vmatpush2.msra.mxu0 0.0
        %1462 = vmatprep.subr.mxu0 0.0
        %1463 = vmatpush2.msra.mxu0 0.0
        %1464 = vmatprep.subr.mxu0 0.0
        %1465 = vmatpush2.msra.mxu0 0.0
        %1466 = vmatprep.mubr.f32.mxu0 0.0
        %1467 = vmatmul.mubr.f32.gmra.mxu0 %v1397
        %v1468 = vpop.f32.mrf.mxu0
        %v1469 = vadd.f32 0.0, %v1468
        %v1470 = vpop.f32.mrf.mxu0
        %1471 = vmatprep.mubr.f32.mxu0 0.0
        %1472 = vmatmul.mubr.f32.gmra.mxu0 %v1400
        %v1473 = vpop.f32.mrf.mxu0
        %v1474 = vadd.f32 0.0, %v1473
        %v1475 = vpop.f32.mrf.mxu0
        %1476 = vdwg.mxu0
        %v1477 = vmul.f32 %v1469, 0.0625
        %v1478 = vmul.f32 %v1474, 0.0625
        %v1479 = vmul.f32 %v1392, %v1392
        %v1480 = vmul.f32 %v1393, %v1393
        %v1481 = vsub.f32 %v1477, %v1479
        %v1482 = vsub.f32 %v1478, %v1480
        %v1483 = vmax.f32 %v1481, 0.0
        %v1484 = vmax.f32 %v1482, 0.0
        %v1485 = vadd.f32 %v1483, 1e-05
        %v1486 = vadd.f32 %v1484, 1e-05
        %v1487 = vrsqrt.pop %v1485
        %v1488 = vrsqrt.pop %v1486
        %vm1489 = vcmask 31744
        %v1491 = vsel %vm1489, %v1392, 0
        %v1494 = vsel %vm1489, %v1393, 0
        %vm1496 = vcmask 1043456
        %v1498 = vsel %vm1496, %v1308, 0
        %1500 = vmatprep.subr.mxu0 0.0
        %1501 = vmatpush1.msra.mxu0 0.0
        %1502 = vmatprep.subr.mxu0 0.0
        %1503 = vmatpush1.msra.mxu0 0.0
        %1504 = vmatprep.subr.mxu0 0.0
        %1505 = vmatpush1.msra.mxu0 0.0
        %1506 = vmatprep.subr.mxu0 0.0
        %1507 = vmatpush1.msra.mxu0 0.0
        %1508 = vmatprep.subr.mxu0 0.0
        %1509 = vmatpush1.msra.mxu0 0.0
        %1510 = vmatprep.subr.mxu0 0.0
        %1511 = vmatpush1.msra.mxu0 0.0
        %1512 = vmatprep.subr.mxu0 0.0
        %1513 = vmatpush1.msra.mxu0 0.0
        %1514 = vmatprep.subr.mxu0 0.0
        %1515 = vmatpush1.msra.mxu0 0.0
        %1516 = vmatprep.subr.mxu0 0.0
        %1517 = vmatpush1.msra.mxu0 0.0
        %1518 = vmatprep.subr.mxu0 0.0
        %1519 = vmatpush1.msra.mxu0 0.0
        %1520 = vmatprep.subr.mxu0 0.0
        %1521 = vmatpush1.msra.mxu0 0.0
        %1522 = vmatprep.subr.mxu0 0.0
        %1523 = vmatpush1.msra.mxu0 0.0
        %1524 = vmatprep.subr.mxu0 0.0
        %1525 = vmatpush1.msra.mxu0 0.0
        %1526 = vmatprep.subr.mxu0 0.0
        %1527 = vmatpush1.msra.mxu0 0.0
        %1528 = vmatprep.subr.mxu0 0.0
        %1529 = vmatpush1.msra.mxu0 0.0
        %1530 = vmatprep.subr.mxu0 0.0
        %1531 = vmatpush1.msra.mxu0 %v1498
        %1532 = vmatprep.subr.mxu0 0.0
        %1533 = vmatpush2.msra.mxu0 0.0
        %1534 = vmatprep.subr.mxu0 0.0
        %1535 = vmatpush2.msra.mxu0 0.0
        %1536 = vmatprep.subr.mxu0 0.0
        %1537 = vmatpush2.msra.mxu0 0.0
        %1538 = vmatprep.subr.mxu0 0.0
        %1539 = vmatpush2.msra.mxu0 0.0
        %1540 = vmatprep.subr.mxu0 0.0
        %1541 = vmatpush2.msra.mxu0 0.0
        %1542 = vmatprep.subr.mxu0 0.0
        %1543 = vmatpush2.msra.mxu0 0.0
        %1544 = vmatprep.subr.mxu0 0.0
        %1545 = vmatpush2.msra.mxu0 0.0
        %1546 = vmatprep.subr.mxu0 0.0
        %1547 = vmatpush2.msra.mxu0 0.0
        %1548 = vmatprep.subr.mxu0 0.0
        %1549 = vmatpush2.msra.mxu0 0.0
        %1550 = vmatprep.subr.mxu0 0.0
        %1551 = vmatpush2.msra.mxu0 0.0
        %1552 = vmatprep.subr.mxu0 0.0
        %1553 = vmatpush2.msra.mxu0 0.0
        %1554 = vmatprep.subr.mxu0 0.0
        %1555 = vmatpush2.msra.mxu0 0.0
        %1556 = vmatprep.subr.mxu0 0.0
        %1557 = vmatpush2.msra.mxu0 0.0
        %1558 = vmatprep.subr.mxu0 0.0
        %1559 = vmatpush2.msra.mxu0 0.0
        %1560 = vmatprep.subr.mxu0 0.0
        %1561 = vmatpush2.msra.mxu0 0.0
        %1562 = vmatprep.subr.mxu0 0.0
        %1563 = vmatpush2.msra.mxu0 0.0
        %1564 = vmatprep.mubr.f32.mxu0 0.0
        %1565 = vmatmul.mubr.f32.gmra.mxu0 %v1491
        %v1566 = vpop.f32.mrf.mxu0
        %v1567 = vadd.f32 0.0, %v1566
        %v1568 = vpop.f32.mrf.mxu0
        %1569 = vmatprep.mubr.f32.mxu0 0.0
        %1570 = vmatmul.mubr.f32.gmra.mxu0 %v1494
        %v1571 = vpop.f32.mrf.mxu0
        %v1572 = vadd.f32 0.0, %v1571
        %v1573 = vpop.f32.mrf.mxu0
        %1574 = vdwg.mxu0
        %v1576 = vsel %vm1489, %v1487, 0
        %v1579 = vsel %vm1489, %v1488, 0
        %1581 = vmatprep.subr.mxu0 0.0
        %1582 = vmatpush1.msra.mxu0 0.0
        %1583 = vmatprep.subr.mxu0 0.0
        %1584 = vmatpush1.msra.mxu0 0.0
        %1585 = vmatprep.subr.mxu0 0.0
        %1586 = vmatpush1.msra.mxu0 0.0
        %1587 = vmatprep.subr.mxu0 0.0
        %1588 = vmatpush1.msra.mxu0 0.0
        %1589 = vmatprep.subr.mxu0 0.0
        %1590 = vmatpush1.msra.mxu0 0.0
        %1591 = vmatprep.subr.mxu0 0.0
        %1592 = vmatpush1.msra.mxu0 0.0
        %1593 = vmatprep.subr.mxu0 0.0
        %1594 = vmatpush1.msra.mxu0 0.0
        %1595 = vmatprep.subr.mxu0 0.0
        %1596 = vmatpush1.msra.mxu0 0.0
        %1597 = vmatprep.subr.mxu0 0.0
        %1598 = vmatpush1.msra.mxu0 0.0
        %1599 = vmatprep.subr.mxu0 0.0
        %1600 = vmatpush1.msra.mxu0 0.0
        %1601 = vmatprep.subr.mxu0 0.0
        %1602 = vmatpush1.msra.mxu0 0.0
        %1603 = vmatprep.subr.mxu0 0.0
        %1604 = vmatpush1.msra.mxu0 0.0
        %1605 = vmatprep.subr.mxu0 0.0
        %1606 = vmatpush1.msra.mxu0 0.0
        %1607 = vmatprep.subr.mxu0 0.0
        %1608 = vmatpush1.msra.mxu0 0.0
        %1609 = vmatprep.subr.mxu0 0.0
        %1610 = vmatpush1.msra.mxu0 0.0
        %1611 = vmatprep.subr.mxu0 0.0
        %1612 = vmatpush1.msra.mxu0 %v1498
        %1613 = vmatprep.subr.mxu0 0.0
        %1614 = vmatpush2.msra.mxu0 0.0
        %1615 = vmatprep.subr.mxu0 0.0
        %1616 = vmatpush2.msra.mxu0 0.0
        %1617 = vmatprep.subr.mxu0 0.0
        %1618 = vmatpush2.msra.mxu0 0.0
        %1619 = vmatprep.subr.mxu0 0.0
        %1620 = vmatpush2.msra.mxu0 0.0
        %1621 = vmatprep.subr.mxu0 0.0
        %1622 = vmatpush2.msra.mxu0 0.0
        %1623 = vmatprep.subr.mxu0 0.0
        %1624 = vmatpush2.msra.mxu0 0.0
        %1625 = vmatprep.subr.mxu0 0.0
        %1626 = vmatpush2.msra.mxu0 0.0
        %1627 = vmatprep.subr.mxu0 0.0
        %1628 = vmatpush2.msra.mxu0 0.0
        %1629 = vmatprep.subr.mxu0 0.0
        %1630 = vmatpush2.msra.mxu0 0.0
        %1631 = vmatprep.subr.mxu0 0.0
        %1632 = vmatpush2.msra.mxu0 0.0
        %1633 = vmatprep.subr.mxu0 0.0
        %1634 = vmatpush2.msra.mxu0 0.0
        %1635 = vmatprep.subr.mxu0 0.0
        %1636 = vmatpush2.msra.mxu0 0.0
        %1637 = vmatprep.subr.mxu0 0.0
        %1638 = vmatpush2.msra.mxu0 0.0
        %1639 = vmatprep.subr.mxu0 0.0
        %1640 = vmatpush2.msra.mxu0 0.0
        %1641 = vmatprep.subr.mxu0 0.0
        %1642 = vmatpush2.msra.mxu0 0.0
        %1643 = vmatprep.subr.mxu0 0.0
        %1644 = vmatpush2.msra.mxu0 0.0
        %1645 = vmatprep.mubr.f32.mxu0 0.0
        %1646 = vmatmul.mubr.f32.gmra.mxu0 %v1576
        %v1647 = vpop.f32.mrf.mxu0
        %v1648 = vadd.f32 0.0, %v1647
        %v1649 = vpop.f32.mrf.mxu0
        %1650 = vmatprep.mubr.f32.mxu0 0.0
        %1651 = vmatmul.mubr.f32.gmra.mxu0 %v1579
        %v1652 = vpop.f32.mrf.mxu0
        %v1653 = vadd.f32 0.0, %v1652
        %v1654 = vpop.f32.mrf.mxu0
        %1655 = vdwg.mxu0
        %v1656 = vsub.f32 %v1292, %v1567
        %v1657 = vsub.f32 %v1297, %v1572
        %v1658 = vmul.f32 %v1656, %v1648
        %v1659 = vmul.f32 %v1657, %v1653
        %v1661 = vlaneseq
        %v1662 = vshrl.u32 %v1661, 7
        %v1663 = vsub.s32 0, %v1662
        %v1664 = vrot.slane %v1309, %v1663
        %v1666 = vmul.f32 %v1658, %v1664
        %v1667 = vmul.f32 %v1659, %v1664
        %v1669 = vlaneseq
        %v1670 = vshrl.u32 %v1669, 7
        %v1671 = vsub.s32 0, %v1670
        %v1672 = vrot.slane %v1310, %v1671
        %v1674 = vadd.f32 %v1666, %v1672
        %v1675 = vadd.f32 %v1667, %v1672
        %v1676 = vld [vmem:[#allocation3] sm:$0xff]
        %s1677 = scalar_lea.vmem [#allocation3], 8
        %v1678 = vld [vmem:[%s1677] sm:$0xff]
        %vm1679 = vcmask 130048
        %v1681 = vsel %vm1679, %v1674, 0
        %v1684 = vsel %vm1679, %v1675, 0
        %v1687 = vsel %vm1679, %v1676, 0
        %1689 = vmatprep.subr.mxu0 0.0
        %1690 = vmatpush1.xpose.msra.mxu0 0.0
        %1691 = vmatprep.subr.mxu0 0.0
        %1692 = vmatpush1.xpose.msra.mxu0 0.0
        %1693 = vmatprep.subr.mxu0 0.0
        %1694 = vmatpush1.xpose.msra.mxu0 0.0
        %1695 = vmatprep.subr.mxu0 0.0
        %1696 = vmatpush1.xpose.msra.mxu0 0.0
        %1697 = vmatprep.subr.mxu0 0.0
        %1698 = vmatpush1.xpose.msra.mxu0 0.0
        %1699 = vmatprep.subr.mxu0 0.0
        %1700 = vmatpush1.xpose.msra.mxu0 0.0
        %1701 = vmatprep.subr.mxu0 0.0
        %1702 = vmatpush1.xpose.msra.mxu0 0.0
        %1703 = vmatprep.subr.mxu0 0.0
        %1704 = vmatpush1.xpose.msra.mxu0 0.0
        %1705 = vmatprep.subr.mxu0 0.0
        %1706 = vmatpush1.xpose.msra.mxu0 0.0
        %1707 = vmatprep.subr.mxu0 0.0
        %1708 = vmatpush1.xpose.msra.mxu0 0.0
        %1709 = vmatprep.subr.mxu0 0.0
        %1710 = vmatpush1.xpose.msra.mxu0 0.0
        %1711 = vmatprep.subr.mxu0 0.0
        %1712 = vmatpush1.xpose.msra.mxu0 0.0
        %1713 = vmatprep.subr.mxu0 0.0
        %1714 = vmatpush1.xpose.msra.mxu0 0.0
        %1715 = vmatprep.subr.mxu0 0.0
        %1716 = vmatpush1.xpose.msra.mxu0 0.0
        %1717 = vmatprep.subr.mxu0 0.0
        %1718 = vmatpush1.xpose.msra.mxu0 0.0
        %1719 = vmatprep.subr.mxu0 0.0
        %1720 = vmatpush1.xpose.msra.mxu0 %v1687
        %1721 = vmatprep.subr.mxu0 0.0
        %1722 = vmatpush2.xpose.msra.mxu0 0.0
        %1723 = vmatprep.subr.mxu0 0.0
        %1724 = vmatpush2.xpose.msra.mxu0 0.0
        %1725 = vmatprep.subr.mxu0 0.0
        %1726 = vmatpush2.xpose.msra.mxu0 0.0
        %1727 = vmatprep.subr.mxu0 0.0
        %1728 = vmatpush2.xpose.msra.mxu0 0.0
        %1729 = vmatprep.subr.mxu0 0.0
        %1730 = vmatpush2.xpose.msra.mxu0 0.0
        %1731 = vmatprep.subr.mxu0 0.0
        %1732 = vmatpush2.xpose.msra.mxu0 0.0
        %1733 = vmatprep.subr.mxu0 0.0
        %1734 = vmatpush2.xpose.msra.mxu0 0.0
        %1735 = vmatprep.subr.mxu0 0.0
        %1736 = vmatpush2.xpose.msra.mxu0 0.0
        %1737 = vmatprep.subr.mxu0 0.0
        %1738 = vmatpush2.xpose.msra.mxu0 0.0
        %1739 = vmatprep.subr.mxu0 0.0
        %1740 = vmatpush2.xpose.msra.mxu0 0.0
        %1741 = vmatprep.subr.mxu0 0.0
        %1742 = vmatpush2.xpose.msra.mxu0 0.0
        %1743 = vmatprep.subr.mxu0 0.0
        %1744 = vmatpush2.xpose.msra.mxu0 0.0
        %1745 = vmatprep.subr.mxu0 0.0
        %1746 = vmatpush2.xpose.msra.mxu0 0.0
        %1747 = vmatprep.subr.mxu0 0.0
        %1748 = vmatpush2.xpose.msra.mxu0 0.0
        %1749 = vmatprep.subr.mxu0 0.0
        %1750 = vmatpush2.xpose.msra.mxu0 0.0
        %1751 = vmatprep.subr.mxu0 0.0
        %1752 = vmatpush2.xpose.msra.mxu0 0.0
        %1753 = vmatprep.mubr.f32.mxu0 0.0
        %1754 = vmatmul.mubr.f32.gmra.mxu0 %v1681
        %v1755 = vpop.f32.mrf.mxu0
        %v1756 = vadd.f32 0.0, %v1755
        %v1757 = vpop.f32.mrf.mxu0
        %1758 = vmatprep.mubr.f32.mxu0 0.0
        %1759 = vmatmul.mubr.f32.gmra.mxu0 %v1684
        %v1760 = vpop.f32.mrf.mxu0
        %v1761 = vadd.f32 0.0, %v1760
        %v1762 = vpop.f32.mrf.mxu0
        %1763 = vdwg.mxu0
        %vm1764 = vcmask 64512
        %v1765 = vsel %vm1764, %v1756, -inf
        %1766 = vmax.xlane.f32.xlu0 %v1765
        %v1767 = vpop.xlane.xlu0 %1766
        %v1768 = vsel %vm1764, %v1761, -inf
        %1769 = vmax.xlane.f32.xlu0 %v1768
        %v1770 = vpop.xlane.xlu0 %1769
        %v1771 = vsub.f32 %v1756, %v1767
        %v1772 = vsub.f32 %v1761, %v1770
        %v1773 = vmul.f32 %v1771, 1.442695
        %v1774 = vpow.pop %v1773
        %v1775 = vmul.f32 %v1772, 1.442695
        %v1776 = vpow.pop %v1775
        %v1777 = vsel %vm1764, %v1774, 0.0
        %1778 = vadd.xlane.f32.xlu0 %v1777
        %v1779 = vpop.xlane.xlu0 %1778
        %v1780 = vsel %vm1764, %v1776, 0.0
        %1781 = vadd.xlane.f32.xlu0 %v1780
        %v1782 = vpop.xlane.xlu0 %1781
        %v1783 = vrcp.pop %v1779
        %v1784 = vrcp.pop %v1782
        %v1785 = vmul.f32 %v1779, %v1783
        %v1786 = vmul.f32 %v1782, %v1784
        %v1787 = vsub.f32 2.0, %v1785
        %v1788 = vsub.f32 2.0, %v1786
        %v1789 = vmul.f32 %v1783, %v1787
        %v1790 = vmul.f32 %v1784, %v1788
        %v1791 = vmul.f32 %v1774, %v1789
        %v1792 = vmul.f32 %v1776, %v1790
        %v1794 = vsel %vm1764, %v1791, 0
        %v1797 = vsel %vm1764, %v1792, 0
        %1799 = vmatprep.subr.mxu0 0.0
        %1800 = vmatpush1.msra.mxu0 0.0
        %1801 = vmatprep.subr.mxu0 0.0
        %1802 = vmatpush1.msra.mxu0 0.0
        %1803 = vmatprep.subr.mxu0 0.0
        %1804 = vmatpush1.msra.mxu0 0.0
        %1805 = vmatprep.subr.mxu0 0.0
        %1806 = vmatpush1.msra.mxu0 0.0
        %1807 = vmatprep.subr.mxu0 0.0
        %1808 = vmatpush1.msra.mxu0 0.0
        %1809 = vmatprep.subr.mxu0 0.0
        %1810 = vmatpush1.msra.mxu0 0.0
        %1811 = vmatprep.subr.mxu0 0.0
        %1812 = vmatpush1.msra.mxu0 0.0
        %1813 = vmatprep.subr.mxu0 0.0
        %1814 = vmatpush1.msra.mxu0 0.0
        %1815 = vmatprep.subr.mxu0 0.0
        %1816 = vmatpush1.msra.mxu0 0.0
        %1817 = vmatprep.subr.mxu0 0.0
        %1818 = vmatpush1.msra.mxu0 0.0
        %1819 = vmatprep.subr.mxu0 0.0
        %1820 = vmatpush1.msra.mxu0 0.0
        %1821 = vmatprep.subr.mxu0 0.0
        %1822 = vmatpush1.msra.mxu0 0.0
        %1823 = vmatprep.subr.mxu0 0.0
        %1824 = vmatpush1.msra.mxu0 0.0
        %1825 = vmatprep.subr.mxu0 0.0
        %1826 = vmatpush1.msra.mxu0 0.0
        %1827 = vmatprep.subr.mxu0 0.0
        %1828 = vmatpush1.msra.mxu0 0.0
        %1829 = vmatprep.subr.mxu0 0.0
        %1830 = vmatpush1.msra.mxu0 %v1678
        %1831 = vmatprep.subr.mxu0 0.0
        %1832 = vmatpush2.msra.mxu0 0.0
        %1833 = vmatprep.subr.mxu0 0.0
        %1834 = vmatpush2.msra.mxu0 0.0
        %1835 = vmatprep.subr.mxu0 0.0
        %1836 = vmatpush2.msra.mxu0 0.0
        %1837 = vmatprep.subr.mxu0 0.0
        %1838 = vmatpush2.msra.mxu0 0.0
        %1839 = vmatprep.subr.mxu0 0.0
        %1840 = vmatpush2.msra.mxu0 0.0
        %1841 = vmatprep.subr.mxu0 0.0
        %1842 = vmatpush2.msra.mxu0 0.0
        %1843 = vmatprep.subr.mxu0 0.0
        %1844 = vmatpush2.msra.mxu0 0.0
        %1845 = vmatprep.subr.mxu0 0.0
        %1846 = vmatpush2.msra.mxu0 0.0
        %1847 = vmatprep.subr.mxu0 0.0
        %1848 = vmatpush2.msra.mxu0 0.0
        %1849 = vmatprep.subr.mxu0 0.0
        %1850 = vmatpush2.msra.mxu0 0.0
        %1851 = vmatprep.subr.mxu0 0.0
        %1852 = vmatpush2.msra.mxu0 0.0
        %1853 = vmatprep.subr.mxu0 0.0
        %1854 = vmatpush2.msra.mxu0 0.0
        %1855 = vmatprep.subr.mxu0 0.0
        %1856 = vmatpush2.msra.mxu0 0.0
        %1857 = vmatprep.subr.mxu0 0.0
        %1858 = vmatpush2.msra.mxu0 0.0
        %1859 = vmatprep.subr.mxu0 0.0
        %1860 = vmatpush2.msra.mxu0 0.0
        %1861 = vmatprep.subr.mxu0 0.0
        %1862 = vmatpush2.msra.mxu0 0.0
        %1863 = vmatprep.mubr.f32.mxu0 0.0
        %1864 = vmatmul.mubr.f32.gmra.mxu0 %v1794
        %v1865 = vpop.f32.mrf.mxu0
        %v1866 = vadd.f32 0.0, %v1865
        %v1867 = vpop.f32.mrf.mxu0
        %1868 = vmatprep.mubr.f32.mxu0 0.0
        %1869 = vmatmul.mubr.f32.gmra.mxu0 %v1797
        %v1870 = vpop.f32.mrf.mxu0
        %v1871 = vadd.f32 0.0, %v1870
        %v1872 = vpop.f32.mrf.mxu0
        %1873 = vdwg.mxu0
        %1874 = vst.msk [vmem:[#allocation2] sm:$0xff] %vm1679, %v1866
        %1875 = vst.msk [vmem:[#allocation2 + $0x8] sm:$0xff] %vm1679, %v1871
        %1876 = vrot.lane.b32.xlu0 %v1674, 112
        %v1877 = vpop.permute.xlu0 %1876
        %1878 = vrot.lane.b32.xlu0 %v1675, 112
        %v1879 = vpop.permute.xlu0 %1878
        %1880 = vrot.lane.b32.xlu0 %v1676, 112
        %v1881 = vpop.permute.xlu0 %1880
        %v1882 = vsel %vm1679, %v1877, 0
        %v1884 = vsel %vm1679, %v1879, 0
        %v1886 = vsel %vm1679, %v1881, 0
        %1888 = vmatprep.subr.mxu0 0.0
        %1889 = vmatpush1.xpose.msra.mxu0 0.0
        %1890 = vmatprep.subr.mxu0 0.0
        %1891 = vmatpush1.xpose.msra.mxu0 0.0
        %1892 = vmatprep.subr.mxu0 0.0
        %1893 = vmatpush1.xpose.msra.mxu0 0.0
        %1894 = vmatprep.subr.mxu0 0.0
        %1895 = vmatpush1.xpose.msra.mxu0 0.0
        %1896 = vmatprep.subr.mxu0 0.0
        %1897 = vmatpush1.xpose.msra.mxu0 0.0
        %1898 = vmatprep.subr.mxu0 0.0
        %1899 = vmatpush1.xpose.msra.mxu0 0.0
        %1900 = vmatprep.subr.mxu0 0.0
        %1901 = vmatpush1.xpose.msra.mxu0 0.0
        %1902 = vmatprep.subr.mxu0 0.0
        %1903 = vmatpush1.xpose.msra.mxu0 0.0
        %1904 = vmatprep.subr.mxu0 0.0
        %1905 = vmatpush1.xpose.msra.mxu0 0.0
        %1906 = vmatprep.subr.mxu0 0.0
        %1907 = vmatpush1.xpose.msra.mxu0 0.0
        %1908 = vmatprep.subr.mxu0 0.0
        %1909 = vmatpush1.xpose.msra.mxu0 0.0
        %1910 = vmatprep.subr.mxu0 0.0
        %1911 = vmatpush1.xpose.msra.mxu0 0.0
        %1912 = vmatprep.subr.mxu0 0.0
        %1913 = vmatpush1.xpose.msra.mxu0 0.0
        %1914 = vmatprep.subr.mxu0 0.0
        %1915 = vmatpush1.xpose.msra.mxu0 0.0
        %1916 = vmatprep.subr.mxu0 0.0
        %1917 = vmatpush1.xpose.msra.mxu0 0.0
        %1918 = vmatprep.subr.mxu0 0.0
        %1919 = vmatpush1.xpose.msra.mxu0 %v1886
        %1920 = vmatprep.subr.mxu0 0.0
        %1921 = vmatpush2.xpose.msra.mxu0 0.0
        %1922 = vmatprep.subr.mxu0 0.0
        %1923 = vmatpush2.xpose.msra.mxu0 0.0
        %1924 = vmatprep.subr.mxu0 0.0
        %1925 = vmatpush2.xpose.msra.mxu0 0.0
        %1926 = vmatprep.subr.mxu0 0.0
        %1927 = vmatpush2.xpose.msra.mxu0 0.0
        %1928 = vmatprep.subr.mxu0 0.0
        %1929 = vmatpush2.xpose.msra.mxu0 0.0
        %1930 = vmatprep.subr.mxu0 0.0
        %1931 = vmatpush2.xpose.msra.mxu0 0.0
        %1932 = vmatprep.subr.mxu0 0.0
        %1933 = vmatpush2.xpose.msra.mxu0 0.0
        %1934 = vmatprep.subr.mxu0 0.0
        %1935 = vmatpush2.xpose.msra.mxu0 0.0
        %1936 = vmatprep.subr.mxu0 0.0
        %1937 = vmatpush2.xpose.msra.mxu0 0.0
        %1938 = vmatprep.subr.mxu0 0.0
        %1939 = vmatpush2.xpose.msra.mxu0 0.0
        %1940 = vmatprep.subr.mxu0 0.0
        %1941 = vmatpush2.xpose.msra.mxu0 0.0
        %1942 = vmatprep.subr.mxu0 0.0
        %1943 = vmatpush2.xpose.msra.mxu0 0.0
        %1944 = vmatprep.subr.mxu0 0.0
        %1945 = vmatpush2.xpose.msra.mxu0 0.0
        %1946 = vmatprep.subr.mxu0 0.0
        %1947 = vmatpush2.xpose.msra.mxu0 0.0
        %1948 = vmatprep.subr.mxu0 0.0
        %1949 = vmatpush2.xpose.msra.mxu0 0.0
        %1950 = vmatprep.subr.mxu0 0.0
        %1951 = vmatpush2.xpose.msra.mxu0 0.0
        %1952 = vmatprep.mubr.f32.mxu0 0.0
        %1953 = vmatmul.mubr.f32.gmra.mxu0 %v1882
        %v1954 = vpop.f32.mrf.mxu0
        %v1955 = vadd.f32 0.0, %v1954
        %v1956 = vpop.f32.mrf.mxu0
        %1957 = vmatprep.mubr.f32.mxu0 0.0
        %1958 = vmatmul.mubr.f32.gmra.mxu0 %v1884
        %v1959 = vpop.f32.mrf.mxu0
        %v1960 = vadd.f32 0.0, %v1959
        %v1961 = vpop.f32.mrf.mxu0
        %1962 = vdwg.mxu0
        %v1963 = vsel %vm1764, %v1955, -inf
        %1964 = vmax.xlane.f32.xlu0 %v1963
        %v1965 = vpop.xlane.xlu0 %1964
        %v1966 = vsel %vm1764, %v1960, -inf
        %1967 = vmax.xlane.f32.xlu0 %v1966
        %v1968 = vpop.xlane.xlu0 %1967
        %v1969 = vsub.f32 %v1955, %v1965
        %v1970 = vsub.f32 %v1960, %v1968
        %v1971 = vmul.f32 %v1969, 1.442695
        %v1972 = vpow.pop %v1971
        %v1973 = vmul.f32 %v1970, 1.442695
        %v1974 = vpow.pop %v1973
        %v1975 = vsel %vm1764, %v1972, 0.0
        %1976 = vadd.xlane.f32.xlu0 %v1975
        %v1977 = vpop.xlane.xlu0 %1976
        %v1978 = vsel %vm1764, %v1974, 0.0
        %1979 = vadd.xlane.f32.xlu0 %v1978
        %v1980 = vpop.xlane.xlu0 %1979
        %v1981 = vrcp.pop %v1977
        %v1982 = vrcp.pop %v1980
        %v1983 = vmul.f32 %v1977, %v1981
        %v1984 = vmul.f32 %v1980, %v1982
        %v1985 = vsub.f32 2.0, %v1983
        %v1986 = vsub.f32 2.0, %v1984
        %v1987 = vmul.f32 %v1981, %v1985
        %v1988 = vmul.f32 %v1982, %v1986
        %v1989 = vmul.f32 %v1972, %v1987
        %v1990 = vmul.f32 %v1974, %v1988
        %1992 = vrot.lane.b32.xlu0 %v1678, 112
        %v1993 = vpop.permute.xlu0 %1992
        %v1996 = vsel %vm1764, %v1989, 0
        %v1999 = vsel %vm1764, %v1990, 0
        %2001 = vmatprep.subr.mxu0 0.0
        %2002 = vmatpush1.msra.mxu0 0.0
        %2003 = vmatprep.subr.mxu0 0.0
        %2004 = vmatpush1.msra.mxu0 0.0
        %2005 = vmatprep.subr.mxu0 0.0
        %2006 = vmatpush1.msra.mxu0 0.0
        %2007 = vmatprep.subr.mxu0 0.0
        %2008 = vmatpush1.msra.mxu0 0.0
        %2009 = vmatprep.subr.mxu0 0.0
        %2010 = vmatpush1.msra.mxu0 0.0
        %2011 = vmatprep.subr.mxu0 0.0
        %2012 = vmatpush1.msra.mxu0 0.0
        %2013 = vmatprep.subr.mxu0 0.0
        %2014 = vmatpush1.msra.mxu0 0.0
        %2015 = vmatprep.subr.mxu0 0.0
        %2016 = vmatpush1.msra.mxu0 0.0
        %2017 = vmatprep.subr.mxu0 0.0
        %2018 = vmatpush1.msra.mxu0 0.0
        %2019 = vmatprep.subr.mxu0 0.0
        %2020 = vmatpush1.msra.mxu0 0.0
        %2021 = vmatprep.subr.mxu0 0.0
        %2022 = vmatpush1.msra.mxu0 0.0
        %2023 = vmatprep.subr.mxu0 0.0
        %2024 = vmatpush1.msra.mxu0 0.0
        %2025 = vmatprep.subr.mxu0 0.0
        %2026 = vmatpush1.msra.mxu0 0.0
        %2027 = vmatprep.subr.mxu0 0.0
        %2028 = vmatpush1.msra.mxu0 0.0
        %2029 = vmatprep.subr.mxu0 0.0
        %2030 = vmatpush1.msra.mxu0 0.0
        %2031 = vmatprep.subr.mxu0 0.0
        %2032 = vmatpush1.msra.mxu0 %v1993
        %2033 = vmatprep.subr.mxu0 0.0
        %2034 = vmatpush2.msra.mxu0 0.0
        %2035 = vmatprep.subr.mxu0 0.0
        %2036 = vmatpush2.msra.mxu0 0.0
        %2037 = vmatprep.subr.mxu0 0.0
        %2038 = vmatpush2.msra.mxu0 0.0
        %2039 = vmatprep.subr.mxu0 0.0
        %2040 = vmatpush2.msra.mxu0 0.0
        %2041 = vmatprep.subr.mxu0 0.0
        %2042 = vmatpush2.msra.mxu0 0.0
        %2043 = vmatprep.subr.mxu0 0.0
        %2044 = vmatpush2.msra.mxu0 0.0
        %2045 = vmatprep.subr.mxu0 0.0
        %2046 = vmatpush2.msra.mxu0 0.0
        %2047 = vmatprep.subr.mxu0 0.0
        %2048 = vmatpush2.msra.mxu0 0.0
        %2049 = vmatprep.subr.mxu0 0.0
        %2050 = vmatpush2.msra.mxu0 0.0
        %2051 = vmatprep.subr.mxu0 0.0
        %2052 = vmatpush2.msra.mxu0 0.0
        %2053 = vmatprep.subr.mxu0 0.0
        %2054 = vmatpush2.msra.mxu0 0.0
        %2055 = vmatprep.subr.mxu0 0.0
        %2056 = vmatpush2.msra.mxu0 0.0
        %2057 = vmatprep.subr.mxu0 0.0
        %2058 = vmatpush2.msra.mxu0 0.0
        %2059 = vmatprep.subr.mxu0 0.0
        %2060 = vmatpush2.msra.mxu0 0.0
        %2061 = vmatprep.subr.mxu0 0.0
        %2062 = vmatpush2.msra.mxu0 0.0
        %2063 = vmatprep.subr.mxu0 0.0
        %2064 = vmatpush2.msra.mxu0 0.0
        %2065 = vmatprep.mubr.f32.mxu0 0.0
        %2066 = vmatmul.mubr.f32.gmra.mxu0 %v1996
        %v2067 = vpop.f32.mrf.mxu0
        %v2068 = vadd.f32 0.0, %v2067
        %v2069 = vpop.f32.mrf.mxu0
        %2070 = vmatprep.mubr.f32.mxu0 0.0
        %2071 = vmatmul.mubr.f32.gmra.mxu0 %v1999
        %v2072 = vpop.f32.mrf.mxu0
        %v2073 = vadd.f32 0.0, %v2072
        %v2074 = vpop.f32.mrf.mxu0
        %2075 = vdwg.mxu0
        %2078 = vrot.lane.b32.xlu0 %v2068, 16
        %v2079 = vpop.permute.xlu0 %2078
        %2080 = vrot.lane.b32.xlu0 %v2073, 16
        %v2081 = vpop.permute.xlu0 %2080
        %vm2084 = vcmask 261248
        %2085 = vst.msk [vmem:[#allocation2] sm:$0xff] %vm2084, %v2079
        %2086 = vst.msk [vmem:[#allocation2 + $0x8] sm:$0xff] %vm2084, %v2081
        %2087 = vrot.lane.b32.xlu0 %v1674, 96
        %v2088 = vpop.permute.xlu0 %2087
        %2089 = vrot.lane.b32.xlu0 %v1675, 96
        %v2090 = vpop.permute.xlu0 %2089
        %2091 = vrot.lane.b32.xlu0 %v1676, 96
        %v2092 = vpop.permute.xlu0 %2091
        %v2093 = vsel %vm1679, %v2088, 0
        %v2095 = vsel %vm1679, %v2090, 0
        %v2097 = vsel %vm1679, %v2092, 0
        %2099 = vmatprep.subr.mxu0 0.0
        %2100 = vmatpush1.xpose.msra.mxu0 0.0
        %2101 = vmatprep.subr.mxu0 0.0
        %2102 = vmatpush1.xpose.msra.mxu0 0.0
        %2103 = vmatprep.subr.mxu0 0.0
        %2104 = vmatpush1.xpose.msra.mxu0 0.0
        %2105 = vmatprep.subr.mxu0 0.0
        %2106 = vmatpush1.xpose.msra.mxu0 0.0
        %2107 = vmatprep.subr.mxu0 0.0
        %2108 = vmatpush1.xpose.msra.mxu0 0.0
        %2109 = vmatprep.subr.mxu0 0.0
        %2110 = vmatpush1.xpose.msra.mxu0 0.0
        %2111 = vmatprep.subr.mxu0 0.0
        %2112 = vmatpush1.xpose.msra.mxu0 0.0
        %2113 = vmatprep.subr.mxu0 0.0
        %2114 = vmatpush1.xpose.msra.mxu0 0.0
        %2115 = vmatprep.subr.mxu0 0.0
        %2116 = vmatpush1.xpose.msra.mxu0 0.0
        %2117 = vmatprep.subr.mxu0 0.0
        %2118 = vmatpush1.xpose.msra.mxu0 0.0
        %2119 = vmatprep.subr.mxu0 0.0
        %2120 = vmatpush1.xpose.msra.mxu0 0.0
        %2121 = vmatprep.subr.mxu0 0.0
        %2122 = vmatpush1.xpose.msra.mxu0 0.0
        %2123 = vmatprep.subr.mxu0 0.0
        %2124 = vmatpush1.xpose.msra.mxu0 0.0
        %2125 = vmatprep.subr.mxu0 0.0
        %2126 = vmatpush1.xpose.msra.mxu0 0.0
        %2127 = vmatprep.subr.mxu0 0.0
        %2128 = vmatpush1.xpose.msra.mxu0 0.0
        %2129 = vmatprep.subr.mxu0 0.0
        %2130 = vmatpush1.xpose.msra.mxu0 %v2097
        %2131 = vmatprep.subr.mxu0 0.0
        %2132 = vmatpush2.xpose.msra.mxu0 0.0
        %2133 = vmatprep.subr.mxu0 0.0
        %2134 = vmatpush2.xpose.msra.mxu0 0.0
        %2135 = vmatprep.subr.mxu0 0.0
        %2136 = vmatpush2.xpose.msra.mxu0 0.0
        %2137 = vmatprep.subr.mxu0 0.0
        %2138 = vmatpush2.xpose.msra.mxu0 0.0
        %2139 = vmatprep.subr.mxu0 0.0
        %2140 = vmatpush2.xpose.msra.mxu0 0.0
        %2141 = vmatprep.subr.mxu0 0.0
        %2142 = vmatpush2.xpose.msra.mxu0 0.0
        %2143 = vmatprep.subr.mxu0 0.0
        %2144 = vmatpush2.xpose.msra.mxu0 0.0
        %2145 = vmatprep.subr.mxu0 0.0
        %2146 = vmatpush2.xpose.msra.mxu0 0.0
        %2147 = vmatprep.subr.mxu0 0.0
        %2148 = vmatpush2.xpose.msra.mxu0 0.0
        %2149 = vmatprep.subr.mxu0 0.0
        %2150 = vmatpush2.xpose.msra.mxu0 0.0
        %2151 = vmatprep.subr.mxu0 0.0
        %2152 = vmatpush2.xpose.msra.mxu0 0.0
        %2153 = vmatprep.subr.mxu0 0.0
        %2154 = vmatpush2.xpose.msra.mxu0 0.0
        %2155 = vmatprep.subr.mxu0 0.0
        %2156 = vmatpush2.xpose.msra.mxu0 0.0
        %2157 = vmatprep.subr.mxu0 0.0
        %2158 = vmatpush2.xpose.msra.mxu0 0.0
        %2159 = vmatprep.subr.mxu0 0.0
        %2160 = vmatpush2.xpose.msra.mxu0 0.0
        %2161 = vmatprep.subr.mxu0 0.0
        %2162 = vmatpush2.xpose.msra.mxu0 0.0
        %2163 = vmatprep.mubr.f32.mxu0 0.0
        %2164 = vmatmul.mubr.f32.gmra.mxu0 %v2093
        %v2165 = vpop.f32.mrf.mxu0
        %v2166 = vadd.f32 0.0, %v2165
        %v2167 = vpop.f32.mrf.mxu0
        %2168 = vmatprep.mubr.f32.mxu0 0.0
        %2169 = vmatmul.mubr.f32.gmra.mxu0 %v2095
        %v2170 = vpop.f32.mrf.mxu0
        %v2171 = vadd.f32 0.0, %v2170
        %v2172 = vpop.f32.mrf.mxu0
        %2173 = vdwg.mxu0
        %v2174 = vsel %vm1764, %v2166, -inf
        %2175 = vmax.xlane.f32.xlu0 %v2174
        %v2176 = vpop.xlane.xlu0 %2175
        %v2177 = vsel %vm1764, %v2171, -inf
        %2178 = vmax.xlane.f32.xlu0 %v2177
        %v2179 = vpop.xlane.xlu0 %2178
        %v2180 = vsub.f32 %v2166, %v2176
        %v2181 = vsub.f32 %v2171, %v2179
        %v2182 = vmul.f32 %v2180, 1.442695
        %v2183 = vpow.pop %v2182
        %v2184 = vmul.f32 %v2181, 1.442695
        %v2185 = vpow.pop %v2184
        %v2186 = vsel %vm1764, %v2183, 0.0
        %2187 = vadd.xlane.f32.xlu0 %v2186
        %v2188 = vpop.xlane.xlu0 %2187
        %v2189 = vsel %vm1764, %v2185, 0.0
        %2190 = vadd.xlane.f32.xlu0 %v2189
        %v2191 = vpop.xlane.xlu0 %2190
        %v2192 = vrcp.pop %v2188
        %v2193 = vrcp.pop %v2191
        %v2194 = vmul.f32 %v2188, %v2192
        %v2195 = vmul.f32 %v2191, %v2193
        %v2196 = vsub.f32 2.0, %v2194
        %v2197 = vsub.f32 2.0, %v2195
        %v2198 = vmul.f32 %v2192, %v2196
        %v2199 = vmul.f32 %v2193, %v2197
        %v2200 = vmul.f32 %v2183, %v2198
        %v2201 = vmul.f32 %v2185, %v2199
        %2202 = vrot.lane.b32.xlu0 %v1678, 96
        %v2203 = vpop.permute.xlu0 %2202
        %v2206 = vsel %vm1764, %v2200, 0
        %v2209 = vsel %vm1764, %v2201, 0
        %2211 = vmatprep.subr.mxu0 0.0
        %2212 = vmatpush1.msra.mxu0 0.0
        %2213 = vmatprep.subr.mxu0 0.0
        %2214 = vmatpush1.msra.mxu0 0.0
        %2215 = vmatprep.subr.mxu0 0.0
        %2216 = vmatpush1.msra.mxu0 0.0
        %2217 = vmatprep.subr.mxu0 0.0
        %2218 = vmatpush1.msra.mxu0 0.0
        %2219 = vmatprep.subr.mxu0 0.0
        %2220 = vmatpush1.msra.mxu0 0.0
        %2221 = vmatprep.subr.mxu0 0.0
        %2222 = vmatpush1.msra.mxu0 0.0
        %2223 = vmatprep.subr.mxu0 0.0
        %2224 = vmatpush1.msra.mxu0 0.0
        %2225 = vmatprep.subr.mxu0 0.0
        %2226 = vmatpush1.msra.mxu0 0.0
        %2227 = vmatprep.subr.mxu0 0.0
        %2228 = vmatpush1.msra.mxu0 0.0
        %2229 = vmatprep.subr.mxu0 0.0
        %2230 = vmatpush1.msra.mxu0 0.0
        %2231 = vmatprep.subr.mxu0 0.0
        %2232 = vmatpush1.msra.mxu0 0.0
        %2233 = vmatprep.subr.mxu0 0.0
        %2234 = vmatpush1.msra.mxu0 0.0
        %2235 = vmatprep.subr.mxu0 0.0
        %2236 = vmatpush1.msra.mxu0 0.0
        %2237 = vmatprep.subr.mxu0 0.0
        %2238 = vmatpush1.msra.mxu0 0.0
        %2239 = vmatprep.subr.mxu0 0.0
        %2240 = vmatpush1.msra.mxu0 0.0
        %2241 = vmatprep.subr.mxu0 0.0
        %2242 = vmatpush1.msra.mxu0 %v2203
        %2243 = vmatprep.subr.mxu0 0.0
        %2244 = vmatpush2.msra.mxu0 0.0
        %2245 = vmatprep.subr.mxu0 0.0
        %2246 = vmatpush2.msra.mxu0 0.0
        %2247 = vmatprep.subr.mxu0 0.0
        %2248 = vmatpush2.msra.mxu0 0.0
        %2249 = vmatprep.subr.mxu0 0.0
        %2250 = vmatpush2.msra.mxu0 0.0
        %2251 = vmatprep.subr.mxu0 0.0
        %2252 = vmatpush2.msra.mxu0 0.0
        %2253 = vmatprep.subr.mxu0 0.0
        %2254 = vmatpush2.msra.mxu0 0.0
        %2255 = vmatprep.subr.mxu0 0.0
        %2256 = vmatpush2.msra.mxu0 0.0
        %2257 = vmatprep.subr.mxu0 0.0
        %2258 = vmatpush2.msra.mxu0 0.0
        %2259 = vmatprep.subr.mxu0 0.0
        %2260 = vmatpush2.msra.mxu0 0.0
        %2261 = vmatprep.subr.mxu0 0.0
        %2262 = vmatpush2.msra.mxu0 0.0
        %2263 = vmatprep.subr.mxu0 0.0
        %2264 = vmatpush2.msra.mxu0 0.0
        %2265 = vmatprep.subr.mxu0 0.0
        %2266 = vmatpush2.msra.mxu0 0.0
        %2267 = vmatprep.subr.mxu0 0.0
        %2268 = vmatpush2.msra.mxu0 0.0
        %2269 = vmatprep.subr.mxu0 0.0
        %2270 = vmatpush2.msra.mxu0 0.0
        %2271 = vmatprep.subr.mxu0 0.0
        %2272 = vmatpush2.msra.mxu0 0.0
        %2273 = vmatprep.subr.mxu0 0.0
        %2274 = vmatpush2.msra.mxu0 0.0
        %2275 = vmatprep.mubr.f32.mxu0 0.0
        %2276 = vmatmul.mubr.f32.gmra.mxu0 %v2206
        %v2277 = vpop.f32.mrf.mxu0
        %v2278 = vadd.f32 0.0, %v2277
        %v2279 = vpop.f32.mrf.mxu0
        %2280 = vmatprep.mubr.f32.mxu0 0.0
        %2281 = vmatmul.mubr.f32.gmra.mxu0 %v2209
        %v2282 = vpop.f32.mrf.mxu0
        %v2283 = vadd.f32 0.0, %v2282
        %v2284 = vpop.f32.mrf.mxu0
        %2285 = vdwg.mxu0
        %2288 = vrot.lane.b32.xlu0 %v2278, 32
        %v2289 = vpop.permute.xlu0 %2288
        %2290 = vrot.lane.b32.xlu0 %v2283, 32
        %v2291 = vpop.permute.xlu0 %2290
        %vm2294 = vcmask 392448
        %2295 = vst.msk [vmem:[#allocation2] sm:$0xff] %vm2294, %v2289
        %2296 = vst.msk [vmem:[#allocation2 + $0x8] sm:$0xff] %vm2294, %v2291
        %2297 = vrot.lane.b32.xlu0 %v1674, 80
        %v2298 = vpop.permute.xlu0 %2297
        %2299 = vrot.lane.b32.xlu0 %v1675, 80
        %v2300 = vpop.permute.xlu0 %2299
        %2301 = vrot.lane.b32.xlu0 %v1676, 80
        %v2302 = vpop.permute.xlu0 %2301
        %v2303 = vsel %vm1679, %v2298, 0
        %v2305 = vsel %vm1679, %v2300, 0
        %v2307 = vsel %vm1679, %v2302, 0
        %2309 = vmatprep.subr.mxu0 0.0
        %2310 = vmatpush1.xpose.msra.mxu0 0.0
        %2311 = vmatprep.subr.mxu0 0.0
        %2312 = vmatpush1.xpose.msra.mxu0 0.0
        %2313 = vmatprep.subr.mxu0 0.0
        %2314 = vmatpush1.xpose.msra.mxu0 0.0
        %2315 = vmatprep.subr.mxu0 0.0
        %2316 = vmatpush1.xpose.msra.mxu0 0.0
        %2317 = vmatprep.subr.mxu0 0.0
        %2318 = vmatpush1.xpose.msra.mxu0 0.0
        %2319 = vmatprep.subr.mxu0 0.0
        %2320 = vmatpush1.xpose.msra.mxu0 0.0
        %2321 = vmatprep.subr.mxu0 0.0
        %2322 = vmatpush1.xpose.msra.mxu0 0.0
        %2323 = vmatprep.subr.mxu0 0.0
        %2324 = vmatpush1.xpose.msra.mxu0 0.0
        %2325 = vmatprep.subr.mxu0 0.0
        %2326 = vmatpush1.xpose.msra.mxu0 0.0
        %2327 = vmatprep.subr.mxu0 0.0
        %2328 = vmatpush1.xpose.msra.mxu0 0.0
        %2329 = vmatprep.subr.mxu0 0.0
        %2330 = vmatpush1.xpose.msra.mxu0 0.0
        %2331 = vmatprep.subr.mxu0 0.0
        %2332 = vmatpush1.xpose.msra.mxu0 0.0
        %2333 = vmatprep.subr.mxu0 0.0
        %2334 = vmatpush1.xpose.msra.mxu0 0.0
        %2335 = vmatprep.subr.mxu0 0.0
        %2336 = vmatpush1.xpose.msra.mxu0 0.0
        %2337 = vmatprep.subr.mxu0 0.0
        %2338 = vmatpush1.xpose.msra.mxu0 0.0
        %2339 = vmatprep.subr.mxu0 0.0
        %2340 = vmatpush1.xpose.msra.mxu0 %v2307
        %2341 = vmatprep.subr.mxu0 0.0
        %2342 = vmatpush2.xpose.msra.mxu0 0.0
        %2343 = vmatprep.subr.mxu0 0.0
        %2344 = vmatpush2.xpose.msra.mxu0 0.0
        %2345 = vmatprep.subr.mxu0 0.0
        %2346 = vmatpush2.xpose.msra.mxu0 0.0
        %2347 = vmatprep.subr.mxu0 0.0
        %2348 = vmatpush2.xpose.msra.mxu0 0.0
        %2349 = vmatprep.subr.mxu0 0.0
        %2350 = vmatpush2.xpose.msra.mxu0 0.0
        %2351 = vmatprep.subr.mxu0 0.0
        %2352 = vmatpush2.xpose.msra.mxu0 0.0
        %2353 = vmatprep.subr.mxu0 0.0
        %2354 = vmatpush2.xpose.msra.mxu0 0.0
        %2355 = vmatprep.subr.mxu0 0.0
        %2356 = vmatpush2.xpose.msra.mxu0 0.0
        %2357 = vmatprep.subr.mxu0 0.0
        %2358 = vmatpush2.xpose.msra.mxu0 0.0
        %2359 = vmatprep.subr.mxu0 0.0
        %2360 = vmatpush2.xpose.msra.mxu0 0.0
        %2361 = vmatprep.subr.mxu0 0.0
        %2362 = vmatpush2.xpose.msra.mxu0 0.0
        %2363 = vmatprep.subr.mxu0 0.0
        %2364 = vmatpush2.xpose.msra.mxu0 0.0
        %2365 = vmatprep.subr.mxu0 0.0
        %2366 = vmatpush2.xpose.msra.mxu0 0.0
        %2367 = vmatprep.subr.mxu0 0.0
        %2368 = vmatpush2.xpose.msra.mxu0 0.0
        %2369 = vmatprep.subr.mxu0 0.0
        %2370 = vmatpush2.xpose.msra.mxu0 0.0
        %2371 = vmatprep.subr.mxu0 0.0
        %2372 = vmatpush2.xpose.msra.mxu0 0.0
        %2373 = vmatprep.mubr.f32.mxu0 0.0
        %2374 = vmatmul.mubr.f32.gmra.mxu0 %v2303
        %v2375 = vpop.f32.mrf.mxu0
        %v2376 = vadd.f32 0.0, %v2375
        %v2377 = vpop.f32.mrf.mxu0
        %2378 = vmatprep.mubr.f32.mxu0 0.0
        %2379 = vmatmul.mubr.f32.gmra.mxu0 %v2305
        %v2380 = vpop.f32.mrf.mxu0
        %v2381 = vadd.f32 0.0, %v2380
        %v2382 = vpop.f32.mrf.mxu0
        %2383 = vdwg.mxu0
        %v2384 = vsel %vm1764, %v2376, -inf
        %2385 = vmax.xlane.f32.xlu0 %v2384
        %v2386 = vpop.xlane.xlu0 %2385
        %v2387 = vsel %vm1764, %v2381, -inf
        %2388 = vmax.xlane.f32.xlu0 %v2387
        %v2389 = vpop.xlane.xlu0 %2388
        %v2390 = vsub.f32 %v2376, %v2386
        %v2391 = vsub.f32 %v2381, %v2389
        %v2392 = vmul.f32 %v2390, 1.442695
        %v2393 = vpow.pop %v2392
        %v2394 = vmul.f32 %v2391, 1.442695
        %v2395 = vpow.pop %v2394
        %v2396 = vsel %vm1764, %v2393, 0.0
        %2397 = vadd.xlane.f32.xlu0 %v2396
        %v2398 = vpop.xlane.xlu0 %2397
        %v2399 = vsel %vm1764, %v2395, 0.0
        %2400 = vadd.xlane.f32.xlu0 %v2399
        %v2401 = vpop.xlane.xlu0 %2400
        %v2402 = vrcp.pop %v2398
        %v2403 = vrcp.pop %v2401
        %v2404 = vmul.f32 %v2398, %v2402
        %v2405 = vmul.f32 %v2401, %v2403
        %v2406 = vsub.f32 2.0, %v2404
        %v2407 = vsub.f32 2.0, %v2405
        %v2408 = vmul.f32 %v2402, %v2406
        %v2409 = vmul.f32 %v2403, %v2407
        %v2410 = vmul.f32 %v2393, %v2408
        %v2411 = vmul.f32 %v2395, %v2409
        %2412 = vrot.lane.b32.xlu0 %v1678, 80
        %v2413 = vpop.permute.xlu0 %2412
        %v2416 = vsel %vm1764, %v2410, 0
        %v2419 = vsel %vm1764, %v2411, 0
        %2421 = vmatprep.subr.mxu0 0.0
        %2422 = vmatpush1.msra.mxu0 0.0
        %2423 = vmatprep.subr.mxu0 0.0
        %2424 = vmatpush1.msra.mxu0 0.0
        %2425 = vmatprep.subr.mxu0 0.0
        %2426 = vmatpush1.msra.mxu0 0.0
        %2427 = vmatprep.subr.mxu0 0.0
        %2428 = vmatpush1.msra.mxu0 0.0
        %2429 = vmatprep.subr.mxu0 0.0
        %2430 = vmatpush1.msra.mxu0 0.0
        %2431 = vmatprep.subr.mxu0 0.0
        %2432 = vmatpush1.msra.mxu0 0.0
        %2433 = vmatprep.subr.mxu0 0.0
        %2434 = vmatpush1.msra.mxu0 0.0
        %2435 = vmatprep.subr.mxu0 0.0
        %2436 = vmatpush1.msra.mxu0 0.0
        %2437 = vmatprep.subr.mxu0 0.0
        %2438 = vmatpush1.msra.mxu0 0.0
        %2439 = vmatprep.subr.mxu0 0.0
        %2440 = vmatpush1.msra.mxu0 0.0
        %2441 = vmatprep.subr.mxu0 0.0
        %2442 = vmatpush1.msra.mxu0 0.0
        %2443 = vmatprep.subr.mxu0 0.0
        %2444 = vmatpush1.msra.mxu0 0.0
        %2445 = vmatprep.subr.mxu0 0.0
        %2446 = vmatpush1.msra.mxu0 0.0
        %2447 = vmatprep.subr.mxu0 0.0
        %2448 = vmatpush1.msra.mxu0 0.0
        %2449 = vmatprep.subr.mxu0 0.0
        %2450 = vmatpush1.msra.mxu0 0.0
        %2451 = vmatprep.subr.mxu0 0.0
        %2452 = vmatpush1.msra.mxu0 %v2413
        %2453 = vmatprep.subr.mxu0 0.0
        %2454 = vmatpush2.msra.mxu0 0.0
        %2455 = vmatprep.subr.mxu0 0.0
        %2456 = vmatpush2.msra.mxu0 0.0
        %2457 = vmatprep.subr.mxu0 0.0
        %2458 = vmatpush2.msra.mxu0 0.0
        %2459 = vmatprep.subr.mxu0 0.0
        %2460 = vmatpush2.msra.mxu0 0.0
        %2461 = vmatprep.subr.mxu0 0.0
        %2462 = vmatpush2.msra.mxu0 0.0
        %2463 = vmatprep.subr.mxu0 0.0
        %2464 = vmatpush2.msra.mxu0 0.0
        %2465 = vmatprep.subr.mxu0 0.0
        %2466 = vmatpush2.msra.mxu0 0.0
        %2467 = vmatprep.subr.mxu0 0.0
        %2468 = vmatpush2.msra.mxu0 0.0
        %2469 = vmatprep.subr.mxu0 0.0
        %2470 = vmatpush2.msra.mxu0 0.0
        %2471 = vmatprep.subr.mxu0 0.0
        %2472 = vmatpush2.msra.mxu0 0.0
        %2473 = vmatprep.subr.mxu0 0.0
        %2474 = vmatpush2.msra.mxu0 0.0
        %2475 = vmatprep.subr.mxu0 0.0
        %2476 = vmatpush2.msra.mxu0 0.0
        %2477 = vmatprep.subr.mxu0 0.0
        %2478 = vmatpush2.msra.mxu0 0.0
        %2479 = vmatprep.subr.mxu0 0.0
        %2480 = vmatpush2.msra.mxu0 0.0
        %2481 = vmatprep.subr.mxu0 0.0
        %2482 = vmatpush2.msra.mxu0 0.0
        %2483 = vmatprep.subr.mxu0 0.0
        %2484 = vmatpush2.msra.mxu0 0.0
        %2485 = vmatprep.mubr.f32.mxu0 0.0
        %2486 = vmatmul.mubr.f32.gmra.mxu0 %v2416
        %v2487 = vpop.f32.mrf.mxu0
        %v2488 = vadd.f32 0.0, %v2487
        %v2489 = vpop.f32.mrf.mxu0
        %2490 = vmatprep.mubr.f32.mxu0 0.0
        %2491 = vmatmul.mubr.f32.gmra.mxu0 %v2419
        %v2492 = vpop.f32.mrf.mxu0
        %v2493 = vadd.f32 0.0, %v2492
        %v2494 = vpop.f32.mrf.mxu0
        %2495 = vdwg.mxu0
        %2498 = vrot.lane.b32.xlu0 %v2488, 48
        %v2499 = vpop.permute.xlu0 %2498
        %2500 = vrot.lane.b32.xlu0 %v2493, 48
        %v2501 = vpop.permute.xlu0 %2500
        %vm2504 = vcmask 523648
        %2505 = vst.msk [vmem:[#allocation2] sm:$0xff] %vm2504, %v2499
        %2506 = vst.msk [vmem:[#allocation2 + $0x8] sm:$0xff] %vm2504, %v2501
        %v2507 = vld [vmem:[#allocation2] sm:$0xff]
        %v2508 = vld [vmem:[#allocation2 + $0x8] sm:$0xff]
        %v2509 = vld [vmem:[%s14] sm:$0xff]
        %v2510 = vld [vmem:[%s14 + $0x8] sm:$0xff]
        %v2511 = vld [vmem:[%s14 + $0x10] sm:$0xff]
        %v2512 = vld [vmem:[%s14 + $0x18] sm:$0xff]
        %v2513 = vld [vmem:[%s14 + $0x20] sm:$0xff]
        %v2514 = vld [vmem:[%s14 + $0x28] sm:$0xff]
        %v2515 = vld [vmem:[%s14 + $0x30] sm:$0xff]
        %v2516 = vld [vmem:[%s14 + $0x38] sm:$0xff]
        %v2517 = vld [vmem:[%s15] sm:$0x1]
        %v2519 = vlaneseq
        %v2520 = vshrl.u32 %v2519, 7
        %v2521 = vsub.s32 0, %v2520
        %v2522 = vrot.slane %v2517, %v2521
        %v2525 = vsel %vm1160, %v2507, 0
        %v2528 = vsel %vm1160, %v2508, 0
        %2530 = vmatprep.subr.mxu0 0.0
        %2531 = vmatpush1.msra.mxu0 0.0
        %2532 = vmatprep.subr.mxu0 0.0
        %2533 = vmatpush1.msra.mxu0 0.0
        %2534 = vmatprep.subr.mxu0 0.0
        %2535 = vmatpush1.msra.mxu0 0.0
        %2536 = vmatprep.subr.mxu0 0.0
        %2537 = vmatpush1.msra.mxu0 0.0
        %2538 = vmatprep.subr.mxu0 0.0
        %2539 = vmatpush1.msra.mxu0 0.0
        %2540 = vmatprep.subr.mxu0 0.0
        %2541 = vmatpush1.msra.mxu0 0.0
        %2542 = vmatprep.subr.mxu0 0.0
        %2543 = vmatpush1.msra.mxu0 0.0
        %2544 = vmatprep.subr.mxu0 0.0
        %2545 = vmatpush1.msra.mxu0 0.0
        %2546 = vmatprep.subr.mxu0 0.0
        %2547 = vmatpush1.msra.mxu0 %v2516
        %2548 = vmatprep.subr.mxu0 0.0
        %2549 = vmatpush1.msra.mxu0 %v2515
        %2550 = vmatprep.subr.mxu0 0.0
        %2551 = vmatpush1.msra.mxu0 %v2514
        %2552 = vmatprep.subr.mxu0 0.0
        %2553 = vmatpush1.msra.mxu0 %v2513
        %2554 = vmatprep.subr.mxu0 0.0
        %2555 = vmatpush1.msra.mxu0 %v2512
        %2556 = vmatprep.subr.mxu0 0.0
        %2557 = vmatpush1.msra.mxu0 %v2511
        %2558 = vmatprep.subr.mxu0 0.0
        %2559 = vmatpush1.msra.mxu0 %v2510
        %2560 = vmatprep.subr.mxu0 0.0
        %2561 = vmatpush1.msra.mxu0 %v2509
        %2562 = vmatprep.subr.mxu0 0.0
        %2563 = vmatpush2.msra.mxu0 0.0
        %2564 = vmatprep.subr.mxu0 0.0
        %2565 = vmatpush2.msra.mxu0 0.0
        %2566 = vmatprep.subr.mxu0 0.0
        %2567 = vmatpush2.msra.mxu0 0.0
        %2568 = vmatprep.subr.mxu0 0.0
        %2569 = vmatpush2.msra.mxu0 0.0
        %2570 = vmatprep.subr.mxu0 0.0
        %2571 = vmatpush2.msra.mxu0 0.0
        %2572 = vmatprep.subr.mxu0 0.0
        %2573 = vmatpush2.msra.mxu0 0.0
        %2574 = vmatprep.subr.mxu0 0.0
        %2575 = vmatpush2.msra.mxu0 0.0
        %2576 = vmatprep.subr.mxu0 0.0
        %2577 = vmatpush2.msra.mxu0 0.0
        %2578 = vmatprep.subr.mxu0 0.0
        %2579 = vmatpush2.msra.mxu0 0.0
        %2580 = vmatprep.subr.mxu0 0.0
        %2581 = vmatpush2.msra.mxu0 0.0
        %2582 = vmatprep.subr.mxu0 0.0
        %2583 = vmatpush2.msra.mxu0 0.0
        %2584 = vmatprep.subr.mxu0 0.0
        %2585 = vmatpush2.msra.mxu0 0.0
        %2586 = vmatprep.subr.mxu0 0.0
        %2587 = vmatpush2.msra.mxu0 0.0
        %2588 = vmatprep.subr.mxu0 0.0
        %2589 = vmatpush2.msra.mxu0 0.0
        %2590 = vmatprep.subr.mxu0 0.0
        %2591 = vmatpush2.msra.mxu0 0.0
        %2592 = vmatprep.subr.mxu0 0.0
        %2593 = vmatpush2.msra.mxu0 0.0
        %2594 = vmatprep.mubr.f32.mxu0 0.0
        %2595 = vmatmul.mubr.f32.gmra.mxu0 %v2525
        %v2596 = vpop.f32.mrf.mxu0
        %v2597 = vadd.f32 %v2522, %v2596
        %v2598 = vpop.f32.mrf.mxu0
        %2599 = vmatprep.mubr.f32.mxu0 0.0
        %2600 = vmatmul.mubr.f32.gmra.mxu0 %v2528
        %v2601 = vpop.f32.mrf.mxu0
        %v2602 = vadd.f32 %v2522, %v2601
        %v2603 = vpop.f32.mrf.mxu0
        %2604 = vdwg.mxu0
        %v2605 = vadd.f32 %v724, %v2597
        %v2606 = vadd.f32 %v725, %v2602
        %v2607 = vld [vmem:[%s16] sm:$0x1]
        %v2608 = vld [vmem:[%s17] sm:$0x1]
        %v2609 = vsel %vm1160, %v2605, 0.0
        %2610 = vadd.xlane.f32.xlu0 %v2609
        %v2611 = vpop.xlane.xlu0 %2610
        %v2612 = vsel %vm1160, %v2606, 0.0
        %2613 = vadd.xlane.f32.xlu0 %v2612
        %v2614 = vpop.xlane.xlu0 %2613
        %v2615 = vmul.f32 %v2611, %v1167
        %v2616 = vmul.f32 %v2614, %v1167
        %v2617 = vsub.f32 %v2605, %v2615
        %v2618 = vsub.f32 %v2606, %v2616
        %v2619 = vmul.f32 %v2617, %v2617
        %v2620 = vmul.f32 %v2618, %v2618
        %v2621 = vsel %vm1160, %v2619, 0.0
        %2622 = vadd.xlane.f32.xlu0 %v2621
        %v2623 = vpop.xlane.xlu0 %2622
        %v2624 = vsel %vm1160, %v2620, 0.0
        %2625 = vadd.xlane.f32.xlu0 %v2624
        %v2626 = vpop.xlane.xlu0 %2625
        %v2627 = vmul.f32 %v2623, %v1167
        %v2628 = vmul.f32 %v2626, %v1167
        %v2629 = vadd.f32 %v2627, 1e-05
        %v2630 = vadd.f32 %v2628, 1e-05
        %v2631 = vrsqrt.pop %v2629
        %v2632 = vrsqrt.pop %v2630
        %v2633 = vmul.f32 %v2617, %v2631
        %v2634 = vmul.f32 %v2618, %v2632
        %v2636 = vlaneseq
        %v2637 = vshrl.u32 %v2636, 7
        %v2638 = vsub.s32 0, %v2637
        %v2639 = vrot.slane %v2607, %v2638
        %v2641 = vmul.f32 %v2633, %v2639
        %v2642 = vmul.f32 %v2634, %v2639
        %v2644 = vlaneseq
        %v2645 = vshrl.u32 %v2644, 7
        %v2646 = vsub.s32 0, %v2645
        %v2647 = vrot.slane %v2608, %v2646
        %v2649 = vadd.f32 %v2641, %v2647
        %v2650 = vadd.f32 %v2642, %v2647
        %v2651 = vld [vmem:[%s18] sm:$0xff]
        %v2652 = vld [vmem:[%s18 + $0x8] sm:$0xff]
        %v2653 = vld [vmem:[%s18 + $0x10] sm:$0xff]
        %v2654 = vld [vmem:[%s18 + $0x18] sm:$0xff]
        %v2655 = vld [vmem:[%s18 + $0x20] sm:$0xff]
        %v2656 = vld [vmem:[%s18 + $0x28] sm:$0xff]
        %v2657 = vld [vmem:[%s18 + $0x30] sm:$0xff]
        %v2658 = vld [vmem:[%s18 + $0x38] sm:$0xff]
        %v2659 = vld [vmem:[%s18 + $0x40] sm:$0xff]
        %v2660 = vld [vmem:[%s18 + $0x48] sm:$0xff]
        %v2661 = vld [vmem:[%s18 + $0x50] sm:$0xff]
        %v2662 = vld [vmem:[%s18 + $0x58] sm:$0xff]
        %v2663 = vld [vmem:[%s18 + $0x60] sm:$0xff]
        %v2664 = vld [vmem:[%s18 + $0x68] sm:$0xff]
        %v2665 = vld [vmem:[%s18 + $0x70] sm:$0xff]
        %v2666 = vld [vmem:[%s18 + $0x78] sm:$0xff]
        %v2667 = vld [vmem:[%s19] sm:$0x3]
        %v2669 = vlaneseq
        %v2670 = vshrl.u32 %v2669, 7
        %v2671 = vsub.s32 0, %v2670
        %v2672 = vrot.slane %v2667, %v2671
        %v2673 = vlaneseq
        %v2674 = vshrl.u32 %v2673, 7
        %v2675 = vsub.s32 1, %v2674
        %v2676 = vrot.slane %v2667, %v2675
        %v2680 = vsel %vm1160, %v2649, 0
        %v2683 = vsel %vm1160, %v2650, 0
        %2685 = vmatprep.subr.mxu0 0.0
        %2686 = vmatpush1.msra.mxu0 0.0
        %2687 = vmatprep.subr.mxu0 0.0
        %2688 = vmatpush1.msra.mxu0 0.0
        %2689 = vmatprep.subr.mxu0 0.0
        %2690 = vmatpush1.msra.mxu0 0.0
        %2691 = vmatprep.subr.mxu0 0.0
        %2692 = vmatpush1.msra.mxu0 0.0
        %2693 = vmatprep.subr.mxu0 0.0
        %2694 = vmatpush1.msra.mxu0 0.0
        %2695 = vmatprep.subr.mxu0 0.0
        %2696 = vmatpush1.msra.mxu0 0.0
        %2697 = vmatprep.subr.mxu0 0.0
        %2698 = vmatpush1.msra.mxu0 0.0
        %2699 = vmatprep.subr.mxu0 0.0
        %2700 = vmatpush1.msra.mxu0 0.0
        %2701 = vmatprep.subr.mxu0 %v2666
        %2702 = vmatpush1.msra.mxu0 %v2665
        %2703 = vmatprep.subr.mxu0 %v2664
        %2704 = vmatpush1.msra.mxu0 %v2663
        %2705 = vmatprep.subr.mxu0 %v2662
        %2706 = vmatpush1.msra.mxu0 %v2661
        %2707 = vmatprep.subr.mxu0 %v2660
        %2708 = vmatpush1.msra.mxu0 %v2659
        %2709 = vmatprep.subr.mxu0 %v2658
        %2710 = vmatpush1.msra.mxu0 %v2657
        %2711 = vmatprep.subr.mxu0 %v2656
        %2712 = vmatpush1.msra.mxu0 %v2655
        %2713 = vmatprep.subr.mxu0 %v2654
        %2714 = vmatpush1.msra.mxu0 %v2653
        %2715 = vmatprep.subr.mxu0 %v2652
        %2716 = vmatpush1.msra.mxu0 %v2651
        %2717 = vmatprep.subr.mxu0 0.0
        %2718 = vmatpush2.msra.mxu0 0.0
        %2719 = vmatprep.subr.mxu0 0.0
        %2720 = vmatpush2.msra.mxu0 0.0
        %2721 = vmatprep.subr.mxu0 0.0
        %2722 = vmatpush2.msra.mxu0 0.0
        %2723 = vmatprep.subr.mxu0 0.0
        %2724 = vmatpush2.msra.mxu0 0.0
        %2725 = vmatprep.subr.mxu0 0.0
        %2726 = vmatpush2.msra.mxu0 0.0
        %2727 = vmatprep.subr.mxu0 0.0
        %2728 = vmatpush2.msra.mxu0 0.0
        %2729 = vmatprep.subr.mxu0 0.0
        %2730 = vmatpush2.msra.mxu0 0.0
        %2731 = vmatprep.subr.mxu0 0.0
        %2732 = vmatpush2.msra.mxu0 0.0
        %2733 = vmatprep.subr.mxu0 0.0
        %2734 = vmatpush2.msra.mxu0 0.0
        %2735 = vmatprep.subr.mxu0 0.0
        %2736 = vmatpush2.msra.mxu0 0.0
        %2737 = vmatprep.subr.mxu0 0.0
        %2738 = vmatpush2.msra.mxu0 0.0
        %2739 = vmatprep.subr.mxu0 0.0
        %2740 = vmatpush2.msra.mxu0 0.0
        %2741 = vmatprep.subr.mxu0 0.0
        %2742 = vmatpush2.msra.mxu0 0.0
        %2743 = vmatprep.subr.mxu0 0.0
        %2744 = vmatpush2.msra.mxu0 0.0
        %2745 = vmatprep.subr.mxu0 0.0
        %2746 = vmatpush2.msra.mxu0 0.0
        %2747 = vmatprep.subr.mxu0 0.0
        %2748 = vmatpush2.msra.mxu0 0.0
        %2749 = vmatprep.mubr.f32.mxu0 0.0
        %2750 = vmatmul.mubr.f32.gmra.mxu0 %v2680
        %v2751 = vpop.f32.mrf.mxu0
        %v2752 = vadd.f32 %v2672, %v2751
        %v2753 = vpop.f32.mrf.mxu0
        %v2754 = vadd.f32 %v2676, %v2753
        %2755 = vmatprep.mubr.f32.mxu0 0.0
        %2756 = vmatmul.mubr.f32.gmra.mxu0 %v2683
        %v2757 = vpop.f32.mrf.mxu0
        %v2758 = vadd.f32 %v2672, %v2757
        %v2759 = vpop.f32.mrf.mxu0
        %v2760 = vadd.f32 %v2676, %v2759
        %2761 = vdwg.mxu0
        %v2762 = vmul.f32 %v2752, 0.5
        %v2763 = vmul.f32 %v2754, 0.5
        %v2764 = vmul.f32 %v2758, 0.5
        %v2765 = vmul.f32 %v2760, 0.5
        %v2766 = vmul.f32 %v2752, 0.70710677
        %v2767 = vmul.f32 %v2754, 0.70710677
        %v2768 = vmul.f32 %v2758, 0.70710677
        %v2769 = vmul.f32 %v2760, 0.70710677
        %v2770 = verf.f32.pop %v2766
        %v2771 = verf.f32.pop %v2767
        %v2772 = verf.f32.pop %v2768
        %v2773 = verf.f32.pop %v2769
        %v2774 = vadd.f32 %v2770, 1.0
        %v2775 = vadd.f32 %v2771, 1.0
        %v2776 = vadd.f32 %v2772, 1.0
        %v2777 = vadd.f32 %v2773, 1.0
        %v2778 = vmul.f32 %v2762, %v2774
        %v2779 = vmul.f32 %v2763, %v2775
        %v2780 = vmul.f32 %v2764, %v2776
        %v2781 = vmul.f32 %v2765, %v2777
        %v2782 = vld [vmem:[%s20] sm:$0xff]
        %v2783 = vld [vmem:[%s20 + $0x8] sm:$0xff]
        %v2784 = vld [vmem:[%s20 + $0x10] sm:$0xff]
        %v2785 = vld [vmem:[%s20 + $0x18] sm:$0xff]
        %v2786 = vld [vmem:[%s20 + $0x20] sm:$0xff]
        %v2787 = vld [vmem:[%s20 + $0x28] sm:$0xff]
        %v2788 = vld [vmem:[%s20 + $0x30] sm:$0xff]
        %v2789 = vld [vmem:[%s20 + $0x38] sm:$0xff]
        %v2790 = vld [vmem:[%s20 + $0x40] sm:$0xff]
        %v2791 = vld [vmem:[%s20 + $0x48] sm:$0xff]
        %v2792 = vld [vmem:[%s20 + $0x50] sm:$0xff]
        %v2793 = vld [vmem:[%s20 + $0x58] sm:$0xff]
        %v2794 = vld [vmem:[%s20 + $0x60] sm:$0xff]
        %v2795 = vld [vmem:[%s20 + $0x68] sm:$0xff]
        %v2796 = vld [vmem:[%s20 + $0x70] sm:$0xff]
        %v2797 = vld [vmem:[%s20 + $0x78] sm:$0xff]
        %v2798 = vld [vmem:[%s20 + $0x80] sm:$0xff]
        %v2799 = vld [vmem:[%s20 + $0x88] sm:$0xff]
        %v2800 = vld [vmem:[%s20 + $0x90] sm:$0xff]
        %v2801 = vld [vmem:[%s20 + $0x98] sm:$0xff]
        %v2802 = vld [vmem:[%s20 + $0xa0] sm:$0xff]
        %v2803 = vld [vmem:[%s20 + $0xa8] sm:$0xff]
        %v2804 = vld [vmem:[%s20 + $0xb0] sm:$0xff]
        %v2805 = vld [vmem:[%s20 + $0xb8] sm:$0xff]
        %v2806 = vld [vmem:[%s20 + $0xc0] sm:$0xff]
        %v2807 = vld [vmem:[%s20 + $0xc8] sm:$0xff]
        %v2808 = vld [vmem:[%s20 + $0xd0] sm:$0xff]
        %v2809 = vld [vmem:[%s20 + $0xd8] sm:$0xff]
        %v2810 = vld [vmem:[%s20 + $0xe0] sm:$0xff]
        %v2811 = vld [vmem:[%s20 + $0xe8] sm:$0xff]
        %v2812 = vld [vmem:[%s20 + $0xf0] sm:$0xff]
        %v2813 = vld [vmem:[%s20 + $0xf8] sm:$0xff]
        %v2814 = vld [vmem:[%s21] sm:$0x1]
        %v2816 = vlaneseq
        %v2817 = vshrl.u32 %v2816, 7
        %v2818 = vsub.s32 0, %v2817
        %v2819 = vrot.slane %v2814, %v2818
        %2821 = vmatprep.subr.mxu0 0.0
        %2822 = vmatpush1.msra.mxu0 %v2797
        %2823 = vmatprep.subr.mxu0 0.0
        %2824 = vmatpush1.msra.mxu0 %v2796
        %2825 = vmatprep.subr.mxu0 0.0
        %2826 = vmatpush1.msra.mxu0 %v2795
        %2827 = vmatprep.subr.mxu0 0.0
        %2828 = vmatpush1.msra.mxu0 %v2794
        %2829 = vmatprep.subr.mxu0 0.0
        %2830 = vmatpush1.msra.mxu0 %v2793
        %2831 = vmatprep.subr.mxu0 0.0
        %2832 = vmatpush1.msra.mxu0 %v2792
        %2833 = vmatprep.subr.mxu0 0.0
        %2834 = vmatpush1.msra.mxu0 %v2791
        %2835 = vmatprep.subr.mxu0 0.0
        %2836 = vmatpush1.msra.mxu0 %v2790
        %2837 = vmatprep.subr.mxu0 0.0
        %2838 = vmatpush1.msra.mxu0 %v2789
        %2839 = vmatprep.subr.mxu0 0.0
        %2840 = vmatpush1.msra.mxu0 %v2788
        %2841 = vmatprep.subr.mxu0 0.0
        %2842 = vmatpush1.msra.mxu0 %v2787
        %2843 = vmatprep.subr.mxu0 0.0
        %2844 = vmatpush1.msra.mxu0 %v2786
        %2845 = vmatprep.subr.mxu0 0.0
        %2846 = vmatpush1.msra.mxu0 %v2785
        %2847 = vmatprep.subr.mxu0 0.0
        %2848 = vmatpush1.msra.mxu0 %v2784
        %2849 = vmatprep.subr.mxu0 0.0
        %2850 = vmatpush1.msra.mxu0 %v2783
        %2851 = vmatprep.subr.mxu0 0.0
        %2852 = vmatpush1.msra.mxu0 %v2782
        %2853 = vmatprep.subr.mxu0 0.0
        %2854 = vmatpush2.msra.mxu0 %v2813
        %2855 = vmatprep.subr.mxu0 0.0
        %2856 = vmatpush2.msra.mxu0 %v2812
        %2857 = vmatprep.subr.mxu0 0.0
        %2858 = vmatpush2.msra.mxu0 %v2811
        %2859 = vmatprep.subr.mxu0 0.0
        %2860 = vmatpush2.msra.mxu0 %v2810
        %2861 = vmatprep.subr.mxu0 0.0
        %2862 = vmatpush2.msra.mxu0 %v2809
        %2863 = vmatprep.subr.mxu0 0.0
        %2864 = vmatpush2.msra.mxu0 %v2808
        %2865 = vmatprep.subr.mxu0 0.0
        %2866 = vmatpush2.msra.mxu0 %v2807
        %2867 = vmatprep.subr.mxu0 0.0
        %2868 = vmatpush2.msra.mxu0 %v2806
        %2869 = vmatprep.subr.mxu0 0.0
        %2870 = vmatpush2.msra.mxu0 %v2805
        %2871 = vmatprep.subr.mxu0 0.0
        %2872 = vmatpush2.msra.mxu0 %v2804
        %2873 = vmatprep.subr.mxu0 0.0
        %2874 = vmatpush2.msra.mxu0 %v2803
        %2875 = vmatprep.subr.mxu0 0.0
        %2876 = vmatpush2.msra.mxu0 %v2802
        %2877 = vmatprep.subr.mxu0 0.0
        %2878 = vmatpush2.msra.mxu0 %v2801
        %2879 = vmatprep.subr.mxu0 0.0
        %2880 = vmatpush2.msra.mxu0 %v2800
        %2881 = vmatprep.subr.mxu0 0.0
        %2882 = vmatpush2.msra.mxu0 %v2799
        %2883 = vmatprep.subr.mxu0 0.0
        %2884 = vmatpush2.msra.mxu0 %v2798
        %2885 = vmatprep.mubr.f32.mxu0 %v2779
        %2886 = vmatmul.mubr.f32.gmra.mxu0 %v2778
        %v2887 = vpop.f32.mrf.mxu0
        %v2888 = vadd.f32 %v2819, %v2887
        %v2889 = vpop.f32.mrf.mxu0
        %2890 = vmatprep.mubr.f32.mxu0 %v2781
        %2891 = vmatmul.mubr.f32.gmra.mxu0 %v2780
        %v2892 = vpop.f32.mrf.mxu0
        %v2893 = vadd.f32 %v2819, %v2892
        %v2894 = vpop.f32.mrf.mxu0
        %2895 = vdwg.mxu0
        %v2896 = vadd.f32 %v2605, %v2888
        %v2897 = vadd.f32 %v2606, %v2893
        %2898 = vst.msk [vmem:[%s709] sm:$0xff] %vm1160, %v2896
        %2899 = vst.msk [vmem:[%s709 + $0x8] sm:$0xff] %vm1160, %v2897
        %s2900 = sand.u32 %s532, 1
        %s2901 = scalar_lea.sflag [#allocation5], %s2900
        %s2902 = sand.u32 %s532, 1
        %s2903 = smul.addr %s2902, 16
        %s2904 = scalar_lea.vmem [#allocation4], %s2903
        // Predicated region
        $region113: #{tpu_custom_call.1} parent=107 // pred_check
          %p2905 = pneg %p542
        $region114: #{tpu_custom_call.1} parent=107 // pred_check_branch
          %2907 = sbr.rel (%p2905) target = $region116
        $region115: #{tpu_custom_call.1} parent=107 // pred_region
          %s2908 = sadd.s32 %s40, %s41
          %s2909 = smul.u32 2, %s2908
          %s2911 = ssub.s32 256, 256
          %2912 = vsyncadd %s2901, %s2911
          %s2913 = smul.addr %s2909, 128
          %s2914 = scalar_lea.hbm %s22, %s2913
          %s2915 = sshll.u32 %s2904, 4
          %s2916 = int_to_ptr.vmem [resolvable:$true] %s2915
          %2921 = dma.vmem_to_hbm [thread:$0]  %s2916, 256, %s2914, %s2901, 128, 128, 8
        $region116: #{tpu_custom_call.1} parent=107 // pred_fallthru
          _
      $region108: #{tpu_custom_call.1} parent=5 // pred_fallthru
        _
      %p2922 = scmp.le.s32.totalorder 2, %s31
      // Predicated region
      $region117: #{tpu_custom_call.1} parent=5 // pred_check
        %p2923 = pneg %p2922
      $region118: #{tpu_custom_call.1} parent=5 // pred_check_branch
        %2925 = sbr.rel (%p2923) target = $region120
      $region119: #{tpu_custom_call.1} parent=5 // pred_region
        %s2926 = ssub.s32 %s31, 2
        // Predicated region
        $region121: #{tpu_custom_call.1} parent=119 // pred_check
          %p2927 = pneg %p548
        $region122: #{tpu_custom_call.1} parent=119 // pred_check_branch
          %2929 = sbr.rel (%p2927) target = $region124
        $region123: #{tpu_custom_call.1} parent=119 // pred_region
          %s2930 = sand.u32 %s533, 1
          %s2931 = scalar_lea.sflag [#allocation5], %s2930
          %s2932 = sand.u32 %s533, 1
          %s2933 = smul.addr %s2932, 16
          %s2934 = scalar_lea.vmem [#allocation4], %s2933
          %2935 = dma.done %s2931, 256
        $region124: #{tpu_custom_call.1} parent=119 // pred_fallthru
          _
      $region120: #{tpu_custom_call.1} parent=5 // pred_fallthru
        _
    $region6: #{tpu_custom_call.1} parent=1 // loop_footer
      %s35 = sadd.s32 1, %s31
    $region7: #{tpu_custom_call.1} parent=1 // loop_footer_branch
      %30 = sbr.rel target = $region3
    $region8: #{tpu_custom_call.1} parent=1 // loop_exit
      _
    %2936 = vsyncpa [#allocation5], 1
    %s2937 = scalar_lea.sflag [#allocation5], 1
    %2938 = vsyncpa %s2937, 1

</llo_original>
